<compile_context>
chip_gen: v5e
topology: v5e:2x2
jax: 0.10.0
libtpu: 0.0.40
codegen_flags: <defaults>
</compile_context>

<pallas_src>
import functools
import math

import jax
import jax.numpy as jnp
import numpy as np
from jax import lax
from jax.experimental import pallas as pl
from jax.experimental.pallas import tpu as pltpu

# ------------------------- synthetic CLIP text config -------------------------
N_CLS = 8          # number of prompts (rows of `prompts`)
SEQ = 8            # token context length
CTX_DIM = 32       # transformer width (ln_final.weight.shape[0])
HEADS = 4
HEAD_DIM = CTX_DIM // HEADS
MLP_DIM = 4 * CTX_DIM
LAYERS = 2         # transformer.resblocks
EMBED_DIM = 32     # text_projection output dim
LN_EPS = 1e-5
NEG_INF = -1e30
DTYPE = jnp.float32


# ------------------------------ fused Pallas kernel ------------------------------
def _text_encoder_kernel(n_layers, n_heads, head_dim, scale,
                         prompts_ref, pos_ref, eot_ref,
                         ln1_g_ref, ln1_b_ref,
                         wqkv_ref, bqkv_ref, wo_ref, bo_ref,
                         ln2_g_ref, ln2_b_ref,
                         w1_ref, b1_ref, w2_ref, b2_ref,
                         lnf_g_ref, lnf_b_ref, wproj_ref,
                         out_ref):
    n_cls, seq, dim = prompts_ref.shape
    rows = n_cls * seq

    def layer_norm(x, g, b):
        mu = jnp.mean(x, axis=-1, keepdims=True)
        xc = x - mu
        var = jnp.mean(xc * xc, axis=-1, keepdims=True)
        return xc * lax.rsqrt(var + LN_EPS) * g + b

    # x = prompts + positional_embedding   (pos passed as (1, S, D))
    x = prompts_ref[...].astype(jnp.float32) + pos_ref[...].astype(jnp.float32)
    x = x.reshape(rows, dim)

    # additive causal bias shared by all layers / heads (computed once)
    row_ids = lax.broadcasted_iota(jnp.int32, (1, seq, seq), 1)
    col_ids = lax.broadcasted_iota(jnp.int32, (1, seq, seq), 2)
    causal_bias = jnp.where(col_ids <= row_ids, 0.0, NEG_INF)        # (1, S, S)

    for l in range(n_layers):
        # ---------------- multi-head causal self-attention ----------------
        h = layer_norm(x, ln1_g_ref[l], ln1_b_ref[l])
        # one fused QKV matmul for all heads: (rows, D) @ (D, 3D)
        qkv = jnp.dot(h, wqkv_ref[l], preferred_element_type=jnp.float32) + bqkv_ref[l]
        o_heads = []
        for hd in range(n_heads):
            base = hd * head_dim
            q = (qkv[:, base:base + head_dim] * scale).reshape(n_cls, seq, head_dim)
            k = qkv[:, dim + base:dim + base + head_dim].reshape(n_cls, seq, head_dim)
            v = qkv[:, 2 * dim + base:2 * dim + base + head_dim].reshape(n_cls, seq, head_dim)
            s = jnp.einsum('nqd,nkd->nqk', q, k,
                           preferred_element_type=jnp.float32)        # (N, S, S)
            s = s + causal_bias
            m = jnp.max(s, axis=-1, keepdims=True)
            e = jnp.exp(s - m)
            p = e * pl.reciprocal(jnp.sum(e, axis=-1, keepdims=True), approx=True)
            o = jnp.einsum('nqk,nkd->nqd', p, v,
                           preferred_element_type=jnp.float32)        # (N, S, Dh)
            o_heads.append(o.reshape(rows, head_dim))
        # one fused out-projection: (rows, D) @ (D, D)
        o_cat = jnp.concatenate(o_heads, axis=-1)                     # (rows, D)
        x = x + jnp.dot(o_cat, wo_ref[l], preferred_element_type=jnp.float32) + bo_ref[l]

        # ------------------------- MLP (QuickGELU) -------------------------
        h = layer_norm(x, ln2_g_ref[l], ln2_b_ref[l])
        h = jnp.dot(h, w1_ref[l], preferred_element_type=jnp.float32) + b1_ref[l]
        h = h * jax.nn.sigmoid(1.702 * h)
        h = jnp.dot(h, w2_ref[l], preferred_element_type=jnp.float32) + b2_ref[l]
        x = x + h

    # ln_final + EOT-token gather (one-hot masked reduction) + text_projection
    x = layer_norm(x, lnf_g_ref[...], lnf_b_ref[...]).reshape(n_cls, seq, dim)
    tok_pos = lax.broadcasted_iota(jnp.int32, (n_cls, seq, 1), 1)
    onehot = jnp.where(tok_pos == eot_ref[...], 1.0, 0.0)             # (N, S, 1)
    gathered = jnp.sum(x * onehot, axis=1)                            # (N, D)
    out_ref[...] = jnp.dot(gathered, wproj_ref[...],
                           preferred_element_type=jnp.float32).astype(out_ref.dtype)


def text_encoder(prompts, tokenized_prompts, params):
    """TextEncoder.forward(prompts, tokenized_prompts) — fully fused."""
    n_cls, seq, dim = prompts.shape
    L, H, Dh = LAYERS, HEADS, HEAD_DIM
    eot_idx = jnp.argmax(tokenized_prompts, axis=-1).astype(jnp.int32)
    eot_idx = eot_idx.reshape(n_cls, 1, 1)
    scale = 1.0 / math.sqrt(Dh)

    # Fuse the per-head QKV / out-projection weights (head-major along lanes)
    # outside the kernel so the kernel performs one (D x 3D) and one (D x D)
    # matmul per layer instead of 3*H + H tiny per-head matmuls.
    def fuse_w(w):   # (L, H, D, Dh) -> (L, D, H*Dh)
        return jnp.transpose(w, (0, 2, 1, 3)).reshape(L, dim, H * Dh)

    def fuse_b(b):   # (L, H, 1, Dh) -> (L, 1, H*Dh)
        return jnp.transpose(b, (0, 2, 1, 3)).reshape(L, 1, H * Dh)

    wqkv = jnp.concatenate(
        [fuse_w(params["wq"]), fuse_w(params["wk"]), fuse_w(params["wv"])], axis=-1)
    bqkv = jnp.concatenate(
        [fuse_b(params["bq"]), fuse_b(params["bk"]), fuse_b(params["bv"])], axis=-1)
    wo_fused = params["wo"].reshape(L, H * Dh, dim)                    # (L, D, D)

    inputs = (
        prompts.astype(DTYPE), params["pos"], eot_idx,
        params["ln1_g"], params["ln1_b"],
        wqkv, bqkv, wo_fused, params["bo"],
        params["ln2_g"], params["ln2_b"],
        params["w1"], params["b1"], params["w2"], params["b2"],
        params["lnf_g"], params["lnf_b"], params["text_proj"],
    )
    vmem_spec = pl.BlockSpec(memory_space=pltpu.MemorySpace.VMEM)
    kernel = functools.partial(_text_encoder_kernel, LAYERS, HEADS, HEAD_DIM, scale)
    return pl.pallas_call(
        kernel,
        out_shape=jax.ShapeDtypeStruct((n_cls, EMBED_DIM), DTYPE),
        in_specs=[vmem_spec] * len(inputs),
        out_specs=vmem_spec,
    )(*inputs)


# ------------------------------ pure-JAX reference ------------------------------
def text_encoder_ref(prompts, tokenized_prompts, params):
    n_cls, seq, dim = prompts.shape
    scale = 1.0 / math.sqrt(HEAD_DIM)
    eot = jnp.argmax(tokenized_prompts, axis=-1)

    def ln(x, g, b):
        mu = jnp.mean(x, -1, keepdims=True)
        var = jnp.mean((x - mu) ** 2, -1, keepdims=True)
        return (x - mu) * lax.rsqrt(var + LN_EPS) * g + b

    x = prompts + params["pos"][0][None]
    x = x.reshape(n_cls * seq, dim)
    mask = jnp.tril(jnp.ones((seq, seq), bool))[None]
    for l in range(LAYERS):
        h = ln(x, params["ln1_g"][l], params["ln1_b"][l])
        attn = jnp.zeros_like(x)
        for hd in range(HEADS):
            q = (h @ params["wq"][l, hd] + params["bq"][l, hd]) * scale
            k = h @ params["wk"][l, hd] + params["bk"][l, hd]
            v = h @ params["wv"][l, hd] + params["bv"][l, hd]
            q = q.reshape(n_cls, seq, HEAD_DIM)
            k = k.reshape(n_cls, seq, HEAD_DIM)
            v = v.reshape(n_cls, seq, HEAD_DIM)
            s = jnp.einsum('nqd,nkd->nqk', q, k)
            s = jnp.where(mask, s, NEG_INF)
            p = jax.nn.softmax(s, axis=-1)
            o = jnp.einsum('nqk,nkd->nqd', p, v).reshape(n_cls * seq, HEAD_DIM)
            attn = attn + o @ params["wo"][l, hd]
        x = x + attn + params["bo"][l]
        h = ln(x, params["ln2_g"][l], params["ln2_b"][l])
        h = h @ params["w1"][l] + params["b1"][l]
        h = h * jax.nn.sigmoid(1.702 * h)
        x = x + h @ params["w2"][l] + params["b2"][l]
    x = ln(x, params["lnf_g"], params["lnf_b"]).reshape(n_cls, seq, dim)
    x = x[jnp.arange(n_cls), eot]
    return x @ params["text_proj"]


# ------------------------------ parameter init ------------------------------
def init_params(key):
    ks = iter(jax.random.split(key, 16))

    def nrm(shape, std=0.02):
        return (std * jax.random.normal(next(ks), shape, jnp.float32)).astype(DTYPE)

    L, H, D, Dh, F = LAYERS, HEADS, CTX_DIM, HEAD_DIM, MLP_DIM
    return {
        "pos": nrm((1, SEQ, D), 0.01),
        "ln1_g": jnp.ones((L, 1, D), DTYPE), "ln1_b": jnp.zeros((L, 1, D), DTYPE),
        # per-head in-projection / out-projection layout (fused head-major in
        # the wrapper before the kernel call)
        "wq": nrm((L, H, D, Dh)), "bq": nrm((L, H, 1, Dh), 0.01),
        "wk": nrm((L, H, D, Dh)), "bk": nrm((L, H, 1, Dh), 0.01),
        "wv": nrm((L, H, D, Dh)), "bv": nrm((L, H, 1, Dh), 0.01),
        "wo": nrm((L, H, Dh, D)), "bo": nrm((L, 1, D), 0.01),
        "ln2_g": jnp.ones((L, 1, D), DTYPE), "ln2_b": jnp.zeros((L, 1, D), DTYPE),
        "w1": nrm((L, D, F)), "b1": nrm((L, 1, F), 0.01),
        "w2": nrm((L, F, D)), "b2": nrm((L, 1, D), 0.01),
        "lnf_g": jnp.ones((1, D), DTYPE), "lnf_b": jnp.zeros((1, D), DTYPE),
        "text_proj": nrm((D, EMBED_DIM)),
    }


if __name__ == "__main__":
    key = jax.random.PRNGKey(0)
    pkey, xkey, tkey = jax.random.split(key, 3)
    params = init_params(pkey)

    prompts = 0.02 * jax.random.normal(xkey, (N_CLS, SEQ, CTX_DIM), dtype=jnp.float32)
    # tokenized prompts: small random ids with the EOT token (max id) at a
    # per-prompt position; argmax(-1) recovers the gather index.
    eot_pos = jnp.array([7, 5, 6, 3, 7, 4, 2, 6], jnp.int32)[:N_CLS]
    tok = jax.random.randint(tkey, (N_CLS, SEQ), 1, 1000, dtype=jnp.int32)
    tok = tok.at[jnp.arange(N_CLS), eot_pos].set(49407)

    out = jax.jit(text_encoder)(prompts, tok, params)
    jax.block_until_ready(out)

    assert out.shape == (N_CLS, EMBED_DIM), out.shape
    assert bool(jnp.all(jnp.isfinite(out)))

    with jax.default_matmul_precision("float32"):
        ref = jax.jit(text_encoder_ref)(prompts, tok, params)
    np.testing.assert_allclose(np.asarray(out), np.asarray(ref), rtol=5e-2, atol=5e-3)

    # TODO(synk): clip_model checkpoint weights are synthetic; only the
    # TextEncoder forward semantics are reproduced here.
    print("KERNEL_OK")
</pallas_src>

<mosaic_0001>
module attributes {stable_mosaic.version = 11 : i64} {
  func.func @_text_encoder_kernel(%arg0: memref<8x8x32xf32, #tpu.memory_space<vmem>>, %arg1: memref<1x8x32xf32, #tpu.memory_space<vmem>>, %arg2: memref<8x1x1xi32, #tpu.memory_space<vmem>>, %arg3: memref<2x1x32xf32, #tpu.memory_space<vmem>>, %arg4: memref<2x1x32xf32, #tpu.memory_space<vmem>>, %arg5: memref<2x32x96xf32, #tpu.memory_space<vmem>>, %arg6: memref<2x1x96xf32, #tpu.memory_space<vmem>>, %arg7: memref<2x32x32xf32, #tpu.memory_space<vmem>>, %arg8: memref<2x1x32xf32, #tpu.memory_space<vmem>>, %arg9: memref<2x1x32xf32, #tpu.memory_space<vmem>>, %arg10: memref<2x1x32xf32, #tpu.memory_space<vmem>>, %arg11: memref<2x32x128xf32, #tpu.memory_space<vmem>>, %arg12: memref<2x1x128xf32, #tpu.memory_space<vmem>>, %arg13: memref<2x128x32xf32, #tpu.memory_space<vmem>>, %arg14: memref<2x1x32xf32, #tpu.memory_space<vmem>>, %arg15: memref<1x32xf32, #tpu.memory_space<vmem>>, %arg16: memref<1x32xf32, #tpu.memory_space<vmem>>, %arg17: memref<32x32xf32, #tpu.memory_space<vmem>>, %arg18: memref<8x32xf32, #tpu.memory_space<vmem>>) attributes {dimension_semantics = [], scalar_prefetch = 0 : i64, scratch_operands = 0 : i64, tpu.core_type = #tpu.core_type<tc>} {
    %c0 = arith.constant 0 : index
    %c0_0 = arith.constant 0 : index
    %c0_1 = arith.constant 0 : index
    %0 = vector.load %arg0[%c0, %c0_0, %c0_1] : memref<8x8x32xf32, #tpu.memory_space<vmem>>, vector<8x8x32xf32>
    %c0_2 = arith.constant 0 : index
    %c0_3 = arith.constant 0 : index
    %c0_4 = arith.constant 0 : index
    %1 = vector.load %arg1[%c0_2, %c0_3, %c0_4] : memref<1x8x32xf32, #tpu.memory_space<vmem>>, vector<1x8x32xf32>
    %2 = vector.broadcast %1 : vector<1x8x32xf32> to vector<8x8x32xf32>
    %3 = arith.addf %0, %2 : vector<8x8x32xf32>
    %4 = vector.shape_cast %3 : vector<8x8x32xf32> to vector<64x32xf32>
    %5 = tpu.iota {dimensions = array<i32: 1>} : vector<1x8x8xi32>
    %6 = tpu.iota {dimensions = array<i32: 2>} : vector<1x8x8xi32>
    %7 = arith.cmpi sle, %6, %5 : vector<1x8x8xi32>
    %cst = arith.constant 0.000000e+00 : f32
    %cst_5 = arith.constant -1.000000e+30 : f32
    %8 = vector.broadcast %cst : f32 to vector<1x8x8xf32>
    %9 = vector.broadcast %cst_5 : f32 to vector<1x8x8xf32>
    %10 = arith.select %7, %8, %9 : vector<1x8x8xi1>, vector<1x8x8xf32>
    %c0_6 = arith.constant 0 : index
    %c0_7 = arith.constant 0 : index
    %c0_8 = arith.constant 0 : index
    %11 = vector.load %arg3[%c0_6, %c0_7, %c0_8] : memref<2x1x32xf32, #tpu.memory_space<vmem>>, vector<1x1x32xf32>
    %12 = vector.shape_cast %11 : vector<1x1x32xf32> to vector<1x32xf32>
    %c0_9 = arith.constant 0 : index
    %c0_10 = arith.constant 0 : index
    %c0_11 = arith.constant 0 : index
    %13 = vector.load %arg4[%c0_9, %c0_10, %c0_11] : memref<2x1x32xf32, #tpu.memory_space<vmem>>, vector<1x1x32xf32>
    %14 = vector.shape_cast %13 : vector<1x1x32xf32> to vector<1x32xf32>
    %cst_12 = arith.constant dense<0.000000e+00> : vector<64xf32>
    %15 = vector.multi_reduction <add>, %4, %cst_12 [1] : vector<64x32xf32> to vector<64xf32>
    %16 = vector.shape_cast %15 : vector<64xf32> to vector<64x1xf32>
    %cst_13 = arith.constant 3.200000e+01 : f32
    %17 = vector.broadcast %cst_13 : f32 to vector<64x1xf32>
    %18 = arith.divf %16, %17 : vector<64x1xf32>
    %19 = vector.broadcast %18 : vector<64x1xf32> to vector<64x32xf32>
    %20 = arith.subf %4, %19 : vector<64x32xf32>
    %21 = arith.mulf %20, %20 : vector<64x32xf32>
    %cst_14 = arith.constant dense<0.000000e+00> : vector<64xf32>
    %22 = vector.multi_reduction <add>, %21, %cst_14 [1] : vector<64x32xf32> to vector<64xf32>
    %23 = vector.shape_cast %22 : vector<64xf32> to vector<64x1xf32>
    %cst_15 = arith.constant 3.200000e+01 : f32
    %24 = vector.broadcast %cst_15 : f32 to vector<64x1xf32>
    %25 = arith.divf %23, %24 : vector<64x1xf32>
    %cst_16 = arith.constant 9.99999974E-6 : f32
    %26 = vector.broadcast %cst_16 : f32 to vector<64x1xf32>
    %27 = arith.addf %25, %26 : vector<64x1xf32>
    %28 = math.rsqrt %27 : vector<64x1xf32>
    %29 = vector.broadcast %28 : vector<64x1xf32> to vector<64x32xf32>
    %30 = arith.mulf %20, %29 : vector<64x32xf32>
    %31 = vector.broadcast %12 : vector<1x32xf32> to vector<64x32xf32>
    %32 = arith.mulf %30, %31 : vector<64x32xf32>
    %33 = vector.broadcast %14 : vector<1x32xf32> to vector<64x32xf32>
    %34 = arith.addf %32, %33 : vector<64x32xf32>
    %c0_17 = arith.constant 0 : index
    %c0_18 = arith.constant 0 : index
    %c0_19 = arith.constant 0 : index
    %35 = vector.load %arg5[%c0_17, %c0_18, %c0_19] : memref<2x32x96xf32, #tpu.memory_space<vmem>>, vector<1x32x96xf32>
    %36 = vector.shape_cast %35 : vector<1x32x96xf32> to vector<32x96xf32>
    %cst_20 = arith.constant dense<0.000000e+00> : vector<64x96xf32>
    %37 = tpu.matmul %34, %36, %cst_20 {dimension_numbers = #tpu.dot_dimension_numbers<[1], [0], [0], [1], [0, 0, 1, 1], [], []>} : vector<64x32xf32>, vector<32x96xf32>, vector<64x96xf32> -> vector<64x96xf32>
    %c0_21 = arith.constant 0 : index
    %c0_22 = arith.constant 0 : index
    %c0_23 = arith.constant 0 : index
    %38 = vector.load %arg6[%c0_21, %c0_22, %c0_23] : memref<2x1x96xf32, #tpu.memory_space<vmem>>, vector<1x1x96xf32>
    %39 = vector.shape_cast %38 : vector<1x1x96xf32> to vector<1x96xf32>
    %40 = vector.broadcast %39 : vector<1x96xf32> to vector<64x96xf32>
    %41 = arith.addf %37, %40 : vector<64x96xf32>
    %42 = vector.extract_strided_slice %41 {offsets = [0, 0], sizes = [64, 8], strides = [1, 1]} : vector<64x96xf32> to vector<64x8xf32>
    %cst_24 = arith.constant 0.353553385 : f32
    %43 = vector.broadcast %cst_24 : f32 to vector<64x8xf32>
    %44 = arith.mulf %42, %43 : vector<64x8xf32>
    %45 = vector.shape_cast %44 : vector<64x8xf32> to vector<8x8x8xf32>
    %46 = vector.extract_strided_slice %41 {offsets = [0, 32], sizes = [64, 8], strides = [1, 1]} : vector<64x96xf32> to vector<64x8xf32>
    %47 = vector.shape_cast %46 : vector<64x8xf32> to vector<8x8x8xf32>
    %48 = vector.extract_strided_slice %41 {offsets = [0, 64], sizes = [64, 8], strides = [1, 1]} : vector<64x96xf32> to vector<64x8xf32>
    %49 = vector.shape_cast %48 : vector<64x8xf32> to vector<8x8x8xf32>
    "tpu.trace_start"() <{level = 10 : i32, message = "nqd,nkd->nqk"}> : () -> ()
    %cst_25 = arith.constant dense<0.000000e+00> : vector<8x8x8xf32>
    %50 = tpu.matmul %45, %47, %cst_25 {dimension_numbers = #tpu.dot_dimension_numbers<[2], [2], [1], [1], [0, 0, 0, 1, 1, 1], [0], [0]>} : vector<8x8x8xf32>, vector<8x8x8xf32>, vector<8x8x8xf32> -> vector<8x8x8xf32>
    "tpu.trace_stop"() : () -> ()
    %51 = vector.broadcast %10 : vector<1x8x8xf32> to vector<8x8x8xf32>
    %52 = arith.addf %50, %51 : vector<8x8x8xf32>
    %cst_26 = arith.constant dense<0xFF800000> : vector<8x8xf32>
    %53 = vector.multi_reduction <maximumf>, %52, %cst_26 [2] : vector<8x8x8xf32> to vector<8x8xf32>
    %54 = vector.shape_cast %53 : vector<8x8xf32> to vector<8x8x1xf32>
    %55 = vector.broadcast %54 : vector<8x8x1xf32> to vector<8x8x8xf32>
    %56 = arith.subf %52, %55 : vector<8x8x8xf32>
    %57 = math.exp %56 : vector<8x8x8xf32>
    %cst_27 = arith.constant dense<0.000000e+00> : vector<8x8xf32>
    %58 = vector.multi_reduction <add>, %57, %cst_27 [2] : vector<8x8x8xf32> to vector<8x8xf32>
    %59 = vector.shape_cast %58 : vector<8x8xf32> to vector<8x8x1xf32>
    %60 = tpu.reciprocal %59 {approx = true} : vector<8x8x1xf32> -> vector<8x8x1xf32>
    %61 = vector.broadcast %60 : vector<8x8x1xf32> to vector<8x8x8xf32>
    %62 = arith.mulf %57, %61 : vector<8x8x8xf32>
    "tpu.trace_start"() <{level = 10 : i32, message = "nqk,nkd->nqd"}> : () -> ()
    %cst_28 = arith.constant dense<0.000000e+00> : vector<8x8x8xf32>
    %63 = tpu.matmul %62, %49, %cst_28 {dimension_numbers = #tpu.dot_dimension_numbers<[2], [1], [1], [2], [0, 0, 0, 1, 1, 2], [0], [0]>} : vector<8x8x8xf32>, vector<8x8x8xf32>, vector<8x8x8xf32> -> vector<8x8x8xf32>
    "tpu.trace_stop"() : () -> ()
    %64 = vector.shape_cast %63 : vector<8x8x8xf32> to vector<64x8xf32>
    %65 = vector.extract_strided_slice %41 {offsets = [0, 8], sizes = [64, 8], strides = [1, 1]} : vector<64x96xf32> to vector<64x8xf32>
    %cst_29 = arith.constant 0.353553385 : f32
    %66 = vector.broadcast %cst_29 : f32 to vector<64x8xf32>
    %67 = arith.mulf %65, %66 : vector<64x8xf32>
    %68 = vector.shape_cast %67 : vector<64x8xf32> to vector<8x8x8xf32>
    %69 = vector.extract_strided_slice %41 {offsets = [0, 40], sizes = [64, 8], strides = [1, 1]} : vector<64x96xf32> to vector<64x8xf32>
    %70 = vector.shape_cast %69 : vector<64x8xf32> to vector<8x8x8xf32>
    %71 = vector.extract_strided_slice %41 {offsets = [0, 72], sizes = [64, 8], strides = [1, 1]} : vector<64x96xf32> to vector<64x8xf32>
    %72 = vector.shape_cast %71 : vector<64x8xf32> to vector<8x8x8xf32>
    "tpu.trace_start"() <{level = 10 : i32, message = "nqd,nkd->nqk"}> : () -> ()
    %cst_30 = arith.constant dense<0.000000e+00> : vector<8x8x8xf32>
    %73 = tpu.matmul %68, %70, %cst_30 {dimension_numbers = #tpu.dot_dimension_numbers<[2], [2], [1], [1], [0, 0, 0, 1, 1, 1], [0], [0]>} : vector<8x8x8xf32>, vector<8x8x8xf32>, vector<8x8x8xf32> -> vector<8x8x8xf32>
    "tpu.trace_stop"() : () -> ()
    %74 = vector.broadcast %10 : vector<1x8x8xf32> to vector<8x8x8xf32>
    %75 = arith.addf %73, %74 : vector<8x8x8xf32>
    %cst_31 = arith.constant dense<0xFF800000> : vector<8x8xf32>
    %76 = vector.multi_reduction <maximumf>, %75, %cst_31 [2] : vector<8x8x8xf32> to vector<8x8xf32>
    %77 = vector.shape_cast %76 : vector<8x8xf32> to vector<8x8x1xf32>
    %78 = vector.broadcast %77 : vector<8x8x1xf32> to vector<8x8x8xf32>
    %79 = arith.subf %75, %78 : vector<8x8x8xf32>
    %80 = math.exp %79 : vector<8x8x8xf32>
    %cst_32 = arith.constant dense<0.000000e+00> : vector<8x8xf32>
    %81 = vector.multi_reduction <add>, %80, %cst_32 [2] : vector<8x8x8xf32> to vector<8x8xf32>
    %82 = vector.shape_cast %81 : vector<8x8xf32> to vector<8x8x1xf32>
    %83 = tpu.reciprocal %82 {approx = true} : vector<8x8x1xf32> -> vector<8x8x1xf32>
    %84 = vector.broadcast %83 : vector<8x8x1xf32> to vector<8x8x8xf32>
    %85 = arith.mulf %80, %84 : vector<8x8x8xf32>
    "tpu.trace_start"() <{level = 10 : i32, message = "nqk,nkd->nqd"}> : () -> ()
    %cst_33 = arith.constant dense<0.000000e+00> : vector<8x8x8xf32>
    %86 = tpu.matmul %85, %72, %cst_33 {dimension_numbers = #tpu.dot_dimension_numbers<[2], [1], [1], [2], [0, 0, 0, 1, 1, 2], [0], [0]>} : vector<8x8x8xf32>, vector<8x8x8xf32>, vector<8x8x8xf32> -> vector<8x8x8xf32>
    "tpu.trace_stop"() : () -> ()
    %87 = vector.shape_cast %86 : vector<8x8x8xf32> to vector<64x8xf32>
    %88 = vector.extract_strided_slice %41 {offsets = [0, 16], sizes = [64, 8], strides = [1, 1]} : vector<64x96xf32> to vector<64x8xf32>
    %cst_34 = arith.constant 0.353553385 : f32
    %89 = vector.broadcast %cst_34 : f32 to vector<64x8xf32>
    %90 = arith.mulf %88, %89 : vector<64x8xf32>
    %91 = vector.shape_cast %90 : vector<64x8xf32> to vector<8x8x8xf32>
    %92 = vector.extract_strided_slice %41 {offsets = [0, 48], sizes = [64, 8], strides = [1, 1]} : vector<64x96xf32> to vector<64x8xf32>
    %93 = vector.shape_cast %92 : vector<64x8xf32> to vector<8x8x8xf32>
    %94 = vector.extract_strided_slice %41 {offsets = [0, 80], sizes = [64, 8], strides = [1, 1]} : vector<64x96xf32> to vector<64x8xf32>
    %95 = vector.shape_cast %94 : vector<64x8xf32> to vector<8x8x8xf32>
    "tpu.trace_start"() <{level = 10 : i32, message = "nqd,nkd->nqk"}> : () -> ()
    %cst_35 = arith.constant dense<0.000000e+00> : vector<8x8x8xf32>
    %96 = tpu.matmul %91, %93, %cst_35 {dimension_numbers = #tpu.dot_dimension_numbers<[2], [2], [1], [1], [0, 0, 0, 1, 1, 1], [0], [0]>} : vector<8x8x8xf32>, vector<8x8x8xf32>, vector<8x8x8xf32> -> vector<8x8x8xf32>
    "tpu.trace_stop"() : () -> ()
    %97 = vector.broadcast %10 : vector<1x8x8xf32> to vector<8x8x8xf32>
    %98 = arith.addf %96, %97 : vector<8x8x8xf32>
    %cst_36 = arith.constant dense<0xFF800000> : vector<8x8xf32>
    %99 = vector.multi_reduction <maximumf>, %98, %cst_36 [2] : vector<8x8x8xf32> to vector<8x8xf32>
    %100 = vector.shape_cast %99 : vector<8x8xf32> to vector<8x8x1xf32>
    %101 = vector.broadcast %100 : vector<8x8x1xf32> to vector<8x8x8xf32>
    %102 = arith.subf %98, %101 : vector<8x8x8xf32>
    %103 = math.exp %102 : vector<8x8x8xf32>
    %cst_37 = arith.constant dense<0.000000e+00> : vector<8x8xf32>
    %104 = vector.multi_reduction <add>, %103, %cst_37 [2] : vector<8x8x8xf32> to vector<8x8xf32>
    %105 = vector.shape_cast %104 : vector<8x8xf32> to vector<8x8x1xf32>
    %106 = tpu.reciprocal %105 {approx = true} : vector<8x8x1xf32> -> vector<8x8x1xf32>
    %107 = vector.broadcast %106 : vector<8x8x1xf32> to vector<8x8x8xf32>
    %108 = arith.mulf %103, %107 : vector<8x8x8xf32>
    "tpu.trace_start"() <{level = 10 : i32, message = "nqk,nkd->nqd"}> : () -> ()
    %cst_38 = arith.constant dense<0.000000e+00> : vector<8x8x8xf32>
    %109 = tpu.matmul %108, %95, %cst_38 {dimension_numbers = #tpu.dot_dimension_numbers<[2], [1], [1], [2], [0, 0, 0, 1, 1, 2], [0], [0]>} : vector<8x8x8xf32>, vector<8x8x8xf32>, vector<8x8x8xf32> -> vector<8x8x8xf32>
    "tpu.trace_stop"() : () -> ()
    %110 = vector.shape_cast %109 : vector<8x8x8xf32> to vector<64x8xf32>
    %111 = vector.extract_strided_slice %41 {offsets = [0, 24], sizes = [64, 8], strides = [1, 1]} : vector<64x96xf32> to vector<64x8xf32>
    %cst_39 = arith.constant 0.353553385 : f32
    %112 = vector.broadcast %cst_39 : f32 to vector<64x8xf32>
    %113 = arith.mulf %111, %112 : vector<64x8xf32>
    %114 = vector.shape_cast %113 : vector<64x8xf32> to vector<8x8x8xf32>
    %115 = vector.extract_strided_slice %41 {offsets = [0, 56], sizes = [64, 8], strides = [1, 1]} : vector<64x96xf32> to vector<64x8xf32>
    %116 = vector.shape_cast %115 : vector<64x8xf32> to vector<8x8x8xf32>
    %117 = vector.extract_strided_slice %41 {offsets = [0, 88], sizes = [64, 8], strides = [1, 1]} : vector<64x96xf32> to vector<64x8xf32>
    %118 = vector.shape_cast %117 : vector<64x8xf32> to vector<8x8x8xf32>
    "tpu.trace_start"() <{level = 10 : i32, message = "nqd,nkd->nqk"}> : () -> ()
    %cst_40 = arith.constant dense<0.000000e+00> : vector<8x8x8xf32>
    %119 = tpu.matmul %114, %116, %cst_40 {dimension_numbers = #tpu.dot_dimension_numbers<[2], [2], [1], [1], [0, 0, 0, 1, 1, 1], [0], [0]>} : vector<8x8x8xf32>, vector<8x8x8xf32>, vector<8x8x8xf32> -> vector<8x8x8xf32>
    "tpu.trace_stop"() : () -> ()
    %120 = vector.broadcast %10 : vector<1x8x8xf32> to vector<8x8x8xf32>
    %121 = arith.addf %119, %120 : vector<8x8x8xf32>
    %cst_41 = arith.constant dense<0xFF800000> : vector<8x8xf32>
    %122 = vector.multi_reduction <maximumf>, %121, %cst_41 [2] : vector<8x8x8xf32> to vector<8x8xf32>
    %123 = vector.shape_cast %122 : vector<8x8xf32> to vector<8x8x1xf32>
    %124 = vector.broadcast %123 : vector<8x8x1xf32> to vector<8x8x8xf32>
    %125 = arith.subf %121, %124 : vector<8x8x8xf32>
    %126 = math.exp %125 : vector<8x8x8xf32>
    %cst_42 = arith.constant dense<0.000000e+00> : vector<8x8xf32>
    %127 = vector.multi_reduction <add>, %126, %cst_42 [2] : vector<8x8x8xf32> to vector<8x8xf32>
    %128 = vector.shape_cast %127 : vector<8x8xf32> to vector<8x8x1xf32>
    %129 = tpu.reciprocal %128 {approx = true} : vector<8x8x1xf32> -> vector<8x8x1xf32>
    %130 = vector.broadcast %129 : vector<8x8x1xf32> to vector<8x8x8xf32>
    %131 = arith.mulf %126, %130 : vector<8x8x8xf32>
    "tpu.trace_start"() <{level = 10 : i32, message = "nqk,nkd->nqd"}> : () -> ()
    %cst_43 = arith.constant dense<0.000000e+00> : vector<8x8x8xf32>
    %132 = tpu.matmul %131, %118, %cst_43 {dimension_numbers = #tpu.dot_dimension_numbers<[2], [1], [1], [2], [0, 0, 0, 1, 1, 2], [0], [0]>} : vector<8x8x8xf32>, vector<8x8x8xf32>, vector<8x8x8xf32> -> vector<8x8x8xf32>
    "tpu.trace_stop"() : () -> ()
    %133 = vector.shape_cast %132 : vector<8x8x8xf32> to vector<64x8xf32>
    %134 = tpu.concatenate %64, %87, %110, %133 in 1 : vector<64x8xf32>, vector<64x8xf32>, vector<64x8xf32>, vector<64x8xf32> -> vector<64x32xf32>
    %c0_44 = arith.constant 0 : index
    %c0_45 = arith.constant 0 : index
    %c0_46 = arith.constant 0 : index
    %135 = vector.load %arg7[%c0_44, %c0_45, %c0_46] : memref<2x32x32xf32, #tpu.memory_space<vmem>>, vector<1x32x32xf32>
    %136 = vector.shape_cast %135 : vector<1x32x32xf32> to vector<32x32xf32>
    %cst_47 = arith.constant dense<0.000000e+00> : vector<64x32xf32>
    %137 = tpu.matmul %134, %136, %cst_47 {dimension_numbers = #tpu.dot_dimension_numbers<[1], [0], [0], [1], [0, 0, 1, 1], [], []>} : vector<64x32xf32>, vector<32x32xf32>, vector<64x32xf32> -> vector<64x32xf32>
    %138 = arith.addf %4, %137 : vector<64x32xf32>
    %c0_48 = arith.constant 0 : index
    %c0_49 = arith.constant 0 : index
    %c0_50 = arith.constant 0 : index
    %139 = vector.load %arg8[%c0_48, %c0_49, %c0_50] : memref<2x1x32xf32, #tpu.memory_space<vmem>>, vector<1x1x32xf32>
    %140 = vector.shape_cast %139 : vector<1x1x32xf32> to vector<1x32xf32>
    %141 = vector.broadcast %140 : vector<1x32xf32> to vector<64x32xf32>
    %142 = arith.addf %138, %141 : vector<64x32xf32>
    %c0_51 = arith.constant 0 : index
    %c0_52 = arith.constant 0 : index
    %c0_53 = arith.constant 0 : index
    %143 = vector.load %arg9[%c0_51, %c0_52, %c0_53] : memref<2x1x32xf32, #tpu.memory_space<vmem>>, vector<1x1x32xf32>
    %144 = vector.shape_cast %143 : vector<1x1x32xf32> to vector<1x32xf32>
    %c0_54 = arith.constant 0 : index
    %c0_55 = arith.constant 0 : index
    %c0_56 = arith.constant 0 : index
    %145 = vector.load %arg10[%c0_54, %c0_55, %c0_56] : memref<2x1x32xf32, #tpu.memory_space<vmem>>, vector<1x1x32xf32>
    %146 = vector.shape_cast %145 : vector<1x1x32xf32> to vector<1x32xf32>
    %cst_57 = arith.constant dense<0.000000e+00> : vector<64xf32>
    %147 = vector.multi_reduction <add>, %142, %cst_57 [1] : vector<64x32xf32> to vector<64xf32>
    %148 = vector.shape_cast %147 : vector<64xf32> to vector<64x1xf32>
    %cst_58 = arith.constant 3.200000e+01 : f32
    %149 = vector.broadcast %cst_58 : f32 to vector<64x1xf32>
    %150 = arith.divf %148, %149 : vector<64x1xf32>
    %151 = vector.broadcast %150 : vector<64x1xf32> to vector<64x32xf32>
    %152 = arith.subf %142, %151 : vector<64x32xf32>
    %153 = arith.mulf %152, %152 : vector<64x32xf32>
    %cst_59 = arith.constant dense<0.000000e+00> : vector<64xf32>
    %154 = vector.multi_reduction <add>, %153, %cst_59 [1] : vector<64x32xf32> to vector<64xf32>
    %155 = vector.shape_cast %154 : vector<64xf32> to vector<64x1xf32>
    %cst_60 = arith.constant 3.200000e+01 : f32
    %156 = vector.broadcast %cst_60 : f32 to vector<64x1xf32>
    %157 = arith.divf %155, %156 : vector<64x1xf32>
    %cst_61 = arith.constant 9.99999974E-6 : f32
    %158 = vector.broadcast %cst_61 : f32 to vector<64x1xf32>
    %159 = arith.addf %157, %158 : vector<64x1xf32>
    %160 = math.rsqrt %159 : vector<64x1xf32>
    %161 = vector.broadcast %160 : vector<64x1xf32> to vector<64x32xf32>
    %162 = arith.mulf %152, %161 : vector<64x32xf32>
    %163 = vector.broadcast %144 : vector<1x32xf32> to vector<64x32xf32>
    %164 = arith.mulf %162, %163 : vector<64x32xf32>
    %165 = vector.broadcast %146 : vector<1x32xf32> to vector<64x32xf32>
    %166 = arith.addf %164, %165 : vector<64x32xf32>
    %c0_62 = arith.constant 0 : index
    %c0_63 = arith.constant 0 : index
    %c0_64 = arith.constant 0 : index
    %167 = vector.load %arg11[%c0_62, %c0_63, %c0_64] : memref<2x32x128xf32, #tpu.memory_space<vmem>>, vector<1x32x128xf32>
    %168 = vector.shape_cast %167 : vector<1x32x128xf32> to vector<32x128xf32>
    %cst_65 = arith.constant dense<0.000000e+00> : vector<64x128xf32>
    %169 = tpu.matmul %166, %168, %cst_65 {dimension_numbers = #tpu.dot_dimension_numbers<[1], [0], [0], [1], [0, 0, 1, 1], [], []>} : vector<64x32xf32>, vector<32x128xf32>, vector<64x128xf32> -> vector<64x128xf32>
    %c0_66 = arith.constant 0 : index
    %c0_67 = arith.constant 0 : index
    %c0_68 = arith.constant 0 : index
    %170 = vector.load %arg12[%c0_66, %c0_67, %c0_68] : memref<2x1x128xf32, #tpu.memory_space<vmem>>, vector<1x1x128xf32>
    %171 = vector.shape_cast %170 : vector<1x1x128xf32> to vector<1x128xf32>
    %172 = vector.broadcast %171 : vector<1x128xf32> to vector<64x128xf32>
    %173 = arith.addf %169, %172 : vector<64x128xf32>
    %cst_69 = arith.constant 1.702000e+00 : f32
    %174 = vector.broadcast %cst_69 : f32 to vector<64x128xf32>
    %175 = arith.mulf %174, %173 : vector<64x128xf32>
    %176 = arith.negf %175 : vector<64x128xf32>
    %177 = math.exp %176 : vector<64x128xf32>
    %cst_70 = arith.constant 1.000000e+00 : f32
    %178 = vector.broadcast %cst_70 : f32 to vector<64x128xf32>
    %179 = arith.addf %178, %177 : vector<64x128xf32>
    %180 = arith.divf %178, %179 : vector<64x128xf32>
    %181 = arith.mulf %173, %180 : vector<64x128xf32>
    %c0_71 = arith.constant 0 : index
    %c0_72 = arith.constant 0 : index
    %c0_73 = arith.constant 0 : index
    %182 = vector.load %arg13[%c0_71, %c0_72, %c0_73] : memref<2x128x32xf32, #tpu.memory_space<vmem>>, vector<1x128x32xf32>
    %183 = vector.shape_cast %182 : vector<1x128x32xf32> to vector<128x32xf32>
    %cst_74 = arith.constant dense<0.000000e+00> : vector<64x32xf32>
    %184 = tpu.matmul %181, %183, %cst_74 {dimension_numbers = #tpu.dot_dimension_numbers<[1], [0], [0], [1], [0, 0, 1, 1], [], []>} : vector<64x128xf32>, vector<128x32xf32>, vector<64x32xf32> -> vector<64x32xf32>
    %c0_75 = arith.constant 0 : index
    %c0_76 = arith.constant 0 : index
    %c0_77 = arith.constant 0 : index
    %185 = vector.load %arg14[%c0_75, %c0_76, %c0_77] : memref<2x1x32xf32, #tpu.memory_space<vmem>>, vector<1x1x32xf32>
    %186 = vector.shape_cast %185 : vector<1x1x32xf32> to vector<1x32xf32>
    %187 = vector.broadcast %186 : vector<1x32xf32> to vector<64x32xf32>
    %188 = arith.addf %184, %187 : vector<64x32xf32>
    %189 = arith.addf %142, %188 : vector<64x32xf32>
    %c1 = arith.constant 1 : index
    %c0_78 = arith.constant 0 : index
    %c0_79 = arith.constant 0 : index
    %190 = vector.load %arg3[%c1, %c0_78, %c0_79] : memref<2x1x32xf32, #tpu.memory_space<vmem>>, vector<1x1x32xf32>
    %191 = vector.shape_cast %190 : vector<1x1x32xf32> to vector<1x32xf32>
    %c1_80 = arith.constant 1 : index
    %c0_81 = arith.constant 0 : index
    %c0_82 = arith.constant 0 : index
    %192 = vector.load %arg4[%c1_80, %c0_81, %c0_82] : memref<2x1x32xf32, #tpu.memory_space<vmem>>, vector<1x1x32xf32>
    %193 = vector.shape_cast %192 : vector<1x1x32xf32> to vector<1x32xf32>
    %cst_83 = arith.constant dense<0.000000e+00> : vector<64xf32>
    %194 = vector.multi_reduction <add>, %189, %cst_83 [1] : vector<64x32xf32> to vector<64xf32>
    %195 = vector.shape_cast %194 : vector<64xf32> to vector<64x1xf32>
    %cst_84 = arith.constant 3.200000e+01 : f32
    %196 = vector.broadcast %cst_84 : f32 to vector<64x1xf32>
    %197 = arith.divf %195, %196 : vector<64x1xf32>
    %198 = vector.broadcast %197 : vector<64x1xf32> to vector<64x32xf32>
    %199 = arith.subf %189, %198 : vector<64x32xf32>
    %200 = arith.mulf %199, %199 : vector<64x32xf32>
    %cst_85 = arith.constant dense<0.000000e+00> : vector<64xf32>
    %201 = vector.multi_reduction <add>, %200, %cst_85 [1] : vector<64x32xf32> to vector<64xf32>
    %202 = vector.shape_cast %201 : vector<64xf32> to vector<64x1xf32>
    %cst_86 = arith.constant 3.200000e+01 : f32
    %203 = vector.broadcast %cst_86 : f32 to vector<64x1xf32>
    %204 = arith.divf %202, %203 : vector<64x1xf32>
    %cst_87 = arith.constant 9.99999974E-6 : f32
    %205 = vector.broadcast %cst_87 : f32 to vector<64x1xf32>
    %206 = arith.addf %204, %205 : vector<64x1xf32>
    %207 = math.rsqrt %206 : vector<64x1xf32>
    %208 = vector.broadcast %207 : vector<64x1xf32> to vector<64x32xf32>
    %209 = arith.mulf %199, %208 : vector<64x32xf32>
    %210 = vector.broadcast %191 : vector<1x32xf32> to vector<64x32xf32>
    %211 = arith.mulf %209, %210 : vector<64x32xf32>
    %212 = vector.broadcast %193 : vector<1x32xf32> to vector<64x32xf32>
    %213 = arith.addf %211, %212 : vector<64x32xf32>
    %c1_88 = arith.constant 1 : index
    %c0_89 = arith.constant 0 : index
    %c0_90 = arith.constant 0 : index
    %214 = vector.load %arg5[%c1_88, %c0_89, %c0_90] : memref<2x32x96xf32, #tpu.memory_space<vmem>>, vector<1x32x96xf32>
    %215 = vector.shape_cast %214 : vector<1x32x96xf32> to vector<32x96xf32>
    %cst_91 = arith.constant dense<0.000000e+00> : vector<64x96xf32>
    %216 = tpu.matmul %213, %215, %cst_91 {dimension_numbers = #tpu.dot_dimension_numbers<[1], [0], [0], [1], [0, 0, 1, 1], [], []>} : vector<64x32xf32>, vector<32x96xf32>, vector<64x96xf32> -> vector<64x96xf32>
    %c1_92 = arith.constant 1 : index
    %c0_93 = arith.constant 0 : index
    %c0_94 = arith.constant 0 : index
    %217 = vector.load %arg6[%c1_92, %c0_93, %c0_94] : memref<2x1x96xf32, #tpu.memory_space<vmem>>, vector<1x1x96xf32>
    %218 = vector.shape_cast %217 : vector<1x1x96xf32> to vector<1x96xf32>
    %219 = vector.broadcast %218 : vector<1x96xf32> to vector<64x96xf32>
    %220 = arith.addf %216, %219 : vector<64x96xf32>
    %221 = vector.extract_strided_slice %220 {offsets = [0, 0], sizes = [64, 8], strides = [1, 1]} : vector<64x96xf32> to vector<64x8xf32>
    %cst_95 = arith.constant 0.353553385 : f32
    %222 = vector.broadcast %cst_95 : f32 to vector<64x8xf32>
    %223 = arith.mulf %221, %222 : vector<64x8xf32>
    %224 = vector.shape_cast %223 : vector<64x8xf32> to vector<8x8x8xf32>
    %225 = vector.extract_strided_slice %220 {offsets = [0, 32], sizes = [64, 8], strides = [1, 1]} : vector<64x96xf32> to vector<64x8xf32>
    %226 = vector.shape_cast %225 : vector<64x8xf32> to vector<8x8x8xf32>
    %227 = vector.extract_strided_slice %220 {offsets = [0, 64], sizes = [64, 8], strides = [1, 1]} : vector<64x96xf32> to vector<64x8xf32>
    %228 = vector.shape_cast %227 : vector<64x8xf32> to vector<8x8x8xf32>
    "tpu.trace_start"() <{level = 10 : i32, message = "nqd,nkd->nqk"}> : () -> ()
    %cst_96 = arith.constant dense<0.000000e+00> : vector<8x8x8xf32>
    %229 = tpu.matmul %224, %226, %cst_96 {dimension_numbers = #tpu.dot_dimension_numbers<[2], [2], [1], [1], [0, 0, 0, 1, 1, 1], [0], [0]>} : vector<8x8x8xf32>, vector<8x8x8xf32>, vector<8x8x8xf32> -> vector<8x8x8xf32>
    "tpu.trace_stop"() : () -> ()
    %230 = vector.broadcast %10 : vector<1x8x8xf32> to vector<8x8x8xf32>
    %231 = arith.addf %229, %230 : vector<8x8x8xf32>
    %cst_97 = arith.constant dense<0xFF800000> : vector<8x8xf32>
    %232 = vector.multi_reduction <maximumf>, %231, %cst_97 [2] : vector<8x8x8xf32> to vector<8x8xf32>
    %233 = vector.shape_cast %232 : vector<8x8xf32> to vector<8x8x1xf32>
    %234 = vector.broadcast %233 : vector<8x8x1xf32> to vector<8x8x8xf32>
    %235 = arith.subf %231, %234 : vector<8x8x8xf32>
    %236 = math.exp %235 : vector<8x8x8xf32>
    %cst_98 = arith.constant dense<0.000000e+00> : vector<8x8xf32>
    %237 = vector.multi_reduction <add>, %236, %cst_98 [2] : vector<8x8x8xf32> to vector<8x8xf32>
    %238 = vector.shape_cast %237 : vector<8x8xf32> to vector<8x8x1xf32>
    %239 = tpu.reciprocal %238 {approx = true} : vector<8x8x1xf32> -> vector<8x8x1xf32>
    %240 = vector.broadcast %239 : vector<8x8x1xf32> to vector<8x8x8xf32>
    %241 = arith.mulf %236, %240 : vector<8x8x8xf32>
    "tpu.trace_start"() <{level = 10 : i32, message = "nqk,nkd->nqd"}> : () -> ()
    %cst_99 = arith.constant dense<0.000000e+00> : vector<8x8x8xf32>
    %242 = tpu.matmul %241, %228, %cst_99 {dimension_numbers = #tpu.dot_dimension_numbers<[2], [1], [1], [2], [0, 0, 0, 1, 1, 2], [0], [0]>} : vector<8x8x8xf32>, vector<8x8x8xf32>, vector<8x8x8xf32> -> vector<8x8x8xf32>
    "tpu.trace_stop"() : () -> ()
    %243 = vector.shape_cast %242 : vector<8x8x8xf32> to vector<64x8xf32>
    %244 = vector.extract_strided_slice %220 {offsets = [0, 8], sizes = [64, 8], strides = [1, 1]} : vector<64x96xf32> to vector<64x8xf32>
    %cst_100 = arith.constant 0.353553385 : f32
    %245 = vector.broadcast %cst_100 : f32 to vector<64x8xf32>
    %246 = arith.mulf %244, %245 : vector<64x8xf32>
    %247 = vector.shape_cast %246 : vector<64x8xf32> to vector<8x8x8xf32>
    %248 = vector.extract_strided_slice %220 {offsets = [0, 40], sizes = [64, 8], strides = [1, 1]} : vector<64x96xf32> to vector<64x8xf32>
    %249 = vector.shape_cast %248 : vector<64x8xf32> to vector<8x8x8xf32>
    %250 = vector.extract_strided_slice %220 {offsets = [0, 72], sizes = [64, 8], strides = [1, 1]} : vector<64x96xf32> to vector<64x8xf32>
    %251 = vector.shape_cast %250 : vector<64x8xf32> to vector<8x8x8xf32>
    "tpu.trace_start"() <{level = 10 : i32, message = "nqd,nkd->nqk"}> : () -> ()
    %cst_101 = arith.constant dense<0.000000e+00> : vector<8x8x8xf32>
    %252 = tpu.matmul %247, %249, %cst_101 {dimension_numbers = #tpu.dot_dimension_numbers<[2], [2], [1], [1], [0, 0, 0, 1, 1, 1], [0], [0]>} : vector<8x8x8xf32>, vector<8x8x8xf32>, vector<8x8x8xf32> -> vector<8x8x8xf32>
    "tpu.trace_stop"() : () -> ()
    %253 = vector.broadcast %10 : vector<1x8x8xf32> to vector<8x8x8xf32>
    %254 = arith.addf %252, %253 : vector<8x8x8xf32>
    %cst_102 = arith.constant dense<0xFF800000> : vector<8x8xf32>
    %255 = vector.multi_reduction <maximumf>, %254, %cst_102 [2] : vector<8x8x8xf32> to vector<8x8xf32>
    %256 = vector.shape_cast %255 : vector<8x8xf32> to vector<8x8x1xf32>
    %257 = vector.broadcast %256 : vector<8x8x1xf32> to vector<8x8x8xf32>
    %258 = arith.subf %254, %257 : vector<8x8x8xf32>
    %259 = math.exp %258 : vector<8x8x8xf32>
    %cst_103 = arith.constant dense<0.000000e+00> : vector<8x8xf32>
    %260 = vector.multi_reduction <add>, %259, %cst_103 [2] : vector<8x8x8xf32> to vector<8x8xf32>
    %261 = vector.shape_cast %260 : vector<8x8xf32> to vector<8x8x1xf32>
    %262 = tpu.reciprocal %261 {approx = true} : vector<8x8x1xf32> -> vector<8x8x1xf32>
    %263 = vector.broadcast %262 : vector<8x8x1xf32> to vector<8x8x8xf32>
    %264 = arith.mulf %259, %263 : vector<8x8x8xf32>
    "tpu.trace_start"() <{level = 10 : i32, message = "nqk,nkd->nqd"}> : () -> ()
    %cst_104 = arith.constant dense<0.000000e+00> : vector<8x8x8xf32>
    %265 = tpu.matmul %264, %251, %cst_104 {dimension_numbers = #tpu.dot_dimension_numbers<[2], [1], [1], [2], [0, 0, 0, 1, 1, 2], [0], [0]>} : vector<8x8x8xf32>, vector<8x8x8xf32>, vector<8x8x8xf32> -> vector<8x8x8xf32>
    "tpu.trace_stop"() : () -> ()
    %266 = vector.shape_cast %265 : vector<8x8x8xf32> to vector<64x8xf32>
    %267 = vector.extract_strided_slice %220 {offsets = [0, 16], sizes = [64, 8], strides = [1, 1]} : vector<64x96xf32> to vector<64x8xf32>
    %cst_105 = arith.constant 0.353553385 : f32
    %268 = vector.broadcast %cst_105 : f32 to vector<64x8xf32>
    %269 = arith.mulf %267, %268 : vector<64x8xf32>
    %270 = vector.shape_cast %269 : vector<64x8xf32> to vector<8x8x8xf32>
    %271 = vector.extract_strided_slice %220 {offsets = [0, 48], sizes = [64, 8], strides = [1, 1]} : vector<64x96xf32> to vector<64x8xf32>
    %272 = vector.shape_cast %271 : vector<64x8xf32> to vector<8x8x8xf32>
    %273 = vector.extract_strided_slice %220 {offsets = [0, 80], sizes = [64, 8], strides = [1, 1]} : vector<64x96xf32> to vector<64x8xf32>
    %274 = vector.shape_cast %273 : vector<64x8xf32> to vector<8x8x8xf32>
    "tpu.trace_start"() <{level = 10 : i32, message = "nqd,nkd->nqk"}> : () -> ()
    %cst_106 = arith.constant dense<0.000000e+00> : vector<8x8x8xf32>
    %275 = tpu.matmul %270, %272, %cst_106 {dimension_numbers = #tpu.dot_dimension_numbers<[2], [2], [1], [1], [0, 0, 0, 1, 1, 1], [0], [0]>} : vector<8x8x8xf32>, vector<8x8x8xf32>, vector<8x8x8xf32> -> vector<8x8x8xf32>
    "tpu.trace_stop"() : () -> ()
    %276 = vector.broadcast %10 : vector<1x8x8xf32> to vector<8x8x8xf32>
    %277 = arith.addf %275, %276 : vector<8x8x8xf32>
    %cst_107 = arith.constant dense<0xFF800000> : vector<8x8xf32>
    %278 = vector.multi_reduction <maximumf>, %277, %cst_107 [2] : vector<8x8x8xf32> to vector<8x8xf32>
    %279 = vector.shape_cast %278 : vector<8x8xf32> to vector<8x8x1xf32>
    %280 = vector.broadcast %279 : vector<8x8x1xf32> to vector<8x8x8xf32>
    %281 = arith.subf %277, %280 : vector<8x8x8xf32>
    %282 = math.exp %281 : vector<8x8x8xf32>
    %cst_108 = arith.constant dense<0.000000e+00> : vector<8x8xf32>
    %283 = vector.multi_reduction <add>, %282, %cst_108 [2] : vector<8x8x8xf32> to vector<8x8xf32>
    %284 = vector.shape_cast %283 : vector<8x8xf32> to vector<8x8x1xf32>
    %285 = tpu.reciprocal %284 {approx = true} : vector<8x8x1xf32> -> vector<8x8x1xf32>
    %286 = vector.broadcast %285 : vector<8x8x1xf32> to vector<8x8x8xf32>
    %287 = arith.mulf %282, %286 : vector<8x8x8xf32>
    "tpu.trace_start"() <{level = 10 : i32, message = "nqk,nkd->nqd"}> : () -> ()
    %cst_109 = arith.constant dense<0.000000e+00> : vector<8x8x8xf32>
    %288 = tpu.matmul %287, %274, %cst_109 {dimension_numbers = #tpu.dot_dimension_numbers<[2], [1], [1], [2], [0, 0, 0, 1, 1, 2], [0], [0]>} : vector<8x8x8xf32>, vector<8x8x8xf32>, vector<8x8x8xf32> -> vector<8x8x8xf32>
    "tpu.trace_stop"() : () -> ()
    %289 = vector.shape_cast %288 : vector<8x8x8xf32> to vector<64x8xf32>
    %290 = vector.extract_strided_slice %220 {offsets = [0, 24], sizes = [64, 8], strides = [1, 1]} : vector<64x96xf32> to vector<64x8xf32>
    %cst_110 = arith.constant 0.353553385 : f32
    %291 = vector.broadcast %cst_110 : f32 to vector<64x8xf32>
    %292 = arith.mulf %290, %291 : vector<64x8xf32>
    %293 = vector.shape_cast %292 : vector<64x8xf32> to vector<8x8x8xf32>
    %294 = vector.extract_strided_slice %220 {offsets = [0, 56], sizes = [64, 8], strides = [1, 1]} : vector<64x96xf32> to vector<64x8xf32>
    %295 = vector.shape_cast %294 : vector<64x8xf32> to vector<8x8x8xf32>
    %296 = vector.extract_strided_slice %220 {offsets = [0, 88], sizes = [64, 8], strides = [1, 1]} : vector<64x96xf32> to vector<64x8xf32>
    %297 = vector.shape_cast %296 : vector<64x8xf32> to vector<8x8x8xf32>
    "tpu.trace_start"() <{level = 10 : i32, message = "nqd,nkd->nqk"}> : () -> ()
    %cst_111 = arith.constant dense<0.000000e+00> : vector<8x8x8xf32>
    %298 = tpu.matmul %293, %295, %cst_111 {dimension_numbers = #tpu.dot_dimension_numbers<[2], [2], [1], [1], [0, 0, 0, 1, 1, 1], [0], [0]>} : vector<8x8x8xf32>, vector<8x8x8xf32>, vector<8x8x8xf32> -> vector<8x8x8xf32>
    "tpu.trace_stop"() : () -> ()
    %299 = vector.broadcast %10 : vector<1x8x8xf32> to vector<8x8x8xf32>
    %300 = arith.addf %298, %299 : vector<8x8x8xf32>
    %cst_112 = arith.constant dense<0xFF800000> : vector<8x8xf32>
    %301 = vector.multi_reduction <maximumf>, %300, %cst_112 [2] : vector<8x8x8xf32> to vector<8x8xf32>
    %302 = vector.shape_cast %301 : vector<8x8xf32> to vector<8x8x1xf32>
    %303 = vector.broadcast %302 : vector<8x8x1xf32> to vector<8x8x8xf32>
    %304 = arith.subf %300, %303 : vector<8x8x8xf32>
    %305 = math.exp %304 : vector<8x8x8xf32>
    %cst_113 = arith.constant dense<0.000000e+00> : vector<8x8xf32>
    %306 = vector.multi_reduction <add>, %305, %cst_113 [2] : vector<8x8x8xf32> to vector<8x8xf32>
    %307 = vector.shape_cast %306 : vector<8x8xf32> to vector<8x8x1xf32>
    %308 = tpu.reciprocal %307 {approx = true} : vector<8x8x1xf32> -> vector<8x8x1xf32>
    %309 = vector.broadcast %308 : vector<8x8x1xf32> to vector<8x8x8xf32>
    %310 = arith.mulf %305, %309 : vector<8x8x8xf32>
    "tpu.trace_start"() <{level = 10 : i32, message = "nqk,nkd->nqd"}> : () -> ()
    %cst_114 = arith.constant dense<0.000000e+00> : vector<8x8x8xf32>
    %311 = tpu.matmul %310, %297, %cst_114 {dimension_numbers = #tpu.dot_dimension_numbers<[2], [1], [1], [2], [0, 0, 0, 1, 1, 2], [0], [0]>} : vector<8x8x8xf32>, vector<8x8x8xf32>, vector<8x8x8xf32> -> vector<8x8x8xf32>
    "tpu.trace_stop"() : () -> ()
    %312 = vector.shape_cast %311 : vector<8x8x8xf32> to vector<64x8xf32>
    %313 = tpu.concatenate %243, %266, %289, %312 in 1 : vector<64x8xf32>, vector<64x8xf32>, vector<64x8xf32>, vector<64x8xf32> -> vector<64x32xf32>
    %c1_115 = arith.constant 1 : index
    %c0_116 = arith.constant 0 : index
    %c0_117 = arith.constant 0 : index
    %314 = vector.load %arg7[%c1_115, %c0_116, %c0_117] : memref<2x32x32xf32, #tpu.memory_space<vmem>>, vector<1x32x32xf32>
    %315 = vector.shape_cast %314 : vector<1x32x32xf32> to vector<32x32xf32>
    %cst_118 = arith.constant dense<0.000000e+00> : vector<64x32xf32>
    %316 = tpu.matmul %313, %315, %cst_118 {dimension_numbers = #tpu.dot_dimension_numbers<[1], [0], [0], [1], [0, 0, 1, 1], [], []>} : vector<64x32xf32>, vector<32x32xf32>, vector<64x32xf32> -> vector<64x32xf32>
    %317 = arith.addf %189, %316 : vector<64x32xf32>
    %c1_119 = arith.constant 1 : index
    %c0_120 = arith.constant 0 : index
    %c0_121 = arith.constant 0 : index
    %318 = vector.load %arg8[%c1_119, %c0_120, %c0_121] : memref<2x1x32xf32, #tpu.memory_space<vmem>>, vector<1x1x32xf32>
    %319 = vector.shape_cast %318 : vector<1x1x32xf32> to vector<1x32xf32>
    %320 = vector.broadcast %319 : vector<1x32xf32> to vector<64x32xf32>
    %321 = arith.addf %317, %320 : vector<64x32xf32>
    %c1_122 = arith.constant 1 : index
    %c0_123 = arith.constant 0 : index
    %c0_124 = arith.constant 0 : index
    %322 = vector.load %arg9[%c1_122, %c0_123, %c0_124] : memref<2x1x32xf32, #tpu.memory_space<vmem>>, vector<1x1x32xf32>
    %323 = vector.shape_cast %322 : vector<1x1x32xf32> to vector<1x32xf32>
    %c1_125 = arith.constant 1 : index
    %c0_126 = arith.constant 0 : index
    %c0_127 = arith.constant 0 : index
    %324 = vector.load %arg10[%c1_125, %c0_126, %c0_127] : memref<2x1x32xf32, #tpu.memory_space<vmem>>, vector<1x1x32xf32>
    %325 = vector.shape_cast %324 : vector<1x1x32xf32> to vector<1x32xf32>
    %cst_128 = arith.constant dense<0.000000e+00> : vector<64xf32>
    %326 = vector.multi_reduction <add>, %321, %cst_128 [1] : vector<64x32xf32> to vector<64xf32>
    %327 = vector.shape_cast %326 : vector<64xf32> to vector<64x1xf32>
    %cst_129 = arith.constant 3.200000e+01 : f32
    %328 = vector.broadcast %cst_129 : f32 to vector<64x1xf32>
    %329 = arith.divf %327, %328 : vector<64x1xf32>
    %330 = vector.broadcast %329 : vector<64x1xf32> to vector<64x32xf32>
    %331 = arith.subf %321, %330 : vector<64x32xf32>
    %332 = arith.mulf %331, %331 : vector<64x32xf32>
    %cst_130 = arith.constant dense<0.000000e+00> : vector<64xf32>
    %333 = vector.multi_reduction <add>, %332, %cst_130 [1] : vector<64x32xf32> to vector<64xf32>
    %334 = vector.shape_cast %333 : vector<64xf32> to vector<64x1xf32>
    %cst_131 = arith.constant 3.200000e+01 : f32
    %335 = vector.broadcast %cst_131 : f32 to vector<64x1xf32>
    %336 = arith.divf %334, %335 : vector<64x1xf32>
    %cst_132 = arith.constant 9.99999974E-6 : f32
    %337 = vector.broadcast %cst_132 : f32 to vector<64x1xf32>
    %338 = arith.addf %336, %337 : vector<64x1xf32>
    %339 = math.rsqrt %338 : vector<64x1xf32>
    %340 = vector.broadcast %339 : vector<64x1xf32> to vector<64x32xf32>
    %341 = arith.mulf %331, %340 : vector<64x32xf32>
    %342 = vector.broadcast %323 : vector<1x32xf32> to vector<64x32xf32>
    %343 = arith.mulf %341, %342 : vector<64x32xf32>
    %344 = vector.broadcast %325 : vector<1x32xf32> to vector<64x32xf32>
    %345 = arith.addf %343, %344 : vector<64x32xf32>
    %c1_133 = arith.constant 1 : index
    %c0_134 = arith.constant 0 : index
    %c0_135 = arith.constant 0 : index
    %346 = vector.load %arg11[%c1_133, %c0_134, %c0_135] : memref<2x32x128xf32, #tpu.memory_space<vmem>>, vector<1x32x128xf32>
    %347 = vector.shape_cast %346 : vector<1x32x128xf32> to vector<32x128xf32>
    %cst_136 = arith.constant dense<0.000000e+00> : vector<64x128xf32>
    %348 = tpu.matmul %345, %347, %cst_136 {dimension_numbers = #tpu.dot_dimension_numbers<[1], [0], [0], [1], [0, 0, 1, 1], [], []>} : vector<64x32xf32>, vector<32x128xf32>, vector<64x128xf32> -> vector<64x128xf32>
    %c1_137 = arith.constant 1 : index
    %c0_138 = arith.constant 0 : index
    %c0_139 = arith.constant 0 : index
    %349 = vector.load %arg12[%c1_137, %c0_138, %c0_139] : memref<2x1x128xf32, #tpu.memory_space<vmem>>, vector<1x1x128xf32>
    %350 = vector.shape_cast %349 : vector<1x1x128xf32> to vector<1x128xf32>
    %351 = vector.broadcast %350 : vector<1x128xf32> to vector<64x128xf32>
    %352 = arith.addf %348, %351 : vector<64x128xf32>
    %cst_140 = arith.constant 1.702000e+00 : f32
    %353 = vector.broadcast %cst_140 : f32 to vector<64x128xf32>
    %354 = arith.mulf %353, %352 : vector<64x128xf32>
    %355 = arith.negf %354 : vector<64x128xf32>
    %356 = math.exp %355 : vector<64x128xf32>
    %cst_141 = arith.constant 1.000000e+00 : f32
    %357 = vector.broadcast %cst_141 : f32 to vector<64x128xf32>
    %358 = arith.addf %357, %356 : vector<64x128xf32>
    %359 = arith.divf %357, %358 : vector<64x128xf32>
    %360 = arith.mulf %352, %359 : vector<64x128xf32>
    %c1_142 = arith.constant 1 : index
    %c0_143 = arith.constant 0 : index
    %c0_144 = arith.constant 0 : index
    %361 = vector.load %arg13[%c1_142, %c0_143, %c0_144] : memref<2x128x32xf32, #tpu.memory_space<vmem>>, vector<1x128x32xf32>
    %362 = vector.shape_cast %361 : vector<1x128x32xf32> to vector<128x32xf32>
    %cst_145 = arith.constant dense<0.000000e+00> : vector<64x32xf32>
    %363 = tpu.matmul %360, %362, %cst_145 {dimension_numbers = #tpu.dot_dimension_numbers<[1], [0], [0], [1], [0, 0, 1, 1], [], []>} : vector<64x128xf32>, vector<128x32xf32>, vector<64x32xf32> -> vector<64x32xf32>
    %c1_146 = arith.constant 1 : index
    %c0_147 = arith.constant 0 : index
    %c0_148 = arith.constant 0 : index
    %364 = vector.load %arg14[%c1_146, %c0_147, %c0_148] : memref<2x1x32xf32, #tpu.memory_space<vmem>>, vector<1x1x32xf32>
    %365 = vector.shape_cast %364 : vector<1x1x32xf32> to vector<1x32xf32>
    %366 = vector.broadcast %365 : vector<1x32xf32> to vector<64x32xf32>
    %367 = arith.addf %363, %366 : vector<64x32xf32>
    %368 = arith.addf %321, %367 : vector<64x32xf32>
    %c0_149 = arith.constant 0 : index
    %c0_150 = arith.constant 0 : index
    %369 = vector.load %arg15[%c0_149, %c0_150] : memref<1x32xf32, #tpu.memory_space<vmem>>, vector<1x32xf32>
    %c0_151 = arith.constant 0 : index
    %c0_152 = arith.constant 0 : index
    %370 = vector.load %arg16[%c0_151, %c0_152] : memref<1x32xf32, #tpu.memory_space<vmem>>, vector<1x32xf32>
    %cst_153 = arith.constant dense<0.000000e+00> : vector<64xf32>
    %371 = vector.multi_reduction <add>, %368, %cst_153 [1] : vector<64x32xf32> to vector<64xf32>
    %372 = vector.shape_cast %371 : vector<64xf32> to vector<64x1xf32>
    %cst_154 = arith.constant 3.200000e+01 : f32
    %373 = vector.broadcast %cst_154 : f32 to vector<64x1xf32>
    %374 = arith.divf %372, %373 : vector<64x1xf32>
    %375 = vector.broadcast %374 : vector<64x1xf32> to vector<64x32xf32>
    %376 = arith.subf %368, %375 : vector<64x32xf32>
    %377 = arith.mulf %376, %376 : vector<64x32xf32>
    %cst_155 = arith.constant dense<0.000000e+00> : vector<64xf32>
    %378 = vector.multi_reduction <add>, %377, %cst_155 [1] : vector<64x32xf32> to vector<64xf32>
    %379 = vector.shape_cast %378 : vector<64xf32> to vector<64x1xf32>
    %cst_156 = arith.constant 3.200000e+01 : f32
    %380 = vector.broadcast %cst_156 : f32 to vector<64x1xf32>
    %381 = arith.divf %379, %380 : vector<64x1xf32>
    %cst_157 = arith.constant 9.99999974E-6 : f32
    %382 = vector.broadcast %cst_157 : f32 to vector<64x1xf32>
    %383 = arith.addf %381, %382 : vector<64x1xf32>
    %384 = math.rsqrt %383 : vector<64x1xf32>
    %385 = vector.broadcast %384 : vector<64x1xf32> to vector<64x32xf32>
    %386 = arith.mulf %376, %385 : vector<64x32xf32>
    %387 = vector.broadcast %369 : vector<1x32xf32> to vector<64x32xf32>
    %388 = arith.mulf %386, %387 : vector<64x32xf32>
    %389 = vector.broadcast %370 : vector<1x32xf32> to vector<64x32xf32>
    %390 = arith.addf %388, %389 : vector<64x32xf32>
    %391 = vector.shape_cast %390 : vector<64x32xf32> to vector<8x8x32xf32>
    %392 = tpu.iota {dimensions = array<i32: 1>} : vector<8x8x1xi32>
    %c0_158 = arith.constant 0 : index
    %c0_159 = arith.constant 0 : index
    %c0_160 = arith.constant 0 : index
    %393 = vector.load %arg2[%c0_158, %c0_159, %c0_160] : memref<8x1x1xi32, #tpu.memory_space<vmem>>, vector<8x1x1xi32>
    %394 = vector.broadcast %393 : vector<8x1x1xi32> to vector<8x8x1xi32>
    %395 = arith.cmpi eq, %392, %394 : vector<8x8x1xi32>
    %cst_161 = arith.constant 1.000000e+00 : f32
    %cst_162 = arith.constant 0.000000e+00 : f32
    %396 = vector.broadcast %cst_161 : f32 to vector<8x8x1xf32>
    %397 = vector.broadcast %cst_162 : f32 to vector<8x8x1xf32>
    %398 = arith.select %395, %396, %397 : vector<8x8x1xi1>, vector<8x8x1xf32>
    %399 = vector.broadcast %398 : vector<8x8x1xf32> to vector<8x8x32xf32>
    %400 = arith.mulf %391, %399 : vector<8x8x32xf32>
    %cst_163 = arith.constant dense<0.000000e+00> : vector<8x32xf32>
    %401 = vector.multi_reduction <add>, %400, %cst_163 [1] : vector<8x8x32xf32> to vector<8x32xf32>
    %c0_164 = arith.constant 0 : index
    %c0_165 = arith.constant 0 : index
    %402 = vector.load %arg17[%c0_164, %c0_165] : memref<32x32xf32, #tpu.memory_space<vmem>>, vector<32x32xf32>
    %cst_166 = arith.constant dense<0.000000e+00> : vector<8x32xf32>
    %403 = tpu.matmul %401, %402, %cst_166 {dimension_numbers = #tpu.dot_dimension_numbers<[1], [0], [0], [1], [0, 0, 1, 1], [], []>} : vector<8x32xf32>, vector<32x32xf32>, vector<8x32xf32> -> vector<8x32xf32>
    %c0_167 = arith.constant 0 : index
    %c0_168 = arith.constant 0 : index
    %404 = vector.load %arg18[%c0_167, %c0_168] : memref<8x32xf32, #tpu.memory_space<vmem>>, vector<8x32xf32>
    tpu.vector_store %arg18[%c0_167, %c0_168], %403 {strides = array<i32>} : memref<8x32xf32, #tpu.memory_space<vmem>>, vector<8x32xf32>,
    return
  }
}

</mosaic_0001>

<llo_original>
// kernel: text_encoder.1
$region0: #{text_encoder.1}
  #allocation0 [shape = 'u32[]', space=smem, size = 0x4, offset = 0x4, fixed_abs, tag = 'smem constant byte address 0x4 - core index']
  #allocation1 [shape = 'u32[72,128]{1,0:T(1,128)}', space=vmem, size = 0x9000, scoped, tag = 'internal scratch']
  %s0 = inlined_call_operand.vmem [shape: f32[8,8,32], index: 0, kind: input, shape index: {}]
  %s1 = inlined_call_operand.vmem [shape: f32[1,8,32], index: 1, kind: input, shape index: {}]
  %s2 = inlined_call_operand.vmem [shape: s32[8,1,1], index: 2, kind: input, shape index: {}]
  %s3 = inlined_call_operand.vmem [shape: f32[2,1,32], index: 3, kind: input, shape index: {}]
  %s4 = inlined_call_operand.vmem [shape: f32[2,1,32], index: 4, kind: input, shape index: {}]
  %s5 = inlined_call_operand.vmem [shape: f32[2,32,96], index: 5, kind: input, shape index: {}]
  %s6 = inlined_call_operand.vmem [shape: f32[2,1,96], index: 6, kind: input, shape index: {}]
  %s7 = inlined_call_operand.vmem [shape: f32[2,32,32], index: 7, kind: input, shape index: {}]
  %s8 = inlined_call_operand.vmem [shape: f32[2,1,32], index: 8, kind: input, shape index: {}]
  %s9 = inlined_call_operand.vmem [shape: f32[2,1,32], index: 9, kind: input, shape index: {}]
  %s10 = inlined_call_operand.vmem [shape: f32[2,1,32], index: 10, kind: input, shape index: {}]
  %s11 = inlined_call_operand.vmem [shape: f32[2,32,128], index: 11, kind: input, shape index: {}]
  %s12 = inlined_call_operand.vmem [shape: f32[2,1,128], index: 12, kind: input, shape index: {}]
  %s13 = inlined_call_operand.vmem [shape: f32[2,128,32], index: 13, kind: input, shape index: {}]
  %s14 = inlined_call_operand.vmem [shape: f32[2,1,32], index: 14, kind: input, shape index: {}]
  %s15 = inlined_call_operand.vmem [shape: f32[1,32], index: 15, kind: input, shape index: {}]
  %s16 = inlined_call_operand.vmem [shape: f32[1,32], index: 16, kind: input, shape index: {}]
  %s17 = inlined_call_operand.vmem [shape: f32[32,32], index: 17, kind: input, shape index: {}]
  %s18 = inlined_call_operand.hbm [shape: f32[8,32], index: 18, kind: output, shape index: {}]
  %s19 = sld [smem:[#allocation0]]
  $region82: #{text_encoder.1} parent=0
    _
  %s21 = ssub.s32 1, %s19
  %s22 = scalar_select 0, %s21, %s19
  $region1: #{text_encoder.1} parent=0
    #allocation2 [shape = 'u8[4096]{0}', space=vmem, size = 0x1000, scoped, tag = 'output window, operand 0, single buffered']
    #allocation3 [shape = 's32[1]{0}', space=sflag, size = 0x4, scoped, tag = 'scoped memory for text_encoder.1']
    %23 = vsyncpa [#allocation3], 0
    // Predicated region
    $region2: #{text_encoder.1} parent=1 // pred_check
      _
    $region3: #{text_encoder.1} parent=1 // pred_check_branch
      %25 = sbr.rel (0) target = $region5
    $region4: #{text_encoder.1} parent=1 // pred_region
      _
    $region5: #{text_encoder.1} parent=1 // pred_fallthru
      _
    // Predicated region
    $region6: #{text_encoder.1} parent=1 // pred_check
      _
    $region7: #{text_encoder.1} parent=1 // pred_check_branch
      %27 = sbr.rel (0) target = $region9
    $region8: #{text_encoder.1} parent=1 // pred_region
      _
    $region9: #{text_encoder.1} parent=1 // pred_fallthru
      _
    // Predicated region
    $region10: #{text_encoder.1} parent=1 // pred_check
      _
    $region11: #{text_encoder.1} parent=1 // pred_check_branch
      %29 = sbr.rel (0) target = $region13
    $region12: #{text_encoder.1} parent=1 // pred_region
      _
    $region13: #{text_encoder.1} parent=1 // pred_fallthru
      _
    // Predicated region
    $region14: #{text_encoder.1} parent=1 // pred_check
      _
    $region15: #{text_encoder.1} parent=1 // pred_check_branch
      %31 = sbr.rel (0) target = $region17
    $region16: #{text_encoder.1} parent=1 // pred_region
      _
    $region17: #{text_encoder.1} parent=1 // pred_fallthru
      _
    // Predicated region
    $region18: #{text_encoder.1} parent=1 // pred_check
      _
    $region19: #{text_encoder.1} parent=1 // pred_check_branch
      %33 = sbr.rel (0) target = $region21
    $region20: #{text_encoder.1} parent=1 // pred_region
      _
    $region21: #{text_encoder.1} parent=1 // pred_fallthru
      _
    // Predicated region
    $region22: #{text_encoder.1} parent=1 // pred_check
      _
    $region23: #{text_encoder.1} parent=1 // pred_check_branch
      %35 = sbr.rel (0) target = $region25
    $region24: #{text_encoder.1} parent=1 // pred_region
      _
    $region25: #{text_encoder.1} parent=1 // pred_fallthru
      _
    // Predicated region
    $region26: #{text_encoder.1} parent=1 // pred_check
      _
    $region27: #{text_encoder.1} parent=1 // pred_check_branch
      %37 = sbr.rel (0) target = $region29
    $region28: #{text_encoder.1} parent=1 // pred_region
      _
    $region29: #{text_encoder.1} parent=1 // pred_fallthru
      _
    // Predicated region
    $region30: #{text_encoder.1} parent=1 // pred_check
      _
    $region31: #{text_encoder.1} parent=1 // pred_check_branch
      %39 = sbr.rel (0) target = $region33
    $region32: #{text_encoder.1} parent=1 // pred_region
      _
    $region33: #{text_encoder.1} parent=1 // pred_fallthru
      _
    // Predicated region
    $region34: #{text_encoder.1} parent=1 // pred_check
      _
    $region35: #{text_encoder.1} parent=1 // pred_check_branch
      %41 = sbr.rel (0) target = $region37
    $region36: #{text_encoder.1} parent=1 // pred_region
      _
    $region37: #{text_encoder.1} parent=1 // pred_fallthru
      _
    // Predicated region
    $region38: #{text_encoder.1} parent=1 // pred_check
      _
    $region39: #{text_encoder.1} parent=1 // pred_check_branch
      %43 = sbr.rel (0) target = $region41
    $region40: #{text_encoder.1} parent=1 // pred_region
      _
    $region41: #{text_encoder.1} parent=1 // pred_fallthru
      _
    // Predicated region
    $region42: #{text_encoder.1} parent=1 // pred_check
      _
    $region43: #{text_encoder.1} parent=1 // pred_check_branch
      %45 = sbr.rel (0) target = $region45
    $region44: #{text_encoder.1} parent=1 // pred_region
      _
    $region45: #{text_encoder.1} parent=1 // pred_fallthru
      _
    // Predicated region
    $region46: #{text_encoder.1} parent=1 // pred_check
      _
    $region47: #{text_encoder.1} parent=1 // pred_check_branch
      %47 = sbr.rel (0) target = $region49
    $region48: #{text_encoder.1} parent=1 // pred_region
      _
    $region49: #{text_encoder.1} parent=1 // pred_fallthru
      _
    // Predicated region
    $region50: #{text_encoder.1} parent=1 // pred_check
      _
    $region51: #{text_encoder.1} parent=1 // pred_check_branch
      %49 = sbr.rel (0) target = $region53
    $region52: #{text_encoder.1} parent=1 // pred_region
      _
    $region53: #{text_encoder.1} parent=1 // pred_fallthru
      _
    // Predicated region
    $region54: #{text_encoder.1} parent=1 // pred_check
      _
    $region55: #{text_encoder.1} parent=1 // pred_check_branch
      %51 = sbr.rel (0) target = $region57
    $region56: #{text_encoder.1} parent=1 // pred_region
      _
    $region57: #{text_encoder.1} parent=1 // pred_fallthru
      _
    // Predicated region
    $region58: #{text_encoder.1} parent=1 // pred_check
      _
    $region59: #{text_encoder.1} parent=1 // pred_check_branch
      %53 = sbr.rel (0) target = $region61
    $region60: #{text_encoder.1} parent=1 // pred_region
      _
    $region61: #{text_encoder.1} parent=1 // pred_fallthru
      _
    // Predicated region
    $region62: #{text_encoder.1} parent=1 // pred_check
      _
    $region63: #{text_encoder.1} parent=1 // pred_check_branch
      %55 = sbr.rel (0) target = $region65
    $region64: #{text_encoder.1} parent=1 // pred_region
      _
    $region65: #{text_encoder.1} parent=1 // pred_fallthru
      _
    // Predicated region
    $region66: #{text_encoder.1} parent=1 // pred_check
      _
    $region67: #{text_encoder.1} parent=1 // pred_check_branch
      %57 = sbr.rel (0) target = $region69
    $region68: #{text_encoder.1} parent=1 // pred_region
      _
    $region69: #{text_encoder.1} parent=1 // pred_fallthru
      _
    // Predicated region
    $region70: #{text_encoder.1} parent=1 // pred_check
      _
    $region71: #{text_encoder.1} parent=1 // pred_check_branch
      %59 = sbr.rel (0) target = $region73
    $region72: #{text_encoder.1} parent=1 // pred_region
      _
    $region73: #{text_encoder.1} parent=1 // pred_fallthru
      _
    %v60 = vld [vmem:[%s0] sm:$0xff]
    %v61 = vld [vmem:[%s0 + $0x8] sm:$0xff]
    %v62 = vld [vmem:[%s0 + $0x10] sm:$0xff]
    %v63 = vld [vmem:[%s0 + $0x18] sm:$0xff]
    %v64 = vld [vmem:[%s0 + $0x20] sm:$0xff]
    %v65 = vld [vmem:[%s0 + $0x28] sm:$0xff]
    %v66 = vld [vmem:[%s0 + $0x30] sm:$0xff]
    %v67 = vld [vmem:[%s0 + $0x38] sm:$0xff]
    %v68 = vld [vmem:[%s1] sm:$0xff]
    %v69 = vadd.f32 %v60, %v68
    %v70 = vadd.f32 %v61, %v68
    %v71 = vadd.f32 %v62, %v68
    %v72 = vadd.f32 %v63, %v68
    %v73 = vadd.f32 %v64, %v68
    %v74 = vadd.f32 %v65, %v68
    %v75 = vadd.f32 %v66, %v68
    %v76 = vadd.f32 %v67, %v68
    %v77 = vlaneseq
    %v78 = vshrl.u32 %v77, 7
    %v79 = vlaneseq
    %v80 = vand.u32 %v79, 127
    %vm81 = vcmp.le.s32.totalorder %v80, %v78
    %v82 = vsel %vm81, 0.0, -1e+30
    %v83 = vld [vmem:[%s3] sm:$0x1]
    %v84 = vld [vmem:[%s4] sm:$0x1]
    %vm85 = vcmask 261120
    %v86 = vsel %vm85, %v69, 0.0
    %87 = vadd.xlane.f32.xlu0 %v86
    %v88 = vpop.xlane.xlu0 %87
    %v89 = vsel %vm85, %v70, 0.0
    %90 = vadd.xlane.f32.xlu0 %v89
    %v91 = vpop.xlane.xlu0 %90
    %v92 = vsel %vm85, %v71, 0.0
    %93 = vadd.xlane.f32.xlu0 %v92
    %v94 = vpop.xlane.xlu0 %93
    %v95 = vsel %vm85, %v72, 0.0
    %96 = vadd.xlane.f32.xlu0 %v95
    %v97 = vpop.xlane.xlu0 %96
    %v98 = vsel %vm85, %v73, 0.0
    %99 = vadd.xlane.f32.xlu0 %v98
    %v100 = vpop.xlane.xlu0 %99
    %v101 = vsel %vm85, %v74, 0.0
    %102 = vadd.xlane.f32.xlu0 %v101
    %v103 = vpop.xlane.xlu0 %102
    %v104 = vsel %vm85, %v75, 0.0
    %105 = vadd.xlane.f32.xlu0 %v104
    %v106 = vpop.xlane.xlu0 %105
    %v107 = vsel %vm85, %v76, 0.0
    %108 = vadd.xlane.f32.xlu0 %v107
    %v109 = vpop.xlane.xlu0 %108
    %v110 = vrcp.pop 32.0
    %v111 = vmul.f32 32.0, %v110
    %v112 = vsub.f32 1.0, %v111
    %v113 = vmul.f32 %v110, %v112
    %v114 = vadd.f32 %v110, %v113
    %vm115 = vweird.f32 %v110
    %v116 = vsel %vm115, %v110, %v114
    %v117 = vmul.f32 %v88, %v116
    %v118 = vmul.f32 %v91, %v116
    %v119 = vmul.f32 %v94, %v116
    %v120 = vmul.f32 %v97, %v116
    %v121 = vmul.f32 %v100, %v116
    %v122 = vmul.f32 %v103, %v116
    %v123 = vmul.f32 %v106, %v116
    %v124 = vmul.f32 %v109, %v116
    %v125 = vsub.f32 %v69, %v117
    %v126 = vsub.f32 %v70, %v118
    %v127 = vsub.f32 %v71, %v119
    %v128 = vsub.f32 %v72, %v120
    %v129 = vsub.f32 %v73, %v121
    %v130 = vsub.f32 %v74, %v122
    %v131 = vsub.f32 %v75, %v123
    %v132 = vsub.f32 %v76, %v124
    %v133 = vmul.f32 %v125, %v125
    %v134 = vmul.f32 %v126, %v126
    %v135 = vmul.f32 %v127, %v127
    %v136 = vmul.f32 %v128, %v128
    %v137 = vmul.f32 %v129, %v129
    %v138 = vmul.f32 %v130, %v130
    %v139 = vmul.f32 %v131, %v131
    %v140 = vmul.f32 %v132, %v132
    %v141 = vsel %vm85, %v133, 0.0
    %142 = vadd.xlane.f32.xlu0 %v141
    %v143 = vpop.xlane.xlu0 %142
    %v144 = vsel %vm85, %v134, 0.0
    %145 = vadd.xlane.f32.xlu0 %v144
    %v146 = vpop.xlane.xlu0 %145
    %v147 = vsel %vm85, %v135, 0.0
    %148 = vadd.xlane.f32.xlu0 %v147
    %v149 = vpop.xlane.xlu0 %148
    %v150 = vsel %vm85, %v136, 0.0
    %151 = vadd.xlane.f32.xlu0 %v150
    %v152 = vpop.xlane.xlu0 %151
    %v153 = vsel %vm85, %v137, 0.0
    %154 = vadd.xlane.f32.xlu0 %v153
    %v155 = vpop.xlane.xlu0 %154
    %v156 = vsel %vm85, %v138, 0.0
    %157 = vadd.xlane.f32.xlu0 %v156
    %v158 = vpop.xlane.xlu0 %157
    %v159 = vsel %vm85, %v139, 0.0
    %160 = vadd.xlane.f32.xlu0 %v159
    %v161 = vpop.xlane.xlu0 %160
    %v162 = vsel %vm85, %v140, 0.0
    %163 = vadd.xlane.f32.xlu0 %v162
    %v164 = vpop.xlane.xlu0 %163
    %v165 = vmul.f32 %v143, %v116
    %v166 = vmul.f32 %v146, %v116
    %v167 = vmul.f32 %v149, %v116
    %v168 = vmul.f32 %v152, %v116
    %v169 = vmul.f32 %v155, %v116
    %v170 = vmul.f32 %v158, %v116
    %v171 = vmul.f32 %v161, %v116
    %v172 = vmul.f32 %v164, %v116
    %v173 = vadd.f32 %v165, 1e-05
    %v174 = vadd.f32 %v166, 1e-05
    %v175 = vadd.f32 %v167, 1e-05
    %v176 = vadd.f32 %v168, 1e-05
    %v177 = vadd.f32 %v169, 1e-05
    %v178 = vadd.f32 %v170, 1e-05
    %v179 = vadd.f32 %v171, 1e-05
    %v180 = vadd.f32 %v172, 1e-05
    %v181 = vrsqrt.pop %v173
    %v182 = vmul.f32 %v181, %v173
    %v183 = vmul.f32 %v182, %v181
    %v184 = vmul.f32 0.5, %v183
    %v185 = vsub.f32 1.5, %v184
    %v186 = vmul.f32 %v181, %v185
    %vm187 = vweird.f32 %v173
    %vm188 = vweird.f32 %v181
    %vm189 = vmor %vm187, %vm188
    %v190 = vsel %vm189, %v181, %v186
    %v191 = vrsqrt.pop %v174
    %v192 = vmul.f32 %v191, %v174
    %v193 = vmul.f32 %v192, %v191
    %v194 = vmul.f32 0.5, %v193
    %v195 = vsub.f32 1.5, %v194
    %v196 = vmul.f32 %v191, %v195
    %vm197 = vweird.f32 %v174
    %vm198 = vweird.f32 %v191
    %vm199 = vmor %vm197, %vm198
    %v200 = vsel %vm199, %v191, %v196
    %v201 = vrsqrt.pop %v175
    %v202 = vmul.f32 %v201, %v175
    %v203 = vmul.f32 %v202, %v201
    %v204 = vmul.f32 0.5, %v203
    %v205 = vsub.f32 1.5, %v204
    %v206 = vmul.f32 %v201, %v205
    %vm207 = vweird.f32 %v175
    %vm208 = vweird.f32 %v201
    %vm209 = vmor %vm207, %vm208
    %v210 = vsel %vm209, %v201, %v206
    %v211 = vrsqrt.pop %v176
    %v212 = vmul.f32 %v211, %v176
    %v213 = vmul.f32 %v212, %v211
    %v214 = vmul.f32 0.5, %v213
    %v215 = vsub.f32 1.5, %v214
    %v216 = vmul.f32 %v211, %v215
    %vm217 = vweird.f32 %v176
    %vm218 = vweird.f32 %v211
    %vm219 = vmor %vm217, %vm218
    %v220 = vsel %vm219, %v211, %v216
    %v221 = vrsqrt.pop %v177
    %v222 = vmul.f32 %v221, %v177
    %v223 = vmul.f32 %v222, %v221
    %v224 = vmul.f32 0.5, %v223
    %v225 = vsub.f32 1.5, %v224
    %v226 = vmul.f32 %v221, %v225
    %vm227 = vweird.f32 %v177
    %vm228 = vweird.f32 %v221
    %vm229 = vmor %vm227, %vm228
    %v230 = vsel %vm229, %v221, %v226
    %v231 = vrsqrt.pop %v178
    %v232 = vmul.f32 %v231, %v178
    %v233 = vmul.f32 %v232, %v231
    %v234 = vmul.f32 0.5, %v233
    %v235 = vsub.f32 1.5, %v234
    %v236 = vmul.f32 %v231, %v235
    %vm237 = vweird.f32 %v178
    %vm238 = vweird.f32 %v231
    %vm239 = vmor %vm237, %vm238
    %v240 = vsel %vm239, %v231, %v236
    %v241 = vrsqrt.pop %v179
    %v242 = vmul.f32 %v241, %v179
    %v243 = vmul.f32 %v242, %v241
    %v244 = vmul.f32 0.5, %v243
    %v245 = vsub.f32 1.5, %v244
    %v246 = vmul.f32 %v241, %v245
    %vm247 = vweird.f32 %v179
    %vm248 = vweird.f32 %v241
    %vm249 = vmor %vm247, %vm248
    %v250 = vsel %vm249, %v241, %v246
    %v251 = vrsqrt.pop %v180
    %v252 = vmul.f32 %v251, %v180
    %v253 = vmul.f32 %v252, %v251
    %v254 = vmul.f32 0.5, %v253
    %v255 = vsub.f32 1.5, %v254
    %v256 = vmul.f32 %v251, %v255
    %vm257 = vweird.f32 %v180
    %vm258 = vweird.f32 %v251
    %vm259 = vmor %vm257, %vm258
    %v260 = vsel %vm259, %v251, %v256
    %v261 = vmul.f32 %v125, %v190
    %v262 = vmul.f32 %v126, %v200
    %v263 = vmul.f32 %v127, %v210
    %v264 = vmul.f32 %v128, %v220
    %v265 = vmul.f32 %v129, %v230
    %v266 = vmul.f32 %v130, %v240
    %v267 = vmul.f32 %v131, %v250
    %v268 = vmul.f32 %v132, %v260
    %v270 = vperm.slane %v83, 0
    %v272 = vmul.f32 %v261, %v270
    %v273 = vmul.f32 %v262, %v270
    %v274 = vmul.f32 %v263, %v270
    %v275 = vmul.f32 %v264, %v270
    %v276 = vmul.f32 %v265, %v270
    %v277 = vmul.f32 %v266, %v270
    %v278 = vmul.f32 %v267, %v270
    %v279 = vmul.f32 %v268, %v270
    %v281 = vperm.slane %v84, 0
    %v283 = vadd.f32 %v272, %v281
    %v284 = vadd.f32 %v273, %v281
    %v285 = vadd.f32 %v274, %v281
    %v286 = vadd.f32 %v275, %v281
    %v287 = vadd.f32 %v276, %v281
    %v288 = vadd.f32 %v277, %v281
    %v289 = vadd.f32 %v278, %v281
    %v290 = vadd.f32 %v279, %v281
    %v291 = vld [vmem:[%s5] sm:$0xff]
    %v292 = vld [vmem:[%s5 + $0x8] sm:$0xff]
    %v293 = vld [vmem:[%s5 + $0x10] sm:$0xff]
    %v294 = vld [vmem:[%s5 + $0x18] sm:$0xff]
    %v295 = vld [vmem:[%s6] sm:$0x1]
    %v297 = vperm.slane %v295, 0
    %v300 = vsel %vm85, %v283, 0
    %v303 = vsel %vm85, %v284, 0
    %v306 = vsel %vm85, %v285, 0
    %v309 = vsel %vm85, %v286, 0
    %v312 = vsel %vm85, %v287, 0
    %v315 = vsel %vm85, %v288, 0
    %v318 = vsel %vm85, %v289, 0
    %v321 = vsel %vm85, %v290, 0
    %323 = vmatpush.msra.mxu0 0.0
    %324 = vmatpush.msra.mxu0 0.0
    %325 = vmatpush.msra.mxu0 0.0
    %326 = vmatpush.msra.mxu0 0.0
    %327 = vmatpush.msra.mxu0 0.0
    %328 = vmatpush.msra.mxu0 0.0
    %329 = vmatpush.msra.mxu0 0.0
    %330 = vmatpush.msra.mxu0 0.0
    %331 = vmatpush.msra.mxu0 0.0
    %332 = vmatpush.msra.mxu0 0.0
    %333 = vmatpush.msra.mxu0 0.0
    %334 = vmatpush.msra.mxu0 0.0
    %335 = vmatpush.msra.mxu0 %v294
    %336 = vmatpush.msra.mxu0 %v293
    %337 = vmatpush.msra.mxu0 %v292
    %338 = vmatpush.msra.mxu0 %v291
    %339 = vmatmul.f32.gmra.mxu0 %v300
    %v340 = vpop.f32.mrf.mxu0
    %v341 = vadd.f32 %v297, %v340
    %342 = vmatmul.f32.gmra.mxu0 %v303
    %v343 = vpop.f32.mrf.mxu0
    %v344 = vadd.f32 %v297, %v343
    %345 = vmatmul.f32.gmra.mxu0 %v306
    %v346 = vpop.f32.mrf.mxu0
    %v347 = vadd.f32 %v297, %v346
    %348 = vmatmul.f32.gmra.mxu0 %v309
    %v349 = vpop.f32.mrf.mxu0
    %v350 = vadd.f32 %v297, %v349
    %351 = vmatmul.f32.gmra.mxu0 %v312
    %v352 = vpop.f32.mrf.mxu0
    %v353 = vadd.f32 %v297, %v352
    %354 = vmatmul.f32.gmra.mxu0 %v315
    %v355 = vpop.f32.mrf.mxu0
    %v356 = vadd.f32 %v297, %v355
    %357 = vmatmul.f32.gmra.mxu0 %v318
    %v358 = vpop.f32.mrf.mxu0
    %v359 = vadd.f32 %v297, %v358
    %360 = vmatmul.f32.gmra.mxu0 %v321
    %v361 = vpop.f32.mrf.mxu0
    %v362 = vadd.f32 %v297, %v361
    %363 = vdwg.mxu0
    %v364 = vmul.f32 %v341, 0.35355338
    %v365 = vmul.f32 %v344, 0.35355338
    %v366 = vmul.f32 %v347, 0.35355338
    %v367 = vmul.f32 %v350, 0.35355338
    %v368 = vmul.f32 %v353, 0.35355338
    %v369 = vmul.f32 %v356, 0.35355338
    %v370 = vmul.f32 %v359, 0.35355338
    %v371 = vmul.f32 %v362, 0.35355338
    %373 = vrot.lane.b32.xlu0 %v341, 96
    %v374 = vpop.permute.xlu0 %373
    %vm375 = vcmask 64512
    %v377 = vsel %vm375, %v364, 0
    %v379 = vsel %vm375, %v374, 0
    %381 = vmatpush.xpose.msra.mxu0 0.0
    %382 = vmatpush.xpose.msra.mxu0 0.0
    %383 = vmatpush.xpose.msra.mxu0 0.0
    %384 = vmatpush.xpose.msra.mxu0 0.0
    %385 = vmatpush.xpose.msra.mxu0 0.0
    %386 = vmatpush.xpose.msra.mxu0 0.0
    %387 = vmatpush.xpose.msra.mxu0 0.0
    %388 = vmatpush.xpose.msra.mxu0 0.0
    %389 = vmatpush.xpose.msra.mxu0 0.0
    %390 = vmatpush.xpose.msra.mxu0 0.0
    %391 = vmatpush.xpose.msra.mxu0 0.0
    %392 = vmatpush.xpose.msra.mxu0 0.0
    %393 = vmatpush.xpose.msra.mxu0 0.0
    %394 = vmatpush.xpose.msra.mxu0 0.0
    %395 = vmatpush.xpose.msra.mxu0 0.0
    %396 = vmatpush.xpose.msra.mxu0 %v379
    %397 = vmatmul.f32.gmra.mxu0 %v377
    %v398 = vpop.f32.mrf.mxu0
    %v399 = vadd.f32 %v82, %v398
    %400 = vdwg.mxu0
    %402 = vrot.lane.b32.xlu0 %v344, 96
    %v403 = vpop.permute.xlu0 %402
    %v405 = vsel %vm375, %v365, 0
    %v407 = vsel %vm375, %v403, 0
    %409 = vmatpush.xpose.msra.mxu0 0.0
    %410 = vmatpush.xpose.msra.mxu0 0.0
    %411 = vmatpush.xpose.msra.mxu0 0.0
    %412 = vmatpush.xpose.msra.mxu0 0.0
    %413 = vmatpush.xpose.msra.mxu0 0.0
    %414 = vmatpush.xpose.msra.mxu0 0.0
    %415 = vmatpush.xpose.msra.mxu0 0.0
    %416 = vmatpush.xpose.msra.mxu0 0.0
    %417 = vmatpush.xpose.msra.mxu0 0.0
    %418 = vmatpush.xpose.msra.mxu0 0.0
    %419 = vmatpush.xpose.msra.mxu0 0.0
    %420 = vmatpush.xpose.msra.mxu0 0.0
    %421 = vmatpush.xpose.msra.mxu0 0.0
    %422 = vmatpush.xpose.msra.mxu0 0.0
    %423 = vmatpush.xpose.msra.mxu0 0.0
    %424 = vmatpush.xpose.msra.mxu0 %v407
    %425 = vmatmul.f32.gmra.mxu0 %v405
    %v426 = vpop.f32.mrf.mxu0
    %v427 = vadd.f32 %v82, %v426
    %428 = vdwg.mxu0
    %430 = vrot.lane.b32.xlu0 %v347, 96
    %v431 = vpop.permute.xlu0 %430
    %v433 = vsel %vm375, %v366, 0
    %v435 = vsel %vm375, %v431, 0
    %437 = vmatpush.xpose.msra.mxu0 0.0
    %438 = vmatpush.xpose.msra.mxu0 0.0
    %439 = vmatpush.xpose.msra.mxu0 0.0
    %440 = vmatpush.xpose.msra.mxu0 0.0
    %441 = vmatpush.xpose.msra.mxu0 0.0
    %442 = vmatpush.xpose.msra.mxu0 0.0
    %443 = vmatpush.xpose.msra.mxu0 0.0
    %444 = vmatpush.xpose.msra.mxu0 0.0
    %445 = vmatpush.xpose.msra.mxu0 0.0
    %446 = vmatpush.xpose.msra.mxu0 0.0
    %447 = vmatpush.xpose.msra.mxu0 0.0
    %448 = vmatpush.xpose.msra.mxu0 0.0
    %449 = vmatpush.xpose.msra.mxu0 0.0
    %450 = vmatpush.xpose.msra.mxu0 0.0
    %451 = vmatpush.xpose.msra.mxu0 0.0
    %452 = vmatpush.xpose.msra.mxu0 %v435
    %453 = vmatmul.f32.gmra.mxu0 %v433
    %v454 = vpop.f32.mrf.mxu0
    %v455 = vadd.f32 %v82, %v454
    %456 = vdwg.mxu0
    %458 = vrot.lane.b32.xlu0 %v350, 96
    %v459 = vpop.permute.xlu0 %458
    %v461 = vsel %vm375, %v367, 0
    %v463 = vsel %vm375, %v459, 0
    %465 = vmatpush.xpose.msra.mxu0 0.0
    %466 = vmatpush.xpose.msra.mxu0 0.0
    %467 = vmatpush.xpose.msra.mxu0 0.0
    %468 = vmatpush.xpose.msra.mxu0 0.0
    %469 = vmatpush.xpose.msra.mxu0 0.0
    %470 = vmatpush.xpose.msra.mxu0 0.0
    %471 = vmatpush.xpose.msra.mxu0 0.0
    %472 = vmatpush.xpose.msra.mxu0 0.0
    %473 = vmatpush.xpose.msra.mxu0 0.0
    %474 = vmatpush.xpose.msra.mxu0 0.0
    %475 = vmatpush.xpose.msra.mxu0 0.0
    %476 = vmatpush.xpose.msra.mxu0 0.0
    %477 = vmatpush.xpose.msra.mxu0 0.0
    %478 = vmatpush.xpose.msra.mxu0 0.0
    %479 = vmatpush.xpose.msra.mxu0 0.0
    %480 = vmatpush.xpose.msra.mxu0 %v463
    %481 = vmatmul.f32.gmra.mxu0 %v461
    %v482 = vpop.f32.mrf.mxu0
    %v483 = vadd.f32 %v82, %v482
    %484 = vdwg.mxu0
    %486 = vrot.lane.b32.xlu0 %v353, 96
    %v487 = vpop.permute.xlu0 %486
    %v489 = vsel %vm375, %v368, 0
    %v491 = vsel %vm375, %v487, 0
    %493 = vmatpush.xpose.msra.mxu0 0.0
    %494 = vmatpush.xpose.msra.mxu0 0.0
    %495 = vmatpush.xpose.msra.mxu0 0.0
    %496 = vmatpush.xpose.msra.mxu0 0.0
    %497 = vmatpush.xpose.msra.mxu0 0.0
    %498 = vmatpush.xpose.msra.mxu0 0.0
    %499 = vmatpush.xpose.msra.mxu0 0.0
    %500 = vmatpush.xpose.msra.mxu0 0.0
    %501 = vmatpush.xpose.msra.mxu0 0.0
    %502 = vmatpush.xpose.msra.mxu0 0.0
    %503 = vmatpush.xpose.msra.mxu0 0.0
    %504 = vmatpush.xpose.msra.mxu0 0.0
    %505 = vmatpush.xpose.msra.mxu0 0.0
    %506 = vmatpush.xpose.msra.mxu0 0.0
    %507 = vmatpush.xpose.msra.mxu0 0.0
    %508 = vmatpush.xpose.msra.mxu0 %v491
    %509 = vmatmul.f32.gmra.mxu0 %v489
    %v510 = vpop.f32.mrf.mxu0
    %v511 = vadd.f32 %v82, %v510
    %512 = vdwg.mxu0
    %514 = vrot.lane.b32.xlu0 %v356, 96
    %v515 = vpop.permute.xlu0 %514
    %v517 = vsel %vm375, %v369, 0
    %v519 = vsel %vm375, %v515, 0
    %521 = vmatpush.xpose.msra.mxu0 0.0
    %522 = vmatpush.xpose.msra.mxu0 0.0
    %523 = vmatpush.xpose.msra.mxu0 0.0
    %524 = vmatpush.xpose.msra.mxu0 0.0
    %525 = vmatpush.xpose.msra.mxu0 0.0
    %526 = vmatpush.xpose.msra.mxu0 0.0
    %527 = vmatpush.xpose.msra.mxu0 0.0
    %528 = vmatpush.xpose.msra.mxu0 0.0
    %529 = vmatpush.xpose.msra.mxu0 0.0
    %530 = vmatpush.xpose.msra.mxu0 0.0
    %531 = vmatpush.xpose.msra.mxu0 0.0
    %532 = vmatpush.xpose.msra.mxu0 0.0
    %533 = vmatpush.xpose.msra.mxu0 0.0
    %534 = vmatpush.xpose.msra.mxu0 0.0
    %535 = vmatpush.xpose.msra.mxu0 0.0
    %536 = vmatpush.xpose.msra.mxu0 %v519
    %537 = vmatmul.f32.gmra.mxu0 %v517
    %v538 = vpop.f32.mrf.mxu0
    %v539 = vadd.f32 %v82, %v538
    %540 = vdwg.mxu0
    %542 = vrot.lane.b32.xlu0 %v359, 96
    %v543 = vpop.permute.xlu0 %542
    %v545 = vsel %vm375, %v370, 0
    %v547 = vsel %vm375, %v543, 0
    %549 = vmatpush.xpose.msra.mxu0 0.0
    %550 = vmatpush.xpose.msra.mxu0 0.0
    %551 = vmatpush.xpose.msra.mxu0 0.0
    %552 = vmatpush.xpose.msra.mxu0 0.0
    %553 = vmatpush.xpose.msra.mxu0 0.0
    %554 = vmatpush.xpose.msra.mxu0 0.0
    %555 = vmatpush.xpose.msra.mxu0 0.0
    %556 = vmatpush.xpose.msra.mxu0 0.0
    %557 = vmatpush.xpose.msra.mxu0 0.0
    %558 = vmatpush.xpose.msra.mxu0 0.0
    %559 = vmatpush.xpose.msra.mxu0 0.0
    %560 = vmatpush.xpose.msra.mxu0 0.0
    %561 = vmatpush.xpose.msra.mxu0 0.0
    %562 = vmatpush.xpose.msra.mxu0 0.0
    %563 = vmatpush.xpose.msra.mxu0 0.0
    %564 = vmatpush.xpose.msra.mxu0 %v547
    %565 = vmatmul.f32.gmra.mxu0 %v545
    %v566 = vpop.f32.mrf.mxu0
    %v567 = vadd.f32 %v82, %v566
    %568 = vdwg.mxu0
    %570 = vrot.lane.b32.xlu0 %v362, 96
    %v571 = vpop.permute.xlu0 %570
    %v573 = vsel %vm375, %v371, 0
    %v575 = vsel %vm375, %v571, 0
    %577 = vmatpush.xpose.msra.mxu0 0.0
    %578 = vmatpush.xpose.msra.mxu0 0.0
    %579 = vmatpush.xpose.msra.mxu0 0.0
    %580 = vmatpush.xpose.msra.mxu0 0.0
    %581 = vmatpush.xpose.msra.mxu0 0.0
    %582 = vmatpush.xpose.msra.mxu0 0.0
    %583 = vmatpush.xpose.msra.mxu0 0.0
    %584 = vmatpush.xpose.msra.mxu0 0.0
    %585 = vmatpush.xpose.msra.mxu0 0.0
    %586 = vmatpush.xpose.msra.mxu0 0.0
    %587 = vmatpush.xpose.msra.mxu0 0.0
    %588 = vmatpush.xpose.msra.mxu0 0.0
    %589 = vmatpush.xpose.msra.mxu0 0.0
    %590 = vmatpush.xpose.msra.mxu0 0.0
    %591 = vmatpush.xpose.msra.mxu0 0.0
    %592 = vmatpush.xpose.msra.mxu0 %v575
    %593 = vmatmul.f32.gmra.mxu0 %v573
    %v594 = vpop.f32.mrf.mxu0
    %v595 = vadd.f32 %v82, %v594
    %596 = vdwg.mxu0
    %v597 = vsel %vm375, %v399, -inf
    %598 = vmax.xlane.f32.xlu0 %v597
    %v599 = vpop.xlane.xlu0 %598
    %v600 = vsel %vm375, %v427, -inf
    %601 = vmax.xlane.f32.xlu0 %v600
    %v602 = vpop.xlane.xlu0 %601
    %v603 = vsel %vm375, %v455, -inf
    %604 = vmax.xlane.f32.xlu0 %v603
    %v605 = vpop.xlane.xlu0 %604
    %v606 = vsel %vm375, %v483, -inf
    %607 = vmax.xlane.f32.xlu0 %v606
    %v608 = vpop.xlane.xlu0 %607
    %v609 = vsel %vm375, %v511, -inf
    %610 = vmax.xlane.f32.xlu0 %v609
    %v611 = vpop.xlane.xlu0 %610
    %v612 = vsel %vm375, %v539, -inf
    %613 = vmax.xlane.f32.xlu0 %v612
    %v614 = vpop.xlane.xlu0 %613
    %v615 = vsel %vm375, %v567, -inf
    %616 = vmax.xlane.f32.xlu0 %v615
    %v617 = vpop.xlane.xlu0 %616
    %v618 = vsel %vm375, %v595, -inf
    %619 = vmax.xlane.f32.xlu0 %v618
    %v620 = vpop.xlane.xlu0 %619
    %v621 = vsub.f32 %v399, %v599
    %v622 = vsub.f32 %v427, %v602
    %v623 = vsub.f32 %v455, %v605
    %v624 = vsub.f32 %v483, %v608
    %v625 = vsub.f32 %v511, %v611
    %v626 = vsub.f32 %v539, %v614
    %v627 = vsub.f32 %v567, %v617
    %v628 = vsub.f32 %v595, %v620
    %v629 = vmul.f32 %v621, 1.442695
    %v630 = vpow.pop %v629
    %v631 = vmul.f32 %v622, 1.442695
    %v632 = vpow.pop %v631
    %v633 = vmul.f32 %v623, 1.442695
    %v634 = vpow.pop %v633
    %v635 = vmul.f32 %v624, 1.442695
    %v636 = vpow.pop %v635
    %v637 = vmul.f32 %v625, 1.442695
    %v638 = vpow.pop %v637
    %v639 = vmul.f32 %v626, 1.442695
    %v640 = vpow.pop %v639
    %v641 = vmul.f32 %v627, 1.442695
    %v642 = vpow.pop %v641
    %v643 = vmul.f32 %v628, 1.442695
    %v644 = vpow.pop %v643
    %v645 = vsel %vm375, %v630, 0.0
    %646 = vadd.xlane.f32.xlu0 %v645
    %v647 = vpop.xlane.xlu0 %646
    %v648 = vsel %vm375, %v632, 0.0
    %649 = vadd.xlane.f32.xlu0 %v648
    %v650 = vpop.xlane.xlu0 %649
    %v651 = vsel %vm375, %v634, 0.0
    %652 = vadd.xlane.f32.xlu0 %v651
    %v653 = vpop.xlane.xlu0 %652
    %v654 = vsel %vm375, %v636, 0.0
    %655 = vadd.xlane.f32.xlu0 %v654
    %v656 = vpop.xlane.xlu0 %655
    %v657 = vsel %vm375, %v638, 0.0
    %658 = vadd.xlane.f32.xlu0 %v657
    %v659 = vpop.xlane.xlu0 %658
    %v660 = vsel %vm375, %v640, 0.0
    %661 = vadd.xlane.f32.xlu0 %v660
    %v662 = vpop.xlane.xlu0 %661
    %v663 = vsel %vm375, %v642, 0.0
    %664 = vadd.xlane.f32.xlu0 %v663
    %v665 = vpop.xlane.xlu0 %664
    %v666 = vsel %vm375, %v644, 0.0
    %667 = vadd.xlane.f32.xlu0 %v666
    %v668 = vpop.xlane.xlu0 %667
    %v669 = vrcp.pop %v647
    %v670 = vrcp.pop %v650
    %v671 = vrcp.pop %v653
    %v672 = vrcp.pop %v656
    %v673 = vrcp.pop %v659
    %v674 = vrcp.pop %v662
    %v675 = vrcp.pop %v665
    %v676 = vrcp.pop %v668
    %v677 = vmul.f32 %v630, %v669
    %v678 = vmul.f32 %v632, %v670
    %v679 = vmul.f32 %v634, %v671
    %v680 = vmul.f32 %v636, %v672
    %v681 = vmul.f32 %v638, %v673
    %v682 = vmul.f32 %v640, %v674
    %v683 = vmul.f32 %v642, %v675
    %v684 = vmul.f32 %v644, %v676
    %685 = vrot.lane.b32.xlu0 %v341, 64
    %v686 = vpop.permute.xlu0 %685
    %v689 = vsel %vm375, %v677, 0
    %691 = vmatpush.msra.mxu0 0.0
    %692 = vmatpush.msra.mxu0 0.0
    %693 = vmatpush.msra.mxu0 0.0
    %694 = vmatpush.msra.mxu0 0.0
    %695 = vmatpush.msra.mxu0 0.0
    %696 = vmatpush.msra.mxu0 0.0
    %697 = vmatpush.msra.mxu0 0.0
    %698 = vmatpush.msra.mxu0 0.0
    %699 = vmatpush.msra.mxu0 0.0
    %700 = vmatpush.msra.mxu0 0.0
    %701 = vmatpush.msra.mxu0 0.0
    %702 = vmatpush.msra.mxu0 0.0
    %703 = vmatpush.msra.mxu0 0.0
    %704 = vmatpush.msra.mxu0 0.0
    %705 = vmatpush.msra.mxu0 0.0
    %706 = vmatpush.msra.mxu0 %v686
    %707 = vmatmul.f32.gmra.mxu0 %v689
    %v708 = vpop.f32.mrf.mxu0
    %v709 = vadd.f32 0.0, %v708
    %710 = vdwg.mxu0
    %711 = vrot.lane.b32.xlu0 %v344, 64
    %v712 = vpop.permute.xlu0 %711
    %v715 = vsel %vm375, %v678, 0
    %717 = vmatpush.msra.mxu0 0.0
    %718 = vmatpush.msra.mxu0 0.0
    %719 = vmatpush.msra.mxu0 0.0
    %720 = vmatpush.msra.mxu0 0.0
    %721 = vmatpush.msra.mxu0 0.0
    %722 = vmatpush.msra.mxu0 0.0
    %723 = vmatpush.msra.mxu0 0.0
    %724 = vmatpush.msra.mxu0 0.0
    %725 = vmatpush.msra.mxu0 0.0
    %726 = vmatpush.msra.mxu0 0.0
    %727 = vmatpush.msra.mxu0 0.0
    %728 = vmatpush.msra.mxu0 0.0
    %729 = vmatpush.msra.mxu0 0.0
    %730 = vmatpush.msra.mxu0 0.0
    %731 = vmatpush.msra.mxu0 0.0
    %732 = vmatpush.msra.mxu0 %v712
    %733 = vmatmul.f32.gmra.mxu0 %v715
    %v734 = vpop.f32.mrf.mxu0
    %v735 = vadd.f32 0.0, %v734
    %736 = vdwg.mxu0
    %737 = vrot.lane.b32.xlu0 %v347, 64
    %v738 = vpop.permute.xlu0 %737
    %v741 = vsel %vm375, %v679, 0
    %743 = vmatpush.msra.mxu0 0.0
    %744 = vmatpush.msra.mxu0 0.0
    %745 = vmatpush.msra.mxu0 0.0
    %746 = vmatpush.msra.mxu0 0.0
    %747 = vmatpush.msra.mxu0 0.0
    %748 = vmatpush.msra.mxu0 0.0
    %749 = vmatpush.msra.mxu0 0.0
    %750 = vmatpush.msra.mxu0 0.0
    %751 = vmatpush.msra.mxu0 0.0
    %752 = vmatpush.msra.mxu0 0.0
    %753 = vmatpush.msra.mxu0 0.0
    %754 = vmatpush.msra.mxu0 0.0
    %755 = vmatpush.msra.mxu0 0.0
    %756 = vmatpush.msra.mxu0 0.0
    %757 = vmatpush.msra.mxu0 0.0
    %758 = vmatpush.msra.mxu0 %v738
    %759 = vmatmul.f32.gmra.mxu0 %v741
    %v760 = vpop.f32.mrf.mxu0
    %v761 = vadd.f32 0.0, %v760
    %762 = vdwg.mxu0
    %763 = vrot.lane.b32.xlu0 %v350, 64
    %v764 = vpop.permute.xlu0 %763
    %v767 = vsel %vm375, %v680, 0
    %769 = vmatpush.msra.mxu0 0.0
    %770 = vmatpush.msra.mxu0 0.0
    %771 = vmatpush.msra.mxu0 0.0
    %772 = vmatpush.msra.mxu0 0.0
    %773 = vmatpush.msra.mxu0 0.0
    %774 = vmatpush.msra.mxu0 0.0
    %775 = vmatpush.msra.mxu0 0.0
    %776 = vmatpush.msra.mxu0 0.0
    %777 = vmatpush.msra.mxu0 0.0
    %778 = vmatpush.msra.mxu0 0.0
    %779 = vmatpush.msra.mxu0 0.0
    %780 = vmatpush.msra.mxu0 0.0
    %781 = vmatpush.msra.mxu0 0.0
    %782 = vmatpush.msra.mxu0 0.0
    %783 = vmatpush.msra.mxu0 0.0
    %784 = vmatpush.msra.mxu0 %v764
    %785 = vmatmul.f32.gmra.mxu0 %v767
    %v786 = vpop.f32.mrf.mxu0
    %v787 = vadd.f32 0.0, %v786
    %788 = vdwg.mxu0
    %789 = vrot.lane.b32.xlu0 %v353, 64
    %v790 = vpop.permute.xlu0 %789
    %v793 = vsel %vm375, %v681, 0
    %795 = vmatpush.msra.mxu0 0.0
    %796 = vmatpush.msra.mxu0 0.0
    %797 = vmatpush.msra.mxu0 0.0
    %798 = vmatpush.msra.mxu0 0.0
    %799 = vmatpush.msra.mxu0 0.0
    %800 = vmatpush.msra.mxu0 0.0
    %801 = vmatpush.msra.mxu0 0.0
    %802 = vmatpush.msra.mxu0 0.0
    %803 = vmatpush.msra.mxu0 0.0
    %804 = vmatpush.msra.mxu0 0.0
    %805 = vmatpush.msra.mxu0 0.0
    %806 = vmatpush.msra.mxu0 0.0
    %807 = vmatpush.msra.mxu0 0.0
    %808 = vmatpush.msra.mxu0 0.0
    %809 = vmatpush.msra.mxu0 0.0
    %810 = vmatpush.msra.mxu0 %v790
    %811 = vmatmul.f32.gmra.mxu0 %v793
    %v812 = vpop.f32.mrf.mxu0
    %v813 = vadd.f32 0.0, %v812
    %814 = vdwg.mxu0
    %815 = vrot.lane.b32.xlu0 %v356, 64
    %v816 = vpop.permute.xlu0 %815
    %v819 = vsel %vm375, %v682, 0
    %821 = vmatpush.msra.mxu0 0.0
    %822 = vmatpush.msra.mxu0 0.0
    %823 = vmatpush.msra.mxu0 0.0
    %824 = vmatpush.msra.mxu0 0.0
    %825 = vmatpush.msra.mxu0 0.0
    %826 = vmatpush.msra.mxu0 0.0
    %827 = vmatpush.msra.mxu0 0.0
    %828 = vmatpush.msra.mxu0 0.0
    %829 = vmatpush.msra.mxu0 0.0
    %830 = vmatpush.msra.mxu0 0.0
    %831 = vmatpush.msra.mxu0 0.0
    %832 = vmatpush.msra.mxu0 0.0
    %833 = vmatpush.msra.mxu0 0.0
    %834 = vmatpush.msra.mxu0 0.0
    %835 = vmatpush.msra.mxu0 0.0
    %836 = vmatpush.msra.mxu0 %v816
    %837 = vmatmul.f32.gmra.mxu0 %v819
    %v838 = vpop.f32.mrf.mxu0
    %v839 = vadd.f32 0.0, %v838
    %840 = vdwg.mxu0
    %841 = vrot.lane.b32.xlu0 %v359, 64
    %v842 = vpop.permute.xlu0 %841
    %v845 = vsel %vm375, %v683, 0
    %847 = vmatpush.msra.mxu0 0.0
    %848 = vmatpush.msra.mxu0 0.0
    %849 = vmatpush.msra.mxu0 0.0
    %850 = vmatpush.msra.mxu0 0.0
    %851 = vmatpush.msra.mxu0 0.0
    %852 = vmatpush.msra.mxu0 0.0
    %853 = vmatpush.msra.mxu0 0.0
    %854 = vmatpush.msra.mxu0 0.0
    %855 = vmatpush.msra.mxu0 0.0
    %856 = vmatpush.msra.mxu0 0.0
    %857 = vmatpush.msra.mxu0 0.0
    %858 = vmatpush.msra.mxu0 0.0
    %859 = vmatpush.msra.mxu0 0.0
    %860 = vmatpush.msra.mxu0 0.0
    %861 = vmatpush.msra.mxu0 0.0
    %862 = vmatpush.msra.mxu0 %v842
    %863 = vmatmul.f32.gmra.mxu0 %v845
    %v864 = vpop.f32.mrf.mxu0
    %v865 = vadd.f32 0.0, %v864
    %866 = vdwg.mxu0
    %867 = vrot.lane.b32.xlu0 %v362, 64
    %v868 = vpop.permute.xlu0 %867
    %v871 = vsel %vm375, %v684, 0
    %873 = vmatpush.msra.mxu0 0.0
    %874 = vmatpush.msra.mxu0 0.0
    %875 = vmatpush.msra.mxu0 0.0
    %876 = vmatpush.msra.mxu0 0.0
    %877 = vmatpush.msra.mxu0 0.0
    %878 = vmatpush.msra.mxu0 0.0
    %879 = vmatpush.msra.mxu0 0.0
    %880 = vmatpush.msra.mxu0 0.0
    %881 = vmatpush.msra.mxu0 0.0
    %882 = vmatpush.msra.mxu0 0.0
    %883 = vmatpush.msra.mxu0 0.0
    %884 = vmatpush.msra.mxu0 0.0
    %885 = vmatpush.msra.mxu0 0.0
    %886 = vmatpush.msra.mxu0 0.0
    %887 = vmatpush.msra.mxu0 0.0
    %888 = vmatpush.msra.mxu0 %v868
    %889 = vmatmul.f32.gmra.mxu0 %v871
    %v890 = vpop.f32.mrf.mxu0
    %v891 = vadd.f32 0.0, %v890
    %892 = vdwg.mxu0
    %893 = vrot.lane.b32.xlu0 %v364, 120
    %v894 = vpop.permute.xlu0 %893
    %895 = vrot.lane.b32.xlu0 %v341, 88
    %v896 = vpop.permute.xlu0 %895
    %v897 = vsel %vm375, %v894, 0
    %v899 = vsel %vm375, %v896, 0
    %901 = vmatpush.xpose.msra.mxu0 0.0
    %902 = vmatpush.xpose.msra.mxu0 0.0
    %903 = vmatpush.xpose.msra.mxu0 0.0
    %904 = vmatpush.xpose.msra.mxu0 0.0
    %905 = vmatpush.xpose.msra.mxu0 0.0
    %906 = vmatpush.xpose.msra.mxu0 0.0
    %907 = vmatpush.xpose.msra.mxu0 0.0
    %908 = vmatpush.xpose.msra.mxu0 0.0
    %909 = vmatpush.xpose.msra.mxu0 0.0
    %910 = vmatpush.xpose.msra.mxu0 0.0
    %911 = vmatpush.xpose.msra.mxu0 0.0
    %912 = vmatpush.xpose.msra.mxu0 0.0
    %913 = vmatpush.xpose.msra.mxu0 0.0
    %914 = vmatpush.xpose.msra.mxu0 0.0
    %915 = vmatpush.xpose.msra.mxu0 0.0
    %916 = vmatpush.xpose.msra.mxu0 %v899
    %917 = vmatmul.f32.gmra.mxu0 %v897
    %v918 = vpop.f32.mrf.mxu0
    %v919 = vadd.f32 %v82, %v918
    %920 = vdwg.mxu0
    %921 = vrot.lane.b32.xlu0 %v365, 120
    %v922 = vpop.permute.xlu0 %921
    %923 = vrot.lane.b32.xlu0 %v344, 88
    %v924 = vpop.permute.xlu0 %923
    %v925 = vsel %vm375, %v922, 0
    %v927 = vsel %vm375, %v924, 0
    %929 = vmatpush.xpose.msra.mxu0 0.0
    %930 = vmatpush.xpose.msra.mxu0 0.0
    %931 = vmatpush.xpose.msra.mxu0 0.0
    %932 = vmatpush.xpose.msra.mxu0 0.0
    %933 = vmatpush.xpose.msra.mxu0 0.0
    %934 = vmatpush.xpose.msra.mxu0 0.0
    %935 = vmatpush.xpose.msra.mxu0 0.0
    %936 = vmatpush.xpose.msra.mxu0 0.0
    %937 = vmatpush.xpose.msra.mxu0 0.0
    %938 = vmatpush.xpose.msra.mxu0 0.0
    %939 = vmatpush.xpose.msra.mxu0 0.0
    %940 = vmatpush.xpose.msra.mxu0 0.0
    %941 = vmatpush.xpose.msra.mxu0 0.0
    %942 = vmatpush.xpose.msra.mxu0 0.0
    %943 = vmatpush.xpose.msra.mxu0 0.0
    %944 = vmatpush.xpose.msra.mxu0 %v927
    %945 = vmatmul.f32.gmra.mxu0 %v925
    %v946 = vpop.f32.mrf.mxu0
    %v947 = vadd.f32 %v82, %v946
    %948 = vdwg.mxu0
    %949 = vrot.lane.b32.xlu0 %v366, 120
    %v950 = vpop.permute.xlu0 %949
    %951 = vrot.lane.b32.xlu0 %v347, 88
    %v952 = vpop.permute.xlu0 %951
    %v953 = vsel %vm375, %v950, 0
    %v955 = vsel %vm375, %v952, 0
    %957 = vmatpush.xpose.msra.mxu0 0.0
    %958 = vmatpush.xpose.msra.mxu0 0.0
    %959 = vmatpush.xpose.msra.mxu0 0.0
    %960 = vmatpush.xpose.msra.mxu0 0.0
    %961 = vmatpush.xpose.msra.mxu0 0.0
    %962 = vmatpush.xpose.msra.mxu0 0.0
    %963 = vmatpush.xpose.msra.mxu0 0.0
    %964 = vmatpush.xpose.msra.mxu0 0.0
    %965 = vmatpush.xpose.msra.mxu0 0.0
    %966 = vmatpush.xpose.msra.mxu0 0.0
    %967 = vmatpush.xpose.msra.mxu0 0.0
    %968 = vmatpush.xpose.msra.mxu0 0.0
    %969 = vmatpush.xpose.msra.mxu0 0.0
    %970 = vmatpush.xpose.msra.mxu0 0.0
    %971 = vmatpush.xpose.msra.mxu0 0.0
    %972 = vmatpush.xpose.msra.mxu0 %v955
    %973 = vmatmul.f32.gmra.mxu0 %v953
    %v974 = vpop.f32.mrf.mxu0
    %v975 = vadd.f32 %v82, %v974
    %976 = vdwg.mxu0
    %977 = vrot.lane.b32.xlu0 %v367, 120
    %v978 = vpop.permute.xlu0 %977
    %979 = vrot.lane.b32.xlu0 %v350, 88
    %v980 = vpop.permute.xlu0 %979
    %v981 = vsel %vm375, %v978, 0
    %v983 = vsel %vm375, %v980, 0
    %985 = vmatpush.xpose.msra.mxu0 0.0
    %986 = vmatpush.xpose.msra.mxu0 0.0
    %987 = vmatpush.xpose.msra.mxu0 0.0
    %988 = vmatpush.xpose.msra.mxu0 0.0
    %989 = vmatpush.xpose.msra.mxu0 0.0
    %990 = vmatpush.xpose.msra.mxu0 0.0
    %991 = vmatpush.xpose.msra.mxu0 0.0
    %992 = vmatpush.xpose.msra.mxu0 0.0
    %993 = vmatpush.xpose.msra.mxu0 0.0
    %994 = vmatpush.xpose.msra.mxu0 0.0
    %995 = vmatpush.xpose.msra.mxu0 0.0
    %996 = vmatpush.xpose.msra.mxu0 0.0
    %997 = vmatpush.xpose.msra.mxu0 0.0
    %998 = vmatpush.xpose.msra.mxu0 0.0
    %999 = vmatpush.xpose.msra.mxu0 0.0
    %1000 = vmatpush.xpose.msra.mxu0 %v983
    %1001 = vmatmul.f32.gmra.mxu0 %v981
    %v1002 = vpop.f32.mrf.mxu0
    %v1003 = vadd.f32 %v82, %v1002
    %1004 = vdwg.mxu0
    %1005 = vrot.lane.b32.xlu0 %v368, 120
    %v1006 = vpop.permute.xlu0 %1005
    %1007 = vrot.lane.b32.xlu0 %v353, 88
    %v1008 = vpop.permute.xlu0 %1007
    %v1009 = vsel %vm375, %v1006, 0
    %v1011 = vsel %vm375, %v1008, 0
    %1013 = vmatpush.xpose.msra.mxu0 0.0
    %1014 = vmatpush.xpose.msra.mxu0 0.0
    %1015 = vmatpush.xpose.msra.mxu0 0.0
    %1016 = vmatpush.xpose.msra.mxu0 0.0
    %1017 = vmatpush.xpose.msra.mxu0 0.0
    %1018 = vmatpush.xpose.msra.mxu0 0.0
    %1019 = vmatpush.xpose.msra.mxu0 0.0
    %1020 = vmatpush.xpose.msra.mxu0 0.0
    %1021 = vmatpush.xpose.msra.mxu0 0.0
    %1022 = vmatpush.xpose.msra.mxu0 0.0
    %1023 = vmatpush.xpose.msra.mxu0 0.0
    %1024 = vmatpush.xpose.msra.mxu0 0.0
    %1025 = vmatpush.xpose.msra.mxu0 0.0
    %1026 = vmatpush.xpose.msra.mxu0 0.0
    %1027 = vmatpush.xpose.msra.mxu0 0.0
    %1028 = vmatpush.xpose.msra.mxu0 %v1011
    %1029 = vmatmul.f32.gmra.mxu0 %v1009
    %v1030 = vpop.f32.mrf.mxu0
    %v1031 = vadd.f32 %v82, %v1030
    %1032 = vdwg.mxu0
    %1033 = vrot.lane.b32.xlu0 %v369, 120
    %v1034 = vpop.permute.xlu0 %1033
    %1035 = vrot.lane.b32.xlu0 %v356, 88
    %v1036 = vpop.permute.xlu0 %1035
    %v1037 = vsel %vm375, %v1034, 0
    %v1039 = vsel %vm375, %v1036, 0
    %1041 = vmatpush.xpose.msra.mxu0 0.0
    %1042 = vmatpush.xpose.msra.mxu0 0.0
    %1043 = vmatpush.xpose.msra.mxu0 0.0
    %1044 = vmatpush.xpose.msra.mxu0 0.0
    %1045 = vmatpush.xpose.msra.mxu0 0.0
    %1046 = vmatpush.xpose.msra.mxu0 0.0
    %1047 = vmatpush.xpose.msra.mxu0 0.0
    %1048 = vmatpush.xpose.msra.mxu0 0.0
    %1049 = vmatpush.xpose.msra.mxu0 0.0
    %1050 = vmatpush.xpose.msra.mxu0 0.0
    %1051 = vmatpush.xpose.msra.mxu0 0.0
    %1052 = vmatpush.xpose.msra.mxu0 0.0
    %1053 = vmatpush.xpose.msra.mxu0 0.0
    %1054 = vmatpush.xpose.msra.mxu0 0.0
    %1055 = vmatpush.xpose.msra.mxu0 0.0
    %1056 = vmatpush.xpose.msra.mxu0 %v1039
    %1057 = vmatmul.f32.gmra.mxu0 %v1037
    %v1058 = vpop.f32.mrf.mxu0
    %v1059 = vadd.f32 %v82, %v1058
    %1060 = vdwg.mxu0
    %1061 = vrot.lane.b32.xlu0 %v370, 120
    %v1062 = vpop.permute.xlu0 %1061
    %1063 = vrot.lane.b32.xlu0 %v359, 88
    %v1064 = vpop.permute.xlu0 %1063
    %v1065 = vsel %vm375, %v1062, 0
    %v1067 = vsel %vm375, %v1064, 0
    %1069 = vmatpush.xpose.msra.mxu0 0.0
    %1070 = vmatpush.xpose.msra.mxu0 0.0
    %1071 = vmatpush.xpose.msra.mxu0 0.0
    %1072 = vmatpush.xpose.msra.mxu0 0.0
    %1073 = vmatpush.xpose.msra.mxu0 0.0
    %1074 = vmatpush.xpose.msra.mxu0 0.0
    %1075 = vmatpush.xpose.msra.mxu0 0.0
    %1076 = vmatpush.xpose.msra.mxu0 0.0
    %1077 = vmatpush.xpose.msra.mxu0 0.0
    %1078 = vmatpush.xpose.msra.mxu0 0.0
    %1079 = vmatpush.xpose.msra.mxu0 0.0
    %1080 = vmatpush.xpose.msra.mxu0 0.0
    %1081 = vmatpush.xpose.msra.mxu0 0.0
    %1082 = vmatpush.xpose.msra.mxu0 0.0
    %1083 = vmatpush.xpose.msra.mxu0 0.0
    %1084 = vmatpush.xpose.msra.mxu0 %v1067
    %1085 = vmatmul.f32.gmra.mxu0 %v1065
    %v1086 = vpop.f32.mrf.mxu0
    %v1087 = vadd.f32 %v82, %v1086
    %1088 = vdwg.mxu0
    %1089 = vrot.lane.b32.xlu0 %v371, 120
    %v1090 = vpop.permute.xlu0 %1089
    %1091 = vrot.lane.b32.xlu0 %v362, 88
    %v1092 = vpop.permute.xlu0 %1091
    %v1093 = vsel %vm375, %v1090, 0
    %v1095 = vsel %vm375, %v1092, 0
    %1097 = vmatpush.xpose.msra.mxu0 0.0
    %1098 = vmatpush.xpose.msra.mxu0 0.0
    %1099 = vmatpush.xpose.msra.mxu0 0.0
    %1100 = vmatpush.xpose.msra.mxu0 0.0
    %1101 = vmatpush.xpose.msra.mxu0 0.0
    %1102 = vmatpush.xpose.msra.mxu0 0.0
    %1103 = vmatpush.xpose.msra.mxu0 0.0
    %1104 = vmatpush.xpose.msra.mxu0 0.0
    %1105 = vmatpush.xpose.msra.mxu0 0.0
    %1106 = vmatpush.xpose.msra.mxu0 0.0
    %1107 = vmatpush.xpose.msra.mxu0 0.0
    %1108 = vmatpush.xpose.msra.mxu0 0.0
    %1109 = vmatpush.xpose.msra.mxu0 0.0
    %1110 = vmatpush.xpose.msra.mxu0 0.0
    %1111 = vmatpush.xpose.msra.mxu0 0.0
    %1112 = vmatpush.xpose.msra.mxu0 %v1095
    %1113 = vmatmul.f32.gmra.mxu0 %v1093
    %v1114 = vpop.f32.mrf.mxu0
    %v1115 = vadd.f32 %v82, %v1114
    %1116 = vdwg.mxu0
    %v1117 = vsel %vm375, %v919, -inf
    %1118 = vmax.xlane.f32.xlu0 %v1117
    %v1119 = vpop.xlane.xlu0 %1118
    %v1120 = vsel %vm375, %v947, -inf
    %1121 = vmax.xlane.f32.xlu0 %v1120
    %v1122 = vpop.xlane.xlu0 %1121
    %v1123 = vsel %vm375, %v975, -inf
    %1124 = vmax.xlane.f32.xlu0 %v1123
    %v1125 = vpop.xlane.xlu0 %1124
    %v1126 = vsel %vm375, %v1003, -inf
    %1127 = vmax.xlane.f32.xlu0 %v1126
    %v1128 = vpop.xlane.xlu0 %1127
    %v1129 = vsel %vm375, %v1031, -inf
    %1130 = vmax.xlane.f32.xlu0 %v1129
    %v1131 = vpop.xlane.xlu0 %1130
    %v1132 = vsel %vm375, %v1059, -inf
    %1133 = vmax.xlane.f32.xlu0 %v1132
    %v1134 = vpop.xlane.xlu0 %1133
    %v1135 = vsel %vm375, %v1087, -inf
    %1136 = vmax.xlane.f32.xlu0 %v1135
    %v1137 = vpop.xlane.xlu0 %1136
    %v1138 = vsel %vm375, %v1115, -inf
    %1139 = vmax.xlane.f32.xlu0 %v1138
    %v1140 = vpop.xlane.xlu0 %1139
    %v1141 = vsub.f32 %v919, %v1119
    %v1142 = vsub.f32 %v947, %v1122
    %v1143 = vsub.f32 %v975, %v1125
    %v1144 = vsub.f32 %v1003, %v1128
    %v1145 = vsub.f32 %v1031, %v1131
    %v1146 = vsub.f32 %v1059, %v1134
    %v1147 = vsub.f32 %v1087, %v1137
    %v1148 = vsub.f32 %v1115, %v1140
    %v1149 = vmul.f32 %v1141, 1.442695
    %v1150 = vpow.pop %v1149
    %v1151 = vmul.f32 %v1142, 1.442695
    %v1152 = vpow.pop %v1151
    %v1153 = vmul.f32 %v1143, 1.442695
    %v1154 = vpow.pop %v1153
    %v1155 = vmul.f32 %v1144, 1.442695
    %v1156 = vpow.pop %v1155
    %v1157 = vmul.f32 %v1145, 1.442695
    %v1158 = vpow.pop %v1157
    %v1159 = vmul.f32 %v1146, 1.442695
    %v1160 = vpow.pop %v1159
    %v1161 = vmul.f32 %v1147, 1.442695
    %v1162 = vpow.pop %v1161
    %v1163 = vmul.f32 %v1148, 1.442695
    %v1164 = vpow.pop %v1163
    %v1165 = vsel %vm375, %v1150, 0.0
    %1166 = vadd.xlane.f32.xlu0 %v1165
    %v1167 = vpop.xlane.xlu0 %1166
    %v1168 = vsel %vm375, %v1152, 0.0
    %1169 = vadd.xlane.f32.xlu0 %v1168
    %v1170 = vpop.xlane.xlu0 %1169
    %v1171 = vsel %vm375, %v1154, 0.0
    %1172 = vadd.xlane.f32.xlu0 %v1171
    %v1173 = vpop.xlane.xlu0 %1172
    %v1174 = vsel %vm375, %v1156, 0.0
    %1175 = vadd.xlane.f32.xlu0 %v1174
    %v1176 = vpop.xlane.xlu0 %1175
    %v1177 = vsel %vm375, %v1158, 0.0
    %1178 = vadd.xlane.f32.xlu0 %v1177
    %v1179 = vpop.xlane.xlu0 %1178
    %v1180 = vsel %vm375, %v1160, 0.0
    %1181 = vadd.xlane.f32.xlu0 %v1180
    %v1182 = vpop.xlane.xlu0 %1181
    %v1183 = vsel %vm375, %v1162, 0.0
    %1184 = vadd.xlane.f32.xlu0 %v1183
    %v1185 = vpop.xlane.xlu0 %1184
    %v1186 = vsel %vm375, %v1164, 0.0
    %1187 = vadd.xlane.f32.xlu0 %v1186
    %v1188 = vpop.xlane.xlu0 %1187
    %v1189 = vrcp.pop %v1167
    %v1190 = vrcp.pop %v1170
    %v1191 = vrcp.pop %v1173
    %v1192 = vrcp.pop %v1176
    %v1193 = vrcp.pop %v1179
    %v1194 = vrcp.pop %v1182
    %v1195 = vrcp.pop %v1185
    %v1196 = vrcp.pop %v1188
    %v1197 = vmul.f32 %v1150, %v1189
    %v1198 = vmul.f32 %v1152, %v1190
    %v1199 = vmul.f32 %v1154, %v1191
    %v1200 = vmul.f32 %v1156, %v1192
    %v1201 = vmul.f32 %v1158, %v1193
    %v1202 = vmul.f32 %v1160, %v1194
    %v1203 = vmul.f32 %v1162, %v1195
    %v1204 = vmul.f32 %v1164, %v1196
    %1205 = vrot.lane.b32.xlu0 %v341, 56
    %v1206 = vpop.permute.xlu0 %1205
    %v1209 = vsel %vm375, %v1197, 0
    %1211 = vmatpush.msra.mxu0 0.0
    %1212 = vmatpush.msra.mxu0 0.0
    %1213 = vmatpush.msra.mxu0 0.0
    %1214 = vmatpush.msra.mxu0 0.0
    %1215 = vmatpush.msra.mxu0 0.0
    %1216 = vmatpush.msra.mxu0 0.0
    %1217 = vmatpush.msra.mxu0 0.0
    %1218 = vmatpush.msra.mxu0 0.0
    %1219 = vmatpush.msra.mxu0 0.0
    %1220 = vmatpush.msra.mxu0 0.0
    %1221 = vmatpush.msra.mxu0 0.0
    %1222 = vmatpush.msra.mxu0 0.0
    %1223 = vmatpush.msra.mxu0 0.0
    %1224 = vmatpush.msra.mxu0 0.0
    %1225 = vmatpush.msra.mxu0 0.0
    %1226 = vmatpush.msra.mxu0 %v1206
    %1227 = vmatmul.f32.gmra.mxu0 %v1209
    %v1228 = vpop.f32.mrf.mxu0
    %v1229 = vadd.f32 0.0, %v1228
    %1230 = vdwg.mxu0
    %1231 = vrot.lane.b32.xlu0 %v344, 56
    %v1232 = vpop.permute.xlu0 %1231
    %v1235 = vsel %vm375, %v1198, 0
    %1237 = vmatpush.msra.mxu0 0.0
    %1238 = vmatpush.msra.mxu0 0.0
    %1239 = vmatpush.msra.mxu0 0.0
    %1240 = vmatpush.msra.mxu0 0.0
    %1241 = vmatpush.msra.mxu0 0.0
    %1242 = vmatpush.msra.mxu0 0.0
    %1243 = vmatpush.msra.mxu0 0.0
    %1244 = vmatpush.msra.mxu0 0.0
    %1245 = vmatpush.msra.mxu0 0.0
    %1246 = vmatpush.msra.mxu0 0.0
    %1247 = vmatpush.msra.mxu0 0.0
    %1248 = vmatpush.msra.mxu0 0.0
    %1249 = vmatpush.msra.mxu0 0.0
    %1250 = vmatpush.msra.mxu0 0.0
    %1251 = vmatpush.msra.mxu0 0.0
    %1252 = vmatpush.msra.mxu0 %v1232
    %1253 = vmatmul.f32.gmra.mxu0 %v1235
    %v1254 = vpop.f32.mrf.mxu0
    %v1255 = vadd.f32 0.0, %v1254
    %1256 = vdwg.mxu0
    %1257 = vrot.lane.b32.xlu0 %v347, 56
    %v1258 = vpop.permute.xlu0 %1257
    %v1261 = vsel %vm375, %v1199, 0
    %1263 = vmatpush.msra.mxu0 0.0
    %1264 = vmatpush.msra.mxu0 0.0
    %1265 = vmatpush.msra.mxu0 0.0
    %1266 = vmatpush.msra.mxu0 0.0
    %1267 = vmatpush.msra.mxu0 0.0
    %1268 = vmatpush.msra.mxu0 0.0
    %1269 = vmatpush.msra.mxu0 0.0
    %1270 = vmatpush.msra.mxu0 0.0
    %1271 = vmatpush.msra.mxu0 0.0
    %1272 = vmatpush.msra.mxu0 0.0
    %1273 = vmatpush.msra.mxu0 0.0
    %1274 = vmatpush.msra.mxu0 0.0
    %1275 = vmatpush.msra.mxu0 0.0
    %1276 = vmatpush.msra.mxu0 0.0
    %1277 = vmatpush.msra.mxu0 0.0
    %1278 = vmatpush.msra.mxu0 %v1258
    %1279 = vmatmul.f32.gmra.mxu0 %v1261
    %v1280 = vpop.f32.mrf.mxu0
    %v1281 = vadd.f32 0.0, %v1280
    %1282 = vdwg.mxu0
    %1283 = vrot.lane.b32.xlu0 %v350, 56
    %v1284 = vpop.permute.xlu0 %1283
    %v1287 = vsel %vm375, %v1200, 0
    %1289 = vmatpush.msra.mxu0 0.0
    %1290 = vmatpush.msra.mxu0 0.0
    %1291 = vmatpush.msra.mxu0 0.0
    %1292 = vmatpush.msra.mxu0 0.0
    %1293 = vmatpush.msra.mxu0 0.0
    %1294 = vmatpush.msra.mxu0 0.0
    %1295 = vmatpush.msra.mxu0 0.0
    %1296 = vmatpush.msra.mxu0 0.0
    %1297 = vmatpush.msra.mxu0 0.0
    %1298 = vmatpush.msra.mxu0 0.0
    %1299 = vmatpush.msra.mxu0 0.0
    %1300 = vmatpush.msra.mxu0 0.0
    %1301 = vmatpush.msra.mxu0 0.0
    %1302 = vmatpush.msra.mxu0 0.0
    %1303 = vmatpush.msra.mxu0 0.0
    %1304 = vmatpush.msra.mxu0 %v1284
    %1305 = vmatmul.f32.gmra.mxu0 %v1287
    %v1306 = vpop.f32.mrf.mxu0
    %v1307 = vadd.f32 0.0, %v1306
    %1308 = vdwg.mxu0
    %1309 = vrot.lane.b32.xlu0 %v353, 56
    %v1310 = vpop.permute.xlu0 %1309
    %v1313 = vsel %vm375, %v1201, 0
    %1315 = vmatpush.msra.mxu0 0.0
    %1316 = vmatpush.msra.mxu0 0.0
    %1317 = vmatpush.msra.mxu0 0.0
    %1318 = vmatpush.msra.mxu0 0.0
    %1319 = vmatpush.msra.mxu0 0.0
    %1320 = vmatpush.msra.mxu0 0.0
    %1321 = vmatpush.msra.mxu0 0.0
    %1322 = vmatpush.msra.mxu0 0.0
    %1323 = vmatpush.msra.mxu0 0.0
    %1324 = vmatpush.msra.mxu0 0.0
    %1325 = vmatpush.msra.mxu0 0.0
    %1326 = vmatpush.msra.mxu0 0.0
    %1327 = vmatpush.msra.mxu0 0.0
    %1328 = vmatpush.msra.mxu0 0.0
    %1329 = vmatpush.msra.mxu0 0.0
    %1330 = vmatpush.msra.mxu0 %v1310
    %1331 = vmatmul.f32.gmra.mxu0 %v1313
    %v1332 = vpop.f32.mrf.mxu0
    %v1333 = vadd.f32 0.0, %v1332
    %1334 = vdwg.mxu0
    %1335 = vrot.lane.b32.xlu0 %v356, 56
    %v1336 = vpop.permute.xlu0 %1335
    %v1339 = vsel %vm375, %v1202, 0
    %1341 = vmatpush.msra.mxu0 0.0
    %1342 = vmatpush.msra.mxu0 0.0
    %1343 = vmatpush.msra.mxu0 0.0
    %1344 = vmatpush.msra.mxu0 0.0
    %1345 = vmatpush.msra.mxu0 0.0
    %1346 = vmatpush.msra.mxu0 0.0
    %1347 = vmatpush.msra.mxu0 0.0
    %1348 = vmatpush.msra.mxu0 0.0
    %1349 = vmatpush.msra.mxu0 0.0
    %1350 = vmatpush.msra.mxu0 0.0
    %1351 = vmatpush.msra.mxu0 0.0
    %1352 = vmatpush.msra.mxu0 0.0
    %1353 = vmatpush.msra.mxu0 0.0
    %1354 = vmatpush.msra.mxu0 0.0
    %1355 = vmatpush.msra.mxu0 0.0
    %1356 = vmatpush.msra.mxu0 %v1336
    %1357 = vmatmul.f32.gmra.mxu0 %v1339
    %v1358 = vpop.f32.mrf.mxu0
    %v1359 = vadd.f32 0.0, %v1358
    %1360 = vdwg.mxu0
    %1361 = vrot.lane.b32.xlu0 %v359, 56
    %v1362 = vpop.permute.xlu0 %1361
    %v1365 = vsel %vm375, %v1203, 0
    %1367 = vmatpush.msra.mxu0 0.0
    %1368 = vmatpush.msra.mxu0 0.0
    %1369 = vmatpush.msra.mxu0 0.0
    %1370 = vmatpush.msra.mxu0 0.0
    %1371 = vmatpush.msra.mxu0 0.0
    %1372 = vmatpush.msra.mxu0 0.0
    %1373 = vmatpush.msra.mxu0 0.0
    %1374 = vmatpush.msra.mxu0 0.0
    %1375 = vmatpush.msra.mxu0 0.0
    %1376 = vmatpush.msra.mxu0 0.0
    %1377 = vmatpush.msra.mxu0 0.0
    %1378 = vmatpush.msra.mxu0 0.0
    %1379 = vmatpush.msra.mxu0 0.0
    %1380 = vmatpush.msra.mxu0 0.0
    %1381 = vmatpush.msra.mxu0 0.0
    %1382 = vmatpush.msra.mxu0 %v1362
    %1383 = vmatmul.f32.gmra.mxu0 %v1365
    %v1384 = vpop.f32.mrf.mxu0
    %v1385 = vadd.f32 0.0, %v1384
    %1386 = vdwg.mxu0
    %1387 = vrot.lane.b32.xlu0 %v362, 56
    %v1388 = vpop.permute.xlu0 %1387
    %v1391 = vsel %vm375, %v1204, 0
    %1393 = vmatpush.msra.mxu0 0.0
    %1394 = vmatpush.msra.mxu0 0.0
    %1395 = vmatpush.msra.mxu0 0.0
    %1396 = vmatpush.msra.mxu0 0.0
    %1397 = vmatpush.msra.mxu0 0.0
    %1398 = vmatpush.msra.mxu0 0.0
    %1399 = vmatpush.msra.mxu0 0.0
    %1400 = vmatpush.msra.mxu0 0.0
    %1401 = vmatpush.msra.mxu0 0.0
    %1402 = vmatpush.msra.mxu0 0.0
    %1403 = vmatpush.msra.mxu0 0.0
    %1404 = vmatpush.msra.mxu0 0.0
    %1405 = vmatpush.msra.mxu0 0.0
    %1406 = vmatpush.msra.mxu0 0.0
    %1407 = vmatpush.msra.mxu0 0.0
    %1408 = vmatpush.msra.mxu0 %v1388
    %1409 = vmatmul.f32.gmra.mxu0 %v1391
    %v1410 = vpop.f32.mrf.mxu0
    %v1411 = vadd.f32 0.0, %v1410
    %1412 = vdwg.mxu0
    %1413 = vrot.lane.b32.xlu0 %v364, 112
    %v1414 = vpop.permute.xlu0 %1413
    %1415 = vrot.lane.b32.xlu0 %v341, 80
    %v1416 = vpop.permute.xlu0 %1415
    %v1417 = vsel %vm375, %v1414, 0
    %v1419 = vsel %vm375, %v1416, 0
    %1421 = vmatpush.xpose.msra.mxu0 0.0
    %1422 = vmatpush.xpose.msra.mxu0 0.0
    %1423 = vmatpush.xpose.msra.mxu0 0.0
    %1424 = vmatpush.xpose.msra.mxu0 0.0
    %1425 = vmatpush.xpose.msra.mxu0 0.0
    %1426 = vmatpush.xpose.msra.mxu0 0.0
    %1427 = vmatpush.xpose.msra.mxu0 0.0
    %1428 = vmatpush.xpose.msra.mxu0 0.0
    %1429 = vmatpush.xpose.msra.mxu0 0.0
    %1430 = vmatpush.xpose.msra.mxu0 0.0
    %1431 = vmatpush.xpose.msra.mxu0 0.0
    %1432 = vmatpush.xpose.msra.mxu0 0.0
    %1433 = vmatpush.xpose.msra.mxu0 0.0
    %1434 = vmatpush.xpose.msra.mxu0 0.0
    %1435 = vmatpush.xpose.msra.mxu0 0.0
    %1436 = vmatpush.xpose.msra.mxu0 %v1419
    %1437 = vmatmul.f32.gmra.mxu0 %v1417
    %v1438 = vpop.f32.mrf.mxu0
    %v1439 = vadd.f32 %v82, %v1438
    %1440 = vdwg.mxu0
    %1441 = vrot.lane.b32.xlu0 %v365, 112
    %v1442 = vpop.permute.xlu0 %1441
    %1443 = vrot.lane.b32.xlu0 %v344, 80
    %v1444 = vpop.permute.xlu0 %1443
    %v1445 = vsel %vm375, %v1442, 0
    %v1447 = vsel %vm375, %v1444, 0
    %1449 = vmatpush.xpose.msra.mxu0 0.0
    %1450 = vmatpush.xpose.msra.mxu0 0.0
    %1451 = vmatpush.xpose.msra.mxu0 0.0
    %1452 = vmatpush.xpose.msra.mxu0 0.0
    %1453 = vmatpush.xpose.msra.mxu0 0.0
    %1454 = vmatpush.xpose.msra.mxu0 0.0
    %1455 = vmatpush.xpose.msra.mxu0 0.0
    %1456 = vmatpush.xpose.msra.mxu0 0.0
    %1457 = vmatpush.xpose.msra.mxu0 0.0
    %1458 = vmatpush.xpose.msra.mxu0 0.0
    %1459 = vmatpush.xpose.msra.mxu0 0.0
    %1460 = vmatpush.xpose.msra.mxu0 0.0
    %1461 = vmatpush.xpose.msra.mxu0 0.0
    %1462 = vmatpush.xpose.msra.mxu0 0.0
    %1463 = vmatpush.xpose.msra.mxu0 0.0
    %1464 = vmatpush.xpose.msra.mxu0 %v1447
    %1465 = vmatmul.f32.gmra.mxu0 %v1445
    %v1466 = vpop.f32.mrf.mxu0
    %v1467 = vadd.f32 %v82, %v1466
    %1468 = vdwg.mxu0
    %1469 = vrot.lane.b32.xlu0 %v366, 112
    %v1470 = vpop.permute.xlu0 %1469
    %1471 = vrot.lane.b32.xlu0 %v347, 80
    %v1472 = vpop.permute.xlu0 %1471
    %v1473 = vsel %vm375, %v1470, 0
    %v1475 = vsel %vm375, %v1472, 0
    %1477 = vmatpush.xpose.msra.mxu0 0.0
    %1478 = vmatpush.xpose.msra.mxu0 0.0
    %1479 = vmatpush.xpose.msra.mxu0 0.0
    %1480 = vmatpush.xpose.msra.mxu0 0.0
    %1481 = vmatpush.xpose.msra.mxu0 0.0
    %1482 = vmatpush.xpose.msra.mxu0 0.0
    %1483 = vmatpush.xpose.msra.mxu0 0.0
    %1484 = vmatpush.xpose.msra.mxu0 0.0
    %1485 = vmatpush.xpose.msra.mxu0 0.0
    %1486 = vmatpush.xpose.msra.mxu0 0.0
    %1487 = vmatpush.xpose.msra.mxu0 0.0
    %1488 = vmatpush.xpose.msra.mxu0 0.0
    %1489 = vmatpush.xpose.msra.mxu0 0.0
    %1490 = vmatpush.xpose.msra.mxu0 0.0
    %1491 = vmatpush.xpose.msra.mxu0 0.0
    %1492 = vmatpush.xpose.msra.mxu0 %v1475
    %1493 = vmatmul.f32.gmra.mxu0 %v1473
    %v1494 = vpop.f32.mrf.mxu0
    %v1495 = vadd.f32 %v82, %v1494
    %1496 = vdwg.mxu0
    %1497 = vrot.lane.b32.xlu0 %v367, 112
    %v1498 = vpop.permute.xlu0 %1497
    %1499 = vrot.lane.b32.xlu0 %v350, 80
    %v1500 = vpop.permute.xlu0 %1499
    %v1501 = vsel %vm375, %v1498, 0
    %v1503 = vsel %vm375, %v1500, 0
    %1505 = vmatpush.xpose.msra.mxu0 0.0
    %1506 = vmatpush.xpose.msra.mxu0 0.0
    %1507 = vmatpush.xpose.msra.mxu0 0.0
    %1508 = vmatpush.xpose.msra.mxu0 0.0
    %1509 = vmatpush.xpose.msra.mxu0 0.0
    %1510 = vmatpush.xpose.msra.mxu0 0.0
    %1511 = vmatpush.xpose.msra.mxu0 0.0
    %1512 = vmatpush.xpose.msra.mxu0 0.0
    %1513 = vmatpush.xpose.msra.mxu0 0.0
    %1514 = vmatpush.xpose.msra.mxu0 0.0
    %1515 = vmatpush.xpose.msra.mxu0 0.0
    %1516 = vmatpush.xpose.msra.mxu0 0.0
    %1517 = vmatpush.xpose.msra.mxu0 0.0
    %1518 = vmatpush.xpose.msra.mxu0 0.0
    %1519 = vmatpush.xpose.msra.mxu0 0.0
    %1520 = vmatpush.xpose.msra.mxu0 %v1503
    %1521 = vmatmul.f32.gmra.mxu0 %v1501
    %v1522 = vpop.f32.mrf.mxu0
    %v1523 = vadd.f32 %v82, %v1522
    %1524 = vdwg.mxu0
    %1525 = vrot.lane.b32.xlu0 %v368, 112
    %v1526 = vpop.permute.xlu0 %1525
    %1527 = vrot.lane.b32.xlu0 %v353, 80
    %v1528 = vpop.permute.xlu0 %1527
    %v1529 = vsel %vm375, %v1526, 0
    %v1531 = vsel %vm375, %v1528, 0
    %1533 = vmatpush.xpose.msra.mxu0 0.0
    %1534 = vmatpush.xpose.msra.mxu0 0.0
    %1535 = vmatpush.xpose.msra.mxu0 0.0
    %1536 = vmatpush.xpose.msra.mxu0 0.0
    %1537 = vmatpush.xpose.msra.mxu0 0.0
    %1538 = vmatpush.xpose.msra.mxu0 0.0
    %1539 = vmatpush.xpose.msra.mxu0 0.0
    %1540 = vmatpush.xpose.msra.mxu0 0.0
    %1541 = vmatpush.xpose.msra.mxu0 0.0
    %1542 = vmatpush.xpose.msra.mxu0 0.0
    %1543 = vmatpush.xpose.msra.mxu0 0.0
    %1544 = vmatpush.xpose.msra.mxu0 0.0
    %1545 = vmatpush.xpose.msra.mxu0 0.0
    %1546 = vmatpush.xpose.msra.mxu0 0.0
    %1547 = vmatpush.xpose.msra.mxu0 0.0
    %1548 = vmatpush.xpose.msra.mxu0 %v1531
    %1549 = vmatmul.f32.gmra.mxu0 %v1529
    %v1550 = vpop.f32.mrf.mxu0
    %v1551 = vadd.f32 %v82, %v1550
    %1552 = vdwg.mxu0
    %1553 = vrot.lane.b32.xlu0 %v369, 112
    %v1554 = vpop.permute.xlu0 %1553
    %1555 = vrot.lane.b32.xlu0 %v356, 80
    %v1556 = vpop.permute.xlu0 %1555
    %v1557 = vsel %vm375, %v1554, 0
    %v1559 = vsel %vm375, %v1556, 0
    %1561 = vmatpush.xpose.msra.mxu0 0.0
    %1562 = vmatpush.xpose.msra.mxu0 0.0
    %1563 = vmatpush.xpose.msra.mxu0 0.0
    %1564 = vmatpush.xpose.msra.mxu0 0.0
    %1565 = vmatpush.xpose.msra.mxu0 0.0
    %1566 = vmatpush.xpose.msra.mxu0 0.0
    %1567 = vmatpush.xpose.msra.mxu0 0.0
    %1568 = vmatpush.xpose.msra.mxu0 0.0
    %1569 = vmatpush.xpose.msra.mxu0 0.0
    %1570 = vmatpush.xpose.msra.mxu0 0.0
    %1571 = vmatpush.xpose.msra.mxu0 0.0
    %1572 = vmatpush.xpose.msra.mxu0 0.0
    %1573 = vmatpush.xpose.msra.mxu0 0.0
    %1574 = vmatpush.xpose.msra.mxu0 0.0
    %1575 = vmatpush.xpose.msra.mxu0 0.0
    %1576 = vmatpush.xpose.msra.mxu0 %v1559
    %1577 = vmatmul.f32.gmra.mxu0 %v1557
    %v1578 = vpop.f32.mrf.mxu0
    %v1579 = vadd.f32 %v82, %v1578
    %1580 = vdwg.mxu0
    %1581 = vrot.lane.b32.xlu0 %v370, 112
    %v1582 = vpop.permute.xlu0 %1581
    %1583 = vrot.lane.b32.xlu0 %v359, 80
    %v1584 = vpop.permute.xlu0 %1583
    %v1585 = vsel %vm375, %v1582, 0
    %v1587 = vsel %vm375, %v1584, 0
    %1589 = vmatpush.xpose.msra.mxu0 0.0
    %1590 = vmatpush.xpose.msra.mxu0 0.0
    %1591 = vmatpush.xpose.msra.mxu0 0.0
    %1592 = vmatpush.xpose.msra.mxu0 0.0
    %1593 = vmatpush.xpose.msra.mxu0 0.0
    %1594 = vmatpush.xpose.msra.mxu0 0.0
    %1595 = vmatpush.xpose.msra.mxu0 0.0
    %1596 = vmatpush.xpose.msra.mxu0 0.0
    %1597 = vmatpush.xpose.msra.mxu0 0.0
    %1598 = vmatpush.xpose.msra.mxu0 0.0
    %1599 = vmatpush.xpose.msra.mxu0 0.0
    %1600 = vmatpush.xpose.msra.mxu0 0.0
    %1601 = vmatpush.xpose.msra.mxu0 0.0
    %1602 = vmatpush.xpose.msra.mxu0 0.0
    %1603 = vmatpush.xpose.msra.mxu0 0.0
    %1604 = vmatpush.xpose.msra.mxu0 %v1587
    %1605 = vmatmul.f32.gmra.mxu0 %v1585
    %v1606 = vpop.f32.mrf.mxu0
    %v1607 = vadd.f32 %v82, %v1606
    %1608 = vdwg.mxu0
    %1609 = vrot.lane.b32.xlu0 %v371, 112
    %v1610 = vpop.permute.xlu0 %1609
    %1611 = vrot.lane.b32.xlu0 %v362, 80
    %v1612 = vpop.permute.xlu0 %1611
    %v1613 = vsel %vm375, %v1610, 0
    %v1615 = vsel %vm375, %v1612, 0
    %1617 = vmatpush.xpose.msra.mxu0 0.0
    %1618 = vmatpush.xpose.msra.mxu0 0.0
    %1619 = vmatpush.xpose.msra.mxu0 0.0
    %1620 = vmatpush.xpose.msra.mxu0 0.0
    %1621 = vmatpush.xpose.msra.mxu0 0.0
    %1622 = vmatpush.xpose.msra.mxu0 0.0
    %1623 = vmatpush.xpose.msra.mxu0 0.0
    %1624 = vmatpush.xpose.msra.mxu0 0.0
    %1625 = vmatpush.xpose.msra.mxu0 0.0
    %1626 = vmatpush.xpose.msra.mxu0 0.0
    %1627 = vmatpush.xpose.msra.mxu0 0.0
    %1628 = vmatpush.xpose.msra.mxu0 0.0
    %1629 = vmatpush.xpose.msra.mxu0 0.0
    %1630 = vmatpush.xpose.msra.mxu0 0.0
    %1631 = vmatpush.xpose.msra.mxu0 0.0
    %1632 = vmatpush.xpose.msra.mxu0 %v1615
    %1633 = vmatmul.f32.gmra.mxu0 %v1613
    %v1634 = vpop.f32.mrf.mxu0
    %v1635 = vadd.f32 %v82, %v1634
    %1636 = vdwg.mxu0
    %v1637 = vsel %vm375, %v1439, -inf
    %1638 = vmax.xlane.f32.xlu0 %v1637
    %v1639 = vpop.xlane.xlu0 %1638
    %v1640 = vsel %vm375, %v1467, -inf
    %1641 = vmax.xlane.f32.xlu0 %v1640
    %v1642 = vpop.xlane.xlu0 %1641
    %v1643 = vsel %vm375, %v1495, -inf
    %1644 = vmax.xlane.f32.xlu0 %v1643
    %v1645 = vpop.xlane.xlu0 %1644
    %v1646 = vsel %vm375, %v1523, -inf
    %1647 = vmax.xlane.f32.xlu0 %v1646
    %v1648 = vpop.xlane.xlu0 %1647
    %v1649 = vsel %vm375, %v1551, -inf
    %1650 = vmax.xlane.f32.xlu0 %v1649
    %v1651 = vpop.xlane.xlu0 %1650
    %v1652 = vsel %vm375, %v1579, -inf
    %1653 = vmax.xlane.f32.xlu0 %v1652
    %v1654 = vpop.xlane.xlu0 %1653
    %v1655 = vsel %vm375, %v1607, -inf
    %1656 = vmax.xlane.f32.xlu0 %v1655
    %v1657 = vpop.xlane.xlu0 %1656
    %v1658 = vsel %vm375, %v1635, -inf
    %1659 = vmax.xlane.f32.xlu0 %v1658
    %v1660 = vpop.xlane.xlu0 %1659
    %v1661 = vsub.f32 %v1439, %v1639
    %v1662 = vsub.f32 %v1467, %v1642
    %v1663 = vsub.f32 %v1495, %v1645
    %v1664 = vsub.f32 %v1523, %v1648
    %v1665 = vsub.f32 %v1551, %v1651
    %v1666 = vsub.f32 %v1579, %v1654
    %v1667 = vsub.f32 %v1607, %v1657
    %v1668 = vsub.f32 %v1635, %v1660
    %v1669 = vmul.f32 %v1661, 1.442695
    %v1670 = vpow.pop %v1669
    %v1671 = vmul.f32 %v1662, 1.442695
    %v1672 = vpow.pop %v1671
    %v1673 = vmul.f32 %v1663, 1.442695
    %v1674 = vpow.pop %v1673
    %v1675 = vmul.f32 %v1664, 1.442695
    %v1676 = vpow.pop %v1675
    %v1677 = vmul.f32 %v1665, 1.442695
    %v1678 = vpow.pop %v1677
    %v1679 = vmul.f32 %v1666, 1.442695
    %v1680 = vpow.pop %v1679
    %v1681 = vmul.f32 %v1667, 1.442695
    %v1682 = vpow.pop %v1681
    %v1683 = vmul.f32 %v1668, 1.442695
    %v1684 = vpow.pop %v1683
    %v1685 = vsel %vm375, %v1670, 0.0
    %1686 = vadd.xlane.f32.xlu0 %v1685
    %v1687 = vpop.xlane.xlu0 %1686
    %v1688 = vsel %vm375, %v1672, 0.0
    %1689 = vadd.xlane.f32.xlu0 %v1688
    %v1690 = vpop.xlane.xlu0 %1689
    %v1691 = vsel %vm375, %v1674, 0.0
    %1692 = vadd.xlane.f32.xlu0 %v1691
    %v1693 = vpop.xlane.xlu0 %1692
    %v1694 = vsel %vm375, %v1676, 0.0
    %1695 = vadd.xlane.f32.xlu0 %v1694
    %v1696 = vpop.xlane.xlu0 %1695
    %v1697 = vsel %vm375, %v1678, 0.0
    %1698 = vadd.xlane.f32.xlu0 %v1697
    %v1699 = vpop.xlane.xlu0 %1698
    %v1700 = vsel %vm375, %v1680, 0.0
    %1701 = vadd.xlane.f32.xlu0 %v1700
    %v1702 = vpop.xlane.xlu0 %1701
    %v1703 = vsel %vm375, %v1682, 0.0
    %1704 = vadd.xlane.f32.xlu0 %v1703
    %v1705 = vpop.xlane.xlu0 %1704
    %v1706 = vsel %vm375, %v1684, 0.0
    %1707 = vadd.xlane.f32.xlu0 %v1706
    %v1708 = vpop.xlane.xlu0 %1707
    %v1709 = vrcp.pop %v1687
    %v1710 = vrcp.pop %v1690
    %v1711 = vrcp.pop %v1693
    %v1712 = vrcp.pop %v1696
    %v1713 = vrcp.pop %v1699
    %v1714 = vrcp.pop %v1702
    %v1715 = vrcp.pop %v1705
    %v1716 = vrcp.pop %v1708
    %v1717 = vmul.f32 %v1670, %v1709
    %v1718 = vmul.f32 %v1672, %v1710
    %v1719 = vmul.f32 %v1674, %v1711
    %v1720 = vmul.f32 %v1676, %v1712
    %v1721 = vmul.f32 %v1678, %v1713
    %v1722 = vmul.f32 %v1680, %v1714
    %v1723 = vmul.f32 %v1682, %v1715
    %v1724 = vmul.f32 %v1684, %v1716
    %1725 = vrot.lane.b32.xlu0 %v341, 48
    %v1726 = vpop.permute.xlu0 %1725
    %v1729 = vsel %vm375, %v1717, 0
    %1731 = vmatpush.msra.mxu0 0.0
    %1732 = vmatpush.msra.mxu0 0.0
    %1733 = vmatpush.msra.mxu0 0.0
    %1734 = vmatpush.msra.mxu0 0.0
    %1735 = vmatpush.msra.mxu0 0.0
    %1736 = vmatpush.msra.mxu0 0.0
    %1737 = vmatpush.msra.mxu0 0.0
    %1738 = vmatpush.msra.mxu0 0.0
    %1739 = vmatpush.msra.mxu0 0.0
    %1740 = vmatpush.msra.mxu0 0.0
    %1741 = vmatpush.msra.mxu0 0.0
    %1742 = vmatpush.msra.mxu0 0.0
    %1743 = vmatpush.msra.mxu0 0.0
    %1744 = vmatpush.msra.mxu0 0.0
    %1745 = vmatpush.msra.mxu0 0.0
    %1746 = vmatpush.msra.mxu0 %v1726
    %1747 = vmatmul.f32.gmra.mxu0 %v1729
    %v1748 = vpop.f32.mrf.mxu0
    %v1749 = vadd.f32 0.0, %v1748
    %1750 = vdwg.mxu0
    %1751 = vrot.lane.b32.xlu0 %v344, 48
    %v1752 = vpop.permute.xlu0 %1751
    %v1755 = vsel %vm375, %v1718, 0
    %1757 = vmatpush.msra.mxu0 0.0
    %1758 = vmatpush.msra.mxu0 0.0
    %1759 = vmatpush.msra.mxu0 0.0
    %1760 = vmatpush.msra.mxu0 0.0
    %1761 = vmatpush.msra.mxu0 0.0
    %1762 = vmatpush.msra.mxu0 0.0
    %1763 = vmatpush.msra.mxu0 0.0
    %1764 = vmatpush.msra.mxu0 0.0
    %1765 = vmatpush.msra.mxu0 0.0
    %1766 = vmatpush.msra.mxu0 0.0
    %1767 = vmatpush.msra.mxu0 0.0
    %1768 = vmatpush.msra.mxu0 0.0
    %1769 = vmatpush.msra.mxu0 0.0
    %1770 = vmatpush.msra.mxu0 0.0
    %1771 = vmatpush.msra.mxu0 0.0
    %1772 = vmatpush.msra.mxu0 %v1752
    %1773 = vmatmul.f32.gmra.mxu0 %v1755
    %v1774 = vpop.f32.mrf.mxu0
    %v1775 = vadd.f32 0.0, %v1774
    %1776 = vdwg.mxu0
    %1777 = vrot.lane.b32.xlu0 %v347, 48
    %v1778 = vpop.permute.xlu0 %1777
    %v1781 = vsel %vm375, %v1719, 0
    %1783 = vmatpush.msra.mxu0 0.0
    %1784 = vmatpush.msra.mxu0 0.0
    %1785 = vmatpush.msra.mxu0 0.0
    %1786 = vmatpush.msra.mxu0 0.0
    %1787 = vmatpush.msra.mxu0 0.0
    %1788 = vmatpush.msra.mxu0 0.0
    %1789 = vmatpush.msra.mxu0 0.0
    %1790 = vmatpush.msra.mxu0 0.0
    %1791 = vmatpush.msra.mxu0 0.0
    %1792 = vmatpush.msra.mxu0 0.0
    %1793 = vmatpush.msra.mxu0 0.0
    %1794 = vmatpush.msra.mxu0 0.0
    %1795 = vmatpush.msra.mxu0 0.0
    %1796 = vmatpush.msra.mxu0 0.0
    %1797 = vmatpush.msra.mxu0 0.0
    %1798 = vmatpush.msra.mxu0 %v1778
    %1799 = vmatmul.f32.gmra.mxu0 %v1781
    %v1800 = vpop.f32.mrf.mxu0
    %v1801 = vadd.f32 0.0, %v1800
    %1802 = vdwg.mxu0
    %1803 = vrot.lane.b32.xlu0 %v350, 48
    %v1804 = vpop.permute.xlu0 %1803
    %v1807 = vsel %vm375, %v1720, 0
    %1809 = vmatpush.msra.mxu0 0.0
    %1810 = vmatpush.msra.mxu0 0.0
    %1811 = vmatpush.msra.mxu0 0.0
    %1812 = vmatpush.msra.mxu0 0.0
    %1813 = vmatpush.msra.mxu0 0.0
    %1814 = vmatpush.msra.mxu0 0.0
    %1815 = vmatpush.msra.mxu0 0.0
    %1816 = vmatpush.msra.mxu0 0.0
    %1817 = vmatpush.msra.mxu0 0.0
    %1818 = vmatpush.msra.mxu0 0.0
    %1819 = vmatpush.msra.mxu0 0.0
    %1820 = vmatpush.msra.mxu0 0.0
    %1821 = vmatpush.msra.mxu0 0.0
    %1822 = vmatpush.msra.mxu0 0.0
    %1823 = vmatpush.msra.mxu0 0.0
    %1824 = vmatpush.msra.mxu0 %v1804
    %1825 = vmatmul.f32.gmra.mxu0 %v1807
    %v1826 = vpop.f32.mrf.mxu0
    %v1827 = vadd.f32 0.0, %v1826
    %1828 = vdwg.mxu0
    %1829 = vrot.lane.b32.xlu0 %v353, 48
    %v1830 = vpop.permute.xlu0 %1829
    %v1833 = vsel %vm375, %v1721, 0
    %1835 = vmatpush.msra.mxu0 0.0
    %1836 = vmatpush.msra.mxu0 0.0
    %1837 = vmatpush.msra.mxu0 0.0
    %1838 = vmatpush.msra.mxu0 0.0
    %1839 = vmatpush.msra.mxu0 0.0
    %1840 = vmatpush.msra.mxu0 0.0
    %1841 = vmatpush.msra.mxu0 0.0
    %1842 = vmatpush.msra.mxu0 0.0
    %1843 = vmatpush.msra.mxu0 0.0
    %1844 = vmatpush.msra.mxu0 0.0
    %1845 = vmatpush.msra.mxu0 0.0
    %1846 = vmatpush.msra.mxu0 0.0
    %1847 = vmatpush.msra.mxu0 0.0
    %1848 = vmatpush.msra.mxu0 0.0
    %1849 = vmatpush.msra.mxu0 0.0
    %1850 = vmatpush.msra.mxu0 %v1830
    %1851 = vmatmul.f32.gmra.mxu0 %v1833
    %v1852 = vpop.f32.mrf.mxu0
    %v1853 = vadd.f32 0.0, %v1852
    %1854 = vdwg.mxu0
    %1855 = vrot.lane.b32.xlu0 %v356, 48
    %v1856 = vpop.permute.xlu0 %1855
    %v1859 = vsel %vm375, %v1722, 0
    %1861 = vmatpush.msra.mxu0 0.0
    %1862 = vmatpush.msra.mxu0 0.0
    %1863 = vmatpush.msra.mxu0 0.0
    %1864 = vmatpush.msra.mxu0 0.0
    %1865 = vmatpush.msra.mxu0 0.0
    %1866 = vmatpush.msra.mxu0 0.0
    %1867 = vmatpush.msra.mxu0 0.0
    %1868 = vmatpush.msra.mxu0 0.0
    %1869 = vmatpush.msra.mxu0 0.0
    %1870 = vmatpush.msra.mxu0 0.0
    %1871 = vmatpush.msra.mxu0 0.0
    %1872 = vmatpush.msra.mxu0 0.0
    %1873 = vmatpush.msra.mxu0 0.0
    %1874 = vmatpush.msra.mxu0 0.0
    %1875 = vmatpush.msra.mxu0 0.0
    %1876 = vmatpush.msra.mxu0 %v1856
    %1877 = vmatmul.f32.gmra.mxu0 %v1859
    %v1878 = vpop.f32.mrf.mxu0
    %v1879 = vadd.f32 0.0, %v1878
    %1880 = vdwg.mxu0
    %1881 = vrot.lane.b32.xlu0 %v359, 48
    %v1882 = vpop.permute.xlu0 %1881
    %v1885 = vsel %vm375, %v1723, 0
    %1887 = vmatpush.msra.mxu0 0.0
    %1888 = vmatpush.msra.mxu0 0.0
    %1889 = vmatpush.msra.mxu0 0.0
    %1890 = vmatpush.msra.mxu0 0.0
    %1891 = vmatpush.msra.mxu0 0.0
    %1892 = vmatpush.msra.mxu0 0.0
    %1893 = vmatpush.msra.mxu0 0.0
    %1894 = vmatpush.msra.mxu0 0.0
    %1895 = vmatpush.msra.mxu0 0.0
    %1896 = vmatpush.msra.mxu0 0.0
    %1897 = vmatpush.msra.mxu0 0.0
    %1898 = vmatpush.msra.mxu0 0.0
    %1899 = vmatpush.msra.mxu0 0.0
    %1900 = vmatpush.msra.mxu0 0.0
    %1901 = vmatpush.msra.mxu0 0.0
    %1902 = vmatpush.msra.mxu0 %v1882
    %1903 = vmatmul.f32.gmra.mxu0 %v1885
    %v1904 = vpop.f32.mrf.mxu0
    %v1905 = vadd.f32 0.0, %v1904
    %1906 = vdwg.mxu0
    %1907 = vrot.lane.b32.xlu0 %v362, 48
    %v1908 = vpop.permute.xlu0 %1907
    %v1911 = vsel %vm375, %v1724, 0
    %1913 = vmatpush.msra.mxu0 0.0
    %1914 = vmatpush.msra.mxu0 0.0
    %1915 = vmatpush.msra.mxu0 0.0
    %1916 = vmatpush.msra.mxu0 0.0
    %1917 = vmatpush.msra.mxu0 0.0
    %1918 = vmatpush.msra.mxu0 0.0
    %1919 = vmatpush.msra.mxu0 0.0
    %1920 = vmatpush.msra.mxu0 0.0
    %1921 = vmatpush.msra.mxu0 0.0
    %1922 = vmatpush.msra.mxu0 0.0
    %1923 = vmatpush.msra.mxu0 0.0
    %1924 = vmatpush.msra.mxu0 0.0
    %1925 = vmatpush.msra.mxu0 0.0
    %1926 = vmatpush.msra.mxu0 0.0
    %1927 = vmatpush.msra.mxu0 0.0
    %1928 = vmatpush.msra.mxu0 %v1908
    %1929 = vmatmul.f32.gmra.mxu0 %v1911
    %v1930 = vpop.f32.mrf.mxu0
    %v1931 = vadd.f32 0.0, %v1930
    %1932 = vdwg.mxu0
    %1933 = vrot.lane.b32.xlu0 %v364, 104
    %v1934 = vpop.permute.xlu0 %1933
    %1935 = vrot.lane.b32.xlu0 %v341, 72
    %v1936 = vpop.permute.xlu0 %1935
    %v1937 = vsel %vm375, %v1934, 0
    %v1939 = vsel %vm375, %v1936, 0
    %1941 = vmatpush.xpose.msra.mxu0 0.0
    %1942 = vmatpush.xpose.msra.mxu0 0.0
    %1943 = vmatpush.xpose.msra.mxu0 0.0
    %1944 = vmatpush.xpose.msra.mxu0 0.0
    %1945 = vmatpush.xpose.msra.mxu0 0.0
    %1946 = vmatpush.xpose.msra.mxu0 0.0
    %1947 = vmatpush.xpose.msra.mxu0 0.0
    %1948 = vmatpush.xpose.msra.mxu0 0.0
    %1949 = vmatpush.xpose.msra.mxu0 0.0
    %1950 = vmatpush.xpose.msra.mxu0 0.0
    %1951 = vmatpush.xpose.msra.mxu0 0.0
    %1952 = vmatpush.xpose.msra.mxu0 0.0
    %1953 = vmatpush.xpose.msra.mxu0 0.0
    %1954 = vmatpush.xpose.msra.mxu0 0.0
    %1955 = vmatpush.xpose.msra.mxu0 0.0
    %1956 = vmatpush.xpose.msra.mxu0 %v1939
    %1957 = vmatmul.f32.gmra.mxu0 %v1937
    %v1958 = vpop.f32.mrf.mxu0
    %v1959 = vadd.f32 %v82, %v1958
    %1960 = vdwg.mxu0
    %1961 = vrot.lane.b32.xlu0 %v365, 104
    %v1962 = vpop.permute.xlu0 %1961
    %1963 = vrot.lane.b32.xlu0 %v344, 72
    %v1964 = vpop.permute.xlu0 %1963
    %v1965 = vsel %vm375, %v1962, 0
    %v1967 = vsel %vm375, %v1964, 0
    %1969 = vmatpush.xpose.msra.mxu0 0.0
    %1970 = vmatpush.xpose.msra.mxu0 0.0
    %1971 = vmatpush.xpose.msra.mxu0 0.0
    %1972 = vmatpush.xpose.msra.mxu0 0.0
    %1973 = vmatpush.xpose.msra.mxu0 0.0
    %1974 = vmatpush.xpose.msra.mxu0 0.0
    %1975 = vmatpush.xpose.msra.mxu0 0.0
    %1976 = vmatpush.xpose.msra.mxu0 0.0
    %1977 = vmatpush.xpose.msra.mxu0 0.0
    %1978 = vmatpush.xpose.msra.mxu0 0.0
    %1979 = vmatpush.xpose.msra.mxu0 0.0
    %1980 = vmatpush.xpose.msra.mxu0 0.0
    %1981 = vmatpush.xpose.msra.mxu0 0.0
    %1982 = vmatpush.xpose.msra.mxu0 0.0
    %1983 = vmatpush.xpose.msra.mxu0 0.0
    %1984 = vmatpush.xpose.msra.mxu0 %v1967
    %1985 = vmatmul.f32.gmra.mxu0 %v1965
    %v1986 = vpop.f32.mrf.mxu0
    %v1987 = vadd.f32 %v82, %v1986
    %1988 = vdwg.mxu0
    %1989 = vrot.lane.b32.xlu0 %v366, 104
    %v1990 = vpop.permute.xlu0 %1989
    %1991 = vrot.lane.b32.xlu0 %v347, 72
    %v1992 = vpop.permute.xlu0 %1991
    %v1993 = vsel %vm375, %v1990, 0
    %v1995 = vsel %vm375, %v1992, 0
    %1997 = vmatpush.xpose.msra.mxu0 0.0
    %1998 = vmatpush.xpose.msra.mxu0 0.0
    %1999 = vmatpush.xpose.msra.mxu0 0.0
    %2000 = vmatpush.xpose.msra.mxu0 0.0
    %2001 = vmatpush.xpose.msra.mxu0 0.0
    %2002 = vmatpush.xpose.msra.mxu0 0.0
    %2003 = vmatpush.xpose.msra.mxu0 0.0
    %2004 = vmatpush.xpose.msra.mxu0 0.0
    %2005 = vmatpush.xpose.msra.mxu0 0.0
    %2006 = vmatpush.xpose.msra.mxu0 0.0
    %2007 = vmatpush.xpose.msra.mxu0 0.0
    %2008 = vmatpush.xpose.msra.mxu0 0.0
    %2009 = vmatpush.xpose.msra.mxu0 0.0
    %2010 = vmatpush.xpose.msra.mxu0 0.0
    %2011 = vmatpush.xpose.msra.mxu0 0.0
    %2012 = vmatpush.xpose.msra.mxu0 %v1995
    %2013 = vmatmul.f32.gmra.mxu0 %v1993
    %v2014 = vpop.f32.mrf.mxu0
    %v2015 = vadd.f32 %v82, %v2014
    %2016 = vdwg.mxu0
    %2017 = vrot.lane.b32.xlu0 %v367, 104
    %v2018 = vpop.permute.xlu0 %2017
    %2019 = vrot.lane.b32.xlu0 %v350, 72
    %v2020 = vpop.permute.xlu0 %2019
    %v2021 = vsel %vm375, %v2018, 0
    %v2023 = vsel %vm375, %v2020, 0
    %2025 = vmatpush.xpose.msra.mxu0 0.0
    %2026 = vmatpush.xpose.msra.mxu0 0.0
    %2027 = vmatpush.xpose.msra.mxu0 0.0
    %2028 = vmatpush.xpose.msra.mxu0 0.0
    %2029 = vmatpush.xpose.msra.mxu0 0.0
    %2030 = vmatpush.xpose.msra.mxu0 0.0
    %2031 = vmatpush.xpose.msra.mxu0 0.0
    %2032 = vmatpush.xpose.msra.mxu0 0.0
    %2033 = vmatpush.xpose.msra.mxu0 0.0
    %2034 = vmatpush.xpose.msra.mxu0 0.0
    %2035 = vmatpush.xpose.msra.mxu0 0.0
    %2036 = vmatpush.xpose.msra.mxu0 0.0
    %2037 = vmatpush.xpose.msra.mxu0 0.0
    %2038 = vmatpush.xpose.msra.mxu0 0.0
    %2039 = vmatpush.xpose.msra.mxu0 0.0
    %2040 = vmatpush.xpose.msra.mxu0 %v2023
    %2041 = vmatmul.f32.gmra.mxu0 %v2021
    %v2042 = vpop.f32.mrf.mxu0
    %v2043 = vadd.f32 %v82, %v2042
    %2044 = vdwg.mxu0
    %2045 = vrot.lane.b32.xlu0 %v368, 104
    %v2046 = vpop.permute.xlu0 %2045
    %2047 = vrot.lane.b32.xlu0 %v353, 72
    %v2048 = vpop.permute.xlu0 %2047
    %v2049 = vsel %vm375, %v2046, 0
    %v2051 = vsel %vm375, %v2048, 0
    %2053 = vmatpush.xpose.msra.mxu0 0.0
    %2054 = vmatpush.xpose.msra.mxu0 0.0
    %2055 = vmatpush.xpose.msra.mxu0 0.0
    %2056 = vmatpush.xpose.msra.mxu0 0.0
    %2057 = vmatpush.xpose.msra.mxu0 0.0
    %2058 = vmatpush.xpose.msra.mxu0 0.0
    %2059 = vmatpush.xpose.msra.mxu0 0.0
    %2060 = vmatpush.xpose.msra.mxu0 0.0
    %2061 = vmatpush.xpose.msra.mxu0 0.0
    %2062 = vmatpush.xpose.msra.mxu0 0.0
    %2063 = vmatpush.xpose.msra.mxu0 0.0
    %2064 = vmatpush.xpose.msra.mxu0 0.0
    %2065 = vmatpush.xpose.msra.mxu0 0.0
    %2066 = vmatpush.xpose.msra.mxu0 0.0
    %2067 = vmatpush.xpose.msra.mxu0 0.0
    %2068 = vmatpush.xpose.msra.mxu0 %v2051
    %2069 = vmatmul.f32.gmra.mxu0 %v2049
    %v2070 = vpop.f32.mrf.mxu0
    %v2071 = vadd.f32 %v82, %v2070
    %2072 = vdwg.mxu0
    %2073 = vrot.lane.b32.xlu0 %v369, 104
    %v2074 = vpop.permute.xlu0 %2073
    %2075 = vrot.lane.b32.xlu0 %v356, 72
    %v2076 = vpop.permute.xlu0 %2075
    %v2077 = vsel %vm375, %v2074, 0
    %v2079 = vsel %vm375, %v2076, 0
    %2081 = vmatpush.xpose.msra.mxu0 0.0
    %2082 = vmatpush.xpose.msra.mxu0 0.0
    %2083 = vmatpush.xpose.msra.mxu0 0.0
    %2084 = vmatpush.xpose.msra.mxu0 0.0
    %2085 = vmatpush.xpose.msra.mxu0 0.0
    %2086 = vmatpush.xpose.msra.mxu0 0.0
    %2087 = vmatpush.xpose.msra.mxu0 0.0
    %2088 = vmatpush.xpose.msra.mxu0 0.0
    %2089 = vmatpush.xpose.msra.mxu0 0.0
    %2090 = vmatpush.xpose.msra.mxu0 0.0
    %2091 = vmatpush.xpose.msra.mxu0 0.0
    %2092 = vmatpush.xpose.msra.mxu0 0.0
    %2093 = vmatpush.xpose.msra.mxu0 0.0
    %2094 = vmatpush.xpose.msra.mxu0 0.0
    %2095 = vmatpush.xpose.msra.mxu0 0.0
    %2096 = vmatpush.xpose.msra.mxu0 %v2079
    %2097 = vmatmul.f32.gmra.mxu0 %v2077
    %v2098 = vpop.f32.mrf.mxu0
    %v2099 = vadd.f32 %v82, %v2098
    %2100 = vdwg.mxu0
    %2101 = vrot.lane.b32.xlu0 %v370, 104
    %v2102 = vpop.permute.xlu0 %2101
    %2103 = vrot.lane.b32.xlu0 %v359, 72
    %v2104 = vpop.permute.xlu0 %2103
    %v2105 = vsel %vm375, %v2102, 0
    %v2107 = vsel %vm375, %v2104, 0
    %2109 = vmatpush.xpose.msra.mxu0 0.0
    %2110 = vmatpush.xpose.msra.mxu0 0.0
    %2111 = vmatpush.xpose.msra.mxu0 0.0
    %2112 = vmatpush.xpose.msra.mxu0 0.0
    %2113 = vmatpush.xpose.msra.mxu0 0.0
    %2114 = vmatpush.xpose.msra.mxu0 0.0
    %2115 = vmatpush.xpose.msra.mxu0 0.0
    %2116 = vmatpush.xpose.msra.mxu0 0.0
    %2117 = vmatpush.xpose.msra.mxu0 0.0
    %2118 = vmatpush.xpose.msra.mxu0 0.0
    %2119 = vmatpush.xpose.msra.mxu0 0.0
    %2120 = vmatpush.xpose.msra.mxu0 0.0
    %2121 = vmatpush.xpose.msra.mxu0 0.0
    %2122 = vmatpush.xpose.msra.mxu0 0.0
    %2123 = vmatpush.xpose.msra.mxu0 0.0
    %2124 = vmatpush.xpose.msra.mxu0 %v2107
    %2125 = vmatmul.f32.gmra.mxu0 %v2105
    %v2126 = vpop.f32.mrf.mxu0
    %v2127 = vadd.f32 %v82, %v2126
    %2128 = vdwg.mxu0
    %2129 = vrot.lane.b32.xlu0 %v371, 104
    %v2130 = vpop.permute.xlu0 %2129
    %2131 = vrot.lane.b32.xlu0 %v362, 72
    %v2132 = vpop.permute.xlu0 %2131
    %v2133 = vsel %vm375, %v2130, 0
    %v2135 = vsel %vm375, %v2132, 0
    %2137 = vmatpush.xpose.msra.mxu0 0.0
    %2138 = vmatpush.xpose.msra.mxu0 0.0
    %2139 = vmatpush.xpose.msra.mxu0 0.0
    %2140 = vmatpush.xpose.msra.mxu0 0.0
    %2141 = vmatpush.xpose.msra.mxu0 0.0
    %2142 = vmatpush.xpose.msra.mxu0 0.0
    %2143 = vmatpush.xpose.msra.mxu0 0.0
    %2144 = vmatpush.xpose.msra.mxu0 0.0
    %2145 = vmatpush.xpose.msra.mxu0 0.0
    %2146 = vmatpush.xpose.msra.mxu0 0.0
    %2147 = vmatpush.xpose.msra.mxu0 0.0
    %2148 = vmatpush.xpose.msra.mxu0 0.0
    %2149 = vmatpush.xpose.msra.mxu0 0.0
    %2150 = vmatpush.xpose.msra.mxu0 0.0
    %2151 = vmatpush.xpose.msra.mxu0 0.0
    %2152 = vmatpush.xpose.msra.mxu0 %v2135
    %2153 = vmatmul.f32.gmra.mxu0 %v2133
    %v2154 = vpop.f32.mrf.mxu0
    %v2155 = vadd.f32 %v82, %v2154
    %2156 = vdwg.mxu0
    %v2157 = vsel %vm375, %v1959, -inf
    %2158 = vmax.xlane.f32.xlu0 %v2157
    %v2159 = vpop.xlane.xlu0 %2158
    %v2160 = vsel %vm375, %v1987, -inf
    %2161 = vmax.xlane.f32.xlu0 %v2160
    %v2162 = vpop.xlane.xlu0 %2161
    %v2163 = vsel %vm375, %v2015, -inf
    %2164 = vmax.xlane.f32.xlu0 %v2163
    %v2165 = vpop.xlane.xlu0 %2164
    %v2166 = vsel %vm375, %v2043, -inf
    %2167 = vmax.xlane.f32.xlu0 %v2166
    %v2168 = vpop.xlane.xlu0 %2167
    %v2169 = vsel %vm375, %v2071, -inf
    %2170 = vmax.xlane.f32.xlu0 %v2169
    %v2171 = vpop.xlane.xlu0 %2170
    %v2172 = vsel %vm375, %v2099, -inf
    %2173 = vmax.xlane.f32.xlu0 %v2172
    %v2174 = vpop.xlane.xlu0 %2173
    %v2175 = vsel %vm375, %v2127, -inf
    %2176 = vmax.xlane.f32.xlu0 %v2175
    %v2177 = vpop.xlane.xlu0 %2176
    %v2178 = vsel %vm375, %v2155, -inf
    %2179 = vmax.xlane.f32.xlu0 %v2178
    %v2180 = vpop.xlane.xlu0 %2179
    %v2181 = vsub.f32 %v1959, %v2159
    %v2182 = vsub.f32 %v1987, %v2162
    %v2183 = vsub.f32 %v2015, %v2165
    %v2184 = vsub.f32 %v2043, %v2168
    %v2185 = vsub.f32 %v2071, %v2171
    %v2186 = vsub.f32 %v2099, %v2174
    %v2187 = vsub.f32 %v2127, %v2177
    %v2188 = vsub.f32 %v2155, %v2180
    %v2189 = vmul.f32 %v2181, 1.442695
    %v2190 = vpow.pop %v2189
    %v2191 = vmul.f32 %v2182, 1.442695
    %v2192 = vpow.pop %v2191
    %v2193 = vmul.f32 %v2183, 1.442695
    %v2194 = vpow.pop %v2193
    %v2195 = vmul.f32 %v2184, 1.442695
    %v2196 = vpow.pop %v2195
    %v2197 = vmul.f32 %v2185, 1.442695
    %v2198 = vpow.pop %v2197
    %v2199 = vmul.f32 %v2186, 1.442695
    %v2200 = vpow.pop %v2199
    %v2201 = vmul.f32 %v2187, 1.442695
    %v2202 = vpow.pop %v2201
    %v2203 = vmul.f32 %v2188, 1.442695
    %v2204 = vpow.pop %v2203
    %v2205 = vsel %vm375, %v2190, 0.0
    %2206 = vadd.xlane.f32.xlu0 %v2205
    %v2207 = vpop.xlane.xlu0 %2206
    %v2208 = vsel %vm375, %v2192, 0.0
    %2209 = vadd.xlane.f32.xlu0 %v2208
    %v2210 = vpop.xlane.xlu0 %2209
    %v2211 = vsel %vm375, %v2194, 0.0
    %2212 = vadd.xlane.f32.xlu0 %v2211
    %v2213 = vpop.xlane.xlu0 %2212
    %v2214 = vsel %vm375, %v2196, 0.0
    %2215 = vadd.xlane.f32.xlu0 %v2214
    %v2216 = vpop.xlane.xlu0 %2215
    %v2217 = vsel %vm375, %v2198, 0.0
    %2218 = vadd.xlane.f32.xlu0 %v2217
    %v2219 = vpop.xlane.xlu0 %2218
    %v2220 = vsel %vm375, %v2200, 0.0
    %2221 = vadd.xlane.f32.xlu0 %v2220
    %v2222 = vpop.xlane.xlu0 %2221
    %v2223 = vsel %vm375, %v2202, 0.0
    %2224 = vadd.xlane.f32.xlu0 %v2223
    %v2225 = vpop.xlane.xlu0 %2224
    %v2226 = vsel %vm375, %v2204, 0.0
    %2227 = vadd.xlane.f32.xlu0 %v2226
    %v2228 = vpop.xlane.xlu0 %2227
    %v2229 = vrcp.pop %v2207
    %v2230 = vrcp.pop %v2210
    %v2231 = vrcp.pop %v2213
    %v2232 = vrcp.pop %v2216
    %v2233 = vrcp.pop %v2219
    %v2234 = vrcp.pop %v2222
    %v2235 = vrcp.pop %v2225
    %v2236 = vrcp.pop %v2228
    %v2237 = vmul.f32 %v2190, %v2229
    %v2238 = vmul.f32 %v2192, %v2230
    %v2239 = vmul.f32 %v2194, %v2231
    %v2240 = vmul.f32 %v2196, %v2232
    %v2241 = vmul.f32 %v2198, %v2233
    %v2242 = vmul.f32 %v2200, %v2234
    %v2243 = vmul.f32 %v2202, %v2235
    %v2244 = vmul.f32 %v2204, %v2236
    %2245 = vrot.lane.b32.xlu0 %v341, 40
    %v2246 = vpop.permute.xlu0 %2245
    %v2249 = vsel %vm375, %v2237, 0
    %2251 = vmatpush.msra.mxu0 0.0
    %2252 = vmatpush.msra.mxu0 0.0
    %2253 = vmatpush.msra.mxu0 0.0
    %2254 = vmatpush.msra.mxu0 0.0
    %2255 = vmatpush.msra.mxu0 0.0
    %2256 = vmatpush.msra.mxu0 0.0
    %2257 = vmatpush.msra.mxu0 0.0
    %2258 = vmatpush.msra.mxu0 0.0
    %2259 = vmatpush.msra.mxu0 0.0
    %2260 = vmatpush.msra.mxu0 0.0
    %2261 = vmatpush.msra.mxu0 0.0
    %2262 = vmatpush.msra.mxu0 0.0
    %2263 = vmatpush.msra.mxu0 0.0
    %2264 = vmatpush.msra.mxu0 0.0
    %2265 = vmatpush.msra.mxu0 0.0
    %2266 = vmatpush.msra.mxu0 %v2246
    %2267 = vmatmul.f32.gmra.mxu0 %v2249
    %v2268 = vpop.f32.mrf.mxu0
    %v2269 = vadd.f32 0.0, %v2268
    %2270 = vdwg.mxu0
    %2271 = vrot.lane.b32.xlu0 %v344, 40
    %v2272 = vpop.permute.xlu0 %2271
    %v2275 = vsel %vm375, %v2238, 0
    %2277 = vmatpush.msra.mxu0 0.0
    %2278 = vmatpush.msra.mxu0 0.0
    %2279 = vmatpush.msra.mxu0 0.0
    %2280 = vmatpush.msra.mxu0 0.0
    %2281 = vmatpush.msra.mxu0 0.0
    %2282 = vmatpush.msra.mxu0 0.0
    %2283 = vmatpush.msra.mxu0 0.0
    %2284 = vmatpush.msra.mxu0 0.0
    %2285 = vmatpush.msra.mxu0 0.0
    %2286 = vmatpush.msra.mxu0 0.0
    %2287 = vmatpush.msra.mxu0 0.0
    %2288 = vmatpush.msra.mxu0 0.0
    %2289 = vmatpush.msra.mxu0 0.0
    %2290 = vmatpush.msra.mxu0 0.0
    %2291 = vmatpush.msra.mxu0 0.0
    %2292 = vmatpush.msra.mxu0 %v2272
    %2293 = vmatmul.f32.gmra.mxu0 %v2275
    %v2294 = vpop.f32.mrf.mxu0
    %v2295 = vadd.f32 0.0, %v2294
    %2296 = vdwg.mxu0
    %2297 = vrot.lane.b32.xlu0 %v347, 40
    %v2298 = vpop.permute.xlu0 %2297
    %v2301 = vsel %vm375, %v2239, 0
    %2303 = vmatpush.msra.mxu0 0.0
    %2304 = vmatpush.msra.mxu0 0.0
    %2305 = vmatpush.msra.mxu0 0.0
    %2306 = vmatpush.msra.mxu0 0.0
    %2307 = vmatpush.msra.mxu0 0.0
    %2308 = vmatpush.msra.mxu0 0.0
    %2309 = vmatpush.msra.mxu0 0.0
    %2310 = vmatpush.msra.mxu0 0.0
    %2311 = vmatpush.msra.mxu0 0.0
    %2312 = vmatpush.msra.mxu0 0.0
    %2313 = vmatpush.msra.mxu0 0.0
    %2314 = vmatpush.msra.mxu0 0.0
    %2315 = vmatpush.msra.mxu0 0.0
    %2316 = vmatpush.msra.mxu0 0.0
    %2317 = vmatpush.msra.mxu0 0.0
    %2318 = vmatpush.msra.mxu0 %v2298
    %2319 = vmatmul.f32.gmra.mxu0 %v2301
    %v2320 = vpop.f32.mrf.mxu0
    %v2321 = vadd.f32 0.0, %v2320
    %2322 = vdwg.mxu0
    %2323 = vrot.lane.b32.xlu0 %v350, 40
    %v2324 = vpop.permute.xlu0 %2323
    %v2327 = vsel %vm375, %v2240, 0
    %2329 = vmatpush.msra.mxu0 0.0
    %2330 = vmatpush.msra.mxu0 0.0
    %2331 = vmatpush.msra.mxu0 0.0
    %2332 = vmatpush.msra.mxu0 0.0
    %2333 = vmatpush.msra.mxu0 0.0
    %2334 = vmatpush.msra.mxu0 0.0
    %2335 = vmatpush.msra.mxu0 0.0
    %2336 = vmatpush.msra.mxu0 0.0
    %2337 = vmatpush.msra.mxu0 0.0
    %2338 = vmatpush.msra.mxu0 0.0
    %2339 = vmatpush.msra.mxu0 0.0
    %2340 = vmatpush.msra.mxu0 0.0
    %2341 = vmatpush.msra.mxu0 0.0
    %2342 = vmatpush.msra.mxu0 0.0
    %2343 = vmatpush.msra.mxu0 0.0
    %2344 = vmatpush.msra.mxu0 %v2324
    %2345 = vmatmul.f32.gmra.mxu0 %v2327
    %v2346 = vpop.f32.mrf.mxu0
    %v2347 = vadd.f32 0.0, %v2346
    %2348 = vdwg.mxu0
    %2349 = vrot.lane.b32.xlu0 %v353, 40
    %v2350 = vpop.permute.xlu0 %2349
    %v2353 = vsel %vm375, %v2241, 0
    %2355 = vmatpush.msra.mxu0 0.0
    %2356 = vmatpush.msra.mxu0 0.0
    %2357 = vmatpush.msra.mxu0 0.0
    %2358 = vmatpush.msra.mxu0 0.0
    %2359 = vmatpush.msra.mxu0 0.0
    %2360 = vmatpush.msra.mxu0 0.0
    %2361 = vmatpush.msra.mxu0 0.0
    %2362 = vmatpush.msra.mxu0 0.0
    %2363 = vmatpush.msra.mxu0 0.0
    %2364 = vmatpush.msra.mxu0 0.0
    %2365 = vmatpush.msra.mxu0 0.0
    %2366 = vmatpush.msra.mxu0 0.0
    %2367 = vmatpush.msra.mxu0 0.0
    %2368 = vmatpush.msra.mxu0 0.0
    %2369 = vmatpush.msra.mxu0 0.0
    %2370 = vmatpush.msra.mxu0 %v2350
    %2371 = vmatmul.f32.gmra.mxu0 %v2353
    %v2372 = vpop.f32.mrf.mxu0
    %v2373 = vadd.f32 0.0, %v2372
    %2374 = vdwg.mxu0
    %2375 = vrot.lane.b32.xlu0 %v356, 40
    %v2376 = vpop.permute.xlu0 %2375
    %v2379 = vsel %vm375, %v2242, 0
    %2381 = vmatpush.msra.mxu0 0.0
    %2382 = vmatpush.msra.mxu0 0.0
    %2383 = vmatpush.msra.mxu0 0.0
    %2384 = vmatpush.msra.mxu0 0.0
    %2385 = vmatpush.msra.mxu0 0.0
    %2386 = vmatpush.msra.mxu0 0.0
    %2387 = vmatpush.msra.mxu0 0.0
    %2388 = vmatpush.msra.mxu0 0.0
    %2389 = vmatpush.msra.mxu0 0.0
    %2390 = vmatpush.msra.mxu0 0.0
    %2391 = vmatpush.msra.mxu0 0.0
    %2392 = vmatpush.msra.mxu0 0.0
    %2393 = vmatpush.msra.mxu0 0.0
    %2394 = vmatpush.msra.mxu0 0.0
    %2395 = vmatpush.msra.mxu0 0.0
    %2396 = vmatpush.msra.mxu0 %v2376
    %2397 = vmatmul.f32.gmra.mxu0 %v2379
    %v2398 = vpop.f32.mrf.mxu0
    %v2399 = vadd.f32 0.0, %v2398
    %2400 = vdwg.mxu0
    %2401 = vrot.lane.b32.xlu0 %v359, 40
    %v2402 = vpop.permute.xlu0 %2401
    %v2405 = vsel %vm375, %v2243, 0
    %2407 = vmatpush.msra.mxu0 0.0
    %2408 = vmatpush.msra.mxu0 0.0
    %2409 = vmatpush.msra.mxu0 0.0
    %2410 = vmatpush.msra.mxu0 0.0
    %2411 = vmatpush.msra.mxu0 0.0
    %2412 = vmatpush.msra.mxu0 0.0
    %2413 = vmatpush.msra.mxu0 0.0
    %2414 = vmatpush.msra.mxu0 0.0
    %2415 = vmatpush.msra.mxu0 0.0
    %2416 = vmatpush.msra.mxu0 0.0
    %2417 = vmatpush.msra.mxu0 0.0
    %2418 = vmatpush.msra.mxu0 0.0
    %2419 = vmatpush.msra.mxu0 0.0
    %2420 = vmatpush.msra.mxu0 0.0
    %2421 = vmatpush.msra.mxu0 0.0
    %2422 = vmatpush.msra.mxu0 %v2402
    %2423 = vmatmul.f32.gmra.mxu0 %v2405
    %v2424 = vpop.f32.mrf.mxu0
    %v2425 = vadd.f32 0.0, %v2424
    %2426 = vdwg.mxu0
    %2427 = vrot.lane.b32.xlu0 %v362, 40
    %v2428 = vpop.permute.xlu0 %2427
    %v2431 = vsel %vm375, %v2244, 0
    %2433 = vmatpush.msra.mxu0 0.0
    %2434 = vmatpush.msra.mxu0 0.0
    %2435 = vmatpush.msra.mxu0 0.0
    %2436 = vmatpush.msra.mxu0 0.0
    %2437 = vmatpush.msra.mxu0 0.0
    %2438 = vmatpush.msra.mxu0 0.0
    %2439 = vmatpush.msra.mxu0 0.0
    %2440 = vmatpush.msra.mxu0 0.0
    %2441 = vmatpush.msra.mxu0 0.0
    %2442 = vmatpush.msra.mxu0 0.0
    %2443 = vmatpush.msra.mxu0 0.0
    %2444 = vmatpush.msra.mxu0 0.0
    %2445 = vmatpush.msra.mxu0 0.0
    %2446 = vmatpush.msra.mxu0 0.0
    %2447 = vmatpush.msra.mxu0 0.0
    %2448 = vmatpush.msra.mxu0 %v2428
    %2449 = vmatmul.f32.gmra.mxu0 %v2431
    %v2450 = vpop.f32.mrf.mxu0
    %v2451 = vadd.f32 0.0, %v2450
    %2452 = vdwg.mxu0
    %2461 = vrot.lane.b32.xlu0 %v1229, 8
    %v2462 = vpop.permute.xlu0 %2461
    %2463 = vrot.lane.b32.xlu0 %v1255, 8
    %v2464 = vpop.permute.xlu0 %2463
    %2465 = vrot.lane.b32.xlu0 %v1281, 8
    %v2466 = vpop.permute.xlu0 %2465
    %2467 = vrot.lane.b32.xlu0 %v1307, 8
    %v2468 = vpop.permute.xlu0 %2467
    %2469 = vrot.lane.b32.xlu0 %v1333, 8
    %v2470 = vpop.permute.xlu0 %2469
    %2471 = vrot.lane.b32.xlu0 %v1359, 8
    %v2472 = vpop.permute.xlu0 %2471
    %2473 = vrot.lane.b32.xlu0 %v1385, 8
    %v2474 = vpop.permute.xlu0 %2473
    %2475 = vrot.lane.b32.xlu0 %v1411, 8
    %v2476 = vpop.permute.xlu0 %2475
    %2493 = vrot.lane.b32.xlu0 %v1749, 16
    %v2494 = vpop.permute.xlu0 %2493
    %2495 = vrot.lane.b32.xlu0 %v1775, 16
    %v2496 = vpop.permute.xlu0 %2495
    %2497 = vrot.lane.b32.xlu0 %v1801, 16
    %v2498 = vpop.permute.xlu0 %2497
    %2499 = vrot.lane.b32.xlu0 %v1827, 16
    %v2500 = vpop.permute.xlu0 %2499
    %2501 = vrot.lane.b32.xlu0 %v1853, 16
    %v2502 = vpop.permute.xlu0 %2501
    %2503 = vrot.lane.b32.xlu0 %v1879, 16
    %v2504 = vpop.permute.xlu0 %2503
    %2505 = vrot.lane.b32.xlu0 %v1905, 16
    %v2506 = vpop.permute.xlu0 %2505
    %2507 = vrot.lane.b32.xlu0 %v1931, 16
    %v2508 = vpop.permute.xlu0 %2507
    %2525 = vrot.lane.b32.xlu0 %v2269, 24
    %v2526 = vpop.permute.xlu0 %2525
    %2527 = vrot.lane.b32.xlu0 %v2295, 24
    %v2528 = vpop.permute.xlu0 %2527
    %2529 = vrot.lane.b32.xlu0 %v2321, 24
    %v2530 = vpop.permute.xlu0 %2529
    %2531 = vrot.lane.b32.xlu0 %v2347, 24
    %v2532 = vpop.permute.xlu0 %2531
    %2533 = vrot.lane.b32.xlu0 %v2373, 24
    %v2534 = vpop.permute.xlu0 %2533
    %2535 = vrot.lane.b32.xlu0 %v2399, 24
    %v2536 = vpop.permute.xlu0 %2535
    %2537 = vrot.lane.b32.xlu0 %v2425, 24
    %v2538 = vpop.permute.xlu0 %2537
    %2539 = vrot.lane.b32.xlu0 %v2451, 24
    %v2540 = vpop.permute.xlu0 %2539
    %v2549 = vsel %vm375, %v709, %v2462
    %v2550 = vsel %vm375, %v735, %v2464
    %v2551 = vsel %vm375, %v761, %v2466
    %v2552 = vsel %vm375, %v787, %v2468
    %v2553 = vsel %vm375, %v813, %v2470
    %v2554 = vsel %vm375, %v839, %v2472
    %v2555 = vsel %vm375, %v865, %v2474
    %v2556 = vsel %vm375, %v891, %v2476
    %vm2557 = vcmask 130048
    %v2558 = vsel %vm2557, %v2549, %v2494
    %v2559 = vsel %vm2557, %v2550, %v2496
    %v2560 = vsel %vm2557, %v2551, %v2498
    %v2561 = vsel %vm2557, %v2552, %v2500
    %v2562 = vsel %vm2557, %v2553, %v2502
    %v2563 = vsel %vm2557, %v2554, %v2504
    %v2564 = vsel %vm2557, %v2555, %v2506
    %v2565 = vsel %vm2557, %v2556, %v2508
    %vm2566 = vcmask 195584
    %v2567 = vsel %vm2566, %v2558, %v2526
    %v2568 = vsel %vm2566, %v2559, %v2528
    %v2569 = vsel %vm2566, %v2560, %v2530
    %v2570 = vsel %vm2566, %v2561, %v2532
    %v2571 = vsel %vm2566, %v2562, %v2534
    %v2572 = vsel %vm2566, %v2563, %v2536
    %v2573 = vsel %vm2566, %v2564, %v2538
    %v2574 = vsel %vm2566, %v2565, %v2540
    %v2575 = vld [vmem:[%s7] sm:$0xff]
    %v2576 = vld [vmem:[%s7 + $0x8] sm:$0xff]
    %v2577 = vld [vmem:[%s7 + $0x10] sm:$0xff]
    %v2578 = vld [vmem:[%s7 + $0x18] sm:$0xff]
    %v2580 = vsel %vm85, %v2567, 0
    %v2583 = vsel %vm85, %v2568, 0
    %v2586 = vsel %vm85, %v2569, 0
    %v2589 = vsel %vm85, %v2570, 0
    %v2592 = vsel %vm85, %v2571, 0
    %v2595 = vsel %vm85, %v2572, 0
    %v2598 = vsel %vm85, %v2573, 0
    %v2601 = vsel %vm85, %v2574, 0
    %2603 = vmatpush.msra.mxu0 0.0
    %2604 = vmatpush.msra.mxu0 0.0
    %2605 = vmatpush.msra.mxu0 0.0
    %2606 = vmatpush.msra.mxu0 0.0
    %2607 = vmatpush.msra.mxu0 0.0
    %2608 = vmatpush.msra.mxu0 0.0
    %2609 = vmatpush.msra.mxu0 0.0
    %2610 = vmatpush.msra.mxu0 0.0
    %2611 = vmatpush.msra.mxu0 0.0
    %2612 = vmatpush.msra.mxu0 0.0
    %2613 = vmatpush.msra.mxu0 0.0
    %2614 = vmatpush.msra.mxu0 0.0
    %2615 = vmatpush.msra.mxu0 %v2578
    %2616 = vmatpush.msra.mxu0 %v2577
    %2617 = vmatpush.msra.mxu0 %v2576
    %2618 = vmatpush.msra.mxu0 %v2575
    %2619 = vmatmul.f32.gmra.mxu0 %v2580
    %v2620 = vpop.f32.mrf.mxu0
    %v2621 = vadd.f32 0.0, %v2620
    %2622 = vmatmul.f32.gmra.mxu0 %v2583
    %v2623 = vpop.f32.mrf.mxu0
    %v2624 = vadd.f32 0.0, %v2623
    %2625 = vmatmul.f32.gmra.mxu0 %v2586
    %v2626 = vpop.f32.mrf.mxu0
    %v2627 = vadd.f32 0.0, %v2626
    %2628 = vmatmul.f32.gmra.mxu0 %v2589
    %v2629 = vpop.f32.mrf.mxu0
    %v2630 = vadd.f32 0.0, %v2629
    %2631 = vmatmul.f32.gmra.mxu0 %v2592
    %v2632 = vpop.f32.mrf.mxu0
    %v2633 = vadd.f32 0.0, %v2632
    %2634 = vmatmul.f32.gmra.mxu0 %v2595
    %v2635 = vpop.f32.mrf.mxu0
    %v2636 = vadd.f32 0.0, %v2635
    %2637 = vmatmul.f32.gmra.mxu0 %v2598
    %v2638 = vpop.f32.mrf.mxu0
    %v2639 = vadd.f32 0.0, %v2638
    %2640 = vmatmul.f32.gmra.mxu0 %v2601
    %v2641 = vpop.f32.mrf.mxu0
    %v2642 = vadd.f32 0.0, %v2641
    %2643 = vdwg.mxu0
    %v2644 = vadd.f32 %v69, %v2621
    %v2645 = vadd.f32 %v70, %v2624
    %v2646 = vadd.f32 %v71, %v2627
    %v2647 = vadd.f32 %v72, %v2630
    %v2648 = vadd.f32 %v73, %v2633
    %v2649 = vadd.f32 %v74, %v2636
    %v2650 = vadd.f32 %v75, %v2639
    %v2651 = vadd.f32 %v76, %v2642
    %v2652 = vld [vmem:[%s8] sm:$0x1]
    %v2654 = vperm.slane %v2652, 0
    %v2656 = vadd.f32 %v2644, %v2654
    %v2657 = vadd.f32 %v2645, %v2654
    %v2658 = vadd.f32 %v2646, %v2654
    %v2659 = vadd.f32 %v2647, %v2654
    %v2660 = vadd.f32 %v2648, %v2654
    %v2661 = vadd.f32 %v2649, %v2654
    %v2662 = vadd.f32 %v2650, %v2654
    %v2663 = vadd.f32 %v2651, %v2654
    %v2664 = vld [vmem:[%s9] sm:$0x1]
    %v2665 = vld [vmem:[%s10] sm:$0x1]
    %v2666 = vsel %vm85, %v2656, 0.0
    %2667 = vadd.xlane.f32.xlu0 %v2666
    %v2668 = vpop.xlane.xlu0 %2667
    %v2669 = vsel %vm85, %v2657, 0.0
    %2670 = vadd.xlane.f32.xlu0 %v2669
    %v2671 = vpop.xlane.xlu0 %2670
    %v2672 = vsel %vm85, %v2658, 0.0
    %2673 = vadd.xlane.f32.xlu0 %v2672
    %v2674 = vpop.xlane.xlu0 %2673
    %v2675 = vsel %vm85, %v2659, 0.0
    %2676 = vadd.xlane.f32.xlu0 %v2675
    %v2677 = vpop.xlane.xlu0 %2676
    %v2678 = vsel %vm85, %v2660, 0.0
    %2679 = vadd.xlane.f32.xlu0 %v2678
    %v2680 = vpop.xlane.xlu0 %2679
    %v2681 = vsel %vm85, %v2661, 0.0
    %2682 = vadd.xlane.f32.xlu0 %v2681
    %v2683 = vpop.xlane.xlu0 %2682
    %v2684 = vsel %vm85, %v2662, 0.0
    %2685 = vadd.xlane.f32.xlu0 %v2684
    %v2686 = vpop.xlane.xlu0 %2685
    %v2687 = vsel %vm85, %v2663, 0.0
    %2688 = vadd.xlane.f32.xlu0 %v2687
    %v2689 = vpop.xlane.xlu0 %2688
    %v2690 = vmul.f32 %v2668, %v116
    %v2691 = vmul.f32 %v2671, %v116
    %v2692 = vmul.f32 %v2674, %v116
    %v2693 = vmul.f32 %v2677, %v116
    %v2694 = vmul.f32 %v2680, %v116
    %v2695 = vmul.f32 %v2683, %v116
    %v2696 = vmul.f32 %v2686, %v116
    %v2697 = vmul.f32 %v2689, %v116
    %v2698 = vsub.f32 %v2656, %v2690
    %v2699 = vsub.f32 %v2657, %v2691
    %v2700 = vsub.f32 %v2658, %v2692
    %v2701 = vsub.f32 %v2659, %v2693
    %v2702 = vsub.f32 %v2660, %v2694
    %v2703 = vsub.f32 %v2661, %v2695
    %v2704 = vsub.f32 %v2662, %v2696
    %v2705 = vsub.f32 %v2663, %v2697
    %v2706 = vmul.f32 %v2698, %v2698
    %v2707 = vmul.f32 %v2699, %v2699
    %v2708 = vmul.f32 %v2700, %v2700
    %v2709 = vmul.f32 %v2701, %v2701
    %v2710 = vmul.f32 %v2702, %v2702
    %v2711 = vmul.f32 %v2703, %v2703
    %v2712 = vmul.f32 %v2704, %v2704
    %v2713 = vmul.f32 %v2705, %v2705
    %v2714 = vsel %vm85, %v2706, 0.0
    %2715 = vadd.xlane.f32.xlu0 %v2714
    %v2716 = vpop.xlane.xlu0 %2715
    %v2717 = vsel %vm85, %v2707, 0.0
    %2718 = vadd.xlane.f32.xlu0 %v2717
    %v2719 = vpop.xlane.xlu0 %2718
    %v2720 = vsel %vm85, %v2708, 0.0
    %2721 = vadd.xlane.f32.xlu0 %v2720
    %v2722 = vpop.xlane.xlu0 %2721
    %v2723 = vsel %vm85, %v2709, 0.0
    %2724 = vadd.xlane.f32.xlu0 %v2723
    %v2725 = vpop.xlane.xlu0 %2724
    %v2726 = vsel %vm85, %v2710, 0.0
    %2727 = vadd.xlane.f32.xlu0 %v2726
    %v2728 = vpop.xlane.xlu0 %2727
    %v2729 = vsel %vm85, %v2711, 0.0
    %2730 = vadd.xlane.f32.xlu0 %v2729
    %v2731 = vpop.xlane.xlu0 %2730
    %v2732 = vsel %vm85, %v2712, 0.0
    %2733 = vadd.xlane.f32.xlu0 %v2732
    %v2734 = vpop.xlane.xlu0 %2733
    %v2735 = vsel %vm85, %v2713, 0.0
    %2736 = vadd.xlane.f32.xlu0 %v2735
    %v2737 = vpop.xlane.xlu0 %2736
    %v2738 = vmul.f32 %v2716, %v116
    %v2739 = vmul.f32 %v2719, %v116
    %v2740 = vmul.f32 %v2722, %v116
    %v2741 = vmul.f32 %v2725, %v116
    %v2742 = vmul.f32 %v2728, %v116
    %v2743 = vmul.f32 %v2731, %v116
    %v2744 = vmul.f32 %v2734, %v116
    %v2745 = vmul.f32 %v2737, %v116
    %v2746 = vadd.f32 %v2738, 1e-05
    %v2747 = vadd.f32 %v2739, 1e-05
    %v2748 = vadd.f32 %v2740, 1e-05
    %v2749 = vadd.f32 %v2741, 1e-05
    %v2750 = vadd.f32 %v2742, 1e-05
    %v2751 = vadd.f32 %v2743, 1e-05
    %v2752 = vadd.f32 %v2744, 1e-05
    %v2753 = vadd.f32 %v2745, 1e-05
    %v2754 = vrsqrt.pop %v2746
    %v2755 = vmul.f32 %v2754, %v2746
    %v2756 = vmul.f32 %v2755, %v2754
    %v2757 = vmul.f32 0.5, %v2756
    %v2758 = vsub.f32 1.5, %v2757
    %v2759 = vmul.f32 %v2754, %v2758
    %vm2760 = vweird.f32 %v2746
    %vm2761 = vweird.f32 %v2754
    %vm2762 = vmor %vm2760, %vm2761
    %v2763 = vsel %vm2762, %v2754, %v2759
    %v2764 = vrsqrt.pop %v2747
    %v2765 = vmul.f32 %v2764, %v2747
    %v2766 = vmul.f32 %v2765, %v2764
    %v2767 = vmul.f32 0.5, %v2766
    %v2768 = vsub.f32 1.5, %v2767
    %v2769 = vmul.f32 %v2764, %v2768
    %vm2770 = vweird.f32 %v2747
    %vm2771 = vweird.f32 %v2764
    %vm2772 = vmor %vm2770, %vm2771
    %v2773 = vsel %vm2772, %v2764, %v2769
    %v2774 = vrsqrt.pop %v2748
    %v2775 = vmul.f32 %v2774, %v2748
    %v2776 = vmul.f32 %v2775, %v2774
    %v2777 = vmul.f32 0.5, %v2776
    %v2778 = vsub.f32 1.5, %v2777
    %v2779 = vmul.f32 %v2774, %v2778
    %vm2780 = vweird.f32 %v2748
    %vm2781 = vweird.f32 %v2774
    %vm2782 = vmor %vm2780, %vm2781
    %v2783 = vsel %vm2782, %v2774, %v2779
    %v2784 = vrsqrt.pop %v2749
    %v2785 = vmul.f32 %v2784, %v2749
    %v2786 = vmul.f32 %v2785, %v2784
    %v2787 = vmul.f32 0.5, %v2786
    %v2788 = vsub.f32 1.5, %v2787
    %v2789 = vmul.f32 %v2784, %v2788
    %vm2790 = vweird.f32 %v2749
    %vm2791 = vweird.f32 %v2784
    %vm2792 = vmor %vm2790, %vm2791
    %v2793 = vsel %vm2792, %v2784, %v2789
    %v2794 = vrsqrt.pop %v2750
    %v2795 = vmul.f32 %v2794, %v2750
    %v2796 = vmul.f32 %v2795, %v2794
    %v2797 = vmul.f32 0.5, %v2796
    %v2798 = vsub.f32 1.5, %v2797
    %v2799 = vmul.f32 %v2794, %v2798
    %vm2800 = vweird.f32 %v2750
    %vm2801 = vweird.f32 %v2794
    %vm2802 = vmor %vm2800, %vm2801
    %v2803 = vsel %vm2802, %v2794, %v2799
    %v2804 = vrsqrt.pop %v2751
    %v2805 = vmul.f32 %v2804, %v2751
    %v2806 = vmul.f32 %v2805, %v2804
    %v2807 = vmul.f32 0.5, %v2806
    %v2808 = vsub.f32 1.5, %v2807
    %v2809 = vmul.f32 %v2804, %v2808
    %vm2810 = vweird.f32 %v2751
    %vm2811 = vweird.f32 %v2804
    %vm2812 = vmor %vm2810, %vm2811
    %v2813 = vsel %vm2812, %v2804, %v2809
    %v2814 = vrsqrt.pop %v2752
    %v2815 = vmul.f32 %v2814, %v2752
    %v2816 = vmul.f32 %v2815, %v2814
    %v2817 = vmul.f32 0.5, %v2816
    %v2818 = vsub.f32 1.5, %v2817
    %v2819 = vmul.f32 %v2814, %v2818
    %vm2820 = vweird.f32 %v2752
    %vm2821 = vweird.f32 %v2814
    %vm2822 = vmor %vm2820, %vm2821
    %v2823 = vsel %vm2822, %v2814, %v2819
    %v2824 = vrsqrt.pop %v2753
    %v2825 = vmul.f32 %v2824, %v2753
    %v2826 = vmul.f32 %v2825, %v2824
    %v2827 = vmul.f32 0.5, %v2826
    %v2828 = vsub.f32 1.5, %v2827
    %v2829 = vmul.f32 %v2824, %v2828
    %vm2830 = vweird.f32 %v2753
    %vm2831 = vweird.f32 %v2824
    %vm2832 = vmor %vm2830, %vm2831
    %v2833 = vsel %vm2832, %v2824, %v2829
    %v2834 = vmul.f32 %v2698, %v2763
    %v2835 = vmul.f32 %v2699, %v2773
    %v2836 = vmul.f32 %v2700, %v2783
    %v2837 = vmul.f32 %v2701, %v2793
    %v2838 = vmul.f32 %v2702, %v2803
    %v2839 = vmul.f32 %v2703, %v2813
    %v2840 = vmul.f32 %v2704, %v2823
    %v2841 = vmul.f32 %v2705, %v2833
    %v2843 = vperm.slane %v2664, 0
    %v2845 = vmul.f32 %v2834, %v2843
    %v2846 = vmul.f32 %v2835, %v2843
    %v2847 = vmul.f32 %v2836, %v2843
    %v2848 = vmul.f32 %v2837, %v2843
    %v2849 = vmul.f32 %v2838, %v2843
    %v2850 = vmul.f32 %v2839, %v2843
    %v2851 = vmul.f32 %v2840, %v2843
    %v2852 = vmul.f32 %v2841, %v2843
    %v2854 = vperm.slane %v2665, 0
    %v2856 = vadd.f32 %v2845, %v2854
    %v2857 = vadd.f32 %v2846, %v2854
    %v2858 = vadd.f32 %v2847, %v2854
    %v2859 = vadd.f32 %v2848, %v2854
    %v2860 = vadd.f32 %v2849, %v2854
    %v2861 = vadd.f32 %v2850, %v2854
    %v2862 = vadd.f32 %v2851, %v2854
    %v2863 = vadd.f32 %v2852, %v2854
    %v2864 = vld [vmem:[%s11] sm:$0xff]
    %v2865 = vld [vmem:[%s11 + $0x8] sm:$0xff]
    %v2866 = vld [vmem:[%s11 + $0x10] sm:$0xff]
    %v2867 = vld [vmem:[%s11 + $0x18] sm:$0xff]
    %v2868 = vld [vmem:[%s12] sm:$0x1]
    %v2870 = vperm.slane %v2868, 0
    %v2873 = vsel %vm85, %v2856, 0
    %v2876 = vsel %vm85, %v2857, 0
    %v2879 = vsel %vm85, %v2858, 0
    %v2882 = vsel %vm85, %v2859, 0
    %v2885 = vsel %vm85, %v2860, 0
    %v2888 = vsel %vm85, %v2861, 0
    %v2891 = vsel %vm85, %v2862, 0
    %v2894 = vsel %vm85, %v2863, 0
    %2896 = vmatpush.msra.mxu0 0.0
    %2897 = vmatpush.msra.mxu0 0.0
    %2898 = vmatpush.msra.mxu0 0.0
    %2899 = vmatpush.msra.mxu0 0.0
    %2900 = vmatpush.msra.mxu0 0.0
    %2901 = vmatpush.msra.mxu0 0.0
    %2902 = vmatpush.msra.mxu0 0.0
    %2903 = vmatpush.msra.mxu0 0.0
    %2904 = vmatpush.msra.mxu0 0.0
    %2905 = vmatpush.msra.mxu0 0.0
    %2906 = vmatpush.msra.mxu0 0.0
    %2907 = vmatpush.msra.mxu0 0.0
    %2908 = vmatpush.msra.mxu0 %v2867
    %2909 = vmatpush.msra.mxu0 %v2866
    %2910 = vmatpush.msra.mxu0 %v2865
    %2911 = vmatpush.msra.mxu0 %v2864
    %2912 = vmatmul.f32.gmra.mxu0 %v2873
    %v2913 = vpop.f32.mrf.mxu0
    %v2914 = vadd.f32 %v2870, %v2913
    %2915 = vmatmul.f32.gmra.mxu0 %v2876
    %v2916 = vpop.f32.mrf.mxu0
    %v2917 = vadd.f32 %v2870, %v2916
    %2918 = vmatmul.f32.gmra.mxu0 %v2879
    %v2919 = vpop.f32.mrf.mxu0
    %v2920 = vadd.f32 %v2870, %v2919
    %2921 = vmatmul.f32.gmra.mxu0 %v2882
    %v2922 = vpop.f32.mrf.mxu0
    %v2923 = vadd.f32 %v2870, %v2922
    %2924 = vmatmul.f32.gmra.mxu0 %v2885
    %v2925 = vpop.f32.mrf.mxu0
    %v2926 = vadd.f32 %v2870, %v2925
    %2927 = vmatmul.f32.gmra.mxu0 %v2888
    %v2928 = vpop.f32.mrf.mxu0
    %v2929 = vadd.f32 %v2870, %v2928
    %2930 = vmatmul.f32.gmra.mxu0 %v2891
    %v2931 = vpop.f32.mrf.mxu0
    %v2932 = vadd.f32 %v2870, %v2931
    %2933 = vmatmul.f32.gmra.mxu0 %v2894
    %v2934 = vpop.f32.mrf.mxu0
    %v2935 = vadd.f32 %v2870, %v2934
    %2936 = vdwg.mxu0
    %v2937 = vmul.f32 %v2914, 1.702
    %v2938 = vmul.f32 %v2917, 1.702
    %v2939 = vmul.f32 %v2920, 1.702
    %v2940 = vmul.f32 %v2923, 1.702
    %v2941 = vmul.f32 %v2926, 1.702
    %v2942 = vmul.f32 %v2929, 1.702
    %v2943 = vmul.f32 %v2932, 1.702
    %v2944 = vmul.f32 %v2935, 1.702
    %v2945 = vxor.u32 %v2937, 2147483648
    %v2946 = vxor.u32 %v2938, 2147483648
    %v2947 = vxor.u32 %v2939, 2147483648
    %v2948 = vxor.u32 %v2940, 2147483648
    %v2949 = vxor.u32 %v2941, 2147483648
    %v2950 = vxor.u32 %v2942, 2147483648
    %v2951 = vxor.u32 %v2943, 2147483648
    %v2952 = vxor.u32 %v2944, 2147483648
    %v2953 = vmul.f32 %v2945, 1.442695
    %v2954 = vpow.pop %v2953
    %v2955 = vmul.f32 %v2946, 1.442695
    %v2956 = vpow.pop %v2955
    %v2957 = vmul.f32 %v2947, 1.442695
    %v2958 = vpow.pop %v2957
    %v2959 = vmul.f32 %v2948, 1.442695
    %v2960 = vpow.pop %v2959
    %v2961 = vmul.f32 %v2949, 1.442695
    %v2962 = vpow.pop %v2961
    %v2963 = vmul.f32 %v2950, 1.442695
    %v2964 = vpow.pop %v2963
    %v2965 = vmul.f32 %v2951, 1.442695
    %v2966 = vpow.pop %v2965
    %v2967 = vmul.f32 %v2952, 1.442695
    %v2968 = vpow.pop %v2967
    %v2969 = vadd.f32 %v2954, 1.0
    %v2970 = vadd.f32 %v2956, 1.0
    %v2971 = vadd.f32 %v2958, 1.0
    %v2972 = vadd.f32 %v2960, 1.0
    %v2973 = vadd.f32 %v2962, 1.0
    %v2974 = vadd.f32 %v2964, 1.0
    %v2975 = vadd.f32 %v2966, 1.0
    %v2976 = vadd.f32 %v2968, 1.0
    %v2977 = vrcp.pop %v2969
    %v2978 = vmul.f32 %v2969, %v2977
    %v2979 = vsub.f32 1.0, %v2978
    %v2980 = vmul.f32 %v2977, %v2979
    %v2981 = vadd.f32 %v2977, %v2980
    %vm2982 = vweird.f32 %v2969
    %vm2983 = vweird.f32 %v2977
    %vm2984 = vmor %vm2982, %vm2983
    %v2985 = vsel %vm2984, %v2977, %v2981
    %v2986 = vand.u32 2147483647, %v2969
    %vm2987 = vcmp.eq.f32.partialorder %v2986, 8.507059e+37
    %v2988 = vand.u32 %v2969, 2147483648
    %v2989 = vor.u32 1.1754944e-38, %v2988
    %v2990 = vsel %vm2987, %v2989, %v2985
    %v2991 = vmul.f32 1.0, %v2990
    %v2992 = vrcp.pop %v2970
    %v2993 = vmul.f32 %v2970, %v2992
    %v2994 = vsub.f32 1.0, %v2993
    %v2995 = vmul.f32 %v2992, %v2994
    %v2996 = vadd.f32 %v2992, %v2995
    %vm2997 = vweird.f32 %v2970
    %vm2998 = vweird.f32 %v2992
    %vm2999 = vmor %vm2997, %vm2998
    %v3000 = vsel %vm2999, %v2992, %v2996
    %v3001 = vand.u32 2147483647, %v2970
    %vm3002 = vcmp.eq.f32.partialorder %v3001, 8.507059e+37
    %v3003 = vand.u32 %v2970, 2147483648
    %v3004 = vor.u32 1.1754944e-38, %v3003
    %v3005 = vsel %vm3002, %v3004, %v3000
    %v3006 = vmul.f32 1.0, %v3005
    %v3007 = vrcp.pop %v2971
    %v3008 = vmul.f32 %v2971, %v3007
    %v3009 = vsub.f32 1.0, %v3008
    %v3010 = vmul.f32 %v3007, %v3009
    %v3011 = vadd.f32 %v3007, %v3010
    %vm3012 = vweird.f32 %v2971
    %vm3013 = vweird.f32 %v3007
    %vm3014 = vmor %vm3012, %vm3013
    %v3015 = vsel %vm3014, %v3007, %v3011
    %v3016 = vand.u32 2147483647, %v2971
    %vm3017 = vcmp.eq.f32.partialorder %v3016, 8.507059e+37
    %v3018 = vand.u32 %v2971, 2147483648
    %v3019 = vor.u32 1.1754944e-38, %v3018
    %v3020 = vsel %vm3017, %v3019, %v3015
    %v3021 = vmul.f32 1.0, %v3020
    %v3022 = vrcp.pop %v2972
    %v3023 = vmul.f32 %v2972, %v3022
    %v3024 = vsub.f32 1.0, %v3023
    %v3025 = vmul.f32 %v3022, %v3024
    %v3026 = vadd.f32 %v3022, %v3025
    %vm3027 = vweird.f32 %v2972
    %vm3028 = vweird.f32 %v3022
    %vm3029 = vmor %vm3027, %vm3028
    %v3030 = vsel %vm3029, %v3022, %v3026
    %v3031 = vand.u32 2147483647, %v2972
    %vm3032 = vcmp.eq.f32.partialorder %v3031, 8.507059e+37
    %v3033 = vand.u32 %v2972, 2147483648
    %v3034 = vor.u32 1.1754944e-38, %v3033
    %v3035 = vsel %vm3032, %v3034, %v3030
    %v3036 = vmul.f32 1.0, %v3035
    %v3037 = vrcp.pop %v2973
    %v3038 = vmul.f32 %v2973, %v3037
    %v3039 = vsub.f32 1.0, %v3038
    %v3040 = vmul.f32 %v3037, %v3039
    %v3041 = vadd.f32 %v3037, %v3040
    %vm3042 = vweird.f32 %v2973
    %vm3043 = vweird.f32 %v3037
    %vm3044 = vmor %vm3042, %vm3043
    %v3045 = vsel %vm3044, %v3037, %v3041
    %v3046 = vand.u32 2147483647, %v2973
    %vm3047 = vcmp.eq.f32.partialorder %v3046, 8.507059e+37
    %v3048 = vand.u32 %v2973, 2147483648
    %v3049 = vor.u32 1.1754944e-38, %v3048
    %v3050 = vsel %vm3047, %v3049, %v3045
    %v3051 = vmul.f32 1.0, %v3050
    %v3052 = vrcp.pop %v2974
    %v3053 = vmul.f32 %v2974, %v3052
    %v3054 = vsub.f32 1.0, %v3053
    %v3055 = vmul.f32 %v3052, %v3054
    %v3056 = vadd.f32 %v3052, %v3055
    %vm3057 = vweird.f32 %v2974
    %vm3058 = vweird.f32 %v3052
    %vm3059 = vmor %vm3057, %vm3058
    %v3060 = vsel %vm3059, %v3052, %v3056
    %v3061 = vand.u32 2147483647, %v2974
    %vm3062 = vcmp.eq.f32.partialorder %v3061, 8.507059e+37
    %v3063 = vand.u32 %v2974, 2147483648
    %v3064 = vor.u32 1.1754944e-38, %v3063
    %v3065 = vsel %vm3062, %v3064, %v3060
    %v3066 = vmul.f32 1.0, %v3065
    %v3067 = vrcp.pop %v2975
    %v3068 = vmul.f32 %v2975, %v3067
    %v3069 = vsub.f32 1.0, %v3068
    %v3070 = vmul.f32 %v3067, %v3069
    %v3071 = vadd.f32 %v3067, %v3070
    %vm3072 = vweird.f32 %v2975
    %vm3073 = vweird.f32 %v3067
    %vm3074 = vmor %vm3072, %vm3073
    %v3075 = vsel %vm3074, %v3067, %v3071
    %v3076 = vand.u32 2147483647, %v2975
    %vm3077 = vcmp.eq.f32.partialorder %v3076, 8.507059e+37
    %v3078 = vand.u32 %v2975, 2147483648
    %v3079 = vor.u32 1.1754944e-38, %v3078
    %v3080 = vsel %vm3077, %v3079, %v3075
    %v3081 = vmul.f32 1.0, %v3080
    %v3082 = vrcp.pop %v2976
    %v3083 = vmul.f32 %v2976, %v3082
    %v3084 = vsub.f32 1.0, %v3083
    %v3085 = vmul.f32 %v3082, %v3084
    %v3086 = vadd.f32 %v3082, %v3085
    %vm3087 = vweird.f32 %v2976
    %vm3088 = vweird.f32 %v3082
    %vm3089 = vmor %vm3087, %vm3088
    %v3090 = vsel %vm3089, %v3082, %v3086
    %v3091 = vand.u32 2147483647, %v2976
    %vm3092 = vcmp.eq.f32.partialorder %v3091, 8.507059e+37
    %v3093 = vand.u32 %v2976, 2147483648
    %v3094 = vor.u32 1.1754944e-38, %v3093
    %v3095 = vsel %vm3092, %v3094, %v3090
    %v3096 = vmul.f32 1.0, %v3095
    %v3097 = vmul.f32 %v2914, %v2991
    %v3098 = vmul.f32 %v2917, %v3006
    %v3099 = vmul.f32 %v2920, %v3021
    %v3100 = vmul.f32 %v2923, %v3036
    %v3101 = vmul.f32 %v2926, %v3051
    %v3102 = vmul.f32 %v2929, %v3066
    %v3103 = vmul.f32 %v2932, %v3081
    %v3104 = vmul.f32 %v2935, %v3096
    %v3105 = vld [vmem:[%s13] sm:$0xff]
    %v3106 = vld [vmem:[%s13 + $0x8] sm:$0xff]
    %v3107 = vld [vmem:[%s13 + $0x10] sm:$0xff]
    %v3108 = vld [vmem:[%s13 + $0x18] sm:$0xff]
    %v3109 = vld [vmem:[%s13 + $0x20] sm:$0xff]
    %v3110 = vld [vmem:[%s13 + $0x28] sm:$0xff]
    %v3111 = vld [vmem:[%s13 + $0x30] sm:$0xff]
    %v3112 = vld [vmem:[%s13 + $0x38] sm:$0xff]
    %v3113 = vld [vmem:[%s13 + $0x40] sm:$0xff]
    %v3114 = vld [vmem:[%s13 + $0x48] sm:$0xff]
    %v3115 = vld [vmem:[%s13 + $0x50] sm:$0xff]
    %v3116 = vld [vmem:[%s13 + $0x58] sm:$0xff]
    %v3117 = vld [vmem:[%s13 + $0x60] sm:$0xff]
    %v3118 = vld [vmem:[%s13 + $0x68] sm:$0xff]
    %v3119 = vld [vmem:[%s13 + $0x70] sm:$0xff]
    %v3120 = vld [vmem:[%s13 + $0x78] sm:$0xff]
    %v3121 = vld [vmem:[%s14] sm:$0x1]
    %v3123 = vperm.slane %v3121, 0
    %3125 = vmatpush.msra.mxu0 %v3120
    %3126 = vmatpush.msra.mxu0 %v3119
    %3127 = vmatpush.msra.mxu0 %v3118
    %3128 = vmatpush.msra.mxu0 %v3117
    %3129 = vmatpush.msra.mxu0 %v3116
    %3130 = vmatpush.msra.mxu0 %v3115
    %3131 = vmatpush.msra.mxu0 %v3114
    %3132 = vmatpush.msra.mxu0 %v3113
    %3133 = vmatpush.msra.mxu0 %v3112
    %3134 = vmatpush.msra.mxu0 %v3111
    %3135 = vmatpush.msra.mxu0 %v3110
    %3136 = vmatpush.msra.mxu0 %v3109
    %3137 = vmatpush.msra.mxu0 %v3108
    %3138 = vmatpush.msra.mxu0 %v3107
    %3139 = vmatpush.msra.mxu0 %v3106
    %3140 = vmatpush.msra.mxu0 %v3105
    %3141 = vmatmul.f32.gmra.mxu0 %v3097
    %v3142 = vpop.f32.mrf.mxu0
    %v3143 = vadd.f32 %v3123, %v3142
    %3144 = vmatmul.f32.gmra.mxu0 %v3098
    %v3145 = vpop.f32.mrf.mxu0
    %v3146 = vadd.f32 %v3123, %v3145
    %3147 = vmatmul.f32.gmra.mxu0 %v3099
    %v3148 = vpop.f32.mrf.mxu0
    %v3149 = vadd.f32 %v3123, %v3148
    %3150 = vmatmul.f32.gmra.mxu0 %v3100
    %v3151 = vpop.f32.mrf.mxu0
    %v3152 = vadd.f32 %v3123, %v3151
    %3153 = vmatmul.f32.gmra.mxu0 %v3101
    %v3154 = vpop.f32.mrf.mxu0
    %v3155 = vadd.f32 %v3123, %v3154
    %3156 = vmatmul.f32.gmra.mxu0 %v3102
    %v3157 = vpop.f32.mrf.mxu0
    %v3158 = vadd.f32 %v3123, %v3157
    %3159 = vmatmul.f32.gmra.mxu0 %v3103
    %v3160 = vpop.f32.mrf.mxu0
    %v3161 = vadd.f32 %v3123, %v3160
    %3162 = vmatmul.f32.gmra.mxu0 %v3104
    %v3163 = vpop.f32.mrf.mxu0
    %v3164 = vadd.f32 %v3123, %v3163
    %3165 = vdwg.mxu0
    %v3166 = vadd.f32 %v2656, %v3143
    %v3167 = vadd.f32 %v2657, %v3146
    %v3168 = vadd.f32 %v2658, %v3149
    %v3169 = vadd.f32 %v2659, %v3152
    %v3170 = vadd.f32 %v2660, %v3155
    %v3171 = vadd.f32 %v2661, %v3158
    %v3172 = vadd.f32 %v2662, %v3161
    %v3173 = vadd.f32 %v2663, %v3164
    %s3174 = scalar_lea.vmem %s3, 1
    %v3175 = vld [vmem:[%s3174] sm:$0x1]
    %s3176 = scalar_lea.vmem %s4, 1
    %v3177 = vld [vmem:[%s3176] sm:$0x1]
    %v3178 = vsel %vm85, %v3166, 0.0
    %3179 = vadd.xlane.f32.xlu0 %v3178
    %v3180 = vpop.xlane.xlu0 %3179
    %v3181 = vsel %vm85, %v3167, 0.0
    %3182 = vadd.xlane.f32.xlu0 %v3181
    %v3183 = vpop.xlane.xlu0 %3182
    %v3184 = vsel %vm85, %v3168, 0.0
    %3185 = vadd.xlane.f32.xlu0 %v3184
    %v3186 = vpop.xlane.xlu0 %3185
    %v3187 = vsel %vm85, %v3169, 0.0
    %3188 = vadd.xlane.f32.xlu0 %v3187
    %v3189 = vpop.xlane.xlu0 %3188
    %v3190 = vsel %vm85, %v3170, 0.0
    %3191 = vadd.xlane.f32.xlu0 %v3190
    %v3192 = vpop.xlane.xlu0 %3191
    %v3193 = vsel %vm85, %v3171, 0.0
    %3194 = vadd.xlane.f32.xlu0 %v3193
    %v3195 = vpop.xlane.xlu0 %3194
    %v3196 = vsel %vm85, %v3172, 0.0
    %3197 = vadd.xlane.f32.xlu0 %v3196
    %v3198 = vpop.xlane.xlu0 %3197
    %v3199 = vsel %vm85, %v3173, 0.0
    %3200 = vadd.xlane.f32.xlu0 %v3199
    %v3201 = vpop.xlane.xlu0 %3200
    %v3202 = vmul.f32 %v3180, %v116
    %v3203 = vmul.f32 %v3183, %v116
    %v3204 = vmul.f32 %v3186, %v116
    %v3205 = vmul.f32 %v3189, %v116
    %v3206 = vmul.f32 %v3192, %v116
    %v3207 = vmul.f32 %v3195, %v116
    %v3208 = vmul.f32 %v3198, %v116
    %v3209 = vmul.f32 %v3201, %v116
    %v3210 = vsub.f32 %v3166, %v3202
    %v3211 = vsub.f32 %v3167, %v3203
    %v3212 = vsub.f32 %v3168, %v3204
    %v3213 = vsub.f32 %v3169, %v3205
    %v3214 = vsub.f32 %v3170, %v3206
    %v3215 = vsub.f32 %v3171, %v3207
    %v3216 = vsub.f32 %v3172, %v3208
    %v3217 = vsub.f32 %v3173, %v3209
    %v3218 = vmul.f32 %v3210, %v3210
    %v3219 = vmul.f32 %v3211, %v3211
    %v3220 = vmul.f32 %v3212, %v3212
    %v3221 = vmul.f32 %v3213, %v3213
    %v3222 = vmul.f32 %v3214, %v3214
    %v3223 = vmul.f32 %v3215, %v3215
    %v3224 = vmul.f32 %v3216, %v3216
    %v3225 = vmul.f32 %v3217, %v3217
    %v3226 = vsel %vm85, %v3218, 0.0
    %3227 = vadd.xlane.f32.xlu0 %v3226
    %v3228 = vpop.xlane.xlu0 %3227
    %v3229 = vsel %vm85, %v3219, 0.0
    %3230 = vadd.xlane.f32.xlu0 %v3229
    %v3231 = vpop.xlane.xlu0 %3230
    %v3232 = vsel %vm85, %v3220, 0.0
    %3233 = vadd.xlane.f32.xlu0 %v3232
    %v3234 = vpop.xlane.xlu0 %3233
    %v3235 = vsel %vm85, %v3221, 0.0
    %3236 = vadd.xlane.f32.xlu0 %v3235
    %v3237 = vpop.xlane.xlu0 %3236
    %v3238 = vsel %vm85, %v3222, 0.0
    %3239 = vadd.xlane.f32.xlu0 %v3238
    %v3240 = vpop.xlane.xlu0 %3239
    %v3241 = vsel %vm85, %v3223, 0.0
    %3242 = vadd.xlane.f32.xlu0 %v3241
    %v3243 = vpop.xlane.xlu0 %3242
    %v3244 = vsel %vm85, %v3224, 0.0
    %3245 = vadd.xlane.f32.xlu0 %v3244
    %v3246 = vpop.xlane.xlu0 %3245
    %v3247 = vsel %vm85, %v3225, 0.0
    %3248 = vadd.xlane.f32.xlu0 %v3247
    %v3249 = vpop.xlane.xlu0 %3248
    %v3250 = vmul.f32 %v3228, %v116
    %v3251 = vmul.f32 %v3231, %v116
    %v3252 = vmul.f32 %v3234, %v116
    %v3253 = vmul.f32 %v3237, %v116
    %v3254 = vmul.f32 %v3240, %v116
    %v3255 = vmul.f32 %v3243, %v116
    %v3256 = vmul.f32 %v3246, %v116
    %v3257 = vmul.f32 %v3249, %v116
    %v3258 = vadd.f32 %v3250, 1e-05
    %v3259 = vadd.f32 %v3251, 1e-05
    %v3260 = vadd.f32 %v3252, 1e-05
    %v3261 = vadd.f32 %v3253, 1e-05
    %v3262 = vadd.f32 %v3254, 1e-05
    %v3263 = vadd.f32 %v3255, 1e-05
    %v3264 = vadd.f32 %v3256, 1e-05
    %v3265 = vadd.f32 %v3257, 1e-05
    %v3266 = vrsqrt.pop %v3258
    %v3267 = vmul.f32 %v3266, %v3258
    %v3268 = vmul.f32 %v3267, %v3266
    %v3269 = vmul.f32 0.5, %v3268
    %v3270 = vsub.f32 1.5, %v3269
    %v3271 = vmul.f32 %v3266, %v3270
    %vm3272 = vweird.f32 %v3258
    %vm3273 = vweird.f32 %v3266
    %vm3274 = vmor %vm3272, %vm3273
    %v3275 = vsel %vm3274, %v3266, %v3271
    %v3276 = vrsqrt.pop %v3259
    %v3277 = vmul.f32 %v3276, %v3259
    %v3278 = vmul.f32 %v3277, %v3276
    %v3279 = vmul.f32 0.5, %v3278
    %v3280 = vsub.f32 1.5, %v3279
    %v3281 = vmul.f32 %v3276, %v3280
    %vm3282 = vweird.f32 %v3259
    %vm3283 = vweird.f32 %v3276
    %vm3284 = vmor %vm3282, %vm3283
    %v3285 = vsel %vm3284, %v3276, %v3281
    %v3286 = vrsqrt.pop %v3260
    %v3287 = vmul.f32 %v3286, %v3260
    %v3288 = vmul.f32 %v3287, %v3286
    %v3289 = vmul.f32 0.5, %v3288
    %v3290 = vsub.f32 1.5, %v3289
    %v3291 = vmul.f32 %v3286, %v3290
    %vm3292 = vweird.f32 %v3260
    %vm3293 = vweird.f32 %v3286
    %vm3294 = vmor %vm3292, %vm3293
    %v3295 = vsel %vm3294, %v3286, %v3291
    %v3296 = vrsqrt.pop %v3261
    %v3297 = vmul.f32 %v3296, %v3261
    %v3298 = vmul.f32 %v3297, %v3296
    %v3299 = vmul.f32 0.5, %v3298
    %v3300 = vsub.f32 1.5, %v3299
    %v3301 = vmul.f32 %v3296, %v3300
    %vm3302 = vweird.f32 %v3261
    %vm3303 = vweird.f32 %v3296
    %vm3304 = vmor %vm3302, %vm3303
    %v3305 = vsel %vm3304, %v3296, %v3301
    %v3306 = vrsqrt.pop %v3262
    %v3307 = vmul.f32 %v3306, %v3262
    %v3308 = vmul.f32 %v3307, %v3306
    %v3309 = vmul.f32 0.5, %v3308
    %v3310 = vsub.f32 1.5, %v3309
    %v3311 = vmul.f32 %v3306, %v3310
    %vm3312 = vweird.f32 %v3262
    %vm3313 = vweird.f32 %v3306
    %vm3314 = vmor %vm3312, %vm3313
    %v3315 = vsel %vm3314, %v3306, %v3311
    %v3316 = vrsqrt.pop %v3263
    %v3317 = vmul.f32 %v3316, %v3263
    %v3318 = vmul.f32 %v3317, %v3316
    %v3319 = vmul.f32 0.5, %v3318
    %v3320 = vsub.f32 1.5, %v3319
    %v3321 = vmul.f32 %v3316, %v3320
    %vm3322 = vweird.f32 %v3263
    %vm3323 = vweird.f32 %v3316
    %vm3324 = vmor %vm3322, %vm3323
    %v3325 = vsel %vm3324, %v3316, %v3321
    %v3326 = vrsqrt.pop %v3264
    %v3327 = vmul.f32 %v3326, %v3264
    %v3328 = vmul.f32 %v3327, %v3326
    %v3329 = vmul.f32 0.5, %v3328
    %v3330 = vsub.f32 1.5, %v3329
    %v3331 = vmul.f32 %v3326, %v3330
    %vm3332 = vweird.f32 %v3264
    %vm3333 = vweird.f32 %v3326
    %vm3334 = vmor %vm3332, %vm3333
    %v3335 = vsel %vm3334, %v3326, %v3331
    %v3336 = vrsqrt.pop %v3265
    %v3337 = vmul.f32 %v3336, %v3265
    %v3338 = vmul.f32 %v3337, %v3336
    %v3339 = vmul.f32 0.5, %v3338
    %v3340 = vsub.f32 1.5, %v3339
    %v3341 = vmul.f32 %v3336, %v3340
    %vm3342 = vweird.f32 %v3265
    %vm3343 = vweird.f32 %v3336
    %vm3344 = vmor %vm3342, %vm3343
    %v3345 = vsel %vm3344, %v3336, %v3341
    %v3346 = vmul.f32 %v3210, %v3275
    %v3347 = vmul.f32 %v3211, %v3285
    %v3348 = vmul.f32 %v3212, %v3295
    %v3349 = vmul.f32 %v3213, %v3305
    %v3350 = vmul.f32 %v3214, %v3315
    %v3351 = vmul.f32 %v3215, %v3325
    %v3352 = vmul.f32 %v3216, %v3335
    %v3353 = vmul.f32 %v3217, %v3345
    %v3355 = vperm.slane %v3175, 0
    %v3357 = vmul.f32 %v3346, %v3355
    %v3358 = vmul.f32 %v3347, %v3355
    %v3359 = vmul.f32 %v3348, %v3355
    %v3360 = vmul.f32 %v3349, %v3355
    %v3361 = vmul.f32 %v3350, %v3355
    %v3362 = vmul.f32 %v3351, %v3355
    %v3363 = vmul.f32 %v3352, %v3355
    %v3364 = vmul.f32 %v3353, %v3355
    %v3366 = vperm.slane %v3177, 0
    %v3368 = vadd.f32 %v3357, %v3366
    %v3369 = vadd.f32 %v3358, %v3366
    %v3370 = vadd.f32 %v3359, %v3366
    %v3371 = vadd.f32 %v3360, %v3366
    %v3372 = vadd.f32 %v3361, %v3366
    %v3373 = vadd.f32 %v3362, %v3366
    %v3374 = vadd.f32 %v3363, %v3366
    %v3375 = vadd.f32 %v3364, %v3366
    %s3376 = scalar_lea.vmem %s5, 32
    %v3377 = vld [vmem:[%s3376] sm:$0xff]
    %v3378 = vld [vmem:[%s3376 + $0x8] sm:$0xff]
    %v3379 = vld [vmem:[%s3376 + $0x10] sm:$0xff]
    %v3380 = vld [vmem:[%s3376 + $0x18] sm:$0xff]
    %s3381 = scalar_lea.vmem %s6, 1
    %v3382 = vld [vmem:[%s3381] sm:$0x1]
    %v3384 = vperm.slane %v3382, 0
    %v3387 = vsel %vm85, %v3368, 0
    %v3390 = vsel %vm85, %v3369, 0
    %v3393 = vsel %vm85, %v3370, 0
    %v3396 = vsel %vm85, %v3371, 0
    %v3399 = vsel %vm85, %v3372, 0
    %v3402 = vsel %vm85, %v3373, 0
    %v3405 = vsel %vm85, %v3374, 0
    %v3408 = vsel %vm85, %v3375, 0
    %3410 = vmatpush.msra.mxu0 0.0
    %3411 = vmatpush.msra.mxu0 0.0
    %3412 = vmatpush.msra.mxu0 0.0
    %3413 = vmatpush.msra.mxu0 0.0
    %3414 = vmatpush.msra.mxu0 0.0
    %3415 = vmatpush.msra.mxu0 0.0
    %3416 = vmatpush.msra.mxu0 0.0
    %3417 = vmatpush.msra.mxu0 0.0
    %3418 = vmatpush.msra.mxu0 0.0
    %3419 = vmatpush.msra.mxu0 0.0
    %3420 = vmatpush.msra.mxu0 0.0
    %3421 = vmatpush.msra.mxu0 0.0
    %3422 = vmatpush.msra.mxu0 %v3380
    %3423 = vmatpush.msra.mxu0 %v3379
    %3424 = vmatpush.msra.mxu0 %v3378
    %3425 = vmatpush.msra.mxu0 %v3377
    %3426 = vmatmul.f32.gmra.mxu0 %v3387
    %v3427 = vpop.f32.mrf.mxu0
    %v3428 = vadd.f32 %v3384, %v3427
    %3429 = vmatmul.f32.gmra.mxu0 %v3390
    %v3430 = vpop.f32.mrf.mxu0
    %v3431 = vadd.f32 %v3384, %v3430
    %3432 = vmatmul.f32.gmra.mxu0 %v3393
    %v3433 = vpop.f32.mrf.mxu0
    %v3434 = vadd.f32 %v3384, %v3433
    %3435 = vmatmul.f32.gmra.mxu0 %v3396
    %v3436 = vpop.f32.mrf.mxu0
    %v3437 = vadd.f32 %v3384, %v3436
    %3438 = vmatmul.f32.gmra.mxu0 %v3399
    %v3439 = vpop.f32.mrf.mxu0
    %v3440 = vadd.f32 %v3384, %v3439
    %3441 = vmatmul.f32.gmra.mxu0 %v3402
    %v3442 = vpop.f32.mrf.mxu0
    %v3443 = vadd.f32 %v3384, %v3442
    %3444 = vmatmul.f32.gmra.mxu0 %v3405
    %v3445 = vpop.f32.mrf.mxu0
    %v3446 = vadd.f32 %v3384, %v3445
    %3447 = vmatmul.f32.gmra.mxu0 %v3408
    %v3448 = vpop.f32.mrf.mxu0
    %v3449 = vadd.f32 %v3384, %v3448
    %3450 = vdwg.mxu0
    %v3451 = vmul.f32 %v3428, 0.35355338
    %v3452 = vmul.f32 %v3431, 0.35355338
    %v3453 = vmul.f32 %v3434, 0.35355338
    %v3454 = vmul.f32 %v3437, 0.35355338
    %v3455 = vmul.f32 %v3440, 0.35355338
    %v3456 = vmul.f32 %v3443, 0.35355338
    %v3457 = vmul.f32 %v3446, 0.35355338
    %v3458 = vmul.f32 %v3449, 0.35355338
    %3460 = vrot.lane.b32.xlu0 %v3428, 96
    %v3461 = vpop.permute.xlu0 %3460
    %v3463 = vsel %vm375, %v3451, 0
    %v3465 = vsel %vm375, %v3461, 0
    %3467 = vmatpush.xpose.msra.mxu0 0.0
    %3468 = vmatpush.xpose.msra.mxu0 0.0
    %3469 = vmatpush.xpose.msra.mxu0 0.0
    %3470 = vmatpush.xpose.msra.mxu0 0.0
    %3471 = vmatpush.xpose.msra.mxu0 0.0
    %3472 = vmatpush.xpose.msra.mxu0 0.0
    %3473 = vmatpush.xpose.msra.mxu0 0.0
    %3474 = vmatpush.xpose.msra.mxu0 0.0
    %3475 = vmatpush.xpose.msra.mxu0 0.0
    %3476 = vmatpush.xpose.msra.mxu0 0.0
    %3477 = vmatpush.xpose.msra.mxu0 0.0
    %3478 = vmatpush.xpose.msra.mxu0 0.0
    %3479 = vmatpush.xpose.msra.mxu0 0.0
    %3480 = vmatpush.xpose.msra.mxu0 0.0
    %3481 = vmatpush.xpose.msra.mxu0 0.0
    %3482 = vmatpush.xpose.msra.mxu0 %v3465
    %3483 = vmatmul.f32.gmra.mxu0 %v3463
    %v3484 = vpop.f32.mrf.mxu0
    %v3485 = vadd.f32 %v82, %v3484
    %3486 = vdwg.mxu0
    %3488 = vrot.lane.b32.xlu0 %v3431, 96
    %v3489 = vpop.permute.xlu0 %3488
    %v3491 = vsel %vm375, %v3452, 0
    %v3493 = vsel %vm375, %v3489, 0
    %3495 = vmatpush.xpose.msra.mxu0 0.0
    %3496 = vmatpush.xpose.msra.mxu0 0.0
    %3497 = vmatpush.xpose.msra.mxu0 0.0
    %3498 = vmatpush.xpose.msra.mxu0 0.0
    %3499 = vmatpush.xpose.msra.mxu0 0.0
    %3500 = vmatpush.xpose.msra.mxu0 0.0
    %3501 = vmatpush.xpose.msra.mxu0 0.0
    %3502 = vmatpush.xpose.msra.mxu0 0.0
    %3503 = vmatpush.xpose.msra.mxu0 0.0
    %3504 = vmatpush.xpose.msra.mxu0 0.0
    %3505 = vmatpush.xpose.msra.mxu0 0.0
    %3506 = vmatpush.xpose.msra.mxu0 0.0
    %3507 = vmatpush.xpose.msra.mxu0 0.0
    %3508 = vmatpush.xpose.msra.mxu0 0.0
    %3509 = vmatpush.xpose.msra.mxu0 0.0
    %3510 = vmatpush.xpose.msra.mxu0 %v3493
    %3511 = vmatmul.f32.gmra.mxu0 %v3491
    %v3512 = vpop.f32.mrf.mxu0
    %v3513 = vadd.f32 %v82, %v3512
    %3514 = vdwg.mxu0
    %3516 = vrot.lane.b32.xlu0 %v3434, 96
    %v3517 = vpop.permute.xlu0 %3516
    %v3519 = vsel %vm375, %v3453, 0
    %v3521 = vsel %vm375, %v3517, 0
    %3523 = vmatpush.xpose.msra.mxu0 0.0
    %3524 = vmatpush.xpose.msra.mxu0 0.0
    %3525 = vmatpush.xpose.msra.mxu0 0.0
    %3526 = vmatpush.xpose.msra.mxu0 0.0
    %3527 = vmatpush.xpose.msra.mxu0 0.0
    %3528 = vmatpush.xpose.msra.mxu0 0.0
    %3529 = vmatpush.xpose.msra.mxu0 0.0
    %3530 = vmatpush.xpose.msra.mxu0 0.0
    %3531 = vmatpush.xpose.msra.mxu0 0.0
    %3532 = vmatpush.xpose.msra.mxu0 0.0
    %3533 = vmatpush.xpose.msra.mxu0 0.0
    %3534 = vmatpush.xpose.msra.mxu0 0.0
    %3535 = vmatpush.xpose.msra.mxu0 0.0
    %3536 = vmatpush.xpose.msra.mxu0 0.0
    %3537 = vmatpush.xpose.msra.mxu0 0.0
    %3538 = vmatpush.xpose.msra.mxu0 %v3521
    %3539 = vmatmul.f32.gmra.mxu0 %v3519
    %v3540 = vpop.f32.mrf.mxu0
    %v3541 = vadd.f32 %v82, %v3540
    %3542 = vdwg.mxu0
    %3544 = vrot.lane.b32.xlu0 %v3437, 96
    %v3545 = vpop.permute.xlu0 %3544
    %v3547 = vsel %vm375, %v3454, 0
    %v3549 = vsel %vm375, %v3545, 0
    %3551 = vmatpush.xpose.msra.mxu0 0.0
    %3552 = vmatpush.xpose.msra.mxu0 0.0
    %3553 = vmatpush.xpose.msra.mxu0 0.0
    %3554 = vmatpush.xpose.msra.mxu0 0.0
    %3555 = vmatpush.xpose.msra.mxu0 0.0
    %3556 = vmatpush.xpose.msra.mxu0 0.0
    %3557 = vmatpush.xpose.msra.mxu0 0.0
    %3558 = vmatpush.xpose.msra.mxu0 0.0
    %3559 = vmatpush.xpose.msra.mxu0 0.0
    %3560 = vmatpush.xpose.msra.mxu0 0.0
    %3561 = vmatpush.xpose.msra.mxu0 0.0
    %3562 = vmatpush.xpose.msra.mxu0 0.0
    %3563 = vmatpush.xpose.msra.mxu0 0.0
    %3564 = vmatpush.xpose.msra.mxu0 0.0
    %3565 = vmatpush.xpose.msra.mxu0 0.0
    %3566 = vmatpush.xpose.msra.mxu0 %v3549
    %3567 = vmatmul.f32.gmra.mxu0 %v3547
    %v3568 = vpop.f32.mrf.mxu0
    %v3569 = vadd.f32 %v82, %v3568
    %3570 = vdwg.mxu0
    %3572 = vrot.lane.b32.xlu0 %v3440, 96
    %v3573 = vpop.permute.xlu0 %3572
    %v3575 = vsel %vm375, %v3455, 0
    %v3577 = vsel %vm375, %v3573, 0
    %3579 = vmatpush.xpose.msra.mxu0 0.0
    %3580 = vmatpush.xpose.msra.mxu0 0.0
    %3581 = vmatpush.xpose.msra.mxu0 0.0
    %3582 = vmatpush.xpose.msra.mxu0 0.0
    %3583 = vmatpush.xpose.msra.mxu0 0.0
    %3584 = vmatpush.xpose.msra.mxu0 0.0
    %3585 = vmatpush.xpose.msra.mxu0 0.0
    %3586 = vmatpush.xpose.msra.mxu0 0.0
    %3587 = vmatpush.xpose.msra.mxu0 0.0
    %3588 = vmatpush.xpose.msra.mxu0 0.0
    %3589 = vmatpush.xpose.msra.mxu0 0.0
    %3590 = vmatpush.xpose.msra.mxu0 0.0
    %3591 = vmatpush.xpose.msra.mxu0 0.0
    %3592 = vmatpush.xpose.msra.mxu0 0.0
    %3593 = vmatpush.xpose.msra.mxu0 0.0
    %3594 = vmatpush.xpose.msra.mxu0 %v3577
    %3595 = vmatmul.f32.gmra.mxu0 %v3575
    %v3596 = vpop.f32.mrf.mxu0
    %v3597 = vadd.f32 %v82, %v3596
    %3598 = vdwg.mxu0
    %3600 = vrot.lane.b32.xlu0 %v3443, 96
    %v3601 = vpop.permute.xlu0 %3600
    %v3603 = vsel %vm375, %v3456, 0
    %v3605 = vsel %vm375, %v3601, 0
    %3607 = vmatpush.xpose.msra.mxu0 0.0
    %3608 = vmatpush.xpose.msra.mxu0 0.0
    %3609 = vmatpush.xpose.msra.mxu0 0.0
    %3610 = vmatpush.xpose.msra.mxu0 0.0
    %3611 = vmatpush.xpose.msra.mxu0 0.0
    %3612 = vmatpush.xpose.msra.mxu0 0.0
    %3613 = vmatpush.xpose.msra.mxu0 0.0
    %3614 = vmatpush.xpose.msra.mxu0 0.0
    %3615 = vmatpush.xpose.msra.mxu0 0.0
    %3616 = vmatpush.xpose.msra.mxu0 0.0
    %3617 = vmatpush.xpose.msra.mxu0 0.0
    %3618 = vmatpush.xpose.msra.mxu0 0.0
    %3619 = vmatpush.xpose.msra.mxu0 0.0
    %3620 = vmatpush.xpose.msra.mxu0 0.0
    %3621 = vmatpush.xpose.msra.mxu0 0.0
    %3622 = vmatpush.xpose.msra.mxu0 %v3605
    %3623 = vmatmul.f32.gmra.mxu0 %v3603
    %v3624 = vpop.f32.mrf.mxu0
    %v3625 = vadd.f32 %v82, %v3624
    %3626 = vdwg.mxu0
    %3628 = vrot.lane.b32.xlu0 %v3446, 96
    %v3629 = vpop.permute.xlu0 %3628
    %v3631 = vsel %vm375, %v3457, 0
    %v3633 = vsel %vm375, %v3629, 0
    %3635 = vmatpush.xpose.msra.mxu0 0.0
    %3636 = vmatpush.xpose.msra.mxu0 0.0
    %3637 = vmatpush.xpose.msra.mxu0 0.0
    %3638 = vmatpush.xpose.msra.mxu0 0.0
    %3639 = vmatpush.xpose.msra.mxu0 0.0
    %3640 = vmatpush.xpose.msra.mxu0 0.0
    %3641 = vmatpush.xpose.msra.mxu0 0.0
    %3642 = vmatpush.xpose.msra.mxu0 0.0
    %3643 = vmatpush.xpose.msra.mxu0 0.0
    %3644 = vmatpush.xpose.msra.mxu0 0.0
    %3645 = vmatpush.xpose.msra.mxu0 0.0
    %3646 = vmatpush.xpose.msra.mxu0 0.0
    %3647 = vmatpush.xpose.msra.mxu0 0.0
    %3648 = vmatpush.xpose.msra.mxu0 0.0
    %3649 = vmatpush.xpose.msra.mxu0 0.0
    %3650 = vmatpush.xpose.msra.mxu0 %v3633
    %3651 = vmatmul.f32.gmra.mxu0 %v3631
    %v3652 = vpop.f32.mrf.mxu0
    %v3653 = vadd.f32 %v82, %v3652
    %3654 = vdwg.mxu0
    %3656 = vrot.lane.b32.xlu0 %v3449, 96
    %v3657 = vpop.permute.xlu0 %3656
    %v3659 = vsel %vm375, %v3458, 0
    %v3661 = vsel %vm375, %v3657, 0
    %3663 = vmatpush.xpose.msra.mxu0 0.0
    %3664 = vmatpush.xpose.msra.mxu0 0.0
    %3665 = vmatpush.xpose.msra.mxu0 0.0
    %3666 = vmatpush.xpose.msra.mxu0 0.0
    %3667 = vmatpush.xpose.msra.mxu0 0.0
    %3668 = vmatpush.xpose.msra.mxu0 0.0
    %3669 = vmatpush.xpose.msra.mxu0 0.0
    %3670 = vmatpush.xpose.msra.mxu0 0.0
    %3671 = vmatpush.xpose.msra.mxu0 0.0
    %3672 = vmatpush.xpose.msra.mxu0 0.0
    %3673 = vmatpush.xpose.msra.mxu0 0.0
    %3674 = vmatpush.xpose.msra.mxu0 0.0
    %3675 = vmatpush.xpose.msra.mxu0 0.0
    %3676 = vmatpush.xpose.msra.mxu0 0.0
    %3677 = vmatpush.xpose.msra.mxu0 0.0
    %3678 = vmatpush.xpose.msra.mxu0 %v3661
    %3679 = vmatmul.f32.gmra.mxu0 %v3659
    %v3680 = vpop.f32.mrf.mxu0
    %v3681 = vadd.f32 %v82, %v3680
    %3682 = vdwg.mxu0
    %v3683 = vsel %vm375, %v3485, -inf
    %3684 = vmax.xlane.f32.xlu0 %v3683
    %v3685 = vpop.xlane.xlu0 %3684
    %v3686 = vsel %vm375, %v3513, -inf
    %3687 = vmax.xlane.f32.xlu0 %v3686
    %v3688 = vpop.xlane.xlu0 %3687
    %v3689 = vsel %vm375, %v3541, -inf
    %3690 = vmax.xlane.f32.xlu0 %v3689
    %v3691 = vpop.xlane.xlu0 %3690
    %v3692 = vsel %vm375, %v3569, -inf
    %3693 = vmax.xlane.f32.xlu0 %v3692
    %v3694 = vpop.xlane.xlu0 %3693
    %v3695 = vsel %vm375, %v3597, -inf
    %3696 = vmax.xlane.f32.xlu0 %v3695
    %v3697 = vpop.xlane.xlu0 %3696
    %v3698 = vsel %vm375, %v3625, -inf
    %3699 = vmax.xlane.f32.xlu0 %v3698
    %v3700 = vpop.xlane.xlu0 %3699
    %v3701 = vsel %vm375, %v3653, -inf
    %3702 = vmax.xlane.f32.xlu0 %v3701
    %v3703 = vpop.xlane.xlu0 %3702
    %v3704 = vsel %vm375, %v3681, -inf
    %3705 = vmax.xlane.f32.xlu0 %v3704
    %v3706 = vpop.xlane.xlu0 %3705
    %v3707 = vsub.f32 %v3485, %v3685
    %v3708 = vsub.f32 %v3513, %v3688
    %v3709 = vsub.f32 %v3541, %v3691
    %v3710 = vsub.f32 %v3569, %v3694
    %v3711 = vsub.f32 %v3597, %v3697
    %v3712 = vsub.f32 %v3625, %v3700
    %v3713 = vsub.f32 %v3653, %v3703
    %v3714 = vsub.f32 %v3681, %v3706
    %v3715 = vmul.f32 %v3707, 1.442695
    %v3716 = vpow.pop %v3715
    %v3717 = vmul.f32 %v3708, 1.442695
    %v3718 = vpow.pop %v3717
    %v3719 = vmul.f32 %v3709, 1.442695
    %v3720 = vpow.pop %v3719
    %v3721 = vmul.f32 %v3710, 1.442695
    %v3722 = vpow.pop %v3721
    %v3723 = vmul.f32 %v3711, 1.442695
    %v3724 = vpow.pop %v3723
    %v3725 = vmul.f32 %v3712, 1.442695
    %v3726 = vpow.pop %v3725
    %v3727 = vmul.f32 %v3713, 1.442695
    %v3728 = vpow.pop %v3727
    %v3729 = vmul.f32 %v3714, 1.442695
    %v3730 = vpow.pop %v3729
    %v3731 = vsel %vm375, %v3716, 0.0
    %3732 = vadd.xlane.f32.xlu0 %v3731
    %v3733 = vpop.xlane.xlu0 %3732
    %v3734 = vsel %vm375, %v3718, 0.0
    %3735 = vadd.xlane.f32.xlu0 %v3734
    %v3736 = vpop.xlane.xlu0 %3735
    %v3737 = vsel %vm375, %v3720, 0.0
    %3738 = vadd.xlane.f32.xlu0 %v3737
    %v3739 = vpop.xlane.xlu0 %3738
    %v3740 = vsel %vm375, %v3722, 0.0
    %3741 = vadd.xlane.f32.xlu0 %v3740
    %v3742 = vpop.xlane.xlu0 %3741
    %v3743 = vsel %vm375, %v3724, 0.0
    %3744 = vadd.xlane.f32.xlu0 %v3743
    %v3745 = vpop.xlane.xlu0 %3744
    %v3746 = vsel %vm375, %v3726, 0.0
    %3747 = vadd.xlane.f32.xlu0 %v3746
    %v3748 = vpop.xlane.xlu0 %3747
    %v3749 = vsel %vm375, %v3728, 0.0
    %3750 = vadd.xlane.f32.xlu0 %v3749
    %v3751 = vpop.xlane.xlu0 %3750
    %v3752 = vsel %vm375, %v3730, 0.0
    %3753 = vadd.xlane.f32.xlu0 %v3752
    %v3754 = vpop.xlane.xlu0 %3753
    %v3755 = vrcp.pop %v3733
    %v3756 = vrcp.pop %v3736
    %v3757 = vrcp.pop %v3739
    %v3758 = vrcp.pop %v3742
    %v3759 = vrcp.pop %v3745
    %v3760 = vrcp.pop %v3748
    %v3761 = vrcp.pop %v3751
    %v3762 = vrcp.pop %v3754
    %v3763 = vmul.f32 %v3716, %v3755
    %v3764 = vmul.f32 %v3718, %v3756
    %v3765 = vmul.f32 %v3720, %v3757
    %v3766 = vmul.f32 %v3722, %v3758
    %v3767 = vmul.f32 %v3724, %v3759
    %v3768 = vmul.f32 %v3726, %v3760
    %v3769 = vmul.f32 %v3728, %v3761
    %v3770 = vmul.f32 %v3730, %v3762
    %3771 = vrot.lane.b32.xlu0 %v3428, 64
    %v3772 = vpop.permute.xlu0 %3771
    %v3775 = vsel %vm375, %v3763, 0
    %3777 = vmatpush.msra.mxu0 0.0
    %3778 = vmatpush.msra.mxu0 0.0
    %3779 = vmatpush.msra.mxu0 0.0
    %3780 = vmatpush.msra.mxu0 0.0
    %3781 = vmatpush.msra.mxu0 0.0
    %3782 = vmatpush.msra.mxu0 0.0
    %3783 = vmatpush.msra.mxu0 0.0
    %3784 = vmatpush.msra.mxu0 0.0
    %3785 = vmatpush.msra.mxu0 0.0
    %3786 = vmatpush.msra.mxu0 0.0
    %3787 = vmatpush.msra.mxu0 0.0
    %3788 = vmatpush.msra.mxu0 0.0
    %3789 = vmatpush.msra.mxu0 0.0
    %3790 = vmatpush.msra.mxu0 0.0
    %3791 = vmatpush.msra.mxu0 0.0
    %3792 = vmatpush.msra.mxu0 %v3772
    %3793 = vmatmul.f32.gmra.mxu0 %v3775
    %v3794 = vpop.f32.mrf.mxu0
    %v3795 = vadd.f32 0.0, %v3794
    %3796 = vdwg.mxu0
    %3797 = vrot.lane.b32.xlu0 %v3431, 64
    %v3798 = vpop.permute.xlu0 %3797
    %v3801 = vsel %vm375, %v3764, 0
    %3803 = vmatpush.msra.mxu0 0.0
    %3804 = vmatpush.msra.mxu0 0.0
    %3805 = vmatpush.msra.mxu0 0.0
    %3806 = vmatpush.msra.mxu0 0.0
    %3807 = vmatpush.msra.mxu0 0.0
    %3808 = vmatpush.msra.mxu0 0.0
    %3809 = vmatpush.msra.mxu0 0.0
    %3810 = vmatpush.msra.mxu0 0.0
    %3811 = vmatpush.msra.mxu0 0.0
    %3812 = vmatpush.msra.mxu0 0.0
    %3813 = vmatpush.msra.mxu0 0.0
    %3814 = vmatpush.msra.mxu0 0.0
    %3815 = vmatpush.msra.mxu0 0.0
    %3816 = vmatpush.msra.mxu0 0.0
    %3817 = vmatpush.msra.mxu0 0.0
    %3818 = vmatpush.msra.mxu0 %v3798
    %3819 = vmatmul.f32.gmra.mxu0 %v3801
    %v3820 = vpop.f32.mrf.mxu0
    %v3821 = vadd.f32 0.0, %v3820
    %3822 = vdwg.mxu0
    %3823 = vrot.lane.b32.xlu0 %v3434, 64
    %v3824 = vpop.permute.xlu0 %3823
    %v3827 = vsel %vm375, %v3765, 0
    %3829 = vmatpush.msra.mxu0 0.0
    %3830 = vmatpush.msra.mxu0 0.0
    %3831 = vmatpush.msra.mxu0 0.0
    %3832 = vmatpush.msra.mxu0 0.0
    %3833 = vmatpush.msra.mxu0 0.0
    %3834 = vmatpush.msra.mxu0 0.0
    %3835 = vmatpush.msra.mxu0 0.0
    %3836 = vmatpush.msra.mxu0 0.0
    %3837 = vmatpush.msra.mxu0 0.0
    %3838 = vmatpush.msra.mxu0 0.0
    %3839 = vmatpush.msra.mxu0 0.0
    %3840 = vmatpush.msra.mxu0 0.0
    %3841 = vmatpush.msra.mxu0 0.0
    %3842 = vmatpush.msra.mxu0 0.0
    %3843 = vmatpush.msra.mxu0 0.0
    %3844 = vmatpush.msra.mxu0 %v3824
    %3845 = vmatmul.f32.gmra.mxu0 %v3827
    %v3846 = vpop.f32.mrf.mxu0
    %v3847 = vadd.f32 0.0, %v3846
    %3848 = vdwg.mxu0
    %3849 = vrot.lane.b32.xlu0 %v3437, 64
    %v3850 = vpop.permute.xlu0 %3849
    %v3853 = vsel %vm375, %v3766, 0
    %3855 = vmatpush.msra.mxu0 0.0
    %3856 = vmatpush.msra.mxu0 0.0
    %3857 = vmatpush.msra.mxu0 0.0
    %3858 = vmatpush.msra.mxu0 0.0
    %3859 = vmatpush.msra.mxu0 0.0
    %3860 = vmatpush.msra.mxu0 0.0
    %3861 = vmatpush.msra.mxu0 0.0
    %3862 = vmatpush.msra.mxu0 0.0
    %3863 = vmatpush.msra.mxu0 0.0
    %3864 = vmatpush.msra.mxu0 0.0
    %3865 = vmatpush.msra.mxu0 0.0
    %3866 = vmatpush.msra.mxu0 0.0
    %3867 = vmatpush.msra.mxu0 0.0
    %3868 = vmatpush.msra.mxu0 0.0
    %3869 = vmatpush.msra.mxu0 0.0
    %3870 = vmatpush.msra.mxu0 %v3850
    %3871 = vmatmul.f32.gmra.mxu0 %v3853
    %v3872 = vpop.f32.mrf.mxu0
    %v3873 = vadd.f32 0.0, %v3872
    %3874 = vdwg.mxu0
    %3875 = vrot.lane.b32.xlu0 %v3440, 64
    %v3876 = vpop.permute.xlu0 %3875
    %v3879 = vsel %vm375, %v3767, 0
    %3881 = vmatpush.msra.mxu0 0.0
    %3882 = vmatpush.msra.mxu0 0.0
    %3883 = vmatpush.msra.mxu0 0.0
    %3884 = vmatpush.msra.mxu0 0.0
    %3885 = vmatpush.msra.mxu0 0.0
    %3886 = vmatpush.msra.mxu0 0.0
    %3887 = vmatpush.msra.mxu0 0.0
    %3888 = vmatpush.msra.mxu0 0.0
    %3889 = vmatpush.msra.mxu0 0.0
    %3890 = vmatpush.msra.mxu0 0.0
    %3891 = vmatpush.msra.mxu0 0.0
    %3892 = vmatpush.msra.mxu0 0.0
    %3893 = vmatpush.msra.mxu0 0.0
    %3894 = vmatpush.msra.mxu0 0.0
    %3895 = vmatpush.msra.mxu0 0.0
    %3896 = vmatpush.msra.mxu0 %v3876
    %3897 = vmatmul.f32.gmra.mxu0 %v3879
    %v3898 = vpop.f32.mrf.mxu0
    %v3899 = vadd.f32 0.0, %v3898
    %3900 = vdwg.mxu0
    %3901 = vrot.lane.b32.xlu0 %v3443, 64
    %v3902 = vpop.permute.xlu0 %3901
    %v3905 = vsel %vm375, %v3768, 0
    %3907 = vmatpush.msra.mxu0 0.0
    %3908 = vmatpush.msra.mxu0 0.0
    %3909 = vmatpush.msra.mxu0 0.0
    %3910 = vmatpush.msra.mxu0 0.0
    %3911 = vmatpush.msra.mxu0 0.0
    %3912 = vmatpush.msra.mxu0 0.0
    %3913 = vmatpush.msra.mxu0 0.0
    %3914 = vmatpush.msra.mxu0 0.0
    %3915 = vmatpush.msra.mxu0 0.0
    %3916 = vmatpush.msra.mxu0 0.0
    %3917 = vmatpush.msra.mxu0 0.0
    %3918 = vmatpush.msra.mxu0 0.0
    %3919 = vmatpush.msra.mxu0 0.0
    %3920 = vmatpush.msra.mxu0 0.0
    %3921 = vmatpush.msra.mxu0 0.0
    %3922 = vmatpush.msra.mxu0 %v3902
    %3923 = vmatmul.f32.gmra.mxu0 %v3905
    %v3924 = vpop.f32.mrf.mxu0
    %v3925 = vadd.f32 0.0, %v3924
    %3926 = vdwg.mxu0
    %3927 = vrot.lane.b32.xlu0 %v3446, 64
    %v3928 = vpop.permute.xlu0 %3927
    %v3931 = vsel %vm375, %v3769, 0
    %3933 = vmatpush.msra.mxu0 0.0
    %3934 = vmatpush.msra.mxu0 0.0
    %3935 = vmatpush.msra.mxu0 0.0
    %3936 = vmatpush.msra.mxu0 0.0
    %3937 = vmatpush.msra.mxu0 0.0
    %3938 = vmatpush.msra.mxu0 0.0
    %3939 = vmatpush.msra.mxu0 0.0
    %3940 = vmatpush.msra.mxu0 0.0
    %3941 = vmatpush.msra.mxu0 0.0
    %3942 = vmatpush.msra.mxu0 0.0
    %3943 = vmatpush.msra.mxu0 0.0
    %3944 = vmatpush.msra.mxu0 0.0
    %3945 = vmatpush.msra.mxu0 0.0
    %3946 = vmatpush.msra.mxu0 0.0
    %3947 = vmatpush.msra.mxu0 0.0
    %3948 = vmatpush.msra.mxu0 %v3928
    %3949 = vmatmul.f32.gmra.mxu0 %v3931
    %v3950 = vpop.f32.mrf.mxu0
    %v3951 = vadd.f32 0.0, %v3950
    %3952 = vdwg.mxu0
    %3953 = vrot.lane.b32.xlu0 %v3449, 64
    %v3954 = vpop.permute.xlu0 %3953
    %v3957 = vsel %vm375, %v3770, 0
    %3959 = vmatpush.msra.mxu0 0.0
    %3960 = vmatpush.msra.mxu0 0.0
    %3961 = vmatpush.msra.mxu0 0.0
    %3962 = vmatpush.msra.mxu0 0.0
    %3963 = vmatpush.msra.mxu0 0.0
    %3964 = vmatpush.msra.mxu0 0.0
    %3965 = vmatpush.msra.mxu0 0.0
    %3966 = vmatpush.msra.mxu0 0.0
    %3967 = vmatpush.msra.mxu0 0.0
    %3968 = vmatpush.msra.mxu0 0.0
    %3969 = vmatpush.msra.mxu0 0.0
    %3970 = vmatpush.msra.mxu0 0.0
    %3971 = vmatpush.msra.mxu0 0.0
    %3972 = vmatpush.msra.mxu0 0.0
    %3973 = vmatpush.msra.mxu0 0.0
    %3974 = vmatpush.msra.mxu0 %v3954
    %3975 = vmatmul.f32.gmra.mxu0 %v3957
    %v3976 = vpop.f32.mrf.mxu0
    %v3977 = vadd.f32 0.0, %v3976
    %3978 = vdwg.mxu0
    %3979 = vrot.lane.b32.xlu0 %v3451, 120
    %v3980 = vpop.permute.xlu0 %3979
    %3981 = vrot.lane.b32.xlu0 %v3428, 88
    %v3982 = vpop.permute.xlu0 %3981
    %v3983 = vsel %vm375, %v3980, 0
    %v3985 = vsel %vm375, %v3982, 0
    %3987 = vmatpush.xpose.msra.mxu0 0.0
    %3988 = vmatpush.xpose.msra.mxu0 0.0
    %3989 = vmatpush.xpose.msra.mxu0 0.0
    %3990 = vmatpush.xpose.msra.mxu0 0.0
    %3991 = vmatpush.xpose.msra.mxu0 0.0
    %3992 = vmatpush.xpose.msra.mxu0 0.0
    %3993 = vmatpush.xpose.msra.mxu0 0.0
    %3994 = vmatpush.xpose.msra.mxu0 0.0
    %3995 = vmatpush.xpose.msra.mxu0 0.0
    %3996 = vmatpush.xpose.msra.mxu0 0.0
    %3997 = vmatpush.xpose.msra.mxu0 0.0
    %3998 = vmatpush.xpose.msra.mxu0 0.0
    %3999 = vmatpush.xpose.msra.mxu0 0.0
    %4000 = vmatpush.xpose.msra.mxu0 0.0
    %4001 = vmatpush.xpose.msra.mxu0 0.0
    %4002 = vmatpush.xpose.msra.mxu0 %v3985
    %4003 = vmatmul.f32.gmra.mxu0 %v3983
    %v4004 = vpop.f32.mrf.mxu0
    %v4005 = vadd.f32 %v82, %v4004
    %4006 = vdwg.mxu0
    %4007 = vrot.lane.b32.xlu0 %v3452, 120
    %v4008 = vpop.permute.xlu0 %4007
    %4009 = vrot.lane.b32.xlu0 %v3431, 88
    %v4010 = vpop.permute.xlu0 %4009
    %v4011 = vsel %vm375, %v4008, 0
    %v4013 = vsel %vm375, %v4010, 0
    %4015 = vmatpush.xpose.msra.mxu0 0.0
    %4016 = vmatpush.xpose.msra.mxu0 0.0
    %4017 = vmatpush.xpose.msra.mxu0 0.0
    %4018 = vmatpush.xpose.msra.mxu0 0.0
    %4019 = vmatpush.xpose.msra.mxu0 0.0
    %4020 = vmatpush.xpose.msra.mxu0 0.0
    %4021 = vmatpush.xpose.msra.mxu0 0.0
    %4022 = vmatpush.xpose.msra.mxu0 0.0
    %4023 = vmatpush.xpose.msra.mxu0 0.0
    %4024 = vmatpush.xpose.msra.mxu0 0.0
    %4025 = vmatpush.xpose.msra.mxu0 0.0
    %4026 = vmatpush.xpose.msra.mxu0 0.0
    %4027 = vmatpush.xpose.msra.mxu0 0.0
    %4028 = vmatpush.xpose.msra.mxu0 0.0
    %4029 = vmatpush.xpose.msra.mxu0 0.0
    %4030 = vmatpush.xpose.msra.mxu0 %v4013
    %4031 = vmatmul.f32.gmra.mxu0 %v4011
    %v4032 = vpop.f32.mrf.mxu0
    %v4033 = vadd.f32 %v82, %v4032
    %4034 = vdwg.mxu0
    %4035 = vrot.lane.b32.xlu0 %v3453, 120
    %v4036 = vpop.permute.xlu0 %4035
    %4037 = vrot.lane.b32.xlu0 %v3434, 88
    %v4038 = vpop.permute.xlu0 %4037
    %v4039 = vsel %vm375, %v4036, 0
    %v4041 = vsel %vm375, %v4038, 0
    %4043 = vmatpush.xpose.msra.mxu0 0.0
    %4044 = vmatpush.xpose.msra.mxu0 0.0
    %4045 = vmatpush.xpose.msra.mxu0 0.0
    %4046 = vmatpush.xpose.msra.mxu0 0.0
    %4047 = vmatpush.xpose.msra.mxu0 0.0
    %4048 = vmatpush.xpose.msra.mxu0 0.0
    %4049 = vmatpush.xpose.msra.mxu0 0.0
    %4050 = vmatpush.xpose.msra.mxu0 0.0
    %4051 = vmatpush.xpose.msra.mxu0 0.0
    %4052 = vmatpush.xpose.msra.mxu0 0.0
    %4053 = vmatpush.xpose.msra.mxu0 0.0
    %4054 = vmatpush.xpose.msra.mxu0 0.0
    %4055 = vmatpush.xpose.msra.mxu0 0.0
    %4056 = vmatpush.xpose.msra.mxu0 0.0
    %4057 = vmatpush.xpose.msra.mxu0 0.0
    %4058 = vmatpush.xpose.msra.mxu0 %v4041
    %4059 = vmatmul.f32.gmra.mxu0 %v4039
    %v4060 = vpop.f32.mrf.mxu0
    %v4061 = vadd.f32 %v82, %v4060
    %4062 = vdwg.mxu0
    %4063 = vrot.lane.b32.xlu0 %v3454, 120
    %v4064 = vpop.permute.xlu0 %4063
    %4065 = vrot.lane.b32.xlu0 %v3437, 88
    %v4066 = vpop.permute.xlu0 %4065
    %v4067 = vsel %vm375, %v4064, 0
    %v4069 = vsel %vm375, %v4066, 0
    %4071 = vmatpush.xpose.msra.mxu0 0.0
    %4072 = vmatpush.xpose.msra.mxu0 0.0
    %4073 = vmatpush.xpose.msra.mxu0 0.0
    %4074 = vmatpush.xpose.msra.mxu0 0.0
    %4075 = vmatpush.xpose.msra.mxu0 0.0
    %4076 = vmatpush.xpose.msra.mxu0 0.0
    %4077 = vmatpush.xpose.msra.mxu0 0.0
    %4078 = vmatpush.xpose.msra.mxu0 0.0
    %4079 = vmatpush.xpose.msra.mxu0 0.0
    %4080 = vmatpush.xpose.msra.mxu0 0.0
    %4081 = vmatpush.xpose.msra.mxu0 0.0
    %4082 = vmatpush.xpose.msra.mxu0 0.0
    %4083 = vmatpush.xpose.msra.mxu0 0.0
    %4084 = vmatpush.xpose.msra.mxu0 0.0
    %4085 = vmatpush.xpose.msra.mxu0 0.0
    %4086 = vmatpush.xpose.msra.mxu0 %v4069
    %4087 = vmatmul.f32.gmra.mxu0 %v4067
    %v4088 = vpop.f32.mrf.mxu0
    %v4089 = vadd.f32 %v82, %v4088
    %4090 = vdwg.mxu0
    %4091 = vrot.lane.b32.xlu0 %v3455, 120
    %v4092 = vpop.permute.xlu0 %4091
    %4093 = vrot.lane.b32.xlu0 %v3440, 88
    %v4094 = vpop.permute.xlu0 %4093
    %v4095 = vsel %vm375, %v4092, 0
    %v4097 = vsel %vm375, %v4094, 0
    %4099 = vmatpush.xpose.msra.mxu0 0.0
    %4100 = vmatpush.xpose.msra.mxu0 0.0
    %4101 = vmatpush.xpose.msra.mxu0 0.0
    %4102 = vmatpush.xpose.msra.mxu0 0.0
    %4103 = vmatpush.xpose.msra.mxu0 0.0
    %4104 = vmatpush.xpose.msra.mxu0 0.0
    %4105 = vmatpush.xpose.msra.mxu0 0.0
    %4106 = vmatpush.xpose.msra.mxu0 0.0
    %4107 = vmatpush.xpose.msra.mxu0 0.0
    %4108 = vmatpush.xpose.msra.mxu0 0.0
    %4109 = vmatpush.xpose.msra.mxu0 0.0
    %4110 = vmatpush.xpose.msra.mxu0 0.0
    %4111 = vmatpush.xpose.msra.mxu0 0.0
    %4112 = vmatpush.xpose.msra.mxu0 0.0
    %4113 = vmatpush.xpose.msra.mxu0 0.0
    %4114 = vmatpush.xpose.msra.mxu0 %v4097
    %4115 = vmatmul.f32.gmra.mxu0 %v4095
    %v4116 = vpop.f32.mrf.mxu0
    %v4117 = vadd.f32 %v82, %v4116
    %4118 = vdwg.mxu0
    %4119 = vrot.lane.b32.xlu0 %v3456, 120
    %v4120 = vpop.permute.xlu0 %4119
    %4121 = vrot.lane.b32.xlu0 %v3443, 88
    %v4122 = vpop.permute.xlu0 %4121
    %v4123 = vsel %vm375, %v4120, 0
    %v4125 = vsel %vm375, %v4122, 0
    %4127 = vmatpush.xpose.msra.mxu0 0.0
    %4128 = vmatpush.xpose.msra.mxu0 0.0
    %4129 = vmatpush.xpose.msra.mxu0 0.0
    %4130 = vmatpush.xpose.msra.mxu0 0.0
    %4131 = vmatpush.xpose.msra.mxu0 0.0
    %4132 = vmatpush.xpose.msra.mxu0 0.0
    %4133 = vmatpush.xpose.msra.mxu0 0.0
    %4134 = vmatpush.xpose.msra.mxu0 0.0
    %4135 = vmatpush.xpose.msra.mxu0 0.0
    %4136 = vmatpush.xpose.msra.mxu0 0.0
    %4137 = vmatpush.xpose.msra.mxu0 0.0
    %4138 = vmatpush.xpose.msra.mxu0 0.0
    %4139 = vmatpush.xpose.msra.mxu0 0.0
    %4140 = vmatpush.xpose.msra.mxu0 0.0
    %4141 = vmatpush.xpose.msra.mxu0 0.0
    %4142 = vmatpush.xpose.msra.mxu0 %v4125
    %4143 = vmatmul.f32.gmra.mxu0 %v4123
    %v4144 = vpop.f32.mrf.mxu0
    %v4145 = vadd.f32 %v82, %v4144
    %4146 = vdwg.mxu0
    %4147 = vrot.lane.b32.xlu0 %v3457, 120
    %v4148 = vpop.permute.xlu0 %4147
    %4149 = vrot.lane.b32.xlu0 %v3446, 88
    %v4150 = vpop.permute.xlu0 %4149
    %v4151 = vsel %vm375, %v4148, 0
    %v4153 = vsel %vm375, %v4150, 0
    %4155 = vmatpush.xpose.msra.mxu0 0.0
    %4156 = vmatpush.xpose.msra.mxu0 0.0
    %4157 = vmatpush.xpose.msra.mxu0 0.0
    %4158 = vmatpush.xpose.msra.mxu0 0.0
    %4159 = vmatpush.xpose.msra.mxu0 0.0
    %4160 = vmatpush.xpose.msra.mxu0 0.0
    %4161 = vmatpush.xpose.msra.mxu0 0.0
    %4162 = vmatpush.xpose.msra.mxu0 0.0
    %4163 = vmatpush.xpose.msra.mxu0 0.0
    %4164 = vmatpush.xpose.msra.mxu0 0.0
    %4165 = vmatpush.xpose.msra.mxu0 0.0
    %4166 = vmatpush.xpose.msra.mxu0 0.0
    %4167 = vmatpush.xpose.msra.mxu0 0.0
    %4168 = vmatpush.xpose.msra.mxu0 0.0
    %4169 = vmatpush.xpose.msra.mxu0 0.0
    %4170 = vmatpush.xpose.msra.mxu0 %v4153
    %4171 = vmatmul.f32.gmra.mxu0 %v4151
    %v4172 = vpop.f32.mrf.mxu0
    %v4173 = vadd.f32 %v82, %v4172
    %4174 = vdwg.mxu0
    %4175 = vrot.lane.b32.xlu0 %v3458, 120
    %v4176 = vpop.permute.xlu0 %4175
    %4177 = vrot.lane.b32.xlu0 %v3449, 88
    %v4178 = vpop.permute.xlu0 %4177
    %v4179 = vsel %vm375, %v4176, 0
    %v4181 = vsel %vm375, %v4178, 0
    %4183 = vmatpush.xpose.msra.mxu0 0.0
    %4184 = vmatpush.xpose.msra.mxu0 0.0
    %4185 = vmatpush.xpose.msra.mxu0 0.0
    %4186 = vmatpush.xpose.msra.mxu0 0.0
    %4187 = vmatpush.xpose.msra.mxu0 0.0
    %4188 = vmatpush.xpose.msra.mxu0 0.0
    %4189 = vmatpush.xpose.msra.mxu0 0.0
    %4190 = vmatpush.xpose.msra.mxu0 0.0
    %4191 = vmatpush.xpose.msra.mxu0 0.0
    %4192 = vmatpush.xpose.msra.mxu0 0.0
    %4193 = vmatpush.xpose.msra.mxu0 0.0
    %4194 = vmatpush.xpose.msra.mxu0 0.0
    %4195 = vmatpush.xpose.msra.mxu0 0.0
    %4196 = vmatpush.xpose.msra.mxu0 0.0
    %4197 = vmatpush.xpose.msra.mxu0 0.0
    %4198 = vmatpush.xpose.msra.mxu0 %v4181
    %4199 = vmatmul.f32.gmra.mxu0 %v4179
    %v4200 = vpop.f32.mrf.mxu0
    %v4201 = vadd.f32 %v82, %v4200
    %4202 = vdwg.mxu0
    %v4203 = vsel %vm375, %v4005, -inf
    %4204 = vmax.xlane.f32.xlu0 %v4203
    %v4205 = vpop.xlane.xlu0 %4204
    %v4206 = vsel %vm375, %v4033, -inf
    %4207 = vmax.xlane.f32.xlu0 %v4206
    %v4208 = vpop.xlane.xlu0 %4207
    %v4209 = vsel %vm375, %v4061, -inf
    %4210 = vmax.xlane.f32.xlu0 %v4209
    %v4211 = vpop.xlane.xlu0 %4210
    %v4212 = vsel %vm375, %v4089, -inf
    %4213 = vmax.xlane.f32.xlu0 %v4212
    %v4214 = vpop.xlane.xlu0 %4213
    %v4215 = vsel %vm375, %v4117, -inf
    %4216 = vmax.xlane.f32.xlu0 %v4215
    %v4217 = vpop.xlane.xlu0 %4216
    %v4218 = vsel %vm375, %v4145, -inf
    %4219 = vmax.xlane.f32.xlu0 %v4218
    %v4220 = vpop.xlane.xlu0 %4219
    %v4221 = vsel %vm375, %v4173, -inf
    %4222 = vmax.xlane.f32.xlu0 %v4221
    %v4223 = vpop.xlane.xlu0 %4222
    %v4224 = vsel %vm375, %v4201, -inf
    %4225 = vmax.xlane.f32.xlu0 %v4224
    %v4226 = vpop.xlane.xlu0 %4225
    %v4227 = vsub.f32 %v4005, %v4205
    %v4228 = vsub.f32 %v4033, %v4208
    %v4229 = vsub.f32 %v4061, %v4211
    %v4230 = vsub.f32 %v4089, %v4214
    %v4231 = vsub.f32 %v4117, %v4217
    %v4232 = vsub.f32 %v4145, %v4220
    %v4233 = vsub.f32 %v4173, %v4223
    %v4234 = vsub.f32 %v4201, %v4226
    %v4235 = vmul.f32 %v4227, 1.442695
    %v4236 = vpow.pop %v4235
    %v4237 = vmul.f32 %v4228, 1.442695
    %v4238 = vpow.pop %v4237
    %v4239 = vmul.f32 %v4229, 1.442695
    %v4240 = vpow.pop %v4239
    %v4241 = vmul.f32 %v4230, 1.442695
    %v4242 = vpow.pop %v4241
    %v4243 = vmul.f32 %v4231, 1.442695
    %v4244 = vpow.pop %v4243
    %v4245 = vmul.f32 %v4232, 1.442695
    %v4246 = vpow.pop %v4245
    %v4247 = vmul.f32 %v4233, 1.442695
    %v4248 = vpow.pop %v4247
    %v4249 = vmul.f32 %v4234, 1.442695
    %v4250 = vpow.pop %v4249
    %v4251 = vsel %vm375, %v4236, 0.0
    %4252 = vadd.xlane.f32.xlu0 %v4251
    %v4253 = vpop.xlane.xlu0 %4252
    %v4254 = vsel %vm375, %v4238, 0.0
    %4255 = vadd.xlane.f32.xlu0 %v4254
    %v4256 = vpop.xlane.xlu0 %4255
    %v4257 = vsel %vm375, %v4240, 0.0
    %4258 = vadd.xlane.f32.xlu0 %v4257
    %v4259 = vpop.xlane.xlu0 %4258
    %v4260 = vsel %vm375, %v4242, 0.0
    %4261 = vadd.xlane.f32.xlu0 %v4260
    %v4262 = vpop.xlane.xlu0 %4261
    %v4263 = vsel %vm375, %v4244, 0.0
    %4264 = vadd.xlane.f32.xlu0 %v4263
    %v4265 = vpop.xlane.xlu0 %4264
    %v4266 = vsel %vm375, %v4246, 0.0
    %4267 = vadd.xlane.f32.xlu0 %v4266
    %v4268 = vpop.xlane.xlu0 %4267
    %v4269 = vsel %vm375, %v4248, 0.0
    %4270 = vadd.xlane.f32.xlu0 %v4269
    %v4271 = vpop.xlane.xlu0 %4270
    %v4272 = vsel %vm375, %v4250, 0.0
    %4273 = vadd.xlane.f32.xlu0 %v4272
    %v4274 = vpop.xlane.xlu0 %4273
    %v4275 = vrcp.pop %v4253
    %v4276 = vrcp.pop %v4256
    %v4277 = vrcp.pop %v4259
    %v4278 = vrcp.pop %v4262
    %v4279 = vrcp.pop %v4265
    %v4280 = vrcp.pop %v4268
    %v4281 = vrcp.pop %v4271
    %v4282 = vrcp.pop %v4274
    %v4283 = vmul.f32 %v4236, %v4275
    %v4284 = vmul.f32 %v4238, %v4276
    %v4285 = vmul.f32 %v4240, %v4277
    %v4286 = vmul.f32 %v4242, %v4278
    %v4287 = vmul.f32 %v4244, %v4279
    %v4288 = vmul.f32 %v4246, %v4280
    %v4289 = vmul.f32 %v4248, %v4281
    %v4290 = vmul.f32 %v4250, %v4282
    %4291 = vrot.lane.b32.xlu0 %v3428, 56
    %v4292 = vpop.permute.xlu0 %4291
    %v4295 = vsel %vm375, %v4283, 0
    %4297 = vmatpush.msra.mxu0 0.0
    %4298 = vmatpush.msra.mxu0 0.0
    %4299 = vmatpush.msra.mxu0 0.0
    %4300 = vmatpush.msra.mxu0 0.0
    %4301 = vmatpush.msra.mxu0 0.0
    %4302 = vmatpush.msra.mxu0 0.0
    %4303 = vmatpush.msra.mxu0 0.0
    %4304 = vmatpush.msra.mxu0 0.0
    %4305 = vmatpush.msra.mxu0 0.0
    %4306 = vmatpush.msra.mxu0 0.0
    %4307 = vmatpush.msra.mxu0 0.0
    %4308 = vmatpush.msra.mxu0 0.0
    %4309 = vmatpush.msra.mxu0 0.0
    %4310 = vmatpush.msra.mxu0 0.0
    %4311 = vmatpush.msra.mxu0 0.0
    %4312 = vmatpush.msra.mxu0 %v4292
    %4313 = vmatmul.f32.gmra.mxu0 %v4295
    %v4314 = vpop.f32.mrf.mxu0
    %v4315 = vadd.f32 0.0, %v4314
    %4316 = vdwg.mxu0
    %4317 = vrot.lane.b32.xlu0 %v3431, 56
    %v4318 = vpop.permute.xlu0 %4317
    %v4321 = vsel %vm375, %v4284, 0
    %4323 = vmatpush.msra.mxu0 0.0
    %4324 = vmatpush.msra.mxu0 0.0
    %4325 = vmatpush.msra.mxu0 0.0
    %4326 = vmatpush.msra.mxu0 0.0
    %4327 = vmatpush.msra.mxu0 0.0
    %4328 = vmatpush.msra.mxu0 0.0
    %4329 = vmatpush.msra.mxu0 0.0
    %4330 = vmatpush.msra.mxu0 0.0
    %4331 = vmatpush.msra.mxu0 0.0
    %4332 = vmatpush.msra.mxu0 0.0
    %4333 = vmatpush.msra.mxu0 0.0
    %4334 = vmatpush.msra.mxu0 0.0
    %4335 = vmatpush.msra.mxu0 0.0
    %4336 = vmatpush.msra.mxu0 0.0
    %4337 = vmatpush.msra.mxu0 0.0
    %4338 = vmatpush.msra.mxu0 %v4318
    %4339 = vmatmul.f32.gmra.mxu0 %v4321
    %v4340 = vpop.f32.mrf.mxu0
    %v4341 = vadd.f32 0.0, %v4340
    %4342 = vdwg.mxu0
    %4343 = vrot.lane.b32.xlu0 %v3434, 56
    %v4344 = vpop.permute.xlu0 %4343
    %v4347 = vsel %vm375, %v4285, 0
    %4349 = vmatpush.msra.mxu0 0.0
    %4350 = vmatpush.msra.mxu0 0.0
    %4351 = vmatpush.msra.mxu0 0.0
    %4352 = vmatpush.msra.mxu0 0.0
    %4353 = vmatpush.msra.mxu0 0.0
    %4354 = vmatpush.msra.mxu0 0.0
    %4355 = vmatpush.msra.mxu0 0.0
    %4356 = vmatpush.msra.mxu0 0.0
    %4357 = vmatpush.msra.mxu0 0.0
    %4358 = vmatpush.msra.mxu0 0.0
    %4359 = vmatpush.msra.mxu0 0.0
    %4360 = vmatpush.msra.mxu0 0.0
    %4361 = vmatpush.msra.mxu0 0.0
    %4362 = vmatpush.msra.mxu0 0.0
    %4363 = vmatpush.msra.mxu0 0.0
    %4364 = vmatpush.msra.mxu0 %v4344
    %4365 = vmatmul.f32.gmra.mxu0 %v4347
    %v4366 = vpop.f32.mrf.mxu0
    %v4367 = vadd.f32 0.0, %v4366
    %4368 = vdwg.mxu0
    %4369 = vrot.lane.b32.xlu0 %v3437, 56
    %v4370 = vpop.permute.xlu0 %4369
    %v4373 = vsel %vm375, %v4286, 0
    %4375 = vmatpush.msra.mxu0 0.0
    %4376 = vmatpush.msra.mxu0 0.0
    %4377 = vmatpush.msra.mxu0 0.0
    %4378 = vmatpush.msra.mxu0 0.0
    %4379 = vmatpush.msra.mxu0 0.0
    %4380 = vmatpush.msra.mxu0 0.0
    %4381 = vmatpush.msra.mxu0 0.0
    %4382 = vmatpush.msra.mxu0 0.0
    %4383 = vmatpush.msra.mxu0 0.0
    %4384 = vmatpush.msra.mxu0 0.0
    %4385 = vmatpush.msra.mxu0 0.0
    %4386 = vmatpush.msra.mxu0 0.0
    %4387 = vmatpush.msra.mxu0 0.0
    %4388 = vmatpush.msra.mxu0 0.0
    %4389 = vmatpush.msra.mxu0 0.0
    %4390 = vmatpush.msra.mxu0 %v4370
    %4391 = vmatmul.f32.gmra.mxu0 %v4373
    %v4392 = vpop.f32.mrf.mxu0
    %v4393 = vadd.f32 0.0, %v4392
    %4394 = vdwg.mxu0
    %4395 = vrot.lane.b32.xlu0 %v3440, 56
    %v4396 = vpop.permute.xlu0 %4395
    %v4399 = vsel %vm375, %v4287, 0
    %4401 = vmatpush.msra.mxu0 0.0
    %4402 = vmatpush.msra.mxu0 0.0
    %4403 = vmatpush.msra.mxu0 0.0
    %4404 = vmatpush.msra.mxu0 0.0
    %4405 = vmatpush.msra.mxu0 0.0
    %4406 = vmatpush.msra.mxu0 0.0
    %4407 = vmatpush.msra.mxu0 0.0
    %4408 = vmatpush.msra.mxu0 0.0
    %4409 = vmatpush.msra.mxu0 0.0
    %4410 = vmatpush.msra.mxu0 0.0
    %4411 = vmatpush.msra.mxu0 0.0
    %4412 = vmatpush.msra.mxu0 0.0
    %4413 = vmatpush.msra.mxu0 0.0
    %4414 = vmatpush.msra.mxu0 0.0
    %4415 = vmatpush.msra.mxu0 0.0
    %4416 = vmatpush.msra.mxu0 %v4396
    %4417 = vmatmul.f32.gmra.mxu0 %v4399
    %v4418 = vpop.f32.mrf.mxu0
    %v4419 = vadd.f32 0.0, %v4418
    %4420 = vdwg.mxu0
    %4421 = vrot.lane.b32.xlu0 %v3443, 56
    %v4422 = vpop.permute.xlu0 %4421
    %v4425 = vsel %vm375, %v4288, 0
    %4427 = vmatpush.msra.mxu0 0.0
    %4428 = vmatpush.msra.mxu0 0.0
    %4429 = vmatpush.msra.mxu0 0.0
    %4430 = vmatpush.msra.mxu0 0.0
    %4431 = vmatpush.msra.mxu0 0.0
    %4432 = vmatpush.msra.mxu0 0.0
    %4433 = vmatpush.msra.mxu0 0.0
    %4434 = vmatpush.msra.mxu0 0.0
    %4435 = vmatpush.msra.mxu0 0.0
    %4436 = vmatpush.msra.mxu0 0.0
    %4437 = vmatpush.msra.mxu0 0.0
    %4438 = vmatpush.msra.mxu0 0.0
    %4439 = vmatpush.msra.mxu0 0.0
    %4440 = vmatpush.msra.mxu0 0.0
    %4441 = vmatpush.msra.mxu0 0.0
    %4442 = vmatpush.msra.mxu0 %v4422
    %4443 = vmatmul.f32.gmra.mxu0 %v4425
    %v4444 = vpop.f32.mrf.mxu0
    %v4445 = vadd.f32 0.0, %v4444
    %4446 = vdwg.mxu0
    %4447 = vrot.lane.b32.xlu0 %v3446, 56
    %v4448 = vpop.permute.xlu0 %4447
    %v4451 = vsel %vm375, %v4289, 0
    %4453 = vmatpush.msra.mxu0 0.0
    %4454 = vmatpush.msra.mxu0 0.0
    %4455 = vmatpush.msra.mxu0 0.0
    %4456 = vmatpush.msra.mxu0 0.0
    %4457 = vmatpush.msra.mxu0 0.0
    %4458 = vmatpush.msra.mxu0 0.0
    %4459 = vmatpush.msra.mxu0 0.0
    %4460 = vmatpush.msra.mxu0 0.0
    %4461 = vmatpush.msra.mxu0 0.0
    %4462 = vmatpush.msra.mxu0 0.0
    %4463 = vmatpush.msra.mxu0 0.0
    %4464 = vmatpush.msra.mxu0 0.0
    %4465 = vmatpush.msra.mxu0 0.0
    %4466 = vmatpush.msra.mxu0 0.0
    %4467 = vmatpush.msra.mxu0 0.0
    %4468 = vmatpush.msra.mxu0 %v4448
    %4469 = vmatmul.f32.gmra.mxu0 %v4451
    %v4470 = vpop.f32.mrf.mxu0
    %v4471 = vadd.f32 0.0, %v4470
    %4472 = vdwg.mxu0
    %4473 = vrot.lane.b32.xlu0 %v3449, 56
    %v4474 = vpop.permute.xlu0 %4473
    %v4477 = vsel %vm375, %v4290, 0
    %4479 = vmatpush.msra.mxu0 0.0
    %4480 = vmatpush.msra.mxu0 0.0
    %4481 = vmatpush.msra.mxu0 0.0
    %4482 = vmatpush.msra.mxu0 0.0
    %4483 = vmatpush.msra.mxu0 0.0
    %4484 = vmatpush.msra.mxu0 0.0
    %4485 = vmatpush.msra.mxu0 0.0
    %4486 = vmatpush.msra.mxu0 0.0
    %4487 = vmatpush.msra.mxu0 0.0
    %4488 = vmatpush.msra.mxu0 0.0
    %4489 = vmatpush.msra.mxu0 0.0
    %4490 = vmatpush.msra.mxu0 0.0
    %4491 = vmatpush.msra.mxu0 0.0
    %4492 = vmatpush.msra.mxu0 0.0
    %4493 = vmatpush.msra.mxu0 0.0
    %4494 = vmatpush.msra.mxu0 %v4474
    %4495 = vmatmul.f32.gmra.mxu0 %v4477
    %v4496 = vpop.f32.mrf.mxu0
    %v4497 = vadd.f32 0.0, %v4496
    %4498 = vdwg.mxu0
    %4499 = vrot.lane.b32.xlu0 %v3451, 112
    %v4500 = vpop.permute.xlu0 %4499
    %4501 = vrot.lane.b32.xlu0 %v3428, 80
    %v4502 = vpop.permute.xlu0 %4501
    %v4503 = vsel %vm375, %v4500, 0
    %v4505 = vsel %vm375, %v4502, 0
    %4507 = vmatpush.xpose.msra.mxu0 0.0
    %4508 = vmatpush.xpose.msra.mxu0 0.0
    %4509 = vmatpush.xpose.msra.mxu0 0.0
    %4510 = vmatpush.xpose.msra.mxu0 0.0
    %4511 = vmatpush.xpose.msra.mxu0 0.0
    %4512 = vmatpush.xpose.msra.mxu0 0.0
    %4513 = vmatpush.xpose.msra.mxu0 0.0
    %4514 = vmatpush.xpose.msra.mxu0 0.0
    %4515 = vmatpush.xpose.msra.mxu0 0.0
    %4516 = vmatpush.xpose.msra.mxu0 0.0
    %4517 = vmatpush.xpose.msra.mxu0 0.0
    %4518 = vmatpush.xpose.msra.mxu0 0.0
    %4519 = vmatpush.xpose.msra.mxu0 0.0
    %4520 = vmatpush.xpose.msra.mxu0 0.0
    %4521 = vmatpush.xpose.msra.mxu0 0.0
    %4522 = vmatpush.xpose.msra.mxu0 %v4505
    %4523 = vmatmul.f32.gmra.mxu0 %v4503
    %v4524 = vpop.f32.mrf.mxu0
    %v4525 = vadd.f32 %v82, %v4524
    %4526 = vdwg.mxu0
    %4527 = vrot.lane.b32.xlu0 %v3452, 112
    %v4528 = vpop.permute.xlu0 %4527
    %4529 = vrot.lane.b32.xlu0 %v3431, 80
    %v4530 = vpop.permute.xlu0 %4529
    %v4531 = vsel %vm375, %v4528, 0
    %v4533 = vsel %vm375, %v4530, 0
    %4535 = vmatpush.xpose.msra.mxu0 0.0
    %4536 = vmatpush.xpose.msra.mxu0 0.0
    %4537 = vmatpush.xpose.msra.mxu0 0.0
    %4538 = vmatpush.xpose.msra.mxu0 0.0
    %4539 = vmatpush.xpose.msra.mxu0 0.0
    %4540 = vmatpush.xpose.msra.mxu0 0.0
    %4541 = vmatpush.xpose.msra.mxu0 0.0
    %4542 = vmatpush.xpose.msra.mxu0 0.0
    %4543 = vmatpush.xpose.msra.mxu0 0.0
    %4544 = vmatpush.xpose.msra.mxu0 0.0
    %4545 = vmatpush.xpose.msra.mxu0 0.0
    %4546 = vmatpush.xpose.msra.mxu0 0.0
    %4547 = vmatpush.xpose.msra.mxu0 0.0
    %4548 = vmatpush.xpose.msra.mxu0 0.0
    %4549 = vmatpush.xpose.msra.mxu0 0.0
    %4550 = vmatpush.xpose.msra.mxu0 %v4533
    %4551 = vmatmul.f32.gmra.mxu0 %v4531
    %v4552 = vpop.f32.mrf.mxu0
    %v4553 = vadd.f32 %v82, %v4552
    %4554 = vdwg.mxu0
    %4555 = vrot.lane.b32.xlu0 %v3453, 112
    %v4556 = vpop.permute.xlu0 %4555
    %4557 = vrot.lane.b32.xlu0 %v3434, 80
    %v4558 = vpop.permute.xlu0 %4557
    %v4559 = vsel %vm375, %v4556, 0
    %v4561 = vsel %vm375, %v4558, 0
    %4563 = vmatpush.xpose.msra.mxu0 0.0
    %4564 = vmatpush.xpose.msra.mxu0 0.0
    %4565 = vmatpush.xpose.msra.mxu0 0.0
    %4566 = vmatpush.xpose.msra.mxu0 0.0
    %4567 = vmatpush.xpose.msra.mxu0 0.0
    %4568 = vmatpush.xpose.msra.mxu0 0.0
    %4569 = vmatpush.xpose.msra.mxu0 0.0
    %4570 = vmatpush.xpose.msra.mxu0 0.0
    %4571 = vmatpush.xpose.msra.mxu0 0.0
    %4572 = vmatpush.xpose.msra.mxu0 0.0
    %4573 = vmatpush.xpose.msra.mxu0 0.0
    %4574 = vmatpush.xpose.msra.mxu0 0.0
    %4575 = vmatpush.xpose.msra.mxu0 0.0
    %4576 = vmatpush.xpose.msra.mxu0 0.0
    %4577 = vmatpush.xpose.msra.mxu0 0.0
    %4578 = vmatpush.xpose.msra.mxu0 %v4561
    %4579 = vmatmul.f32.gmra.mxu0 %v4559
    %v4580 = vpop.f32.mrf.mxu0
    %v4581 = vadd.f32 %v82, %v4580
    %4582 = vdwg.mxu0
    %4583 = vrot.lane.b32.xlu0 %v3454, 112
    %v4584 = vpop.permute.xlu0 %4583
    %4585 = vrot.lane.b32.xlu0 %v3437, 80
    %v4586 = vpop.permute.xlu0 %4585
    %v4587 = vsel %vm375, %v4584, 0
    %v4589 = vsel %vm375, %v4586, 0
    %4591 = vmatpush.xpose.msra.mxu0 0.0
    %4592 = vmatpush.xpose.msra.mxu0 0.0
    %4593 = vmatpush.xpose.msra.mxu0 0.0
    %4594 = vmatpush.xpose.msra.mxu0 0.0
    %4595 = vmatpush.xpose.msra.mxu0 0.0
    %4596 = vmatpush.xpose.msra.mxu0 0.0
    %4597 = vmatpush.xpose.msra.mxu0 0.0
    %4598 = vmatpush.xpose.msra.mxu0 0.0
    %4599 = vmatpush.xpose.msra.mxu0 0.0
    %4600 = vmatpush.xpose.msra.mxu0 0.0
    %4601 = vmatpush.xpose.msra.mxu0 0.0
    %4602 = vmatpush.xpose.msra.mxu0 0.0
    %4603 = vmatpush.xpose.msra.mxu0 0.0
    %4604 = vmatpush.xpose.msra.mxu0 0.0
    %4605 = vmatpush.xpose.msra.mxu0 0.0
    %4606 = vmatpush.xpose.msra.mxu0 %v4589
    %4607 = vmatmul.f32.gmra.mxu0 %v4587
    %v4608 = vpop.f32.mrf.mxu0
    %v4609 = vadd.f32 %v82, %v4608
    %4610 = vdwg.mxu0
    %4611 = vrot.lane.b32.xlu0 %v3455, 112
    %v4612 = vpop.permute.xlu0 %4611
    %4613 = vrot.lane.b32.xlu0 %v3440, 80
    %v4614 = vpop.permute.xlu0 %4613
    %v4615 = vsel %vm375, %v4612, 0
    %v4617 = vsel %vm375, %v4614, 0
    %4619 = vmatpush.xpose.msra.mxu0 0.0
    %4620 = vmatpush.xpose.msra.mxu0 0.0
    %4621 = vmatpush.xpose.msra.mxu0 0.0
    %4622 = vmatpush.xpose.msra.mxu0 0.0
    %4623 = vmatpush.xpose.msra.mxu0 0.0
    %4624 = vmatpush.xpose.msra.mxu0 0.0
    %4625 = vmatpush.xpose.msra.mxu0 0.0
    %4626 = vmatpush.xpose.msra.mxu0 0.0
    %4627 = vmatpush.xpose.msra.mxu0 0.0
    %4628 = vmatpush.xpose.msra.mxu0 0.0
    %4629 = vmatpush.xpose.msra.mxu0 0.0
    %4630 = vmatpush.xpose.msra.mxu0 0.0
    %4631 = vmatpush.xpose.msra.mxu0 0.0
    %4632 = vmatpush.xpose.msra.mxu0 0.0
    %4633 = vmatpush.xpose.msra.mxu0 0.0
    %4634 = vmatpush.xpose.msra.mxu0 %v4617
    %4635 = vmatmul.f32.gmra.mxu0 %v4615
    %v4636 = vpop.f32.mrf.mxu0
    %v4637 = vadd.f32 %v82, %v4636
    %4638 = vdwg.mxu0
    %4639 = vrot.lane.b32.xlu0 %v3456, 112
    %v4640 = vpop.permute.xlu0 %4639
    %4641 = vrot.lane.b32.xlu0 %v3443, 80
    %v4642 = vpop.permute.xlu0 %4641
    %v4643 = vsel %vm375, %v4640, 0
    %v4645 = vsel %vm375, %v4642, 0
    %4647 = vmatpush.xpose.msra.mxu0 0.0
    %4648 = vmatpush.xpose.msra.mxu0 0.0
    %4649 = vmatpush.xpose.msra.mxu0 0.0
    %4650 = vmatpush.xpose.msra.mxu0 0.0
    %4651 = vmatpush.xpose.msra.mxu0 0.0
    %4652 = vmatpush.xpose.msra.mxu0 0.0
    %4653 = vmatpush.xpose.msra.mxu0 0.0
    %4654 = vmatpush.xpose.msra.mxu0 0.0
    %4655 = vmatpush.xpose.msra.mxu0 0.0
    %4656 = vmatpush.xpose.msra.mxu0 0.0
    %4657 = vmatpush.xpose.msra.mxu0 0.0
    %4658 = vmatpush.xpose.msra.mxu0 0.0
    %4659 = vmatpush.xpose.msra.mxu0 0.0
    %4660 = vmatpush.xpose.msra.mxu0 0.0
    %4661 = vmatpush.xpose.msra.mxu0 0.0
    %4662 = vmatpush.xpose.msra.mxu0 %v4645
    %4663 = vmatmul.f32.gmra.mxu0 %v4643
    %v4664 = vpop.f32.mrf.mxu0
    %v4665 = vadd.f32 %v82, %v4664
    %4666 = vdwg.mxu0
    %4667 = vrot.lane.b32.xlu0 %v3457, 112
    %v4668 = vpop.permute.xlu0 %4667
    %4669 = vrot.lane.b32.xlu0 %v3446, 80
    %v4670 = vpop.permute.xlu0 %4669
    %v4671 = vsel %vm375, %v4668, 0
    %v4673 = vsel %vm375, %v4670, 0
    %4675 = vmatpush.xpose.msra.mxu0 0.0
    %4676 = vmatpush.xpose.msra.mxu0 0.0
    %4677 = vmatpush.xpose.msra.mxu0 0.0
    %4678 = vmatpush.xpose.msra.mxu0 0.0
    %4679 = vmatpush.xpose.msra.mxu0 0.0
    %4680 = vmatpush.xpose.msra.mxu0 0.0
    %4681 = vmatpush.xpose.msra.mxu0 0.0
    %4682 = vmatpush.xpose.msra.mxu0 0.0
    %4683 = vmatpush.xpose.msra.mxu0 0.0
    %4684 = vmatpush.xpose.msra.mxu0 0.0
    %4685 = vmatpush.xpose.msra.mxu0 0.0
    %4686 = vmatpush.xpose.msra.mxu0 0.0
    %4687 = vmatpush.xpose.msra.mxu0 0.0
    %4688 = vmatpush.xpose.msra.mxu0 0.0
    %4689 = vmatpush.xpose.msra.mxu0 0.0
    %4690 = vmatpush.xpose.msra.mxu0 %v4673
    %4691 = vmatmul.f32.gmra.mxu0 %v4671
    %v4692 = vpop.f32.mrf.mxu0
    %v4693 = vadd.f32 %v82, %v4692
    %4694 = vdwg.mxu0
    %4695 = vrot.lane.b32.xlu0 %v3458, 112
    %v4696 = vpop.permute.xlu0 %4695
    %4697 = vrot.lane.b32.xlu0 %v3449, 80
    %v4698 = vpop.permute.xlu0 %4697
    %v4699 = vsel %vm375, %v4696, 0
    %v4701 = vsel %vm375, %v4698, 0
    %4703 = vmatpush.xpose.msra.mxu0 0.0
    %4704 = vmatpush.xpose.msra.mxu0 0.0
    %4705 = vmatpush.xpose.msra.mxu0 0.0
    %4706 = vmatpush.xpose.msra.mxu0 0.0
    %4707 = vmatpush.xpose.msra.mxu0 0.0
    %4708 = vmatpush.xpose.msra.mxu0 0.0
    %4709 = vmatpush.xpose.msra.mxu0 0.0
    %4710 = vmatpush.xpose.msra.mxu0 0.0
    %4711 = vmatpush.xpose.msra.mxu0 0.0
    %4712 = vmatpush.xpose.msra.mxu0 0.0
    %4713 = vmatpush.xpose.msra.mxu0 0.0
    %4714 = vmatpush.xpose.msra.mxu0 0.0
    %4715 = vmatpush.xpose.msra.mxu0 0.0
    %4716 = vmatpush.xpose.msra.mxu0 0.0
    %4717 = vmatpush.xpose.msra.mxu0 0.0
    %4718 = vmatpush.xpose.msra.mxu0 %v4701
    %4719 = vmatmul.f32.gmra.mxu0 %v4699
    %v4720 = vpop.f32.mrf.mxu0
    %v4721 = vadd.f32 %v82, %v4720
    %4722 = vdwg.mxu0
    %v4723 = vsel %vm375, %v4525, -inf
    %4724 = vmax.xlane.f32.xlu0 %v4723
    %v4725 = vpop.xlane.xlu0 %4724
    %v4726 = vsel %vm375, %v4553, -inf
    %4727 = vmax.xlane.f32.xlu0 %v4726
    %v4728 = vpop.xlane.xlu0 %4727
    %v4729 = vsel %vm375, %v4581, -inf
    %4730 = vmax.xlane.f32.xlu0 %v4729
    %v4731 = vpop.xlane.xlu0 %4730
    %v4732 = vsel %vm375, %v4609, -inf
    %4733 = vmax.xlane.f32.xlu0 %v4732
    %v4734 = vpop.xlane.xlu0 %4733
    %v4735 = vsel %vm375, %v4637, -inf
    %4736 = vmax.xlane.f32.xlu0 %v4735
    %v4737 = vpop.xlane.xlu0 %4736
    %v4738 = vsel %vm375, %v4665, -inf
    %4739 = vmax.xlane.f32.xlu0 %v4738
    %v4740 = vpop.xlane.xlu0 %4739
    %v4741 = vsel %vm375, %v4693, -inf
    %4742 = vmax.xlane.f32.xlu0 %v4741
    %v4743 = vpop.xlane.xlu0 %4742
    %v4744 = vsel %vm375, %v4721, -inf
    %4745 = vmax.xlane.f32.xlu0 %v4744
    %v4746 = vpop.xlane.xlu0 %4745
    %v4747 = vsub.f32 %v4525, %v4725
    %v4748 = vsub.f32 %v4553, %v4728
    %v4749 = vsub.f32 %v4581, %v4731
    %v4750 = vsub.f32 %v4609, %v4734
    %v4751 = vsub.f32 %v4637, %v4737
    %v4752 = vsub.f32 %v4665, %v4740
    %v4753 = vsub.f32 %v4693, %v4743
    %v4754 = vsub.f32 %v4721, %v4746
    %v4755 = vmul.f32 %v4747, 1.442695
    %v4756 = vpow.pop %v4755
    %v4757 = vmul.f32 %v4748, 1.442695
    %v4758 = vpow.pop %v4757
    %v4759 = vmul.f32 %v4749, 1.442695
    %v4760 = vpow.pop %v4759
    %v4761 = vmul.f32 %v4750, 1.442695
    %v4762 = vpow.pop %v4761
    %v4763 = vmul.f32 %v4751, 1.442695
    %v4764 = vpow.pop %v4763
    %v4765 = vmul.f32 %v4752, 1.442695
    %v4766 = vpow.pop %v4765
    %v4767 = vmul.f32 %v4753, 1.442695
    %v4768 = vpow.pop %v4767
    %v4769 = vmul.f32 %v4754, 1.442695
    %v4770 = vpow.pop %v4769
    %v4771 = vsel %vm375, %v4756, 0.0
    %4772 = vadd.xlane.f32.xlu0 %v4771
    %v4773 = vpop.xlane.xlu0 %4772
    %v4774 = vsel %vm375, %v4758, 0.0
    %4775 = vadd.xlane.f32.xlu0 %v4774
    %v4776 = vpop.xlane.xlu0 %4775
    %v4777 = vsel %vm375, %v4760, 0.0
    %4778 = vadd.xlane.f32.xlu0 %v4777
    %v4779 = vpop.xlane.xlu0 %4778
    %v4780 = vsel %vm375, %v4762, 0.0
    %4781 = vadd.xlane.f32.xlu0 %v4780
    %v4782 = vpop.xlane.xlu0 %4781
    %v4783 = vsel %vm375, %v4764, 0.0
    %4784 = vadd.xlane.f32.xlu0 %v4783
    %v4785 = vpop.xlane.xlu0 %4784
    %v4786 = vsel %vm375, %v4766, 0.0
    %4787 = vadd.xlane.f32.xlu0 %v4786
    %v4788 = vpop.xlane.xlu0 %4787
    %v4789 = vsel %vm375, %v4768, 0.0
    %4790 = vadd.xlane.f32.xlu0 %v4789
    %v4791 = vpop.xlane.xlu0 %4790
    %v4792 = vsel %vm375, %v4770, 0.0
    %4793 = vadd.xlane.f32.xlu0 %v4792
    %v4794 = vpop.xlane.xlu0 %4793
    %v4795 = vrcp.pop %v4773
    %v4796 = vrcp.pop %v4776
    %v4797 = vrcp.pop %v4779
    %v4798 = vrcp.pop %v4782
    %v4799 = vrcp.pop %v4785
    %v4800 = vrcp.pop %v4788
    %v4801 = vrcp.pop %v4791
    %v4802 = vrcp.pop %v4794
    %v4803 = vmul.f32 %v4756, %v4795
    %v4804 = vmul.f32 %v4758, %v4796
    %v4805 = vmul.f32 %v4760, %v4797
    %v4806 = vmul.f32 %v4762, %v4798
    %v4807 = vmul.f32 %v4764, %v4799
    %v4808 = vmul.f32 %v4766, %v4800
    %v4809 = vmul.f32 %v4768, %v4801
    %v4810 = vmul.f32 %v4770, %v4802
    %4811 = vrot.lane.b32.xlu0 %v3428, 48
    %v4812 = vpop.permute.xlu0 %4811
    %v4815 = vsel %vm375, %v4803, 0
    %4817 = vmatpush.msra.mxu0 0.0
    %4818 = vmatpush.msra.mxu0 0.0
    %4819 = vmatpush.msra.mxu0 0.0
    %4820 = vmatpush.msra.mxu0 0.0
    %4821 = vmatpush.msra.mxu0 0.0
    %4822 = vmatpush.msra.mxu0 0.0
    %4823 = vmatpush.msra.mxu0 0.0
    %4824 = vmatpush.msra.mxu0 0.0
    %4825 = vmatpush.msra.mxu0 0.0
    %4826 = vmatpush.msra.mxu0 0.0
    %4827 = vmatpush.msra.mxu0 0.0
    %4828 = vmatpush.msra.mxu0 0.0
    %4829 = vmatpush.msra.mxu0 0.0
    %4830 = vmatpush.msra.mxu0 0.0
    %4831 = vmatpush.msra.mxu0 0.0
    %4832 = vmatpush.msra.mxu0 %v4812
    %4833 = vmatmul.f32.gmra.mxu0 %v4815
    %v4834 = vpop.f32.mrf.mxu0
    %v4835 = vadd.f32 0.0, %v4834
    %4836 = vdwg.mxu0
    %4837 = vrot.lane.b32.xlu0 %v3431, 48
    %v4838 = vpop.permute.xlu0 %4837
    %v4841 = vsel %vm375, %v4804, 0
    %4843 = vmatpush.msra.mxu0 0.0
    %4844 = vmatpush.msra.mxu0 0.0
    %4845 = vmatpush.msra.mxu0 0.0
    %4846 = vmatpush.msra.mxu0 0.0
    %4847 = vmatpush.msra.mxu0 0.0
    %4848 = vmatpush.msra.mxu0 0.0
    %4849 = vmatpush.msra.mxu0 0.0
    %4850 = vmatpush.msra.mxu0 0.0
    %4851 = vmatpush.msra.mxu0 0.0
    %4852 = vmatpush.msra.mxu0 0.0
    %4853 = vmatpush.msra.mxu0 0.0
    %4854 = vmatpush.msra.mxu0 0.0
    %4855 = vmatpush.msra.mxu0 0.0
    %4856 = vmatpush.msra.mxu0 0.0
    %4857 = vmatpush.msra.mxu0 0.0
    %4858 = vmatpush.msra.mxu0 %v4838
    %4859 = vmatmul.f32.gmra.mxu0 %v4841
    %v4860 = vpop.f32.mrf.mxu0
    %v4861 = vadd.f32 0.0, %v4860
    %4862 = vdwg.mxu0
    %4863 = vrot.lane.b32.xlu0 %v3434, 48
    %v4864 = vpop.permute.xlu0 %4863
    %v4867 = vsel %vm375, %v4805, 0
    %4869 = vmatpush.msra.mxu0 0.0
    %4870 = vmatpush.msra.mxu0 0.0
    %4871 = vmatpush.msra.mxu0 0.0
    %4872 = vmatpush.msra.mxu0 0.0
    %4873 = vmatpush.msra.mxu0 0.0
    %4874 = vmatpush.msra.mxu0 0.0
    %4875 = vmatpush.msra.mxu0 0.0
    %4876 = vmatpush.msra.mxu0 0.0
    %4877 = vmatpush.msra.mxu0 0.0
    %4878 = vmatpush.msra.mxu0 0.0
    %4879 = vmatpush.msra.mxu0 0.0
    %4880 = vmatpush.msra.mxu0 0.0
    %4881 = vmatpush.msra.mxu0 0.0
    %4882 = vmatpush.msra.mxu0 0.0
    %4883 = vmatpush.msra.mxu0 0.0
    %4884 = vmatpush.msra.mxu0 %v4864
    %4885 = vmatmul.f32.gmra.mxu0 %v4867
    %v4886 = vpop.f32.mrf.mxu0
    %v4887 = vadd.f32 0.0, %v4886
    %4888 = vdwg.mxu0
    %4889 = vrot.lane.b32.xlu0 %v3437, 48
    %v4890 = vpop.permute.xlu0 %4889
    %v4893 = vsel %vm375, %v4806, 0
    %4895 = vmatpush.msra.mxu0 0.0
    %4896 = vmatpush.msra.mxu0 0.0
    %4897 = vmatpush.msra.mxu0 0.0
    %4898 = vmatpush.msra.mxu0 0.0
    %4899 = vmatpush.msra.mxu0 0.0
    %4900 = vmatpush.msra.mxu0 0.0
    %4901 = vmatpush.msra.mxu0 0.0
    %4902 = vmatpush.msra.mxu0 0.0
    %4903 = vmatpush.msra.mxu0 0.0
    %4904 = vmatpush.msra.mxu0 0.0
    %4905 = vmatpush.msra.mxu0 0.0
    %4906 = vmatpush.msra.mxu0 0.0
    %4907 = vmatpush.msra.mxu0 0.0
    %4908 = vmatpush.msra.mxu0 0.0
    %4909 = vmatpush.msra.mxu0 0.0
    %4910 = vmatpush.msra.mxu0 %v4890
    %4911 = vmatmul.f32.gmra.mxu0 %v4893
    %v4912 = vpop.f32.mrf.mxu0
    %v4913 = vadd.f32 0.0, %v4912
    %4914 = vdwg.mxu0
    %4915 = vrot.lane.b32.xlu0 %v3440, 48
    %v4916 = vpop.permute.xlu0 %4915
    %v4919 = vsel %vm375, %v4807, 0
    %4921 = vmatpush.msra.mxu0 0.0
    %4922 = vmatpush.msra.mxu0 0.0
    %4923 = vmatpush.msra.mxu0 0.0
    %4924 = vmatpush.msra.mxu0 0.0
    %4925 = vmatpush.msra.mxu0 0.0
    %4926 = vmatpush.msra.mxu0 0.0
    %4927 = vmatpush.msra.mxu0 0.0
    %4928 = vmatpush.msra.mxu0 0.0
    %4929 = vmatpush.msra.mxu0 0.0
    %4930 = vmatpush.msra.mxu0 0.0
    %4931 = vmatpush.msra.mxu0 0.0
    %4932 = vmatpush.msra.mxu0 0.0
    %4933 = vmatpush.msra.mxu0 0.0
    %4934 = vmatpush.msra.mxu0 0.0
    %4935 = vmatpush.msra.mxu0 0.0
    %4936 = vmatpush.msra.mxu0 %v4916
    %4937 = vmatmul.f32.gmra.mxu0 %v4919
    %v4938 = vpop.f32.mrf.mxu0
    %v4939 = vadd.f32 0.0, %v4938
    %4940 = vdwg.mxu0
    %4941 = vrot.lane.b32.xlu0 %v3443, 48
    %v4942 = vpop.permute.xlu0 %4941
    %v4945 = vsel %vm375, %v4808, 0
    %4947 = vmatpush.msra.mxu0 0.0
    %4948 = vmatpush.msra.mxu0 0.0
    %4949 = vmatpush.msra.mxu0 0.0
    %4950 = vmatpush.msra.mxu0 0.0
    %4951 = vmatpush.msra.mxu0 0.0
    %4952 = vmatpush.msra.mxu0 0.0
    %4953 = vmatpush.msra.mxu0 0.0
    %4954 = vmatpush.msra.mxu0 0.0
    %4955 = vmatpush.msra.mxu0 0.0
    %4956 = vmatpush.msra.mxu0 0.0
    %4957 = vmatpush.msra.mxu0 0.0
    %4958 = vmatpush.msra.mxu0 0.0
    %4959 = vmatpush.msra.mxu0 0.0
    %4960 = vmatpush.msra.mxu0 0.0
    %4961 = vmatpush.msra.mxu0 0.0
    %4962 = vmatpush.msra.mxu0 %v4942
    %4963 = vmatmul.f32.gmra.mxu0 %v4945
    %v4964 = vpop.f32.mrf.mxu0
    %v4965 = vadd.f32 0.0, %v4964
    %4966 = vdwg.mxu0
    %4967 = vrot.lane.b32.xlu0 %v3446, 48
    %v4968 = vpop.permute.xlu0 %4967
    %v4971 = vsel %vm375, %v4809, 0
    %4973 = vmatpush.msra.mxu0 0.0
    %4974 = vmatpush.msra.mxu0 0.0
    %4975 = vmatpush.msra.mxu0 0.0
    %4976 = vmatpush.msra.mxu0 0.0
    %4977 = vmatpush.msra.mxu0 0.0
    %4978 = vmatpush.msra.mxu0 0.0
    %4979 = vmatpush.msra.mxu0 0.0
    %4980 = vmatpush.msra.mxu0 0.0
    %4981 = vmatpush.msra.mxu0 0.0
    %4982 = vmatpush.msra.mxu0 0.0
    %4983 = vmatpush.msra.mxu0 0.0
    %4984 = vmatpush.msra.mxu0 0.0
    %4985 = vmatpush.msra.mxu0 0.0
    %4986 = vmatpush.msra.mxu0 0.0
    %4987 = vmatpush.msra.mxu0 0.0
    %4988 = vmatpush.msra.mxu0 %v4968
    %4989 = vmatmul.f32.gmra.mxu0 %v4971
    %v4990 = vpop.f32.mrf.mxu0
    %v4991 = vadd.f32 0.0, %v4990
    %4992 = vdwg.mxu0
    %4993 = vrot.lane.b32.xlu0 %v3449, 48
    %v4994 = vpop.permute.xlu0 %4993
    %v4997 = vsel %vm375, %v4810, 0
    %4999 = vmatpush.msra.mxu0 0.0
    %5000 = vmatpush.msra.mxu0 0.0
    %5001 = vmatpush.msra.mxu0 0.0
    %5002 = vmatpush.msra.mxu0 0.0
    %5003 = vmatpush.msra.mxu0 0.0
    %5004 = vmatpush.msra.mxu0 0.0
    %5005 = vmatpush.msra.mxu0 0.0
    %5006 = vmatpush.msra.mxu0 0.0
    %5007 = vmatpush.msra.mxu0 0.0
    %5008 = vmatpush.msra.mxu0 0.0
    %5009 = vmatpush.msra.mxu0 0.0
    %5010 = vmatpush.msra.mxu0 0.0
    %5011 = vmatpush.msra.mxu0 0.0
    %5012 = vmatpush.msra.mxu0 0.0
    %5013 = vmatpush.msra.mxu0 0.0
    %5014 = vmatpush.msra.mxu0 %v4994
    %5015 = vmatmul.f32.gmra.mxu0 %v4997
    %v5016 = vpop.f32.mrf.mxu0
    %v5017 = vadd.f32 0.0, %v5016
    %5018 = vdwg.mxu0
    %5019 = vrot.lane.b32.xlu0 %v3451, 104
    %v5020 = vpop.permute.xlu0 %5019
    %5021 = vrot.lane.b32.xlu0 %v3428, 72
    %v5022 = vpop.permute.xlu0 %5021
    %v5023 = vsel %vm375, %v5020, 0
    %v5025 = vsel %vm375, %v5022, 0
    %5027 = vmatpush.xpose.msra.mxu0 0.0
    %5028 = vmatpush.xpose.msra.mxu0 0.0
    %5029 = vmatpush.xpose.msra.mxu0 0.0
    %5030 = vmatpush.xpose.msra.mxu0 0.0
    %5031 = vmatpush.xpose.msra.mxu0 0.0
    %5032 = vmatpush.xpose.msra.mxu0 0.0
    %5033 = vmatpush.xpose.msra.mxu0 0.0
    %5034 = vmatpush.xpose.msra.mxu0 0.0
    %5035 = vmatpush.xpose.msra.mxu0 0.0
    %5036 = vmatpush.xpose.msra.mxu0 0.0
    %5037 = vmatpush.xpose.msra.mxu0 0.0
    %5038 = vmatpush.xpose.msra.mxu0 0.0
    %5039 = vmatpush.xpose.msra.mxu0 0.0
    %5040 = vmatpush.xpose.msra.mxu0 0.0
    %5041 = vmatpush.xpose.msra.mxu0 0.0
    %5042 = vmatpush.xpose.msra.mxu0 %v5025
    %5043 = vmatmul.f32.gmra.mxu0 %v5023
    %v5044 = vpop.f32.mrf.mxu0
    %v5045 = vadd.f32 %v82, %v5044
    %5046 = vdwg.mxu0
    %5047 = vrot.lane.b32.xlu0 %v3452, 104
    %v5048 = vpop.permute.xlu0 %5047
    %5049 = vrot.lane.b32.xlu0 %v3431, 72
    %v5050 = vpop.permute.xlu0 %5049
    %v5051 = vsel %vm375, %v5048, 0
    %v5053 = vsel %vm375, %v5050, 0
    %5055 = vmatpush.xpose.msra.mxu0 0.0
    %5056 = vmatpush.xpose.msra.mxu0 0.0
    %5057 = vmatpush.xpose.msra.mxu0 0.0
    %5058 = vmatpush.xpose.msra.mxu0 0.0
    %5059 = vmatpush.xpose.msra.mxu0 0.0
    %5060 = vmatpush.xpose.msra.mxu0 0.0
    %5061 = vmatpush.xpose.msra.mxu0 0.0
    %5062 = vmatpush.xpose.msra.mxu0 0.0
    %5063 = vmatpush.xpose.msra.mxu0 0.0
    %5064 = vmatpush.xpose.msra.mxu0 0.0
    %5065 = vmatpush.xpose.msra.mxu0 0.0
    %5066 = vmatpush.xpose.msra.mxu0 0.0
    %5067 = vmatpush.xpose.msra.mxu0 0.0
    %5068 = vmatpush.xpose.msra.mxu0 0.0
    %5069 = vmatpush.xpose.msra.mxu0 0.0
    %5070 = vmatpush.xpose.msra.mxu0 %v5053
    %5071 = vmatmul.f32.gmra.mxu0 %v5051
    %v5072 = vpop.f32.mrf.mxu0
    %v5073 = vadd.f32 %v82, %v5072
    %5074 = vdwg.mxu0
    %5075 = vrot.lane.b32.xlu0 %v3453, 104
    %v5076 = vpop.permute.xlu0 %5075
    %5077 = vrot.lane.b32.xlu0 %v3434, 72
    %v5078 = vpop.permute.xlu0 %5077
    %v5079 = vsel %vm375, %v5076, 0
    %v5081 = vsel %vm375, %v5078, 0
    %5083 = vmatpush.xpose.msra.mxu0 0.0
    %5084 = vmatpush.xpose.msra.mxu0 0.0
    %5085 = vmatpush.xpose.msra.mxu0 0.0
    %5086 = vmatpush.xpose.msra.mxu0 0.0
    %5087 = vmatpush.xpose.msra.mxu0 0.0
    %5088 = vmatpush.xpose.msra.mxu0 0.0
    %5089 = vmatpush.xpose.msra.mxu0 0.0
    %5090 = vmatpush.xpose.msra.mxu0 0.0
    %5091 = vmatpush.xpose.msra.mxu0 0.0
    %5092 = vmatpush.xpose.msra.mxu0 0.0
    %5093 = vmatpush.xpose.msra.mxu0 0.0
    %5094 = vmatpush.xpose.msra.mxu0 0.0
    %5095 = vmatpush.xpose.msra.mxu0 0.0
    %5096 = vmatpush.xpose.msra.mxu0 0.0
    %5097 = vmatpush.xpose.msra.mxu0 0.0
    %5098 = vmatpush.xpose.msra.mxu0 %v5081
    %5099 = vmatmul.f32.gmra.mxu0 %v5079
    %v5100 = vpop.f32.mrf.mxu0
    %v5101 = vadd.f32 %v82, %v5100
    %5102 = vdwg.mxu0
    %5103 = vrot.lane.b32.xlu0 %v3454, 104
    %v5104 = vpop.permute.xlu0 %5103
    %5105 = vrot.lane.b32.xlu0 %v3437, 72
    %v5106 = vpop.permute.xlu0 %5105
    %v5107 = vsel %vm375, %v5104, 0
    %v5109 = vsel %vm375, %v5106, 0
    %5111 = vmatpush.xpose.msra.mxu0 0.0
    %5112 = vmatpush.xpose.msra.mxu0 0.0
    %5113 = vmatpush.xpose.msra.mxu0 0.0
    %5114 = vmatpush.xpose.msra.mxu0 0.0
    %5115 = vmatpush.xpose.msra.mxu0 0.0
    %5116 = vmatpush.xpose.msra.mxu0 0.0
    %5117 = vmatpush.xpose.msra.mxu0 0.0
    %5118 = vmatpush.xpose.msra.mxu0 0.0
    %5119 = vmatpush.xpose.msra.mxu0 0.0
    %5120 = vmatpush.xpose.msra.mxu0 0.0
    %5121 = vmatpush.xpose.msra.mxu0 0.0
    %5122 = vmatpush.xpose.msra.mxu0 0.0
    %5123 = vmatpush.xpose.msra.mxu0 0.0
    %5124 = vmatpush.xpose.msra.mxu0 0.0
    %5125 = vmatpush.xpose.msra.mxu0 0.0
    %5126 = vmatpush.xpose.msra.mxu0 %v5109
    %5127 = vmatmul.f32.gmra.mxu0 %v5107
    %v5128 = vpop.f32.mrf.mxu0
    %v5129 = vadd.f32 %v82, %v5128
    %5130 = vdwg.mxu0
    %5131 = vrot.lane.b32.xlu0 %v3455, 104
    %v5132 = vpop.permute.xlu0 %5131
    %5133 = vrot.lane.b32.xlu0 %v3440, 72
    %v5134 = vpop.permute.xlu0 %5133
    %v5135 = vsel %vm375, %v5132, 0
    %v5137 = vsel %vm375, %v5134, 0
    %5139 = vmatpush.xpose.msra.mxu0 0.0
    %5140 = vmatpush.xpose.msra.mxu0 0.0
    %5141 = vmatpush.xpose.msra.mxu0 0.0
    %5142 = vmatpush.xpose.msra.mxu0 0.0
    %5143 = vmatpush.xpose.msra.mxu0 0.0
    %5144 = vmatpush.xpose.msra.mxu0 0.0
    %5145 = vmatpush.xpose.msra.mxu0 0.0
    %5146 = vmatpush.xpose.msra.mxu0 0.0
    %5147 = vmatpush.xpose.msra.mxu0 0.0
    %5148 = vmatpush.xpose.msra.mxu0 0.0
    %5149 = vmatpush.xpose.msra.mxu0 0.0
    %5150 = vmatpush.xpose.msra.mxu0 0.0
    %5151 = vmatpush.xpose.msra.mxu0 0.0
    %5152 = vmatpush.xpose.msra.mxu0 0.0
    %5153 = vmatpush.xpose.msra.mxu0 0.0
    %5154 = vmatpush.xpose.msra.mxu0 %v5137
    %5155 = vmatmul.f32.gmra.mxu0 %v5135
    %v5156 = vpop.f32.mrf.mxu0
    %v5157 = vadd.f32 %v82, %v5156
    %5158 = vdwg.mxu0
    %5159 = vrot.lane.b32.xlu0 %v3456, 104
    %v5160 = vpop.permute.xlu0 %5159
    %5161 = vrot.lane.b32.xlu0 %v3443, 72
    %v5162 = vpop.permute.xlu0 %5161
    %v5163 = vsel %vm375, %v5160, 0
    %v5165 = vsel %vm375, %v5162, 0
    %5167 = vmatpush.xpose.msra.mxu0 0.0
    %5168 = vmatpush.xpose.msra.mxu0 0.0
    %5169 = vmatpush.xpose.msra.mxu0 0.0
    %5170 = vmatpush.xpose.msra.mxu0 0.0
    %5171 = vmatpush.xpose.msra.mxu0 0.0
    %5172 = vmatpush.xpose.msra.mxu0 0.0
    %5173 = vmatpush.xpose.msra.mxu0 0.0
    %5174 = vmatpush.xpose.msra.mxu0 0.0
    %5175 = vmatpush.xpose.msra.mxu0 0.0
    %5176 = vmatpush.xpose.msra.mxu0 0.0
    %5177 = vmatpush.xpose.msra.mxu0 0.0
    %5178 = vmatpush.xpose.msra.mxu0 0.0
    %5179 = vmatpush.xpose.msra.mxu0 0.0
    %5180 = vmatpush.xpose.msra.mxu0 0.0
    %5181 = vmatpush.xpose.msra.mxu0 0.0
    %5182 = vmatpush.xpose.msra.mxu0 %v5165
    %5183 = vmatmul.f32.gmra.mxu0 %v5163
    %v5184 = vpop.f32.mrf.mxu0
    %v5185 = vadd.f32 %v82, %v5184
    %5186 = vdwg.mxu0
    %5187 = vrot.lane.b32.xlu0 %v3457, 104
    %v5188 = vpop.permute.xlu0 %5187
    %5189 = vrot.lane.b32.xlu0 %v3446, 72
    %v5190 = vpop.permute.xlu0 %5189
    %v5191 = vsel %vm375, %v5188, 0
    %v5193 = vsel %vm375, %v5190, 0
    %5195 = vmatpush.xpose.msra.mxu0 0.0
    %5196 = vmatpush.xpose.msra.mxu0 0.0
    %5197 = vmatpush.xpose.msra.mxu0 0.0
    %5198 = vmatpush.xpose.msra.mxu0 0.0
    %5199 = vmatpush.xpose.msra.mxu0 0.0
    %5200 = vmatpush.xpose.msra.mxu0 0.0
    %5201 = vmatpush.xpose.msra.mxu0 0.0
    %5202 = vmatpush.xpose.msra.mxu0 0.0
    %5203 = vmatpush.xpose.msra.mxu0 0.0
    %5204 = vmatpush.xpose.msra.mxu0 0.0
    %5205 = vmatpush.xpose.msra.mxu0 0.0
    %5206 = vmatpush.xpose.msra.mxu0 0.0
    %5207 = vmatpush.xpose.msra.mxu0 0.0
    %5208 = vmatpush.xpose.msra.mxu0 0.0
    %5209 = vmatpush.xpose.msra.mxu0 0.0
    %5210 = vmatpush.xpose.msra.mxu0 %v5193
    %5211 = vmatmul.f32.gmra.mxu0 %v5191
    %v5212 = vpop.f32.mrf.mxu0
    %v5213 = vadd.f32 %v82, %v5212
    %5214 = vdwg.mxu0
    %5215 = vrot.lane.b32.xlu0 %v3458, 104
    %v5216 = vpop.permute.xlu0 %5215
    %5217 = vrot.lane.b32.xlu0 %v3449, 72
    %v5218 = vpop.permute.xlu0 %5217
    %v5219 = vsel %vm375, %v5216, 0
    %v5221 = vsel %vm375, %v5218, 0
    %5223 = vmatpush.xpose.msra.mxu0 0.0
    %5224 = vmatpush.xpose.msra.mxu0 0.0
    %5225 = vmatpush.xpose.msra.mxu0 0.0
    %5226 = vmatpush.xpose.msra.mxu0 0.0
    %5227 = vmatpush.xpose.msra.mxu0 0.0
    %5228 = vmatpush.xpose.msra.mxu0 0.0
    %5229 = vmatpush.xpose.msra.mxu0 0.0
    %5230 = vmatpush.xpose.msra.mxu0 0.0
    %5231 = vmatpush.xpose.msra.mxu0 0.0
    %5232 = vmatpush.xpose.msra.mxu0 0.0
    %5233 = vmatpush.xpose.msra.mxu0 0.0
    %5234 = vmatpush.xpose.msra.mxu0 0.0
    %5235 = vmatpush.xpose.msra.mxu0 0.0
    %5236 = vmatpush.xpose.msra.mxu0 0.0
    %5237 = vmatpush.xpose.msra.mxu0 0.0
    %5238 = vmatpush.xpose.msra.mxu0 %v5221
    %5239 = vmatmul.f32.gmra.mxu0 %v5219
    %v5240 = vpop.f32.mrf.mxu0
    %v5241 = vadd.f32 %v82, %v5240
    %5242 = vdwg.mxu0
    %v5243 = vsel %vm375, %v5045, -inf
    %5244 = vmax.xlane.f32.xlu0 %v5243
    %v5245 = vpop.xlane.xlu0 %5244
    %v5246 = vsel %vm375, %v5073, -inf
    %5247 = vmax.xlane.f32.xlu0 %v5246
    %v5248 = vpop.xlane.xlu0 %5247
    %v5249 = vsel %vm375, %v5101, -inf
    %5250 = vmax.xlane.f32.xlu0 %v5249
    %v5251 = vpop.xlane.xlu0 %5250
    %v5252 = vsel %vm375, %v5129, -inf
    %5253 = vmax.xlane.f32.xlu0 %v5252
    %v5254 = vpop.xlane.xlu0 %5253
    %v5255 = vsel %vm375, %v5157, -inf
    %5256 = vmax.xlane.f32.xlu0 %v5255
    %v5257 = vpop.xlane.xlu0 %5256
    %v5258 = vsel %vm375, %v5185, -inf
    %5259 = vmax.xlane.f32.xlu0 %v5258
    %v5260 = vpop.xlane.xlu0 %5259
    %v5261 = vsel %vm375, %v5213, -inf
    %5262 = vmax.xlane.f32.xlu0 %v5261
    %v5263 = vpop.xlane.xlu0 %5262
    %v5264 = vsel %vm375, %v5241, -inf
    %5265 = vmax.xlane.f32.xlu0 %v5264
    %v5266 = vpop.xlane.xlu0 %5265
    %v5267 = vsub.f32 %v5045, %v5245
    %v5268 = vsub.f32 %v5073, %v5248
    %v5269 = vsub.f32 %v5101, %v5251
    %v5270 = vsub.f32 %v5129, %v5254
    %v5271 = vsub.f32 %v5157, %v5257
    %v5272 = vsub.f32 %v5185, %v5260
    %v5273 = vsub.f32 %v5213, %v5263
    %v5274 = vsub.f32 %v5241, %v5266
    %v5275 = vmul.f32 %v5267, 1.442695
    %v5276 = vpow.pop %v5275
    %v5277 = vmul.f32 %v5268, 1.442695
    %v5278 = vpow.pop %v5277
    %v5279 = vmul.f32 %v5269, 1.442695
    %v5280 = vpow.pop %v5279
    %v5281 = vmul.f32 %v5270, 1.442695
    %v5282 = vpow.pop %v5281
    %v5283 = vmul.f32 %v5271, 1.442695
    %v5284 = vpow.pop %v5283
    %v5285 = vmul.f32 %v5272, 1.442695
    %v5286 = vpow.pop %v5285
    %v5287 = vmul.f32 %v5273, 1.442695
    %v5288 = vpow.pop %v5287
    %v5289 = vmul.f32 %v5274, 1.442695
    %v5290 = vpow.pop %v5289
    %v5291 = vsel %vm375, %v5276, 0.0
    %5292 = vadd.xlane.f32.xlu0 %v5291
    %v5293 = vpop.xlane.xlu0 %5292
    %v5294 = vsel %vm375, %v5278, 0.0
    %5295 = vadd.xlane.f32.xlu0 %v5294
    %v5296 = vpop.xlane.xlu0 %5295
    %v5297 = vsel %vm375, %v5280, 0.0
    %5298 = vadd.xlane.f32.xlu0 %v5297
    %v5299 = vpop.xlane.xlu0 %5298
    %v5300 = vsel %vm375, %v5282, 0.0
    %5301 = vadd.xlane.f32.xlu0 %v5300
    %v5302 = vpop.xlane.xlu0 %5301
    %v5303 = vsel %vm375, %v5284, 0.0
    %5304 = vadd.xlane.f32.xlu0 %v5303
    %v5305 = vpop.xlane.xlu0 %5304
    %v5306 = vsel %vm375, %v5286, 0.0
    %5307 = vadd.xlane.f32.xlu0 %v5306
    %v5308 = vpop.xlane.xlu0 %5307
    %v5309 = vsel %vm375, %v5288, 0.0
    %5310 = vadd.xlane.f32.xlu0 %v5309
    %v5311 = vpop.xlane.xlu0 %5310
    %v5312 = vsel %vm375, %v5290, 0.0
    %5313 = vadd.xlane.f32.xlu0 %v5312
    %v5314 = vpop.xlane.xlu0 %5313
    %v5315 = vrcp.pop %v5293
    %v5316 = vrcp.pop %v5296
    %v5317 = vrcp.pop %v5299
    %v5318 = vrcp.pop %v5302
    %v5319 = vrcp.pop %v5305
    %v5320 = vrcp.pop %v5308
    %v5321 = vrcp.pop %v5311
    %v5322 = vrcp.pop %v5314
    %v5323 = vmul.f32 %v5276, %v5315
    %v5324 = vmul.f32 %v5278, %v5316
    %v5325 = vmul.f32 %v5280, %v5317
    %v5326 = vmul.f32 %v5282, %v5318
    %v5327 = vmul.f32 %v5284, %v5319
    %v5328 = vmul.f32 %v5286, %v5320
    %v5329 = vmul.f32 %v5288, %v5321
    %v5330 = vmul.f32 %v5290, %v5322
    %5331 = vrot.lane.b32.xlu0 %v3428, 40
    %v5332 = vpop.permute.xlu0 %5331
    %v5335 = vsel %vm375, %v5323, 0
    %5337 = vmatpush.msra.mxu0 0.0
    %5338 = vmatpush.msra.mxu0 0.0
    %5339 = vmatpush.msra.mxu0 0.0
    %5340 = vmatpush.msra.mxu0 0.0
    %5341 = vmatpush.msra.mxu0 0.0
    %5342 = vmatpush.msra.mxu0 0.0
    %5343 = vmatpush.msra.mxu0 0.0
    %5344 = vmatpush.msra.mxu0 0.0
    %5345 = vmatpush.msra.mxu0 0.0
    %5346 = vmatpush.msra.mxu0 0.0
    %5347 = vmatpush.msra.mxu0 0.0
    %5348 = vmatpush.msra.mxu0 0.0
    %5349 = vmatpush.msra.mxu0 0.0
    %5350 = vmatpush.msra.mxu0 0.0
    %5351 = vmatpush.msra.mxu0 0.0
    %5352 = vmatpush.msra.mxu0 %v5332
    %5353 = vmatmul.f32.gmra.mxu0 %v5335
    %v5354 = vpop.f32.mrf.mxu0
    %v5355 = vadd.f32 0.0, %v5354
    %5356 = vdwg.mxu0
    %5357 = vrot.lane.b32.xlu0 %v3431, 40
    %v5358 = vpop.permute.xlu0 %5357
    %v5361 = vsel %vm375, %v5324, 0
    %5363 = vmatpush.msra.mxu0 0.0
    %5364 = vmatpush.msra.mxu0 0.0
    %5365 = vmatpush.msra.mxu0 0.0
    %5366 = vmatpush.msra.mxu0 0.0
    %5367 = vmatpush.msra.mxu0 0.0
    %5368 = vmatpush.msra.mxu0 0.0
    %5369 = vmatpush.msra.mxu0 0.0
    %5370 = vmatpush.msra.mxu0 0.0
    %5371 = vmatpush.msra.mxu0 0.0
    %5372 = vmatpush.msra.mxu0 0.0
    %5373 = vmatpush.msra.mxu0 0.0
    %5374 = vmatpush.msra.mxu0 0.0
    %5375 = vmatpush.msra.mxu0 0.0
    %5376 = vmatpush.msra.mxu0 0.0
    %5377 = vmatpush.msra.mxu0 0.0
    %5378 = vmatpush.msra.mxu0 %v5358
    %5379 = vmatmul.f32.gmra.mxu0 %v5361
    %v5380 = vpop.f32.mrf.mxu0
    %v5381 = vadd.f32 0.0, %v5380
    %5382 = vdwg.mxu0
    %5383 = vrot.lane.b32.xlu0 %v3434, 40
    %v5384 = vpop.permute.xlu0 %5383
    %v5387 = vsel %vm375, %v5325, 0
    %5389 = vmatpush.msra.mxu0 0.0
    %5390 = vmatpush.msra.mxu0 0.0
    %5391 = vmatpush.msra.mxu0 0.0
    %5392 = vmatpush.msra.mxu0 0.0
    %5393 = vmatpush.msra.mxu0 0.0
    %5394 = vmatpush.msra.mxu0 0.0
    %5395 = vmatpush.msra.mxu0 0.0
    %5396 = vmatpush.msra.mxu0 0.0
    %5397 = vmatpush.msra.mxu0 0.0
    %5398 = vmatpush.msra.mxu0 0.0
    %5399 = vmatpush.msra.mxu0 0.0
    %5400 = vmatpush.msra.mxu0 0.0
    %5401 = vmatpush.msra.mxu0 0.0
    %5402 = vmatpush.msra.mxu0 0.0
    %5403 = vmatpush.msra.mxu0 0.0
    %5404 = vmatpush.msra.mxu0 %v5384
    %5405 = vmatmul.f32.gmra.mxu0 %v5387
    %v5406 = vpop.f32.mrf.mxu0
    %v5407 = vadd.f32 0.0, %v5406
    %5408 = vdwg.mxu0
    %5409 = vrot.lane.b32.xlu0 %v3437, 40
    %v5410 = vpop.permute.xlu0 %5409
    %v5413 = vsel %vm375, %v5326, 0
    %5415 = vmatpush.msra.mxu0 0.0
    %5416 = vmatpush.msra.mxu0 0.0
    %5417 = vmatpush.msra.mxu0 0.0
    %5418 = vmatpush.msra.mxu0 0.0
    %5419 = vmatpush.msra.mxu0 0.0
    %5420 = vmatpush.msra.mxu0 0.0
    %5421 = vmatpush.msra.mxu0 0.0
    %5422 = vmatpush.msra.mxu0 0.0
    %5423 = vmatpush.msra.mxu0 0.0
    %5424 = vmatpush.msra.mxu0 0.0
    %5425 = vmatpush.msra.mxu0 0.0
    %5426 = vmatpush.msra.mxu0 0.0
    %5427 = vmatpush.msra.mxu0 0.0
    %5428 = vmatpush.msra.mxu0 0.0
    %5429 = vmatpush.msra.mxu0 0.0
    %5430 = vmatpush.msra.mxu0 %v5410
    %5431 = vmatmul.f32.gmra.mxu0 %v5413
    %v5432 = vpop.f32.mrf.mxu0
    %v5433 = vadd.f32 0.0, %v5432
    %5434 = vdwg.mxu0
    %5435 = vrot.lane.b32.xlu0 %v3440, 40
    %v5436 = vpop.permute.xlu0 %5435
    %v5439 = vsel %vm375, %v5327, 0
    %5441 = vmatpush.msra.mxu0 0.0
    %5442 = vmatpush.msra.mxu0 0.0
    %5443 = vmatpush.msra.mxu0 0.0
    %5444 = vmatpush.msra.mxu0 0.0
    %5445 = vmatpush.msra.mxu0 0.0
    %5446 = vmatpush.msra.mxu0 0.0
    %5447 = vmatpush.msra.mxu0 0.0
    %5448 = vmatpush.msra.mxu0 0.0
    %5449 = vmatpush.msra.mxu0 0.0
    %5450 = vmatpush.msra.mxu0 0.0
    %5451 = vmatpush.msra.mxu0 0.0
    %5452 = vmatpush.msra.mxu0 0.0
    %5453 = vmatpush.msra.mxu0 0.0
    %5454 = vmatpush.msra.mxu0 0.0
    %5455 = vmatpush.msra.mxu0 0.0
    %5456 = vmatpush.msra.mxu0 %v5436
    %5457 = vmatmul.f32.gmra.mxu0 %v5439
    %v5458 = vpop.f32.mrf.mxu0
    %v5459 = vadd.f32 0.0, %v5458
    %5460 = vdwg.mxu0
    %5461 = vrot.lane.b32.xlu0 %v3443, 40
    %v5462 = vpop.permute.xlu0 %5461
    %v5465 = vsel %vm375, %v5328, 0
    %5467 = vmatpush.msra.mxu0 0.0
    %5468 = vmatpush.msra.mxu0 0.0
    %5469 = vmatpush.msra.mxu0 0.0
    %5470 = vmatpush.msra.mxu0 0.0
    %5471 = vmatpush.msra.mxu0 0.0
    %5472 = vmatpush.msra.mxu0 0.0
    %5473 = vmatpush.msra.mxu0 0.0
    %5474 = vmatpush.msra.mxu0 0.0
    %5475 = vmatpush.msra.mxu0 0.0
    %5476 = vmatpush.msra.mxu0 0.0
    %5477 = vmatpush.msra.mxu0 0.0
    %5478 = vmatpush.msra.mxu0 0.0
    %5479 = vmatpush.msra.mxu0 0.0
    %5480 = vmatpush.msra.mxu0 0.0
    %5481 = vmatpush.msra.mxu0 0.0
    %5482 = vmatpush.msra.mxu0 %v5462
    %5483 = vmatmul.f32.gmra.mxu0 %v5465
    %v5484 = vpop.f32.mrf.mxu0
    %v5485 = vadd.f32 0.0, %v5484
    %5486 = vdwg.mxu0
    %5487 = vrot.lane.b32.xlu0 %v3446, 40
    %v5488 = vpop.permute.xlu0 %5487
    %v5491 = vsel %vm375, %v5329, 0
    %5493 = vmatpush.msra.mxu0 0.0
    %5494 = vmatpush.msra.mxu0 0.0
    %5495 = vmatpush.msra.mxu0 0.0
    %5496 = vmatpush.msra.mxu0 0.0
    %5497 = vmatpush.msra.mxu0 0.0
    %5498 = vmatpush.msra.mxu0 0.0
    %5499 = vmatpush.msra.mxu0 0.0
    %5500 = vmatpush.msra.mxu0 0.0
    %5501 = vmatpush.msra.mxu0 0.0
    %5502 = vmatpush.msra.mxu0 0.0
    %5503 = vmatpush.msra.mxu0 0.0
    %5504 = vmatpush.msra.mxu0 0.0
    %5505 = vmatpush.msra.mxu0 0.0
    %5506 = vmatpush.msra.mxu0 0.0
    %5507 = vmatpush.msra.mxu0 0.0
    %5508 = vmatpush.msra.mxu0 %v5488
    %5509 = vmatmul.f32.gmra.mxu0 %v5491
    %v5510 = vpop.f32.mrf.mxu0
    %v5511 = vadd.f32 0.0, %v5510
    %5512 = vdwg.mxu0
    %5513 = vrot.lane.b32.xlu0 %v3449, 40
    %v5514 = vpop.permute.xlu0 %5513
    %v5517 = vsel %vm375, %v5330, 0
    %5519 = vmatpush.msra.mxu0 0.0
    %5520 = vmatpush.msra.mxu0 0.0
    %5521 = vmatpush.msra.mxu0 0.0
    %5522 = vmatpush.msra.mxu0 0.0
    %5523 = vmatpush.msra.mxu0 0.0
    %5524 = vmatpush.msra.mxu0 0.0
    %5525 = vmatpush.msra.mxu0 0.0
    %5526 = vmatpush.msra.mxu0 0.0
    %5527 = vmatpush.msra.mxu0 0.0
    %5528 = vmatpush.msra.mxu0 0.0
    %5529 = vmatpush.msra.mxu0 0.0
    %5530 = vmatpush.msra.mxu0 0.0
    %5531 = vmatpush.msra.mxu0 0.0
    %5532 = vmatpush.msra.mxu0 0.0
    %5533 = vmatpush.msra.mxu0 0.0
    %5534 = vmatpush.msra.mxu0 %v5514
    %5535 = vmatmul.f32.gmra.mxu0 %v5517
    %v5536 = vpop.f32.mrf.mxu0
    %v5537 = vadd.f32 0.0, %v5536
    %5538 = vdwg.mxu0
    %5547 = vrot.lane.b32.xlu0 %v4315, 8
    %v5548 = vpop.permute.xlu0 %5547
    %5549 = vrot.lane.b32.xlu0 %v4341, 8
    %v5550 = vpop.permute.xlu0 %5549
    %5551 = vrot.lane.b32.xlu0 %v4367, 8
    %v5552 = vpop.permute.xlu0 %5551
    %5553 = vrot.lane.b32.xlu0 %v4393, 8
    %v5554 = vpop.permute.xlu0 %5553
    %5555 = vrot.lane.b32.xlu0 %v4419, 8
    %v5556 = vpop.permute.xlu0 %5555
    %5557 = vrot.lane.b32.xlu0 %v4445, 8
    %v5558 = vpop.permute.xlu0 %5557
    %5559 = vrot.lane.b32.xlu0 %v4471, 8
    %v5560 = vpop.permute.xlu0 %5559
    %5561 = vrot.lane.b32.xlu0 %v4497, 8
    %v5562 = vpop.permute.xlu0 %5561
    %5579 = vrot.lane.b32.xlu0 %v4835, 16
    %v5580 = vpop.permute.xlu0 %5579
    %5581 = vrot.lane.b32.xlu0 %v4861, 16
    %v5582 = vpop.permute.xlu0 %5581
    %5583 = vrot.lane.b32.xlu0 %v4887, 16
    %v5584 = vpop.permute.xlu0 %5583
    %5585 = vrot.lane.b32.xlu0 %v4913, 16
    %v5586 = vpop.permute.xlu0 %5585
    %5587 = vrot.lane.b32.xlu0 %v4939, 16
    %v5588 = vpop.permute.xlu0 %5587
    %5589 = vrot.lane.b32.xlu0 %v4965, 16
    %v5590 = vpop.permute.xlu0 %5589
    %5591 = vrot.lane.b32.xlu0 %v4991, 16
    %v5592 = vpop.permute.xlu0 %5591
    %5593 = vrot.lane.b32.xlu0 %v5017, 16
    %v5594 = vpop.permute.xlu0 %5593
    %5611 = vrot.lane.b32.xlu0 %v5355, 24
    %v5612 = vpop.permute.xlu0 %5611
    %5613 = vrot.lane.b32.xlu0 %v5381, 24
    %v5614 = vpop.permute.xlu0 %5613
    %5615 = vrot.lane.b32.xlu0 %v5407, 24
    %v5616 = vpop.permute.xlu0 %5615
    %5617 = vrot.lane.b32.xlu0 %v5433, 24
    %v5618 = vpop.permute.xlu0 %5617
    %5619 = vrot.lane.b32.xlu0 %v5459, 24
    %v5620 = vpop.permute.xlu0 %5619
    %5621 = vrot.lane.b32.xlu0 %v5485, 24
    %v5622 = vpop.permute.xlu0 %5621
    %5623 = vrot.lane.b32.xlu0 %v5511, 24
    %v5624 = vpop.permute.xlu0 %5623
    %5625 = vrot.lane.b32.xlu0 %v5537, 24
    %v5626 = vpop.permute.xlu0 %5625
    %v5635 = vsel %vm375, %v3795, %v5548
    %v5636 = vsel %vm375, %v3821, %v5550
    %v5637 = vsel %vm375, %v3847, %v5552
    %v5638 = vsel %vm375, %v3873, %v5554
    %v5639 = vsel %vm375, %v3899, %v5556
    %v5640 = vsel %vm375, %v3925, %v5558
    %v5641 = vsel %vm375, %v3951, %v5560
    %v5642 = vsel %vm375, %v3977, %v5562
    %v5643 = vsel %vm2557, %v5635, %v5580
    %v5644 = vsel %vm2557, %v5636, %v5582
    %v5645 = vsel %vm2557, %v5637, %v5584
    %v5646 = vsel %vm2557, %v5638, %v5586
    %v5647 = vsel %vm2557, %v5639, %v5588
    %v5648 = vsel %vm2557, %v5640, %v5590
    %v5649 = vsel %vm2557, %v5641, %v5592
    %v5650 = vsel %vm2557, %v5642, %v5594
    %v5651 = vsel %vm2566, %v5643, %v5612
    %v5652 = vsel %vm2566, %v5644, %v5614
    %v5653 = vsel %vm2566, %v5645, %v5616
    %v5654 = vsel %vm2566, %v5646, %v5618
    %v5655 = vsel %vm2566, %v5647, %v5620
    %v5656 = vsel %vm2566, %v5648, %v5622
    %v5657 = vsel %vm2566, %v5649, %v5624
    %v5658 = vsel %vm2566, %v5650, %v5626
    %s5659 = scalar_lea.vmem %s7, 32
    %v5660 = vld [vmem:[%s5659] sm:$0xff]
    %v5661 = vld [vmem:[%s5659 + $0x8] sm:$0xff]
    %v5662 = vld [vmem:[%s5659 + $0x10] sm:$0xff]
    %v5663 = vld [vmem:[%s5659 + $0x18] sm:$0xff]
    %v5665 = vsel %vm85, %v5651, 0
    %v5668 = vsel %vm85, %v5652, 0
    %v5671 = vsel %vm85, %v5653, 0
    %v5674 = vsel %vm85, %v5654, 0
    %v5677 = vsel %vm85, %v5655, 0
    %v5680 = vsel %vm85, %v5656, 0
    %v5683 = vsel %vm85, %v5657, 0
    %v5686 = vsel %vm85, %v5658, 0
    %5688 = vmatpush.msra.mxu0 0.0
    %5689 = vmatpush.msra.mxu0 0.0
    %5690 = vmatpush.msra.mxu0 0.0
    %5691 = vmatpush.msra.mxu0 0.0
    %5692 = vmatpush.msra.mxu0 0.0
    %5693 = vmatpush.msra.mxu0 0.0
    %5694 = vmatpush.msra.mxu0 0.0
    %5695 = vmatpush.msra.mxu0 0.0
    %5696 = vmatpush.msra.mxu0 0.0
    %5697 = vmatpush.msra.mxu0 0.0
    %5698 = vmatpush.msra.mxu0 0.0
    %5699 = vmatpush.msra.mxu0 0.0
    %5700 = vmatpush.msra.mxu0 %v5663
    %5701 = vmatpush.msra.mxu0 %v5662
    %5702 = vmatpush.msra.mxu0 %v5661
    %5703 = vmatpush.msra.mxu0 %v5660
    %5704 = vmatmul.f32.gmra.mxu0 %v5665
    %v5705 = vpop.f32.mrf.mxu0
    %v5706 = vadd.f32 0.0, %v5705
    %5707 = vmatmul.f32.gmra.mxu0 %v5668
    %v5708 = vpop.f32.mrf.mxu0
    %v5709 = vadd.f32 0.0, %v5708
    %5710 = vmatmul.f32.gmra.mxu0 %v5671
    %v5711 = vpop.f32.mrf.mxu0
    %v5712 = vadd.f32 0.0, %v5711
    %5713 = vmatmul.f32.gmra.mxu0 %v5674
    %v5714 = vpop.f32.mrf.mxu0
    %v5715 = vadd.f32 0.0, %v5714
    %5716 = vmatmul.f32.gmra.mxu0 %v5677
    %v5717 = vpop.f32.mrf.mxu0
    %v5718 = vadd.f32 0.0, %v5717
    %5719 = vmatmul.f32.gmra.mxu0 %v5680
    %v5720 = vpop.f32.mrf.mxu0
    %v5721 = vadd.f32 0.0, %v5720
    %5722 = vmatmul.f32.gmra.mxu0 %v5683
    %v5723 = vpop.f32.mrf.mxu0
    %v5724 = vadd.f32 0.0, %v5723
    %5725 = vmatmul.f32.gmra.mxu0 %v5686
    %v5726 = vpop.f32.mrf.mxu0
    %v5727 = vadd.f32 0.0, %v5726
    %5728 = vdwg.mxu0
    %v5729 = vadd.f32 %v3166, %v5706
    %v5730 = vadd.f32 %v3167, %v5709
    %v5731 = vadd.f32 %v3168, %v5712
    %v5732 = vadd.f32 %v3169, %v5715
    %v5733 = vadd.f32 %v3170, %v5718
    %v5734 = vadd.f32 %v3171, %v5721
    %v5735 = vadd.f32 %v3172, %v5724
    %v5736 = vadd.f32 %v3173, %v5727
    %s5737 = scalar_lea.vmem %s8, 1
    %v5738 = vld [vmem:[%s5737] sm:$0x1]
    %v5740 = vperm.slane %v5738, 0
    %v5742 = vadd.f32 %v5729, %v5740
    %v5743 = vadd.f32 %v5730, %v5740
    %v5744 = vadd.f32 %v5731, %v5740
    %v5745 = vadd.f32 %v5732, %v5740
    %v5746 = vadd.f32 %v5733, %v5740
    %v5747 = vadd.f32 %v5734, %v5740
    %v5748 = vadd.f32 %v5735, %v5740
    %v5749 = vadd.f32 %v5736, %v5740
    %s5750 = scalar_lea.vmem %s9, 1
    %v5751 = vld [vmem:[%s5750] sm:$0x1]
    %s5752 = scalar_lea.vmem %s10, 1
    %v5753 = vld [vmem:[%s5752] sm:$0x1]
    %v5754 = vsel %vm85, %v5742, 0.0
    %5755 = vadd.xlane.f32.xlu0 %v5754
    %v5756 = vpop.xlane.xlu0 %5755
    %v5757 = vsel %vm85, %v5743, 0.0
    %5758 = vadd.xlane.f32.xlu0 %v5757
    %v5759 = vpop.xlane.xlu0 %5758
    %v5760 = vsel %vm85, %v5744, 0.0
    %5761 = vadd.xlane.f32.xlu0 %v5760
    %v5762 = vpop.xlane.xlu0 %5761
    %v5763 = vsel %vm85, %v5745, 0.0
    %5764 = vadd.xlane.f32.xlu0 %v5763
    %v5765 = vpop.xlane.xlu0 %5764
    %v5766 = vsel %vm85, %v5746, 0.0
    %5767 = vadd.xlane.f32.xlu0 %v5766
    %v5768 = vpop.xlane.xlu0 %5767
    %v5769 = vsel %vm85, %v5747, 0.0
    %5770 = vadd.xlane.f32.xlu0 %v5769
    %v5771 = vpop.xlane.xlu0 %5770
    %v5772 = vsel %vm85, %v5748, 0.0
    %5773 = vadd.xlane.f32.xlu0 %v5772
    %v5774 = vpop.xlane.xlu0 %5773
    %v5775 = vsel %vm85, %v5749, 0.0
    %5776 = vadd.xlane.f32.xlu0 %v5775
    %v5777 = vpop.xlane.xlu0 %5776
    %v5778 = vmul.f32 %v5756, %v116
    %v5779 = vmul.f32 %v5759, %v116
    %v5780 = vmul.f32 %v5762, %v116
    %v5781 = vmul.f32 %v5765, %v116
    %v5782 = vmul.f32 %v5768, %v116
    %v5783 = vmul.f32 %v5771, %v116
    %v5784 = vmul.f32 %v5774, %v116
    %v5785 = vmul.f32 %v5777, %v116
    %v5786 = vsub.f32 %v5742, %v5778
    %v5787 = vsub.f32 %v5743, %v5779
    %v5788 = vsub.f32 %v5744, %v5780
    %v5789 = vsub.f32 %v5745, %v5781
    %v5790 = vsub.f32 %v5746, %v5782
    %v5791 = vsub.f32 %v5747, %v5783
    %v5792 = vsub.f32 %v5748, %v5784
    %v5793 = vsub.f32 %v5749, %v5785
    %v5794 = vmul.f32 %v5786, %v5786
    %v5795 = vmul.f32 %v5787, %v5787
    %v5796 = vmul.f32 %v5788, %v5788
    %v5797 = vmul.f32 %v5789, %v5789
    %v5798 = vmul.f32 %v5790, %v5790
    %v5799 = vmul.f32 %v5791, %v5791
    %v5800 = vmul.f32 %v5792, %v5792
    %v5801 = vmul.f32 %v5793, %v5793
    %v5802 = vsel %vm85, %v5794, 0.0
    %5803 = vadd.xlane.f32.xlu0 %v5802
    %v5804 = vpop.xlane.xlu0 %5803
    %v5805 = vsel %vm85, %v5795, 0.0
    %5806 = vadd.xlane.f32.xlu0 %v5805
    %v5807 = vpop.xlane.xlu0 %5806
    %v5808 = vsel %vm85, %v5796, 0.0
    %5809 = vadd.xlane.f32.xlu0 %v5808
    %v5810 = vpop.xlane.xlu0 %5809
    %v5811 = vsel %vm85, %v5797, 0.0
    %5812 = vadd.xlane.f32.xlu0 %v5811
    %v5813 = vpop.xlane.xlu0 %5812
    %v5814 = vsel %vm85, %v5798, 0.0
    %5815 = vadd.xlane.f32.xlu0 %v5814
    %v5816 = vpop.xlane.xlu0 %5815
    %v5817 = vsel %vm85, %v5799, 0.0
    %5818 = vadd.xlane.f32.xlu0 %v5817
    %v5819 = vpop.xlane.xlu0 %5818
    %v5820 = vsel %vm85, %v5800, 0.0
    %5821 = vadd.xlane.f32.xlu0 %v5820
    %v5822 = vpop.xlane.xlu0 %5821
    %v5823 = vsel %vm85, %v5801, 0.0
    %5824 = vadd.xlane.f32.xlu0 %v5823
    %v5825 = vpop.xlane.xlu0 %5824
    %v5826 = vmul.f32 %v5804, %v116
    %v5827 = vmul.f32 %v5807, %v116
    %v5828 = vmul.f32 %v5810, %v116
    %v5829 = vmul.f32 %v5813, %v116
    %v5830 = vmul.f32 %v5816, %v116
    %v5831 = vmul.f32 %v5819, %v116
    %v5832 = vmul.f32 %v5822, %v116
    %v5833 = vmul.f32 %v5825, %v116
    %v5834 = vadd.f32 %v5826, 1e-05
    %v5835 = vadd.f32 %v5827, 1e-05
    %v5836 = vadd.f32 %v5828, 1e-05
    %v5837 = vadd.f32 %v5829, 1e-05
    %v5838 = vadd.f32 %v5830, 1e-05
    %v5839 = vadd.f32 %v5831, 1e-05
    %v5840 = vadd.f32 %v5832, 1e-05
    %v5841 = vadd.f32 %v5833, 1e-05
    %v5842 = vrsqrt.pop %v5834
    %v5843 = vmul.f32 %v5842, %v5834
    %v5844 = vmul.f32 %v5843, %v5842
    %v5845 = vmul.f32 0.5, %v5844
    %v5846 = vsub.f32 1.5, %v5845
    %v5847 = vmul.f32 %v5842, %v5846
    %vm5848 = vweird.f32 %v5834
    %vm5849 = vweird.f32 %v5842
    %vm5850 = vmor %vm5848, %vm5849
    %v5851 = vsel %vm5850, %v5842, %v5847
    %v5852 = vrsqrt.pop %v5835
    %v5853 = vmul.f32 %v5852, %v5835
    %v5854 = vmul.f32 %v5853, %v5852
    %v5855 = vmul.f32 0.5, %v5854
    %v5856 = vsub.f32 1.5, %v5855
    %v5857 = vmul.f32 %v5852, %v5856
    %vm5858 = vweird.f32 %v5835
    %vm5859 = vweird.f32 %v5852
    %vm5860 = vmor %vm5858, %vm5859
    %v5861 = vsel %vm5860, %v5852, %v5857
    %v5862 = vrsqrt.pop %v5836
    %v5863 = vmul.f32 %v5862, %v5836
    %v5864 = vmul.f32 %v5863, %v5862
    %v5865 = vmul.f32 0.5, %v5864
    %v5866 = vsub.f32 1.5, %v5865
    %v5867 = vmul.f32 %v5862, %v5866
    %vm5868 = vweird.f32 %v5836
    %vm5869 = vweird.f32 %v5862
    %vm5870 = vmor %vm5868, %vm5869
    %v5871 = vsel %vm5870, %v5862, %v5867
    %v5872 = vrsqrt.pop %v5837
    %v5873 = vmul.f32 %v5872, %v5837
    %v5874 = vmul.f32 %v5873, %v5872
    %v5875 = vmul.f32 0.5, %v5874
    %v5876 = vsub.f32 1.5, %v5875
    %v5877 = vmul.f32 %v5872, %v5876
    %vm5878 = vweird.f32 %v5837
    %vm5879 = vweird.f32 %v5872
    %vm5880 = vmor %vm5878, %vm5879
    %v5881 = vsel %vm5880, %v5872, %v5877
    %v5882 = vrsqrt.pop %v5838
    %v5883 = vmul.f32 %v5882, %v5838
    %v5884 = vmul.f32 %v5883, %v5882
    %v5885 = vmul.f32 0.5, %v5884
    %v5886 = vsub.f32 1.5, %v5885
    %v5887 = vmul.f32 %v5882, %v5886
    %vm5888 = vweird.f32 %v5838
    %vm5889 = vweird.f32 %v5882
    %vm5890 = vmor %vm5888, %vm5889
    %v5891 = vsel %vm5890, %v5882, %v5887
    %v5892 = vrsqrt.pop %v5839
    %v5893 = vmul.f32 %v5892, %v5839
    %v5894 = vmul.f32 %v5893, %v5892
    %v5895 = vmul.f32 0.5, %v5894
    %v5896 = vsub.f32 1.5, %v5895
    %v5897 = vmul.f32 %v5892, %v5896
    %vm5898 = vweird.f32 %v5839
    %vm5899 = vweird.f32 %v5892
    %vm5900 = vmor %vm5898, %vm5899
    %v5901 = vsel %vm5900, %v5892, %v5897
    %v5902 = vrsqrt.pop %v5840
    %v5903 = vmul.f32 %v5902, %v5840
    %v5904 = vmul.f32 %v5903, %v5902
    %v5905 = vmul.f32 0.5, %v5904
    %v5906 = vsub.f32 1.5, %v5905
    %v5907 = vmul.f32 %v5902, %v5906
    %vm5908 = vweird.f32 %v5840
    %vm5909 = vweird.f32 %v5902
    %vm5910 = vmor %vm5908, %vm5909
    %v5911 = vsel %vm5910, %v5902, %v5907
    %v5912 = vrsqrt.pop %v5841
    %v5913 = vmul.f32 %v5912, %v5841
    %v5914 = vmul.f32 %v5913, %v5912
    %v5915 = vmul.f32 0.5, %v5914
    %v5916 = vsub.f32 1.5, %v5915
    %v5917 = vmul.f32 %v5912, %v5916
    %vm5918 = vweird.f32 %v5841
    %vm5919 = vweird.f32 %v5912
    %vm5920 = vmor %vm5918, %vm5919
    %v5921 = vsel %vm5920, %v5912, %v5917
    %v5922 = vmul.f32 %v5786, %v5851
    %v5923 = vmul.f32 %v5787, %v5861
    %v5924 = vmul.f32 %v5788, %v5871
    %v5925 = vmul.f32 %v5789, %v5881
    %v5926 = vmul.f32 %v5790, %v5891
    %v5927 = vmul.f32 %v5791, %v5901
    %v5928 = vmul.f32 %v5792, %v5911
    %v5929 = vmul.f32 %v5793, %v5921
    %v5931 = vperm.slane %v5751, 0
    %v5933 = vmul.f32 %v5922, %v5931
    %v5934 = vmul.f32 %v5923, %v5931
    %v5935 = vmul.f32 %v5924, %v5931
    %v5936 = vmul.f32 %v5925, %v5931
    %v5937 = vmul.f32 %v5926, %v5931
    %v5938 = vmul.f32 %v5927, %v5931
    %v5939 = vmul.f32 %v5928, %v5931
    %v5940 = vmul.f32 %v5929, %v5931
    %v5942 = vperm.slane %v5753, 0
    %v5944 = vadd.f32 %v5933, %v5942
    %v5945 = vadd.f32 %v5934, %v5942
    %v5946 = vadd.f32 %v5935, %v5942
    %v5947 = vadd.f32 %v5936, %v5942
    %v5948 = vadd.f32 %v5937, %v5942
    %v5949 = vadd.f32 %v5938, %v5942
    %v5950 = vadd.f32 %v5939, %v5942
    %v5951 = vadd.f32 %v5940, %v5942
    %s5952 = scalar_lea.vmem %s11, 32
    %v5953 = vld [vmem:[%s5952] sm:$0xff]
    %v5954 = vld [vmem:[%s5952 + $0x8] sm:$0xff]
    %v5955 = vld [vmem:[%s5952 + $0x10] sm:$0xff]
    %v5956 = vld [vmem:[%s5952 + $0x18] sm:$0xff]
    %s5957 = scalar_lea.vmem %s12, 1
    %v5958 = vld [vmem:[%s5957] sm:$0x1]
    %v5960 = vperm.slane %v5958, 0
    %v5963 = vsel %vm85, %v5944, 0
    %v5966 = vsel %vm85, %v5945, 0
    %v5969 = vsel %vm85, %v5946, 0
    %v5972 = vsel %vm85, %v5947, 0
    %v5975 = vsel %vm85, %v5948, 0
    %v5978 = vsel %vm85, %v5949, 0
    %v5981 = vsel %vm85, %v5950, 0
    %v5984 = vsel %vm85, %v5951, 0
    %5986 = vmatpush.msra.mxu0 0.0
    %5987 = vmatpush.msra.mxu0 0.0
    %5988 = vmatpush.msra.mxu0 0.0
    %5989 = vmatpush.msra.mxu0 0.0
    %5990 = vmatpush.msra.mxu0 0.0
    %5991 = vmatpush.msra.mxu0 0.0
    %5992 = vmatpush.msra.mxu0 0.0
    %5993 = vmatpush.msra.mxu0 0.0
    %5994 = vmatpush.msra.mxu0 0.0
    %5995 = vmatpush.msra.mxu0 0.0
    %5996 = vmatpush.msra.mxu0 0.0
    %5997 = vmatpush.msra.mxu0 0.0
    %5998 = vmatpush.msra.mxu0 %v5956
    %5999 = vmatpush.msra.mxu0 %v5955
    %6000 = vmatpush.msra.mxu0 %v5954
    %6001 = vmatpush.msra.mxu0 %v5953
    %6002 = vmatmul.f32.gmra.mxu0 %v5963
    %v6003 = vpop.f32.mrf.mxu0
    %v6004 = vadd.f32 %v5960, %v6003
    %6005 = vmatmul.f32.gmra.mxu0 %v5966
    %v6006 = vpop.f32.mrf.mxu0
    %v6007 = vadd.f32 %v5960, %v6006
    %6008 = vmatmul.f32.gmra.mxu0 %v5969
    %v6009 = vpop.f32.mrf.mxu0
    %v6010 = vadd.f32 %v5960, %v6009
    %6011 = vmatmul.f32.gmra.mxu0 %v5972
    %v6012 = vpop.f32.mrf.mxu0
    %v6013 = vadd.f32 %v5960, %v6012
    %6014 = vmatmul.f32.gmra.mxu0 %v5975
    %v6015 = vpop.f32.mrf.mxu0
    %v6016 = vadd.f32 %v5960, %v6015
    %6017 = vmatmul.f32.gmra.mxu0 %v5978
    %v6018 = vpop.f32.mrf.mxu0
    %v6019 = vadd.f32 %v5960, %v6018
    %6020 = vmatmul.f32.gmra.mxu0 %v5981
    %v6021 = vpop.f32.mrf.mxu0
    %v6022 = vadd.f32 %v5960, %v6021
    %6023 = vmatmul.f32.gmra.mxu0 %v5984
    %v6024 = vpop.f32.mrf.mxu0
    %v6025 = vadd.f32 %v5960, %v6024
    %6026 = vdwg.mxu0
    %v6027 = vmul.f32 %v6004, 1.702
    %v6028 = vmul.f32 %v6007, 1.702
    %v6029 = vmul.f32 %v6010, 1.702
    %v6030 = vmul.f32 %v6013, 1.702
    %v6031 = vmul.f32 %v6016, 1.702
    %v6032 = vmul.f32 %v6019, 1.702
    %v6033 = vmul.f32 %v6022, 1.702
    %v6034 = vmul.f32 %v6025, 1.702
    %v6035 = vxor.u32 %v6027, 2147483648
    %v6036 = vxor.u32 %v6028, 2147483648
    %v6037 = vxor.u32 %v6029, 2147483648
    %v6038 = vxor.u32 %v6030, 2147483648
    %v6039 = vxor.u32 %v6031, 2147483648
    %v6040 = vxor.u32 %v6032, 2147483648
    %v6041 = vxor.u32 %v6033, 2147483648
    %v6042 = vxor.u32 %v6034, 2147483648
    %v6043 = vmul.f32 %v6035, 1.442695
    %v6044 = vpow.pop %v6043
    %v6045 = vmul.f32 %v6036, 1.442695
    %v6046 = vpow.pop %v6045
    %v6047 = vmul.f32 %v6037, 1.442695
    %v6048 = vpow.pop %v6047
    %v6049 = vmul.f32 %v6038, 1.442695
    %v6050 = vpow.pop %v6049
    %v6051 = vmul.f32 %v6039, 1.442695
    %v6052 = vpow.pop %v6051
    %v6053 = vmul.f32 %v6040, 1.442695
    %v6054 = vpow.pop %v6053
    %v6055 = vmul.f32 %v6041, 1.442695
    %v6056 = vpow.pop %v6055
    %v6057 = vmul.f32 %v6042, 1.442695
    %v6058 = vpow.pop %v6057
    %v6059 = vadd.f32 %v6044, 1.0
    %v6060 = vadd.f32 %v6046, 1.0
    %v6061 = vadd.f32 %v6048, 1.0
    %v6062 = vadd.f32 %v6050, 1.0
    %v6063 = vadd.f32 %v6052, 1.0
    %v6064 = vadd.f32 %v6054, 1.0
    %v6065 = vadd.f32 %v6056, 1.0
    %v6066 = vadd.f32 %v6058, 1.0
    %v6067 = vrcp.pop %v6059
    %v6068 = vmul.f32 %v6059, %v6067
    %v6069 = vsub.f32 1.0, %v6068
    %v6070 = vmul.f32 %v6067, %v6069
    %v6071 = vadd.f32 %v6067, %v6070
    %vm6072 = vweird.f32 %v6059
    %vm6073 = vweird.f32 %v6067
    %vm6074 = vmor %vm6072, %vm6073
    %v6075 = vsel %vm6074, %v6067, %v6071
    %v6076 = vand.u32 2147483647, %v6059
    %vm6077 = vcmp.eq.f32.partialorder %v6076, 8.507059e+37
    %v6078 = vand.u32 %v6059, 2147483648
    %v6079 = vor.u32 1.1754944e-38, %v6078
    %v6080 = vsel %vm6077, %v6079, %v6075
    %v6081 = vmul.f32 1.0, %v6080
    %v6082 = vrcp.pop %v6060
    %v6083 = vmul.f32 %v6060, %v6082
    %v6084 = vsub.f32 1.0, %v6083
    %v6085 = vmul.f32 %v6082, %v6084
    %v6086 = vadd.f32 %v6082, %v6085
    %vm6087 = vweird.f32 %v6060
    %vm6088 = vweird.f32 %v6082
    %vm6089 = vmor %vm6087, %vm6088
    %v6090 = vsel %vm6089, %v6082, %v6086
    %v6091 = vand.u32 2147483647, %v6060
    %vm6092 = vcmp.eq.f32.partialorder %v6091, 8.507059e+37
    %v6093 = vand.u32 %v6060, 2147483648
    %v6094 = vor.u32 1.1754944e-38, %v6093
    %v6095 = vsel %vm6092, %v6094, %v6090
    %v6096 = vmul.f32 1.0, %v6095
    %v6097 = vrcp.pop %v6061
    %v6098 = vmul.f32 %v6061, %v6097
    %v6099 = vsub.f32 1.0, %v6098
    %v6100 = vmul.f32 %v6097, %v6099
    %v6101 = vadd.f32 %v6097, %v6100
    %vm6102 = vweird.f32 %v6061
    %vm6103 = vweird.f32 %v6097
    %vm6104 = vmor %vm6102, %vm6103
    %v6105 = vsel %vm6104, %v6097, %v6101
    %v6106 = vand.u32 2147483647, %v6061
    %vm6107 = vcmp.eq.f32.partialorder %v6106, 8.507059e+37
    %v6108 = vand.u32 %v6061, 2147483648
    %v6109 = vor.u32 1.1754944e-38, %v6108
    %v6110 = vsel %vm6107, %v6109, %v6105
    %v6111 = vmul.f32 1.0, %v6110
    %v6112 = vrcp.pop %v6062
    %v6113 = vmul.f32 %v6062, %v6112
    %v6114 = vsub.f32 1.0, %v6113
    %v6115 = vmul.f32 %v6112, %v6114
    %v6116 = vadd.f32 %v6112, %v6115
    %vm6117 = vweird.f32 %v6062
    %vm6118 = vweird.f32 %v6112
    %vm6119 = vmor %vm6117, %vm6118
    %v6120 = vsel %vm6119, %v6112, %v6116
    %v6121 = vand.u32 2147483647, %v6062
    %vm6122 = vcmp.eq.f32.partialorder %v6121, 8.507059e+37
    %v6123 = vand.u32 %v6062, 2147483648
    %v6124 = vor.u32 1.1754944e-38, %v6123
    %v6125 = vsel %vm6122, %v6124, %v6120
    %v6126 = vmul.f32 1.0, %v6125
    %v6127 = vrcp.pop %v6063
    %v6128 = vmul.f32 %v6063, %v6127
    %v6129 = vsub.f32 1.0, %v6128
    %v6130 = vmul.f32 %v6127, %v6129
    %v6131 = vadd.f32 %v6127, %v6130
    %vm6132 = vweird.f32 %v6063
    %vm6133 = vweird.f32 %v6127
    %vm6134 = vmor %vm6132, %vm6133
    %v6135 = vsel %vm6134, %v6127, %v6131
    %v6136 = vand.u32 2147483647, %v6063
    %vm6137 = vcmp.eq.f32.partialorder %v6136, 8.507059e+37
    %v6138 = vand.u32 %v6063, 2147483648
    %v6139 = vor.u32 1.1754944e-38, %v6138
    %v6140 = vsel %vm6137, %v6139, %v6135
    %v6141 = vmul.f32 1.0, %v6140
    %v6142 = vrcp.pop %v6064
    %v6143 = vmul.f32 %v6064, %v6142
    %v6144 = vsub.f32 1.0, %v6143
    %v6145 = vmul.f32 %v6142, %v6144
    %v6146 = vadd.f32 %v6142, %v6145
    %vm6147 = vweird.f32 %v6064
    %vm6148 = vweird.f32 %v6142
    %vm6149 = vmor %vm6147, %vm6148
    %v6150 = vsel %vm6149, %v6142, %v6146
    %v6151 = vand.u32 2147483647, %v6064
    %vm6152 = vcmp.eq.f32.partialorder %v6151, 8.507059e+37
    %v6153 = vand.u32 %v6064, 2147483648
    %v6154 = vor.u32 1.1754944e-38, %v6153
    %v6155 = vsel %vm6152, %v6154, %v6150
    %v6156 = vmul.f32 1.0, %v6155
    %v6157 = vrcp.pop %v6065
    %v6158 = vmul.f32 %v6065, %v6157
    %v6159 = vsub.f32 1.0, %v6158
    %v6160 = vmul.f32 %v6157, %v6159
    %v6161 = vadd.f32 %v6157, %v6160
    %vm6162 = vweird.f32 %v6065
    %vm6163 = vweird.f32 %v6157
    %vm6164 = vmor %vm6162, %vm6163
    %v6165 = vsel %vm6164, %v6157, %v6161
    %v6166 = vand.u32 2147483647, %v6065
    %vm6167 = vcmp.eq.f32.partialorder %v6166, 8.507059e+37
    %v6168 = vand.u32 %v6065, 2147483648
    %v6169 = vor.u32 1.1754944e-38, %v6168
    %v6170 = vsel %vm6167, %v6169, %v6165
    %v6171 = vmul.f32 1.0, %v6170
    %v6172 = vrcp.pop %v6066
    %v6173 = vmul.f32 %v6066, %v6172
    %v6174 = vsub.f32 1.0, %v6173
    %v6175 = vmul.f32 %v6172, %v6174
    %v6176 = vadd.f32 %v6172, %v6175
    %vm6177 = vweird.f32 %v6066
    %vm6178 = vweird.f32 %v6172
    %vm6179 = vmor %vm6177, %vm6178
    %v6180 = vsel %vm6179, %v6172, %v6176
    %v6181 = vand.u32 2147483647, %v6066
    %vm6182 = vcmp.eq.f32.partialorder %v6181, 8.507059e+37
    %v6183 = vand.u32 %v6066, 2147483648
    %v6184 = vor.u32 1.1754944e-38, %v6183
    %v6185 = vsel %vm6182, %v6184, %v6180
    %v6186 = vmul.f32 1.0, %v6185
    %v6187 = vmul.f32 %v6004, %v6081
    %v6188 = vmul.f32 %v6007, %v6096
    %v6189 = vmul.f32 %v6010, %v6111
    %v6190 = vmul.f32 %v6013, %v6126
    %v6191 = vmul.f32 %v6016, %v6141
    %v6192 = vmul.f32 %v6019, %v6156
    %v6193 = vmul.f32 %v6022, %v6171
    %v6194 = vmul.f32 %v6025, %v6186
    %s6195 = scalar_lea.vmem %s13, 128
    %v6196 = vld [vmem:[%s6195] sm:$0xff]
    %v6197 = vld [vmem:[%s6195 + $0x8] sm:$0xff]
    %v6198 = vld [vmem:[%s6195 + $0x10] sm:$0xff]
    %v6199 = vld [vmem:[%s6195 + $0x18] sm:$0xff]
    %v6200 = vld [vmem:[%s6195 + $0x20] sm:$0xff]
    %v6201 = vld [vmem:[%s6195 + $0x28] sm:$0xff]
    %v6202 = vld [vmem:[%s6195 + $0x30] sm:$0xff]
    %v6203 = vld [vmem:[%s6195 + $0x38] sm:$0xff]
    %v6204 = vld [vmem:[%s6195 + $0x40] sm:$0xff]
    %v6205 = vld [vmem:[%s6195 + $0x48] sm:$0xff]
    %v6206 = vld [vmem:[%s6195 + $0x50] sm:$0xff]
    %v6207 = vld [vmem:[%s6195 + $0x58] sm:$0xff]
    %v6208 = vld [vmem:[%s6195 + $0x60] sm:$0xff]
    %v6209 = vld [vmem:[%s6195 + $0x68] sm:$0xff]
    %v6210 = vld [vmem:[%s6195 + $0x70] sm:$0xff]
    %v6211 = vld [vmem:[%s6195 + $0x78] sm:$0xff]
    %s6212 = scalar_lea.vmem %s14, 1
    %v6213 = vld [vmem:[%s6212] sm:$0x1]
    %v6215 = vperm.slane %v6213, 0
    %6217 = vmatpush.msra.mxu0 %v6211
    %6218 = vmatpush.msra.mxu0 %v6210
    %6219 = vmatpush.msra.mxu0 %v6209
    %6220 = vmatpush.msra.mxu0 %v6208
    %6221 = vmatpush.msra.mxu0 %v6207
    %6222 = vmatpush.msra.mxu0 %v6206
    %6223 = vmatpush.msra.mxu0 %v6205
    %6224 = vmatpush.msra.mxu0 %v6204
    %6225 = vmatpush.msra.mxu0 %v6203
    %6226 = vmatpush.msra.mxu0 %v6202
    %6227 = vmatpush.msra.mxu0 %v6201
    %6228 = vmatpush.msra.mxu0 %v6200
    %6229 = vmatpush.msra.mxu0 %v6199
    %6230 = vmatpush.msra.mxu0 %v6198
    %6231 = vmatpush.msra.mxu0 %v6197
    %6232 = vmatpush.msra.mxu0 %v6196
    %6233 = vmatmul.f32.gmra.mxu0 %v6187
    %v6234 = vpop.f32.mrf.mxu0
    %v6235 = vadd.f32 %v6215, %v6234
    %6236 = vmatmul.f32.gmra.mxu0 %v6188
    %v6237 = vpop.f32.mrf.mxu0
    %v6238 = vadd.f32 %v6215, %v6237
    %6239 = vmatmul.f32.gmra.mxu0 %v6189
    %v6240 = vpop.f32.mrf.mxu0
    %v6241 = vadd.f32 %v6215, %v6240
    %6242 = vmatmul.f32.gmra.mxu0 %v6190
    %v6243 = vpop.f32.mrf.mxu0
    %v6244 = vadd.f32 %v6215, %v6243
    %6245 = vmatmul.f32.gmra.mxu0 %v6191
    %v6246 = vpop.f32.mrf.mxu0
    %v6247 = vadd.f32 %v6215, %v6246
    %6248 = vmatmul.f32.gmra.mxu0 %v6192
    %v6249 = vpop.f32.mrf.mxu0
    %v6250 = vadd.f32 %v6215, %v6249
    %6251 = vmatmul.f32.gmra.mxu0 %v6193
    %v6252 = vpop.f32.mrf.mxu0
    %v6253 = vadd.f32 %v6215, %v6252
    %6254 = vmatmul.f32.gmra.mxu0 %v6194
    %v6255 = vpop.f32.mrf.mxu0
    %v6256 = vadd.f32 %v6215, %v6255
    %6257 = vdwg.mxu0
    %v6258 = vadd.f32 %v5742, %v6235
    %v6259 = vadd.f32 %v5743, %v6238
    %v6260 = vadd.f32 %v5744, %v6241
    %v6261 = vadd.f32 %v5745, %v6244
    %v6262 = vadd.f32 %v5746, %v6247
    %v6263 = vadd.f32 %v5747, %v6250
    %v6264 = vadd.f32 %v5748, %v6253
    %v6265 = vadd.f32 %v5749, %v6256
    %v6266 = vld [vmem:[%s15] sm:$0x1]
    %v6267 = vld [vmem:[%s16] sm:$0x1]
    %v6268 = vsel %vm85, %v6258, 0.0
    %6269 = vadd.xlane.f32.xlu0 %v6268
    %v6270 = vpop.xlane.xlu0 %6269
    %v6271 = vsel %vm85, %v6259, 0.0
    %6272 = vadd.xlane.f32.xlu0 %v6271
    %v6273 = vpop.xlane.xlu0 %6272
    %v6274 = vsel %vm85, %v6260, 0.0
    %6275 = vadd.xlane.f32.xlu0 %v6274
    %v6276 = vpop.xlane.xlu0 %6275
    %v6277 = vsel %vm85, %v6261, 0.0
    %6278 = vadd.xlane.f32.xlu0 %v6277
    %v6279 = vpop.xlane.xlu0 %6278
    %v6280 = vsel %vm85, %v6262, 0.0
    %6281 = vadd.xlane.f32.xlu0 %v6280
    %v6282 = vpop.xlane.xlu0 %6281
    %v6283 = vsel %vm85, %v6263, 0.0
    %6284 = vadd.xlane.f32.xlu0 %v6283
    %v6285 = vpop.xlane.xlu0 %6284
    %v6286 = vsel %vm85, %v6264, 0.0
    %6287 = vadd.xlane.f32.xlu0 %v6286
    %v6288 = vpop.xlane.xlu0 %6287
    %v6289 = vsel %vm85, %v6265, 0.0
    %6290 = vadd.xlane.f32.xlu0 %v6289
    %v6291 = vpop.xlane.xlu0 %6290
    %v6292 = vmul.f32 %v6270, %v116
    %v6293 = vmul.f32 %v6273, %v116
    %v6294 = vmul.f32 %v6276, %v116
    %v6295 = vmul.f32 %v6279, %v116
    %v6296 = vmul.f32 %v6282, %v116
    %v6297 = vmul.f32 %v6285, %v116
    %v6298 = vmul.f32 %v6288, %v116
    %v6299 = vmul.f32 %v6291, %v116
    %v6300 = vsub.f32 %v6258, %v6292
    %v6301 = vsub.f32 %v6259, %v6293
    %v6302 = vsub.f32 %v6260, %v6294
    %v6303 = vsub.f32 %v6261, %v6295
    %v6304 = vsub.f32 %v6262, %v6296
    %v6305 = vsub.f32 %v6263, %v6297
    %v6306 = vsub.f32 %v6264, %v6298
    %v6307 = vsub.f32 %v6265, %v6299
    %v6308 = vmul.f32 %v6300, %v6300
    %v6309 = vmul.f32 %v6301, %v6301
    %v6310 = vmul.f32 %v6302, %v6302
    %v6311 = vmul.f32 %v6303, %v6303
    %v6312 = vmul.f32 %v6304, %v6304
    %v6313 = vmul.f32 %v6305, %v6305
    %v6314 = vmul.f32 %v6306, %v6306
    %v6315 = vmul.f32 %v6307, %v6307
    %v6316 = vsel %vm85, %v6308, 0.0
    %6317 = vadd.xlane.f32.xlu0 %v6316
    %v6318 = vpop.xlane.xlu0 %6317
    %v6319 = vsel %vm85, %v6309, 0.0
    %6320 = vadd.xlane.f32.xlu0 %v6319
    %v6321 = vpop.xlane.xlu0 %6320
    %v6322 = vsel %vm85, %v6310, 0.0
    %6323 = vadd.xlane.f32.xlu0 %v6322
    %v6324 = vpop.xlane.xlu0 %6323
    %v6325 = vsel %vm85, %v6311, 0.0
    %6326 = vadd.xlane.f32.xlu0 %v6325
    %v6327 = vpop.xlane.xlu0 %6326
    %v6328 = vsel %vm85, %v6312, 0.0
    %6329 = vadd.xlane.f32.xlu0 %v6328
    %v6330 = vpop.xlane.xlu0 %6329
    %v6331 = vsel %vm85, %v6313, 0.0
    %6332 = vadd.xlane.f32.xlu0 %v6331
    %v6333 = vpop.xlane.xlu0 %6332
    %v6334 = vsel %vm85, %v6314, 0.0
    %6335 = vadd.xlane.f32.xlu0 %v6334
    %v6336 = vpop.xlane.xlu0 %6335
    %v6337 = vsel %vm85, %v6315, 0.0
    %6338 = vadd.xlane.f32.xlu0 %v6337
    %v6339 = vpop.xlane.xlu0 %6338
    %v6340 = vmul.f32 %v6318, %v116
    %v6341 = vmul.f32 %v6321, %v116
    %v6342 = vmul.f32 %v6324, %v116
    %v6343 = vmul.f32 %v6327, %v116
    %v6344 = vmul.f32 %v6330, %v116
    %v6345 = vmul.f32 %v6333, %v116
    %v6346 = vmul.f32 %v6336, %v116
    %v6347 = vmul.f32 %v6339, %v116
    %v6348 = vadd.f32 %v6340, 1e-05
    %v6349 = vadd.f32 %v6341, 1e-05
    %v6350 = vadd.f32 %v6342, 1e-05
    %v6351 = vadd.f32 %v6343, 1e-05
    %v6352 = vadd.f32 %v6344, 1e-05
    %v6353 = vadd.f32 %v6345, 1e-05
    %v6354 = vadd.f32 %v6346, 1e-05
    %v6355 = vadd.f32 %v6347, 1e-05
    %v6356 = vrsqrt.pop %v6348
    %v6357 = vmul.f32 %v6356, %v6348
    %v6358 = vmul.f32 %v6357, %v6356
    %v6359 = vmul.f32 0.5, %v6358
    %v6360 = vsub.f32 1.5, %v6359
    %v6361 = vmul.f32 %v6356, %v6360
    %vm6362 = vweird.f32 %v6348
    %vm6363 = vweird.f32 %v6356
    %vm6364 = vmor %vm6362, %vm6363
    %v6365 = vsel %vm6364, %v6356, %v6361
    %v6366 = vrsqrt.pop %v6349
    %v6367 = vmul.f32 %v6366, %v6349
    %v6368 = vmul.f32 %v6367, %v6366
    %v6369 = vmul.f32 0.5, %v6368
    %v6370 = vsub.f32 1.5, %v6369
    %v6371 = vmul.f32 %v6366, %v6370
    %vm6372 = vweird.f32 %v6349
    %vm6373 = vweird.f32 %v6366
    %vm6374 = vmor %vm6372, %vm6373
    %v6375 = vsel %vm6374, %v6366, %v6371
    %v6376 = vrsqrt.pop %v6350
    %v6377 = vmul.f32 %v6376, %v6350
    %v6378 = vmul.f32 %v6377, %v6376
    %v6379 = vmul.f32 0.5, %v6378
    %v6380 = vsub.f32 1.5, %v6379
    %v6381 = vmul.f32 %v6376, %v6380
    %vm6382 = vweird.f32 %v6350
    %vm6383 = vweird.f32 %v6376
    %vm6384 = vmor %vm6382, %vm6383
    %v6385 = vsel %vm6384, %v6376, %v6381
    %v6386 = vrsqrt.pop %v6351
    %v6387 = vmul.f32 %v6386, %v6351
    %v6388 = vmul.f32 %v6387, %v6386
    %v6389 = vmul.f32 0.5, %v6388
    %v6390 = vsub.f32 1.5, %v6389
    %v6391 = vmul.f32 %v6386, %v6390
    %vm6392 = vweird.f32 %v6351
    %vm6393 = vweird.f32 %v6386
    %vm6394 = vmor %vm6392, %vm6393
    %v6395 = vsel %vm6394, %v6386, %v6391
    %v6396 = vrsqrt.pop %v6352
    %v6397 = vmul.f32 %v6396, %v6352
    %v6398 = vmul.f32 %v6397, %v6396
    %v6399 = vmul.f32 0.5, %v6398
    %v6400 = vsub.f32 1.5, %v6399
    %v6401 = vmul.f32 %v6396, %v6400
    %vm6402 = vweird.f32 %v6352
    %vm6403 = vweird.f32 %v6396
    %vm6404 = vmor %vm6402, %vm6403
    %v6405 = vsel %vm6404, %v6396, %v6401
    %v6406 = vrsqrt.pop %v6353
    %v6407 = vmul.f32 %v6406, %v6353
    %v6408 = vmul.f32 %v6407, %v6406
    %v6409 = vmul.f32 0.5, %v6408
    %v6410 = vsub.f32 1.5, %v6409
    %v6411 = vmul.f32 %v6406, %v6410
    %vm6412 = vweird.f32 %v6353
    %vm6413 = vweird.f32 %v6406
    %vm6414 = vmor %vm6412, %vm6413
    %v6415 = vsel %vm6414, %v6406, %v6411
    %v6416 = vrsqrt.pop %v6354
    %v6417 = vmul.f32 %v6416, %v6354
    %v6418 = vmul.f32 %v6417, %v6416
    %v6419 = vmul.f32 0.5, %v6418
    %v6420 = vsub.f32 1.5, %v6419
    %v6421 = vmul.f32 %v6416, %v6420
    %vm6422 = vweird.f32 %v6354
    %vm6423 = vweird.f32 %v6416
    %vm6424 = vmor %vm6422, %vm6423
    %v6425 = vsel %vm6424, %v6416, %v6421
    %v6426 = vrsqrt.pop %v6355
    %v6427 = vmul.f32 %v6426, %v6355
    %v6428 = vmul.f32 %v6427, %v6426
    %v6429 = vmul.f32 0.5, %v6428
    %v6430 = vsub.f32 1.5, %v6429
    %v6431 = vmul.f32 %v6426, %v6430
    %vm6432 = vweird.f32 %v6355
    %vm6433 = vweird.f32 %v6426
    %vm6434 = vmor %vm6432, %vm6433
    %v6435 = vsel %vm6434, %v6426, %v6431
    %v6436 = vmul.f32 %v6300, %v6365
    %v6437 = vmul.f32 %v6301, %v6375
    %v6438 = vmul.f32 %v6302, %v6385
    %v6439 = vmul.f32 %v6303, %v6395
    %v6440 = vmul.f32 %v6304, %v6405
    %v6441 = vmul.f32 %v6305, %v6415
    %v6442 = vmul.f32 %v6306, %v6425
    %v6443 = vmul.f32 %v6307, %v6435
    %v6445 = vperm.slane %v6266, 0
    %v6447 = vmul.f32 %v6436, %v6445
    %v6448 = vmul.f32 %v6437, %v6445
    %v6449 = vmul.f32 %v6438, %v6445
    %v6450 = vmul.f32 %v6439, %v6445
    %v6451 = vmul.f32 %v6440, %v6445
    %v6452 = vmul.f32 %v6441, %v6445
    %v6453 = vmul.f32 %v6442, %v6445
    %v6454 = vmul.f32 %v6443, %v6445
    %v6456 = vperm.slane %v6267, 0
    %v6458 = vadd.f32 %v6447, %v6456
    %v6459 = vadd.f32 %v6448, %v6456
    %v6460 = vadd.f32 %v6449, %v6456
    %v6461 = vadd.f32 %v6450, %v6456
    %v6462 = vadd.f32 %v6451, %v6456
    %v6463 = vadd.f32 %v6452, %v6456
    %v6464 = vadd.f32 %v6453, %v6456
    %v6465 = vadd.f32 %v6454, %v6456
    %v6466 = vld [vmem:[%s2] sm:$0x1]
    %v6467 = vld [vmem:[%s2 + $0x1] sm:$0x1]
    %v6468 = vld [vmem:[%s2 + $0x2] sm:$0x1]
    %v6469 = vld [vmem:[%s2 + $0x3] sm:$0x1]
    %v6470 = vld [vmem:[%s2 + $0x4] sm:$0x1]
    %v6471 = vld [vmem:[%s2 + $0x5] sm:$0x1]
    %v6472 = vld [vmem:[%s2 + $0x6] sm:$0x1]
    %v6473 = vld [vmem:[%s2 + $0x7] sm:$0x1]
    %v6474 = vperm.slane %v6466, 0
    %v6475 = vperm.slane %v6467, 0
    %v6476 = vperm.slane %v6468, 0
    %v6477 = vperm.slane %v6469, 0
    %v6478 = vperm.slane %v6470, 0
    %v6479 = vperm.slane %v6471, 0
    %v6480 = vperm.slane %v6472, 0
    %v6481 = vperm.slane %v6473, 0
    %vm6482 = vcmp.eq.s32.totalorder %v78, %v6474
    %vm6483 = vcmp.eq.s32.totalorder %v78, %v6475
    %vm6484 = vcmp.eq.s32.totalorder %v78, %v6476
    %vm6485 = vcmp.eq.s32.totalorder %v78, %v6477
    %vm6486 = vcmp.eq.s32.totalorder %v78, %v6478
    %vm6487 = vcmp.eq.s32.totalorder %v78, %v6479
    %vm6488 = vcmp.eq.s32.totalorder %v78, %v6480
    %vm6489 = vcmp.eq.s32.totalorder %v78, %v6481
    %v6490 = vsel %vm6482, 1.0, 0.0
    %v6491 = vsel %vm6483, 1.0, 0.0
    %v6492 = vsel %vm6484, 1.0, 0.0
    %v6493 = vsel %vm6485, 1.0, 0.0
    %v6494 = vsel %vm6486, 1.0, 0.0
    %v6495 = vsel %vm6487, 1.0, 0.0
    %v6496 = vsel %vm6488, 1.0, 0.0
    %v6497 = vsel %vm6489, 1.0, 0.0
    %6499 = vset.pattern.permute.xlu0 0
    %6500 = vperm.xlu0 %6499, %v6490
    %v6501 = vpop.permute.xlu0 %6500
    %6504 = vset.pattern.permute.xlu0 0
    %6505 = vperm.xlu0 %6504, %v6491
    %v6506 = vpop.permute.xlu0 %6505
    %6509 = vset.pattern.permute.xlu0 0
    %6510 = vperm.xlu0 %6509, %v6492
    %v6511 = vpop.permute.xlu0 %6510
    %6514 = vset.pattern.permute.xlu0 0
    %6515 = vperm.xlu0 %6514, %v6493
    %v6516 = vpop.permute.xlu0 %6515
    %6519 = vset.pattern.permute.xlu0 0
    %6520 = vperm.xlu0 %6519, %v6494
    %v6521 = vpop.permute.xlu0 %6520
    %6524 = vset.pattern.permute.xlu0 0
    %6525 = vperm.xlu0 %6524, %v6495
    %v6526 = vpop.permute.xlu0 %6525
    %6529 = vset.pattern.permute.xlu0 0
    %6530 = vperm.xlu0 %6529, %v6496
    %v6531 = vpop.permute.xlu0 %6530
    %6534 = vset.pattern.permute.xlu0 0
    %6535 = vperm.xlu0 %6534, %v6497
    %v6536 = vpop.permute.xlu0 %6535
    %v6538 = vmul.f32 %v6458, %v6501
    %v6539 = vmul.f32 %v6459, %v6506
    %v6540 = vmul.f32 %v6460, %v6511
    %v6541 = vmul.f32 %v6461, %v6516
    %v6542 = vmul.f32 %v6462, %v6521
    %v6543 = vmul.f32 %v6463, %v6526
    %v6544 = vmul.f32 %v6464, %v6531
    %v6545 = vmul.f32 %v6465, %v6536
    %v6546 = vsel %vm85, %v6538, 0.0
    %v6547 = vrot.slane %v6546, 4
    %v6548 = vadd.f32 %v6546, %v6547
    %v6549 = vrot.slane %v6548, 2
    %v6550 = vadd.f32 %v6548, %v6549
    %v6551 = vrot.slane %v6550, 1
    %v6552 = vadd.f32 %v6550, %v6551
    %v6553 = vsel %vm85, %v6539, 0.0
    %v6554 = vrot.slane %v6553, 4
    %v6555 = vadd.f32 %v6553, %v6554
    %v6556 = vrot.slane %v6555, 2
    %v6557 = vadd.f32 %v6555, %v6556
    %v6558 = vrot.slane %v6557, 1
    %v6559 = vadd.f32 %v6557, %v6558
    %v6560 = vsel %vm85, %v6540, 0.0
    %v6561 = vrot.slane %v6560, 4
    %v6562 = vadd.f32 %v6560, %v6561
    %v6563 = vrot.slane %v6562, 2
    %v6564 = vadd.f32 %v6562, %v6563
    %v6565 = vrot.slane %v6564, 1
    %v6566 = vadd.f32 %v6564, %v6565
    %v6567 = vsel %vm85, %v6541, 0.0
    %v6568 = vrot.slane %v6567, 4
    %v6569 = vadd.f32 %v6567, %v6568
    %v6570 = vrot.slane %v6569, 2
    %v6571 = vadd.f32 %v6569, %v6570
    %v6572 = vrot.slane %v6571, 1
    %v6573 = vadd.f32 %v6571, %v6572
    %v6574 = vsel %vm85, %v6542, 0.0
    %v6575 = vrot.slane %v6574, 4
    %v6576 = vadd.f32 %v6574, %v6575
    %v6577 = vrot.slane %v6576, 2
    %v6578 = vadd.f32 %v6576, %v6577
    %v6579 = vrot.slane %v6578, 1
    %v6580 = vadd.f32 %v6578, %v6579
    %v6581 = vsel %vm85, %v6543, 0.0
    %v6582 = vrot.slane %v6581, 4
    %v6583 = vadd.f32 %v6581, %v6582
    %v6584 = vrot.slane %v6583, 2
    %v6585 = vadd.f32 %v6583, %v6584
    %v6586 = vrot.slane %v6585, 1
    %v6587 = vadd.f32 %v6585, %v6586
    %v6588 = vsel %vm85, %v6544, 0.0
    %v6589 = vrot.slane %v6588, 4
    %v6590 = vadd.f32 %v6588, %v6589
    %v6591 = vrot.slane %v6590, 2
    %v6592 = vadd.f32 %v6590, %v6591
    %v6593 = vrot.slane %v6592, 1
    %v6594 = vadd.f32 %v6592, %v6593
    %v6595 = vsel %vm85, %v6545, 0.0
    %v6596 = vrot.slane %v6595, 4
    %v6597 = vadd.f32 %v6595, %v6596
    %v6598 = vrot.slane %v6597, 2
    %v6599 = vadd.f32 %v6597, %v6598
    %v6600 = vrot.slane %v6599, 1
    %v6601 = vadd.f32 %v6599, %v6600
    %v6602 = vld [vmem:[%s17] sm:$0xff]
    %v6603 = vld [vmem:[%s17 + $0x8] sm:$0xff]
    %v6604 = vld [vmem:[%s17 + $0x10] sm:$0xff]
    %v6605 = vld [vmem:[%s17 + $0x18] sm:$0xff]
    %vm6614 = vcmask 1041409
    %v6615 = vsel %vm6614, %v6559, %v6552
    %vm6616 = vcmask 1042434
    %v6617 = vsel %vm6616, %v6566, %v6615
    %vm6618 = vcmask 1043459
    %v6619 = vsel %vm6618, %v6573, %v6617
    %vm6620 = vcmask 1044484
    %v6621 = vsel %vm6620, %v6580, %v6619
    %vm6622 = vcmask 1045509
    %v6623 = vsel %vm6622, %v6587, %v6621
    %vm6624 = vcmask 1046534
    %v6625 = vsel %vm6624, %v6594, %v6623
    %vm6626 = vcmask 1047559
    %v6627 = vsel %vm6626, %v6601, %v6625
    %v6628 = vsel %vm85, %v6627, 0
    %6630 = vmatpush.msra.mxu0 0.0
    %6631 = vmatpush.msra.mxu0 0.0
    %6632 = vmatpush.msra.mxu0 0.0
    %6633 = vmatpush.msra.mxu0 0.0
    %6634 = vmatpush.msra.mxu0 0.0
    %6635 = vmatpush.msra.mxu0 0.0
    %6636 = vmatpush.msra.mxu0 0.0
    %6637 = vmatpush.msra.mxu0 0.0
    %6638 = vmatpush.msra.mxu0 0.0
    %6639 = vmatpush.msra.mxu0 0.0
    %6640 = vmatpush.msra.mxu0 0.0
    %6641 = vmatpush.msra.mxu0 0.0
    %6642 = vmatpush.msra.mxu0 %v6605
    %6643 = vmatpush.msra.mxu0 %v6604
    %6644 = vmatpush.msra.mxu0 %v6603
    %6645 = vmatpush.msra.mxu0 %v6602
    %6646 = vmatmul.f32.gmra.mxu0 %v6628
    %v6647 = vpop.f32.mrf.mxu0
    %v6648 = vadd.f32 0.0, %v6647
    %6649 = vdwg.mxu0
    %6650 = vst.msk [vmem:[#allocation2] sm:$0xff] %vm85, %v6648
    // Predicated region
    $region74: #{text_encoder.1} parent=1 // pred_check
      _
    $region75: #{text_encoder.1} parent=1 // pred_check_branch
      %6652 = sbr.rel (0) target = $region77
    $region76: #{text_encoder.1} parent=1 // pred_region
      %6654 = vsyncadd [#allocation3], 0
      %s6656 = sshll.u32 [#allocation2], 4
      %s6657 = int_to_ptr.vmem [resolvable:$true] %s6656
      %s6658 = sshll.u32 %s18, 4
      %s6659 = int_to_ptr.hbm [resolvable:$true] %s6658
      %6661 = dma.vmem_to_hbm [thread:$0]  %s6657, 128, %s6659, [#allocation3]
    $region77: #{text_encoder.1} parent=1 // pred_fallthru
      _
    // Predicated region
    $region78: #{text_encoder.1} parent=1 // pred_check
      _
    $region79: #{text_encoder.1} parent=1 // pred_check_branch
      %6663 = sbr.rel (0) target = $region81
    $region80: #{text_encoder.1} parent=1 // pred_region
      %6665 = dma.done [#allocation3], 128
    $region81: #{text_encoder.1} parent=1 // pred_fallthru
      _
    %6666 = vsyncpa [#allocation3], 1

</llo_original>
